<compile_context>
chip_gen: v6e
topology: v6e:2x2x1
jax: 0.10.0
libtpu: 0.0.40
codegen_flags: <defaults>
</compile_context>

<pallas_src>
import math

import jax
import jax.numpy as jnp
from jax import lax
from jax.experimental import pallas as pl
from jax.experimental.pallas import tpu as pltpu

# ---------------- configuration (small shapes consistent with the module) ----------------
B = 2
C, H, W, PATCH = 3, 16, 16, 4
PATCH_DIM = C * PATCH * PATCH                  # 48 (im2col row width)
NUM_PATCHES = (H // PATCH) * (W // PATCH)      # 16
L_V = NUM_PATCHES + 1                          # 17 CLIP vision tokens (cls + patches)
L_VP = 24                                      # vision rows padded to a sublane multiple
L_T = 8                                        # caption length
D_V = 64                                       # vision hidden size   (stands in for 768)
VIS_HEADS = 2
VIS_HEAD_DIM = D_V // VIS_HEADS                # 32
VIS_LAYERS = 2
TXT_DIM = 64                                   # CLIP text-embedding dim (stands in for 512)
D_MODEL = 128                                  # decoder d_model      (stands in for 512)
N_HEADS = 4
DEC_HEAD_DIM = D_MODEL // N_HEADS              # 32
N_LAYERS = 2
VOCAB = 256
MAX_LEN = 64
LN_EPS = 1e-5
NEG = -1e9                                     # additive "blocked" value (== -inf after exp)

HEAD_SLOT = 64                                 # per-head lane slot (head_dim=32 + zero pad)
G = 2                                          # batch items folded into sublanes per step
RV = G * L_VP                                  # 48 folded vision rows
RD = G * (L_VP + L_T)                          # 64 folded decoder rows [all img | all txt]
MXU_DTYPE = jnp.bfloat16                       # set jnp.float32 for f32 validation path

# kernel weight-argument order (must match _captioner_kernel's signature exactly)
W_ORDER = (
    "patch_w", "vis_add", "vmask", "pre_g", "pre_b",
    "vln1_g", "vln1_b", "vwqkv", "vbqkv", "vwo", "vbo",
    "vln2_g", "vln2_b", "vfc1_w", "vfc1_b", "vfc2_w", "vfc2_b",
    "img_proj", "txt_tab", "dimg_add", "dtxt_add", "dmask_base",
    "dln1_g", "dln1_b", "dwqkv", "dwo",
    "dln2_g", "dln2_b", "dfc1_w", "dfc1_b", "dfc2_w", "dfc2_b",
    "lnf_g", "lnf_b", "lm_w", "lm_b",
)


# ---------------- in-kernel helpers (traced inside the fused kernel) ----------------
def _mx(x):
    return x.astype(MXU_DTYPE)


def _ln(x, g, b, eps=LN_EPS):
    mean = jnp.mean(x, axis=-1, keepdims=True)
    var = jnp.mean(jnp.square(x - mean), axis=-1, keepdims=True)
    return (x - mean) * lax.rsqrt(var + eps) * g + b


def _attention(qkv, mask, wo, n_heads, head_dim):
    """Multi-head self-attention + ONE merged output projection, heads kept lane-resident.

    qkv : (L, 3*n_heads*HEAD_SLOT) f32, packed [Q heads | K heads | V heads]; each head owns
          a HEAD_SLOT-lane block whose trailing (HEAD_SLOT-head_dim) lanes are zero.
    mask: (L, L) additive f32.  wo: (n_heads*HEAD_SLOT, D) MXU-dtype, zero rows at pad lanes.
    Scores/softmax stay in f32; MXU operand casts happen at the dot inputs.
    """
    slot = HEAD_SLOT
    hs = n_heads * slot
    scale = 1.0 / math.sqrt(head_dim)
    dn = (((1,), (1,)), ((), ()))          # q @ k^T without materializing the transpose
    ctx_heads = []
    for h in range(n_heads):
        lo = h * slot
        qh = _mx(qkv[:, lo:lo + slot])
        kh = _mx(qkv[:, hs + lo:hs + lo + slot])
        vh = _mx(qkv[:, 2 * hs + lo:2 * hs + lo + slot])
        s = lax.dot_general(qh, kh, dn, preferred_element_type=jnp.float32) * scale + mask
        s = s - jnp.max(s, axis=-1, keepdims=True)
        p = jnp.exp(s)
        # approx=True uses the EUP vrcp (free bundle slot); ~1e-3-level deviation vs exact.
        p = p * pl.reciprocal(jnp.sum(p, axis=-1, keepdims=True), approx=True)
        ctx_heads.append(jnp.dot(_mx(p), vh, preferred_element_type=jnp.float32))
    ctx = jnp.concatenate(ctx_heads, axis=-1)      # (L, hs); pad lanes are exactly zero
    return jnp.dot(_mx(ctx), wo, preferred_element_type=jnp.float32)


# ---------------- single fused kernel: whole forward pass ----------------
# TODO(synk): stands in for the frozen pretrained CLIP ViT (openai/clip-vit-base-patch32);
# same architecture/axis conventions but synthetic deterministic weights and reduced
# width/depth.  The HF from_pretrained weight/tokenizer load has no in-kernel equivalent.
def _captioner_kernel(
        patches_ref, ids_ref, key_add_ref,
        patch_w_ref, vis_add_ref, vmask_ref, pre_g_ref, pre_b_ref,
        vln1_g_ref, vln1_b_ref, vwqkv_ref, vbqkv_ref, vwo_ref, vbo_ref,
        vln2_g_ref, vln2_b_ref, vfc1_w_ref, vfc1_b_ref, vfc2_w_ref, vfc2_b_ref,
        img_proj_ref, txt_tab_ref, dimg_add_ref, dtxt_add_ref, dmask_base_ref,
        dln1_g_ref, dln1_b_ref, dwqkv_ref, dwo_ref,
        dln2_g_ref, dln2_b_ref, dfc1_w_ref, dfc1_b_ref, dfc2_w_ref, dfc2_b_ref,
        lnf_g_ref, lnf_b_ref, lm_w_ref, lm_b_ref,
        hdec_ref, logits_ref):
    # ------------- vision encoder (patch conv == matmul, pre-LN, CLIP layers) -------------
    # Row 0 of each batch item's patch block is zero, so vis_add injects class_emb + pos[0]
    # there; rows 1..16 get pos[1:17]; pad rows stay zero and are masked as keys.
    x = jnp.dot(_mx(patches_ref[0]), patch_w_ref[...],
                preferred_element_type=jnp.float32) + vis_add_ref[...]
    x = _ln(x, pre_g_ref[...], pre_b_ref[...])
    vmask = vmask_ref[...]                          # block-diagonal (RV, RV) baked constant

    # TODO(synk): at real depth/width, replace this static unroll with a layer grid axis /
    # emit_pipeline streaming bf16 weights (Buffered(2)) instead of holding them resident.
    for l in range(VIS_LAYERS):                     # pre-LN CLIP layer, quick_gelu MLP
        h = _ln(x, vln1_g_ref[l], vln1_b_ref[l])
        qkv = jnp.dot(_mx(h), vwqkv_ref[l], preferred_element_type=jnp.float32) + vbqkv_ref[l]
        x = x + _attention(qkv, vmask, vwo_ref[l], VIS_HEADS, VIS_HEAD_DIM) + vbo_ref[l]
        h = _ln(x, vln2_g_ref[l], vln2_b_ref[l])
        h = jnp.dot(_mx(h), vfc1_w_ref[l], preferred_element_type=jnp.float32) + vfc1_b_ref[l]
        h = h * jax.nn.sigmoid(1.702 * h)           # CLIP quick_gelu (f32 on VPU/EUP)
        x = x + jnp.dot(_mx(h), vfc2_w_ref[l], preferred_element_type=jnp.float32) + vfc2_b_ref[l]

    # ------------- decoder input assembly (vision features never leave VMEM) -------------
    x_img = jnp.dot(_mx(x), img_proj_ref[...],
                    preferred_element_type=jnp.float32) + dimg_add_ref[...]     # (RV, 128)
    onehot = jnp.where(
        ids_ref[0] == lax.broadcasted_iota(jnp.int32, (G * L_T, VOCAB), 1), 1.0, 0.0)
    x_txt = jnp.dot(_mx(onehot), txt_tab_ref[...],
                    preferred_element_type=jnp.float32) + dtxt_add_ref[...]     # (G*L_T, 128)
    x = jnp.concatenate([x_img, x_txt], axis=0)     # (RD, 128): [img rows all b | txt rows]
    dmask = dmask_base_ref[...] + key_add_ref[0]    # block-diag base + per-batch pad columns

    for l in range(N_LAYERS):                       # CausalSelfAttnBlock (bias-free q/k/v/out)
        h = _ln(x, dln1_g_ref[l], dln1_b_ref[l])
        qkv = jnp.dot(_mx(h), dwqkv_ref[l], preferred_element_type=jnp.float32)
        x = x + _attention(qkv, dmask, dwo_ref[l], N_HEADS, DEC_HEAD_DIM)
        h = _ln(x, dln2_g_ref[l], dln2_b_ref[l])
        h = jnp.dot(_mx(h), dfc1_w_ref[l], preferred_element_type=jnp.float32) + dfc1_b_ref[l]
        h = 0.5 * h * (1.0 + lax.erf(h * (1.0 / math.sqrt(2.0))))   # exact nn.GELU()
        x = x + jnp.dot(_mx(h), dfc2_w_ref[l], preferred_element_type=jnp.float32) + dfc2_b_ref[l]

    xf = _ln(x, lnf_g_ref[...], lnf_b_ref[...])
    hdec_ref[0] = xf
    txt = xf[RV:, :]                                # text rows: one contiguous aligned block
    # TODO(synk): at a real vocab size, tile lm_head over the vocab dim instead of resident lm_w.
    logits_ref[0] = jnp.dot(_mx(txt), lm_w_ref[...],
                            preferred_element_type=jnp.float32) + lm_b_ref[...]


# ---------------- pallas_call wrapper ----------------
def _const_spec(arr):
    nd = arr.ndim
    return pl.BlockSpec(arr.shape, lambda g, _nd=nd: (0,) * _nd)


def multimodal_captioner(pixel_values, caption_input_ids, text_mask, packed):
    Bsz = pixel_values.shape[0]
    assert Bsz % G == 0, "batch must be a multiple of the fold factor G"
    ng = Bsz // G

    # im2col patchify: Conv2d(k=PATCH, s=PATCH) == matmul on patchified rows (input prep).
    Ph, Pw = H // PATCH, W // PATCH
    patches = pixel_values.reshape(Bsz, C, Ph, PATCH, Pw, PATCH)
    patches = patches.transpose(0, 2, 4, 1, 3, 5).reshape(Bsz, Ph * Pw, PATCH_DIM)
    patches = jnp.pad(patches, ((0, 0), (1, L_VP - L_V), (0, 0)))   # CLS slot + tail pad rows
    patches = patches.reshape(ng, RV, PATCH_DIM)

    ids = caption_input_ids.astype(jnp.int32).reshape(ng, G * L_T, 1)

    # Only the per-batch additive key padding is built here (tiny); the (L,L) mask bases are
    # baked constants inside `packed`.
    pad_add = (1.0 - text_mask.astype(jnp.float32)) * -10000.0                 # (B, L_T)
    key_add = jnp.concatenate(
        [jnp.zeros((ng, RV), jnp.float32), pad_add.reshape(ng, G * L_T)],
        axis=1)[:, None, :]                                                     # (ng, 1, RD)

    weights = [packed[k] for k in W_ORDER]
    in_specs = [pl.BlockSpec((1, RV, PATCH_DIM), lambda g: (g, 0, 0)),
                pl.BlockSpec((1, G * L_T, 1), lambda g: (g, 0, 0)),
                pl.BlockSpec((1, 1, RD), lambda g: (g, 0, 0))]
    in_specs += [_const_spec(w) for w in weights]

    hdec_pad, logits = pl.pallas_call(
        _captioner_kernel,
        grid=(ng,),
        out_shape=(jax.ShapeDtypeStruct((ng, RD, D_MODEL), jnp.float32),
                   jax.ShapeDtypeStruct((ng, G * L_T, VOCAB), jnp.float32)),
        in_specs=in_specs,
        out_specs=(pl.BlockSpec((1, RD, D_MODEL), lambda g: (g, 0, 0)),
                   pl.BlockSpec((1, G * L_T, VOCAB), lambda g: (g, 0, 0))),
        compiler_params=pltpu.CompilerParams(dimension_semantics=("parallel",)),
    )(patches, ids, key_add, *weights)

    h_img = hdec_pad[:, :RV, :].reshape(Bsz, L_VP, D_MODEL)[:, :L_V, :]
    h_txt = hdec_pad[:, RV:, :].reshape(Bsz, L_T, D_MODEL)
    h_dec = jnp.concatenate([h_img, h_txt], axis=1)                  # (B, L_V + L_T, D)
    return logits.reshape(Bsz, L_T, VOCAB), h_dec


# ---------------- deterministic parameter init (same structure as the PyTorch module) -----
def init_params(key):
    keys = iter(jax.random.split(key, 256))

    def nrm(*shape):
        return jax.random.normal(next(keys), shape, jnp.float32) * 0.02

    zeros = lambda *s: jnp.zeros(s, jnp.float32)
    ones = lambda *s: jnp.ones(s, jnp.float32)

    def vis_layer():
        return dict(
            ln1_g=ones(D_V), ln1_b=zeros(D_V),
            wq=nrm(D_V, D_V), bq=zeros(D_V),
            wk=nrm(D_V, D_V), bk=zeros(D_V),
            wv=nrm(D_V, D_V), bv=zeros(D_V),
            wo=nrm(D_V, D_V), bo=zeros(D_V),
            ln2_g=ones(D_V), ln2_b=zeros(D_V),
            fc1_w=nrm(D_V, 4 * D_V), fc1_b=zeros(4 * D_V),
            fc2_w=nrm(4 * D_V, D_V), fc2_b=zeros(D_V),
        )

    def dec_block():
        return dict(
            ln1_g=ones(D_MODEL), ln1_b=zeros(D_MODEL),
            wq=nrm(D_MODEL, D_MODEL), wk=nrm(D_MODEL, D_MODEL),
            wv=nrm(D_MODEL, D_MODEL), wo=nrm(D_MODEL, D_MODEL),
            ln2_g=ones(D_MODEL), ln2_b=zeros(D_MODEL),
            fc1_w=nrm(D_MODEL, 4 * D_MODEL), fc1_b=zeros(4 * D_MODEL),
            fc2_w=nrm(4 * D_MODEL, D_MODEL), fc2_b=zeros(D_MODEL),
        )

    return dict(
        vision=dict(
            patch_w=nrm(PATCH_DIM, D_V),
            class_emb=nrm(D_V),
            vis_pos=nrm(L_V, D_V),
            pre_ln_g=ones(D_V), pre_ln_b=zeros(D_V),
            layers=[vis_layer() for _ in range(VIS_LAYERS)],
        ),
        tok_emb=nrm(VOCAB, TXT_DIM),
        decoder=dict(
            type_emb=nrm(2, D_MODEL),
            pos_emb=nrm(MAX_LEN, D_MODEL),
            img_proj=nrm(D_V, D_MODEL),
            txt_proj=nrm(TXT_DIM, D_MODEL),
            blocks=[dec_block() for _ in range(N_LAYERS)],
            ln_f_g=ones(D_MODEL), ln_f_b=zeros(D_MODEL),
        ),
        lm_head_w=nrm(D_MODEL, VOCAB),
        lm_head_b=zeros(VOCAB),
    )


# ---------------- one-time weight repack for the fused kernel ----------------
def _stack(layers, name):
    return jnp.stack([l[name] for l in layers], axis=0)


def _pad_head_lanes(x, n_heads, head_dim):
    """Zero-pad the head-concatenated last axis so every head owns HEAD_SLOT lanes."""
    shp = x.shape
    x = x.reshape(*shp[:-1], n_heads, head_dim)
    x = jnp.pad(x, [(0, 0)] * (x.ndim - 1) + [(0, HEAD_SLOT - head_dim)])
    return x.reshape(*shp[:-1], n_heads * HEAD_SLOT)


def _pad_head_rows(w, n_heads, head_dim):
    """Zero-pad the head-concatenated input-row axis of an output projection to HEAD_SLOT."""
    *lead, _, dout = w.shape
    w = w.reshape(*lead, n_heads, head_dim, dout)
    w = jnp.pad(w, [(0, 0)] * len(lead) + [(0, 0), (0, HEAD_SLOT - head_dim), (0, 0)])
    return w.reshape(*lead, n_heads * HEAD_SLOT, dout)


def pack_params(p):
    """Stack per-layer weights, fuse Q/K/V with 64-lane head slots, cast matmul weights to
    MXU_DTYPE, constant-fold tok_emb @ txt_proj, precompute batch-tiled positional/type adds
    and the block-diagonal (batch-folded) mask bases."""
    cast = lambda a: a.astype(MXU_DTYPE)

    # ---- vision tower ----
    v = p["vision"]
    vis_add = jnp.concatenate(
        [(v["class_emb"] + v["vis_pos"][0])[None, :],
         v["vis_pos"][1:],
         jnp.zeros((L_VP - L_V, D_V), jnp.float32)], axis=0)
    vis_add = jnp.tile(vis_add, (G, 1))                                   # (RV, D_V)

    rv = jnp.arange(RV)
    vmask = jnp.where((rv[:, None] // L_VP == rv[None, :] // L_VP)
                      & (rv[None, :] % L_VP < L_V), 0.0, NEG).astype(jnp.float32)

    vl = v["layers"]
    vwqkv = jnp.concatenate([_pad_head_lanes(_stack(vl, n), VIS_HEADS, VIS_HEAD_DIM)
                             for n in ("wq", "wk", "wv")], axis=-1)
    vbqkv = jnp.concatenate([_pad_head_lanes(_stack(vl, n), VIS_HEADS, VIS_HEAD_DIM)
                             for n in ("bq", "bk", "bv")], axis=-1)[:, None, :]
    vision = dict(
        patch_w=cast(v["patch_w"]), vis_add=vis_add, vmask=vmask,
        pre_g=v["pre_ln_g"][None, :], pre_b=v["pre_ln_b"][None, :],
        vln1_g=_stack(vl, "ln1_g")[:, None, :], vln1_b=_stack(vl, "ln1_b")[:, None, :],
        vwqkv=cast(vwqkv), vbqkv=vbqkv,
        vwo=cast(_pad_head_rows(_stack(vl, "wo"), VIS_HEADS, VIS_HEAD_DIM)),
        vbo=_stack(vl, "bo")[:, None, :],
        vln2_g=_stack(vl, "ln2_g")[:, None, :], vln2_b=_stack(vl, "ln2_b")[:, None, :],
        vfc1_w=cast(_stack(vl, "fc1_w")), vfc1_b=_stack(vl, "fc1_b")[:, None, :],
        vfc2_w=cast(_stack(vl, "fc2_w")), vfc2_b=_stack(vl, "fc2_b")[:, None, :],
    )

    # ---- multimodal decoder ----
    d = p["decoder"]
    dimg_add = jnp.concatenate(
        [d["type_emb"][0][None, :] + d["pos_emb"][:L_V],
         jnp.zeros((L_VP - L_V, D_MODEL), jnp.float32)], axis=0)
    dimg_add = jnp.tile(dimg_add, (G, 1))                                 # (RV, D_MODEL)
    dtxt_add = jnp.tile(d["type_emb"][1][None, :] + d["pos_emb"][L_V:L_V + L_T], (G, 1))

    # constant-fold tok_emb @ txt_proj (two bias-free linear maps) in f32, cast once.
    txt_tab = cast(jnp.dot(p["tok_emb"], d["txt_proj"]))                  # (VOCAB, D_MODEL)

    # Block-diagonal mask base for the "images first" folded layout.  Real image rows see
    # only their batch's real image columns; text rows additionally see ALL of their batch's
    # text columns (the reference's torch.tril(torch.zeros(Lt,Lt)) == zeros, i.e. non-causal
    # over text — reproduced faithfully).  The 7 image-pad columns are always blocked.
    idx = jnp.arange(RD)
    is_txt = idx >= RV
    bat = jnp.where(is_txt, (idx - RV) // L_T, idx // L_VP)
    img_real = (~is_txt) & (idx % L_VP < L_V)
    allowed = (bat[:, None] == bat[None, :]) & (
        img_real[None, :] | (is_txt[:, None] & is_txt[None, :]))
    dmask_base = jnp.where(allowed, 0.0, NEG).astype(jnp.float32)

    bl = d["blocks"]
    dwqkv = jnp.concatenate([_pad_head_lanes(_stack(bl, n), N_HEADS, DEC_HEAD_DIM)
                             for n in ("wq", "wk", "wv")], axis=-1)
    decoder = dict(
        img_proj=cast(d["img_proj"]), txt_tab=txt_tab,
        dimg_add=dimg_add, dtxt_add=dtxt_add, dmask_base=dmask_base,
        dln1_g=_stack(bl, "ln1_g")[:, None, :], dln1_b=_stack(bl, "ln1_b")[:, None, :],
        dwqkv=cast(dwqkv),
        dwo=cast(_pad_head_rows(_stack(bl, "wo"), N_HEADS, DEC_HEAD_DIM)),
        dln2_g=_stack(bl, "ln2_g")[:, None, :], dln2_b=_stack(bl, "ln2_b")[:, None, :],
        dfc1_w=cast(_stack(bl, "fc1_w")), dfc1_b=_stack(bl, "fc1_b")[:, None, :],
        dfc2_w=cast(_stack(bl, "fc2_w")), dfc2_b=_stack(bl, "fc2_b")[:, None, :],
        lnf_g=d["ln_f_g"][None, :], lnf_b=d["ln_f_b"][None, :],
        lm_w=cast(p["lm_head_w"]), lm_b=p["lm_head_b"][None, :],
    )
    return {**vision, **decoder}


if __name__ == "__main__":
    root = jax.random.PRNGKey(0)
    k_param, k_px, k_ids = jax.random.split(root, 3)
    params = pack_params(init_params(k_param))

    pixel_values = jax.random.normal(k_px, (B, C, H, W), jnp.float32)        # NCHW like PyTorch
    caption_input_ids = jax.random.randint(k_ids, (B, L_T), 0, VOCAB)
    text_mask = jnp.ones((B, L_T), jnp.float32).at[1, L_T - 2:].set(0.0)     # padding in sample 1

    fwd = jax.jit(multimodal_captioner)
    logits, h_dec = fwd(pixel_values, caption_input_ids, text_mask, params)
    jax.block_until_ready((logits, h_dec))

    assert logits.shape == (B, L_T, VOCAB)
    assert h_dec.shape == (B, L_V + L_T, D_MODEL)
    assert bool(jnp.all(jnp.isfinite(logits))) and bool(jnp.all(jnp.isfinite(h_dec)))
    print("KERNEL_OK")
</pallas_src>

<mosaic_0001>
module attributes {stable_mosaic.version = 11 : i64} {
  func.func @_captioner_kernel(%arg0: i32, %arg1: memref<1x48x48xf32, #tpu.memory_space<vmem>>, %arg2: memref<1x16x1xi32, #tpu.memory_space<vmem>>, %arg3: memref<1x1x64xf32, #tpu.memory_space<vmem>>, %arg4: memref<48x64xbf16, #tpu.memory_space<vmem>>, %arg5: memref<48x64xf32, #tpu.memory_space<vmem>>, %arg6: memref<48x48xf32, #tpu.memory_space<vmem>>, %arg7: memref<1x64xf32, #tpu.memory_space<vmem>>, %arg8: memref<1x64xf32, #tpu.memory_space<vmem>>, %arg9: memref<2x1x64xf32, #tpu.memory_space<vmem>>, %arg10: memref<2x1x64xf32, #tpu.memory_space<vmem>>, %arg11: memref<2x64x384xbf16, #tpu.memory_space<vmem>>, %arg12: memref<2x1x384xf32, #tpu.memory_space<vmem>>, %arg13: memref<2x128x64xbf16, #tpu.memory_space<vmem>>, %arg14: memref<2x1x64xf32, #tpu.memory_space<vmem>>, %arg15: memref<2x1x64xf32, #tpu.memory_space<vmem>>, %arg16: memref<2x1x64xf32, #tpu.memory_space<vmem>>, %arg17: memref<2x64x256xbf16, #tpu.memory_space<vmem>>, %arg18: memref<2x1x256xf32, #tpu.memory_space<vmem>>, %arg19: memref<2x256x64xbf16, #tpu.memory_space<vmem>>, %arg20: memref<2x1x64xf32, #tpu.memory_space<vmem>>, %arg21: memref<64x128xbf16, #tpu.memory_space<vmem>>, %arg22: memref<256x128xbf16, #tpu.memory_space<vmem>>, %arg23: memref<48x128xf32, #tpu.memory_space<vmem>>, %arg24: memref<16x128xf32, #tpu.memory_space<vmem>>, %arg25: memref<64x64xf32, #tpu.memory_space<vmem>>, %arg26: memref<2x1x128xf32, #tpu.memory_space<vmem>>, %arg27: memref<2x1x128xf32, #tpu.memory_space<vmem>>, %arg28: memref<2x128x768xbf16, #tpu.memory_space<vmem>>, %arg29: memref<2x256x128xbf16, #tpu.memory_space<vmem>>, %arg30: memref<2x1x128xf32, #tpu.memory_space<vmem>>, %arg31: memref<2x1x128xf32, #tpu.memory_space<vmem>>, %arg32: memref<2x128x512xbf16, #tpu.memory_space<vmem>>, %arg33: memref<2x1x512xf32, #tpu.memory_space<vmem>>, %arg34: memref<2x512x128xbf16, #tpu.memory_space<vmem>>, %arg35: memref<2x1x128xf32, #tpu.memory_space<vmem>>, %arg36: memref<1x128xf32, #tpu.memory_space<vmem>>, %arg37: memref<1x128xf32, #tpu.memory_space<vmem>>, %arg38: memref<128x256xbf16, #tpu.memory_space<vmem>>, %arg39: memref<1x256xf32, #tpu.memory_space<vmem>>, %arg40: memref<1x64x128xf32, #tpu.memory_space<vmem>>, %arg41: memref<1x16x256xf32, #tpu.memory_space<vmem>>) attributes {dimension_semantics = [#tpu.dimension_semantics<parallel>], iteration_bounds = array<i64: 1>, scalar_prefetch = 0 : i64, scratch_operands = 0 : i64, tpu.core_type = #tpu.core_type<tc>, window_params = [{transform_indices = @transform_0, window_bounds = array<i64: 1, 48, 48>}, {transform_indices = @transform_1, window_bounds = array<i64: 1, 16, 1>}, {transform_indices = @transform_2, window_bounds = array<i64: 1, 1, 64>}, {pipeline_mode = #tpu.pipeline_mode<synchronous>, transform_indices = @transform_3, window_bounds = array<i64: 48, 64>}, {pipeline_mode = #tpu.pipeline_mode<synchronous>, transform_indices = @transform_4, window_bounds = array<i64: 48, 64>}, {pipeline_mode = #tpu.pipeline_mode<synchronous>, transform_indices = @transform_5, window_bounds = array<i64: 48, 48>}, {pipeline_mode = #tpu.pipeline_mode<synchronous>, transform_indices = @transform_6, window_bounds = array<i64: 1, 64>}, {pipeline_mode = #tpu.pipeline_mode<synchronous>, transform_indices = @transform_7, window_bounds = array<i64: 1, 64>}, {pipeline_mode = #tpu.pipeline_mode<synchronous>, transform_indices = @transform_8, window_bounds = array<i64: 2, 1, 64>}, {pipeline_mode = #tpu.pipeline_mode<synchronous>, transform_indices = @transform_9, window_bounds = array<i64: 2, 1, 64>}, {pipeline_mode = #tpu.pipeline_mode<synchronous>, transform_indices = @transform_10, window_bounds = array<i64: 2, 64, 384>}, {pipeline_mode = #tpu.pipeline_mode<synchronous>, transform_indices = @transform_11, window_bounds = array<i64: 2, 1, 384>}, {pipeline_mode = #tpu.pipeline_mode<synchronous>, transform_indices = @transform_12, window_bounds = array<i64: 2, 128, 64>}, {pipeline_mode = #tpu.pipeline_mode<synchronous>, transform_indices = @transform_13, window_bounds = array<i64: 2, 1, 64>}, {pipeline_mode = #tpu.pipeline_mode<synchronous>, transform_indices = @transform_14, window_bounds = array<i64: 2, 1, 64>}, {pipeline_mode = #tpu.pipeline_mode<synchronous>, transform_indices = @transform_15, window_bounds = array<i64: 2, 1, 64>}, {pipeline_mode = #tpu.pipeline_mode<synchronous>, transform_indices = @transform_16, window_bounds = array<i64: 2, 64, 256>}, {pipeline_mode = #tpu.pipeline_mode<synchronous>, transform_indices = @transform_17, window_bounds = array<i64: 2, 1, 256>}, {pipeline_mode = #tpu.pipeline_mode<synchronous>, transform_indices = @transform_18, window_bounds = array<i64: 2, 256, 64>}, {pipeline_mode = #tpu.pipeline_mode<synchronous>, transform_indices = @transform_19, window_bounds = array<i64: 2, 1, 64>}, {pipeline_mode = #tpu.pipeline_mode<synchronous>, transform_indices = @transform_20, window_bounds = array<i64: 64, 128>}, {pipeline_mode = #tpu.pipeline_mode<synchronous>, transform_indices = @transform_21, window_bounds = array<i64: 256, 128>}, {pipeline_mode = #tpu.pipeline_mode<synchronous>, transform_indices = @transform_22, window_bounds = array<i64: 48, 128>}, {pipeline_mode = #tpu.pipeline_mode<synchronous>, transform_indices = @transform_23, window_bounds = array<i64: 16, 128>}, {pipeline_mode = #tpu.pipeline_mode<synchronous>, transform_indices = @transform_24, window_bounds = array<i64: 64, 64>}, {pipeline_mode = #tpu.pipeline_mode<synchronous>, transform_indices = @transform_25, window_bounds = array<i64: 2, 1, 128>}, {pipeline_mode = #tpu.pipeline_mode<synchronous>, transform_indices = @transform_26, window_bounds = array<i64: 2, 1, 128>}, {pipeline_mode = #tpu.pipeline_mode<synchronous>, transform_indices = @transform_27, window_bounds = array<i64: 2, 128, 768>}, {pipeline_mode = #tpu.pipeline_mode<synchronous>, transform_indices = @transform_28, window_bounds = array<i64: 2, 256, 128>}, {pipeline_mode = #tpu.pipeline_mode<synchronous>, transform_indices = @transform_29, window_bounds = array<i64: 2, 1, 128>}, {pipeline_mode = #tpu.pipeline_mode<synchronous>, transform_indices = @transform_30, window_bounds = array<i64: 2, 1, 128>}, {pipeline_mode = #tpu.pipeline_mode<synchronous>, transform_indices = @transform_31, window_bounds = array<i64: 2, 128, 512>}, {pipeline_mode = #tpu.pipeline_mode<synchronous>, transform_indices = @transform_32, window_bounds = array<i64: 2, 1, 512>}, {pipeline_mode = #tpu.pipeline_mode<synchronous>, transform_indices = @transform_33, window_bounds = array<i64: 2, 512, 128>}, {pipeline_mode = #tpu.pipeline_mode<synchronous>, transform_indices = @transform_34, window_bounds = array<i64: 2, 1, 128>}, {pipeline_mode = #tpu.pipeline_mode<synchronous>, transform_indices = @transform_35, window_bounds = array<i64: 1, 128>}, {pipeline_mode = #tpu.pipeline_mode<synchronous>, transform_indices = @transform_36, window_bounds = array<i64: 1, 128>}, {pipeline_mode = #tpu.pipeline_mode<synchronous>, transform_indices = @transform_37, window_bounds = array<i64: 128, 256>}, {pipeline_mode = #tpu.pipeline_mode<synchronous>, transform_indices = @transform_38, window_bounds = array<i64: 1, 256>}, {transform_indices = @transform_39, window_bounds = array<i64: 1, 64, 128>}, {transform_indices = @transform_40, window_bounds = array<i64: 1, 16, 256>}]} {
    %c0 = arith.constant 0 : index
    %c0_0 = arith.constant 0 : index
    %c0_1 = arith.constant 0 : index
    %0 = vector.load %arg1[%c0, %c0_0, %c0_1] : memref<1x48x48xf32, #tpu.memory_space<vmem>>, vector<1x48x48xf32>
    %1 = vector.shape_cast %0 : vector<1x48x48xf32> to vector<48x48xf32>
    %2 = arith.truncf %1 : vector<48x48xf32> to vector<48x48xbf16>
    %c0_2 = arith.constant 0 : index
    %c0_3 = arith.constant 0 : index
    %3 = vector.load %arg4[%c0_2, %c0_3] : memref<48x64xbf16, #tpu.memory_space<vmem>>, vector<48x64xbf16>
    %cst = arith.constant dense<0.000000e+00> : vector<48x64xf32>
    %4 = tpu.matmul %2, %3, %cst {dimension_numbers = #tpu.dot_dimension_numbers<[1], [0], [0], [1], [0, 0, 1, 1], [], []>} : vector<48x48xbf16>, vector<48x64xbf16>, vector<48x64xf32> -> vector<48x64xf32>
    %c0_4 = arith.constant 0 : index
    %c0_5 = arith.constant 0 : index
    %5 = vector.load %arg5[%c0_4, %c0_5] : memref<48x64xf32, #tpu.memory_space<vmem>>, vector<48x64xf32>
    %6 = arith.addf %4, %5 : vector<48x64xf32>
    %c0_6 = arith.constant 0 : index
    %c0_7 = arith.constant 0 : index
    %7 = vector.load %arg7[%c0_6, %c0_7] : memref<1x64xf32, #tpu.memory_space<vmem>>, vector<1x64xf32>
    %c0_8 = arith.constant 0 : index
    %c0_9 = arith.constant 0 : index
    %8 = vector.load %arg8[%c0_8, %c0_9] : memref<1x64xf32, #tpu.memory_space<vmem>>, vector<1x64xf32>
    %cst_10 = arith.constant dense<0.000000e+00> : vector<48xf32>
    %9 = vector.multi_reduction <add>, %6, %cst_10 [1] : vector<48x64xf32> to vector<48xf32>
    %10 = vector.shape_cast %9 : vector<48xf32> to vector<48x1xf32>
    %cst_11 = arith.constant 6.400000e+01 : f32
    %11 = vector.broadcast %cst_11 : f32 to vector<48x1xf32>
    %12 = arith.divf %10, %11 : vector<48x1xf32>
    %13 = vector.broadcast %12 : vector<48x1xf32> to vector<48x64xf32>
    %14 = arith.subf %6, %13 : vector<48x64xf32>
    %15 = arith.mulf %14, %14 : vector<48x64xf32>
    %cst_12 = arith.constant dense<0.000000e+00> : vector<48xf32>
    %16 = vector.multi_reduction <add>, %15, %cst_12 [1] : vector<48x64xf32> to vector<48xf32>
    %17 = vector.shape_cast %16 : vector<48xf32> to vector<48x1xf32>
    %cst_13 = arith.constant 6.400000e+01 : f32
    %18 = vector.broadcast %cst_13 : f32 to vector<48x1xf32>
    %19 = arith.divf %17, %18 : vector<48x1xf32>
    %20 = vector.broadcast %12 : vector<48x1xf32> to vector<48x64xf32>
    %21 = arith.subf %6, %20 : vector<48x64xf32>
    %cst_14 = arith.constant 9.99999974E-6 : f32
    %22 = vector.broadcast %cst_14 : f32 to vector<48x1xf32>
    %23 = arith.addf %19, %22 : vector<48x1xf32>
    %24 = math.rsqrt %23 : vector<48x1xf32>
    %25 = vector.broadcast %24 : vector<48x1xf32> to vector<48x64xf32>
    %26 = arith.mulf %21, %25 : vector<48x64xf32>
    %27 = vector.broadcast %7 : vector<1x64xf32> to vector<48x64xf32>
    %28 = arith.mulf %26, %27 : vector<48x64xf32>
    %29 = vector.broadcast %8 : vector<1x64xf32> to vector<48x64xf32>
    %30 = arith.addf %28, %29 : vector<48x64xf32>
    %c0_15 = arith.constant 0 : index
    %c0_16 = arith.constant 0 : index
    %31 = vector.load %arg6[%c0_15, %c0_16] : memref<48x48xf32, #tpu.memory_space<vmem>>, vector<48x48xf32>
    %c0_17 = arith.constant 0 : index
    %c0_18 = arith.constant 0 : index
    %c0_19 = arith.constant 0 : index
    %32 = vector.load %arg9[%c0_17, %c0_18, %c0_19] : memref<2x1x64xf32, #tpu.memory_space<vmem>>, vector<1x1x64xf32>
    %33 = vector.shape_cast %32 : vector<1x1x64xf32> to vector<1x64xf32>
    %c0_20 = arith.constant 0 : index
    %c0_21 = arith.constant 0 : index
    %c0_22 = arith.constant 0 : index
    %34 = vector.load %arg10[%c0_20, %c0_21, %c0_22] : memref<2x1x64xf32, #tpu.memory_space<vmem>>, vector<1x1x64xf32>
    %35 = vector.shape_cast %34 : vector<1x1x64xf32> to vector<1x64xf32>
    %cst_23 = arith.constant dense<0.000000e+00> : vector<48xf32>
    %36 = vector.multi_reduction <add>, %30, %cst_23 [1] : vector<48x64xf32> to vector<48xf32>
    %37 = vector.shape_cast %36 : vector<48xf32> to vector<48x1xf32>
    %cst_24 = arith.constant 6.400000e+01 : f32
    %38 = vector.broadcast %cst_24 : f32 to vector<48x1xf32>
    %39 = arith.divf %37, %38 : vector<48x1xf32>
    %40 = vector.broadcast %39 : vector<48x1xf32> to vector<48x64xf32>
    %41 = arith.subf %30, %40 : vector<48x64xf32>
    %42 = arith.mulf %41, %41 : vector<48x64xf32>
    %cst_25 = arith.constant dense<0.000000e+00> : vector<48xf32>
    %43 = vector.multi_reduction <add>, %42, %cst_25 [1] : vector<48x64xf32> to vector<48xf32>
    %44 = vector.shape_cast %43 : vector<48xf32> to vector<48x1xf32>
    %cst_26 = arith.constant 6.400000e+01 : f32
    %45 = vector.broadcast %cst_26 : f32 to vector<48x1xf32>
    %46 = arith.divf %44, %45 : vector<48x1xf32>
    %47 = vector.broadcast %39 : vector<48x1xf32> to vector<48x64xf32>
    %48 = arith.subf %30, %47 : vector<48x64xf32>
    %cst_27 = arith.constant 9.99999974E-6 : f32
    %49 = vector.broadcast %cst_27 : f32 to vector<48x1xf32>
    %50 = arith.addf %46, %49 : vector<48x1xf32>
    %51 = math.rsqrt %50 : vector<48x1xf32>
    %52 = vector.broadcast %51 : vector<48x1xf32> to vector<48x64xf32>
    %53 = arith.mulf %48, %52 : vector<48x64xf32>
    %54 = vector.broadcast %33 : vector<1x64xf32> to vector<48x64xf32>
    %55 = arith.mulf %53, %54 : vector<48x64xf32>
    %56 = vector.broadcast %35 : vector<1x64xf32> to vector<48x64xf32>
    %57 = arith.addf %55, %56 : vector<48x64xf32>
    %58 = arith.truncf %57 : vector<48x64xf32> to vector<48x64xbf16>
    %c0_28 = arith.constant 0 : index
    %c0_29 = arith.constant 0 : index
    %c0_30 = arith.constant 0 : index
    %59 = vector.load %arg11[%c0_28, %c0_29, %c0_30] : memref<2x64x384xbf16, #tpu.memory_space<vmem>>, vector<1x64x384xbf16>
    %60 = vector.shape_cast %59 : vector<1x64x384xbf16> to vector<64x384xbf16>
    %cst_31 = arith.constant dense<0.000000e+00> : vector<48x384xf32>
    %61 = tpu.matmul %58, %60, %cst_31 {dimension_numbers = #tpu.dot_dimension_numbers<[1], [0], [0], [1], [0, 0, 1, 1], [], []>} : vector<48x64xbf16>, vector<64x384xbf16>, vector<48x384xf32> -> vector<48x384xf32>
    %c0_32 = arith.constant 0 : index
    %c0_33 = arith.constant 0 : index
    %c0_34 = arith.constant 0 : index
    %62 = vector.load %arg12[%c0_32, %c0_33, %c0_34] : memref<2x1x384xf32, #tpu.memory_space<vmem>>, vector<1x1x384xf32>
    %63 = vector.shape_cast %62 : vector<1x1x384xf32> to vector<1x384xf32>
    %64 = vector.broadcast %63 : vector<1x384xf32> to vector<48x384xf32>
    %65 = arith.addf %61, %64 : vector<48x384xf32>
    %c0_35 = arith.constant 0 : index
    %c0_36 = arith.constant 0 : index
    %c0_37 = arith.constant 0 : index
    %66 = vector.load %arg13[%c0_35, %c0_36, %c0_37] : memref<2x128x64xbf16, #tpu.memory_space<vmem>>, vector<1x128x64xbf16>
    %67 = vector.shape_cast %66 : vector<1x128x64xbf16> to vector<128x64xbf16>
    %68 = vector.extract_strided_slice %65 {offsets = [0, 0], sizes = [48, 64], strides = [1, 1]} : vector<48x384xf32> to vector<48x64xf32>
    %69 = arith.truncf %68 : vector<48x64xf32> to vector<48x64xbf16>
    %70 = vector.extract_strided_slice %65 {offsets = [0, 128], sizes = [48, 64], strides = [1, 1]} : vector<48x384xf32> to vector<48x64xf32>
    %71 = arith.truncf %70 : vector<48x64xf32> to vector<48x64xbf16>
    %72 = vector.extract_strided_slice %65 {offsets = [0, 256], sizes = [48, 64], strides = [1, 1]} : vector<48x384xf32> to vector<48x64xf32>
    %73 = arith.truncf %72 : vector<48x64xf32> to vector<48x64xbf16>
    %cst_38 = arith.constant dense<0.000000e+00> : vector<48x48xf32>
    %74 = tpu.matmul %69, %71, %cst_38 {dimension_numbers = #tpu.dot_dimension_numbers<[1], [1], [0], [0], [0, 0, 1, 0], [], []>} : vector<48x64xbf16>, vector<48x64xbf16>, vector<48x48xf32> -> vector<48x48xf32>
    %cst_39 = arith.constant 0.176776692 : f32
    %75 = vector.broadcast %cst_39 : f32 to vector<48x48xf32>
    %76 = arith.mulf %74, %75 : vector<48x48xf32>
    %77 = arith.addf %76, %31 : vector<48x48xf32>
    %cst_40 = arith.constant dense<0xFF800000> : vector<48xf32>
    %78 = vector.multi_reduction <maximumf>, %77, %cst_40 [1] : vector<48x48xf32> to vector<48xf32>
    %79 = vector.shape_cast %78 : vector<48xf32> to vector<48x1xf32>
    %80 = vector.broadcast %79 : vector<48x1xf32> to vector<48x48xf32>
    %81 = arith.subf %77, %80 : vector<48x48xf32>
    %82 = math.exp %81 : vector<48x48xf32>
    %cst_41 = arith.constant dense<0.000000e+00> : vector<48xf32>
    %83 = vector.multi_reduction <add>, %82, %cst_41 [1] : vector<48x48xf32> to vector<48xf32>
    %84 = vector.shape_cast %83 : vector<48xf32> to vector<48x1xf32>
    %85 = tpu.reciprocal %84 {approx = true} : vector<48x1xf32> -> vector<48x1xf32>
    %86 = vector.broadcast %85 : vector<48x1xf32> to vector<48x48xf32>
    %87 = arith.mulf %82, %86 : vector<48x48xf32>
    %88 = arith.truncf %87 : vector<48x48xf32> to vector<48x48xbf16>
    %cst_42 = arith.constant dense<0.000000e+00> : vector<48x64xf32>
    %89 = tpu.matmul %88, %73, %cst_42 {dimension_numbers = #tpu.dot_dimension_numbers<[1], [0], [0], [1], [0, 0, 1, 1], [], []>} : vector<48x48xbf16>, vector<48x64xbf16>, vector<48x64xf32> -> vector<48x64xf32>
    %90 = vector.extract_strided_slice %65 {offsets = [0, 64], sizes = [48, 64], strides = [1, 1]} : vector<48x384xf32> to vector<48x64xf32>
    %91 = arith.truncf %90 : vector<48x64xf32> to vector<48x64xbf16>
    %92 = vector.extract_strided_slice %65 {offsets = [0, 192], sizes = [48, 64], strides = [1, 1]} : vector<48x384xf32> to vector<48x64xf32>
    %93 = arith.truncf %92 : vector<48x64xf32> to vector<48x64xbf16>
    %94 = vector.extract_strided_slice %65 {offsets = [0, 320], sizes = [48, 64], strides = [1, 1]} : vector<48x384xf32> to vector<48x64xf32>
    %95 = arith.truncf %94 : vector<48x64xf32> to vector<48x64xbf16>
    %cst_43 = arith.constant dense<0.000000e+00> : vector<48x48xf32>
    %96 = tpu.matmul %91, %93, %cst_43 {dimension_numbers = #tpu.dot_dimension_numbers<[1], [1], [0], [0], [0, 0, 1, 0], [], []>} : vector<48x64xbf16>, vector<48x64xbf16>, vector<48x48xf32> -> vector<48x48xf32>
    %cst_44 = arith.constant 0.176776692 : f32
    %97 = vector.broadcast %cst_44 : f32 to vector<48x48xf32>
    %98 = arith.mulf %96, %97 : vector<48x48xf32>
    %99 = arith.addf %98, %31 : vector<48x48xf32>
    %cst_45 = arith.constant dense<0xFF800000> : vector<48xf32>
    %100 = vector.multi_reduction <maximumf>, %99, %cst_45 [1] : vector<48x48xf32> to vector<48xf32>
    %101 = vector.shape_cast %100 : vector<48xf32> to vector<48x1xf32>
    %102 = vector.broadcast %101 : vector<48x1xf32> to vector<48x48xf32>
    %103 = arith.subf %99, %102 : vector<48x48xf32>
    %104 = math.exp %103 : vector<48x48xf32>
    %cst_46 = arith.constant dense<0.000000e+00> : vector<48xf32>
    %105 = vector.multi_reduction <add>, %104, %cst_46 [1] : vector<48x48xf32> to vector<48xf32>
    %106 = vector.shape_cast %105 : vector<48xf32> to vector<48x1xf32>
    %107 = tpu.reciprocal %106 {approx = true} : vector<48x1xf32> -> vector<48x1xf32>
    %108 = vector.broadcast %107 : vector<48x1xf32> to vector<48x48xf32>
    %109 = arith.mulf %104, %108 : vector<48x48xf32>
    %110 = arith.truncf %109 : vector<48x48xf32> to vector<48x48xbf16>
    %cst_47 = arith.constant dense<0.000000e+00> : vector<48x64xf32>
    %111 = tpu.matmul %110, %95, %cst_47 {dimension_numbers = #tpu.dot_dimension_numbers<[1], [0], [0], [1], [0, 0, 1, 1], [], []>} : vector<48x48xbf16>, vector<48x64xbf16>, vector<48x64xf32> -> vector<48x64xf32>
    %112 = tpu.concatenate %89, %111 in 1 : vector<48x64xf32>, vector<48x64xf32> -> vector<48x128xf32>
    %113 = arith.truncf %112 : vector<48x128xf32> to vector<48x128xbf16>
    %cst_48 = arith.constant dense<0.000000e+00> : vector<48x64xf32>
    %114 = tpu.matmul %113, %67, %cst_48 {dimension_numbers = #tpu.dot_dimension_numbers<[1], [0], [0], [1], [0, 0, 1, 1], [], []>} : vector<48x128xbf16>, vector<128x64xbf16>, vector<48x64xf32> -> vector<48x64xf32>
    %115 = arith.addf %30, %114 : vector<48x64xf32>
    %c0_49 = arith.constant 0 : index
    %c0_50 = arith.constant 0 : index
    %c0_51 = arith.constant 0 : index
    %116 = vector.load %arg14[%c0_49, %c0_50, %c0_51] : memref<2x1x64xf32, #tpu.memory_space<vmem>>, vector<1x1x64xf32>
    %117 = vector.shape_cast %116 : vector<1x1x64xf32> to vector<1x64xf32>
    %118 = vector.broadcast %117 : vector<1x64xf32> to vector<48x64xf32>
    %119 = arith.addf %115, %118 : vector<48x64xf32>
    %c0_52 = arith.constant 0 : index
    %c0_53 = arith.constant 0 : index
    %c0_54 = arith.constant 0 : index
    %120 = vector.load %arg15[%c0_52, %c0_53, %c0_54] : memref<2x1x64xf32, #tpu.memory_space<vmem>>, vector<1x1x64xf32>
    %121 = vector.shape_cast %120 : vector<1x1x64xf32> to vector<1x64xf32>
    %c0_55 = arith.constant 0 : index
    %c0_56 = arith.constant 0 : index
    %c0_57 = arith.constant 0 : index
    %122 = vector.load %arg16[%c0_55, %c0_56, %c0_57] : memref<2x1x64xf32, #tpu.memory_space<vmem>>, vector<1x1x64xf32>
    %123 = vector.shape_cast %122 : vector<1x1x64xf32> to vector<1x64xf32>
    %cst_58 = arith.constant dense<0.000000e+00> : vector<48xf32>
    %124 = vector.multi_reduction <add>, %119, %cst_58 [1] : vector<48x64xf32> to vector<48xf32>
    %125 = vector.shape_cast %124 : vector<48xf32> to vector<48x1xf32>
    %cst_59 = arith.constant 6.400000e+01 : f32
    %126 = vector.broadcast %cst_59 : f32 to vector<48x1xf32>
    %127 = arith.divf %125, %126 : vector<48x1xf32>
    %128 = vector.broadcast %127 : vector<48x1xf32> to vector<48x64xf32>
    %129 = arith.subf %119, %128 : vector<48x64xf32>
    %130 = arith.mulf %129, %129 : vector<48x64xf32>
    %cst_60 = arith.constant dense<0.000000e+00> : vector<48xf32>
    %131 = vector.multi_reduction <add>, %130, %cst_60 [1] : vector<48x64xf32> to vector<48xf32>
    %132 = vector.shape_cast %131 : vector<48xf32> to vector<48x1xf32>
    %cst_61 = arith.constant 6.400000e+01 : f32
    %133 = vector.broadcast %cst_61 : f32 to vector<48x1xf32>
    %134 = arith.divf %132, %133 : vector<48x1xf32>
    %135 = vector.broadcast %127 : vector<48x1xf32> to vector<48x64xf32>
    %136 = arith.subf %119, %135 : vector<48x64xf32>
    %cst_62 = arith.constant 9.99999974E-6 : f32
    %137 = vector.broadcast %cst_62 : f32 to vector<48x1xf32>
    %138 = arith.addf %134, %137 : vector<48x1xf32>
    %139 = math.rsqrt %138 : vector<48x1xf32>
    %140 = vector.broadcast %139 : vector<48x1xf32> to vector<48x64xf32>
    %141 = arith.mulf %136, %140 : vector<48x64xf32>
    %142 = vector.broadcast %121 : vector<1x64xf32> to vector<48x64xf32>
    %143 = arith.mulf %141, %142 : vector<48x64xf32>
    %144 = vector.broadcast %123 : vector<1x64xf32> to vector<48x64xf32>
    %145 = arith.addf %143, %144 : vector<48x64xf32>
    %146 = arith.truncf %145 : vector<48x64xf32> to vector<48x64xbf16>
    %c0_63 = arith.constant 0 : index
    %c0_64 = arith.constant 0 : index
    %c0_65 = arith.constant 0 : index
    %147 = vector.load %arg17[%c0_63, %c0_64, %c0_65] : memref<2x64x256xbf16, #tpu.memory_space<vmem>>, vector<1x64x256xbf16>
    %148 = vector.shape_cast %147 : vector<1x64x256xbf16> to vector<64x256xbf16>
    %cst_66 = arith.constant dense<0.000000e+00> : vector<48x256xf32>
    %149 = tpu.matmul %146, %148, %cst_66 {dimension_numbers = #tpu.dot_dimension_numbers<[1], [0], [0], [1], [0, 0, 1, 1], [], []>} : vector<48x64xbf16>, vector<64x256xbf16>, vector<48x256xf32> -> vector<48x256xf32>
    %c0_67 = arith.constant 0 : index
    %c0_68 = arith.constant 0 : index
    %c0_69 = arith.constant 0 : index
    %150 = vector.load %arg18[%c0_67, %c0_68, %c0_69] : memref<2x1x256xf32, #tpu.memory_space<vmem>>, vector<1x1x256xf32>
    %151 = vector.shape_cast %150 : vector<1x1x256xf32> to vector<1x256xf32>
    %152 = vector.broadcast %151 : vector<1x256xf32> to vector<48x256xf32>
    %153 = arith.addf %149, %152 : vector<48x256xf32>
    %cst_70 = arith.constant 1.702000e+00 : f32
    %154 = vector.broadcast %cst_70 : f32 to vector<48x256xf32>
    %155 = arith.mulf %154, %153 : vector<48x256xf32>
    %156 = arith.negf %155 : vector<48x256xf32>
    %157 = math.exp %156 : vector<48x256xf32>
    %cst_71 = arith.constant 1.000000e+00 : f32
    %158 = vector.broadcast %cst_71 : f32 to vector<48x256xf32>
    %159 = arith.addf %158, %157 : vector<48x256xf32>
    %160 = arith.divf %158, %159 : vector<48x256xf32>
    %161 = arith.mulf %153, %160 : vector<48x256xf32>
    %162 = arith.truncf %161 : vector<48x256xf32> to vector<48x256xbf16>
    %c0_72 = arith.constant 0 : index
    %c0_73 = arith.constant 0 : index
    %c0_74 = arith.constant 0 : index
    %163 = vector.load %arg19[%c0_72, %c0_73, %c0_74] : memref<2x256x64xbf16, #tpu.memory_space<vmem>>, vector<1x256x64xbf16>
    %164 = vector.shape_cast %163 : vector<1x256x64xbf16> to vector<256x64xbf16>
    %cst_75 = arith.constant dense<0.000000e+00> : vector<48x64xf32>
    %165 = tpu.matmul %162, %164, %cst_75 {dimension_numbers = #tpu.dot_dimension_numbers<[1], [0], [0], [1], [0, 0, 1, 1], [], []>} : vector<48x256xbf16>, vector<256x64xbf16>, vector<48x64xf32> -> vector<48x64xf32>
    %166 = arith.addf %119, %165 : vector<48x64xf32>
    %c0_76 = arith.constant 0 : index
    %c0_77 = arith.constant 0 : index
    %c0_78 = arith.constant 0 : index
    %167 = vector.load %arg20[%c0_76, %c0_77, %c0_78] : memref<2x1x64xf32, #tpu.memory_space<vmem>>, vector<1x1x64xf32>
    %168 = vector.shape_cast %167 : vector<1x1x64xf32> to vector<1x64xf32>
    %169 = vector.broadcast %168 : vector<1x64xf32> to vector<48x64xf32>
    %170 = arith.addf %166, %169 : vector<48x64xf32>
    %c1 = arith.constant 1 : index
    %c0_79 = arith.constant 0 : index
    %c0_80 = arith.constant 0 : index
    %171 = vector.load %arg9[%c1, %c0_79, %c0_80] : memref<2x1x64xf32, #tpu.memory_space<vmem>>, vector<1x1x64xf32>
    %172 = vector.shape_cast %171 : vector<1x1x64xf32> to vector<1x64xf32>
    %c1_81 = arith.constant 1 : index
    %c0_82 = arith.constant 0 : index
    %c0_83 = arith.constant 0 : index
    %173 = vector.load %arg10[%c1_81, %c0_82, %c0_83] : memref<2x1x64xf32, #tpu.memory_space<vmem>>, vector<1x1x64xf32>
    %174 = vector.shape_cast %173 : vector<1x1x64xf32> to vector<1x64xf32>
    %cst_84 = arith.constant dense<0.000000e+00> : vector<48xf32>
    %175 = vector.multi_reduction <add>, %170, %cst_84 [1] : vector<48x64xf32> to vector<48xf32>
    %176 = vector.shape_cast %175 : vector<48xf32> to vector<48x1xf32>
    %cst_85 = arith.constant 6.400000e+01 : f32
    %177 = vector.broadcast %cst_85 : f32 to vector<48x1xf32>
    %178 = arith.divf %176, %177 : vector<48x1xf32>
    %179 = vector.broadcast %178 : vector<48x1xf32> to vector<48x64xf32>
    %180 = arith.subf %170, %179 : vector<48x64xf32>
    %181 = arith.mulf %180, %180 : vector<48x64xf32>
    %cst_86 = arith.constant dense<0.000000e+00> : vector<48xf32>
    %182 = vector.multi_reduction <add>, %181, %cst_86 [1] : vector<48x64xf32> to vector<48xf32>
    %183 = vector.shape_cast %182 : vector<48xf32> to vector<48x1xf32>
    %cst_87 = arith.constant 6.400000e+01 : f32
    %184 = vector.broadcast %cst_87 : f32 to vector<48x1xf32>
    %185 = arith.divf %183, %184 : vector<48x1xf32>
    %186 = vector.broadcast %178 : vector<48x1xf32> to vector<48x64xf32>
    %187 = arith.subf %170, %186 : vector<48x64xf32>
    %cst_88 = arith.constant 9.99999974E-6 : f32
    %188 = vector.broadcast %cst_88 : f32 to vector<48x1xf32>
    %189 = arith.addf %185, %188 : vector<48x1xf32>
    %190 = math.rsqrt %189 : vector<48x1xf32>
    %191 = vector.broadcast %190 : vector<48x1xf32> to vector<48x64xf32>
    %192 = arith.mulf %187, %191 : vector<48x64xf32>
    %193 = vector.broadcast %172 : vector<1x64xf32> to vector<48x64xf32>
    %194 = arith.mulf %192, %193 : vector<48x64xf32>
    %195 = vector.broadcast %174 : vector<1x64xf32> to vector<48x64xf32>
    %196 = arith.addf %194, %195 : vector<48x64xf32>
    %197 = arith.truncf %196 : vector<48x64xf32> to vector<48x64xbf16>
    %c1_89 = arith.constant 1 : index
    %c0_90 = arith.constant 0 : index
    %c0_91 = arith.constant 0 : index
    %198 = vector.load %arg11[%c1_89, %c0_90, %c0_91] : memref<2x64x384xbf16, #tpu.memory_space<vmem>>, vector<1x64x384xbf16>
    %199 = vector.shape_cast %198 : vector<1x64x384xbf16> to vector<64x384xbf16>
    %cst_92 = arith.constant dense<0.000000e+00> : vector<48x384xf32>
    %200 = tpu.matmul %197, %199, %cst_92 {dimension_numbers = #tpu.dot_dimension_numbers<[1], [0], [0], [1], [0, 0, 1, 1], [], []>} : vector<48x64xbf16>, vector<64x384xbf16>, vector<48x384xf32> -> vector<48x384xf32>
    %c1_93 = arith.constant 1 : index
    %c0_94 = arith.constant 0 : index
    %c0_95 = arith.constant 0 : index
    %201 = vector.load %arg12[%c1_93, %c0_94, %c0_95] : memref<2x1x384xf32, #tpu.memory_space<vmem>>, vector<1x1x384xf32>
    %202 = vector.shape_cast %201 : vector<1x1x384xf32> to vector<1x384xf32>
    %203 = vector.broadcast %202 : vector<1x384xf32> to vector<48x384xf32>
    %204 = arith.addf %200, %203 : vector<48x384xf32>
    %c1_96 = arith.constant 1 : index
    %c0_97 = arith.constant 0 : index
    %c0_98 = arith.constant 0 : index
    %205 = vector.load %arg13[%c1_96, %c0_97, %c0_98] : memref<2x128x64xbf16, #tpu.memory_space<vmem>>, vector<1x128x64xbf16>
    %206 = vector.shape_cast %205 : vector<1x128x64xbf16> to vector<128x64xbf16>
    %207 = vector.extract_strided_slice %204 {offsets = [0, 0], sizes = [48, 64], strides = [1, 1]} : vector<48x384xf32> to vector<48x64xf32>
    %208 = arith.truncf %207 : vector<48x64xf32> to vector<48x64xbf16>
    %209 = vector.extract_strided_slice %204 {offsets = [0, 128], sizes = [48, 64], strides = [1, 1]} : vector<48x384xf32> to vector<48x64xf32>
    %210 = arith.truncf %209 : vector<48x64xf32> to vector<48x64xbf16>
    %211 = vector.extract_strided_slice %204 {offsets = [0, 256], sizes = [48, 64], strides = [1, 1]} : vector<48x384xf32> to vector<48x64xf32>
    %212 = arith.truncf %211 : vector<48x64xf32> to vector<48x64xbf16>
    %cst_99 = arith.constant dense<0.000000e+00> : vector<48x48xf32>
    %213 = tpu.matmul %208, %210, %cst_99 {dimension_numbers = #tpu.dot_dimension_numbers<[1], [1], [0], [0], [0, 0, 1, 0], [], []>} : vector<48x64xbf16>, vector<48x64xbf16>, vector<48x48xf32> -> vector<48x48xf32>
    %cst_100 = arith.constant 0.176776692 : f32
    %214 = vector.broadcast %cst_100 : f32 to vector<48x48xf32>
    %215 = arith.mulf %213, %214 : vector<48x48xf32>
    %216 = arith.addf %215, %31 : vector<48x48xf32>
    %cst_101 = arith.constant dense<0xFF800000> : vector<48xf32>
    %217 = vector.multi_reduction <maximumf>, %216, %cst_101 [1] : vector<48x48xf32> to vector<48xf32>
    %218 = vector.shape_cast %217 : vector<48xf32> to vector<48x1xf32>
    %219 = vector.broadcast %218 : vector<48x1xf32> to vector<48x48xf32>
    %220 = arith.subf %216, %219 : vector<48x48xf32>
    %221 = math.exp %220 : vector<48x48xf32>
    %cst_102 = arith.constant dense<0.000000e+00> : vector<48xf32>
    %222 = vector.multi_reduction <add>, %221, %cst_102 [1] : vector<48x48xf32> to vector<48xf32>
    %223 = vector.shape_cast %222 : vector<48xf32> to vector<48x1xf32>
    %224 = tpu.reciprocal %223 {approx = true} : vector<48x1xf32> -> vector<48x1xf32>
    %225 = vector.broadcast %224 : vector<48x1xf32> to vector<48x48xf32>
    %226 = arith.mulf %221, %225 : vector<48x48xf32>
    %227 = arith.truncf %226 : vector<48x48xf32> to vector<48x48xbf16>
    %cst_103 = arith.constant dense<0.000000e+00> : vector<48x64xf32>
    %228 = tpu.matmul %227, %212, %cst_103 {dimension_numbers = #tpu.dot_dimension_numbers<[1], [0], [0], [1], [0, 0, 1, 1], [], []>} : vector<48x48xbf16>, vector<48x64xbf16>, vector<48x64xf32> -> vector<48x64xf32>
    %229 = vector.extract_strided_slice %204 {offsets = [0, 64], sizes = [48, 64], strides = [1, 1]} : vector<48x384xf32> to vector<48x64xf32>
    %230 = arith.truncf %229 : vector<48x64xf32> to vector<48x64xbf16>
    %231 = vector.extract_strided_slice %204 {offsets = [0, 192], sizes = [48, 64], strides = [1, 1]} : vector<48x384xf32> to vector<48x64xf32>
    %232 = arith.truncf %231 : vector<48x64xf32> to vector<48x64xbf16>
    %233 = vector.extract_strided_slice %204 {offsets = [0, 320], sizes = [48, 64], strides = [1, 1]} : vector<48x384xf32> to vector<48x64xf32>
    %234 = arith.truncf %233 : vector<48x64xf32> to vector<48x64xbf16>
    %cst_104 = arith.constant dense<0.000000e+00> : vector<48x48xf32>
    %235 = tpu.matmul %230, %232, %cst_104 {dimension_numbers = #tpu.dot_dimension_numbers<[1], [1], [0], [0], [0, 0, 1, 0], [], []>} : vector<48x64xbf16>, vector<48x64xbf16>, vector<48x48xf32> -> vector<48x48xf32>
    %cst_105 = arith.constant 0.176776692 : f32
    %236 = vector.broadcast %cst_105 : f32 to vector<48x48xf32>
    %237 = arith.mulf %235, %236 : vector<48x48xf32>
    %238 = arith.addf %237, %31 : vector<48x48xf32>
    %cst_106 = arith.constant dense<0xFF800000> : vector<48xf32>
    %239 = vector.multi_reduction <maximumf>, %238, %cst_106 [1] : vector<48x48xf32> to vector<48xf32>
    %240 = vector.shape_cast %239 : vector<48xf32> to vector<48x1xf32>
    %241 = vector.broadcast %240 : vector<48x1xf32> to vector<48x48xf32>
    %242 = arith.subf %238, %241 : vector<48x48xf32>
    %243 = math.exp %242 : vector<48x48xf32>
    %cst_107 = arith.constant dense<0.000000e+00> : vector<48xf32>
    %244 = vector.multi_reduction <add>, %243, %cst_107 [1] : vector<48x48xf32> to vector<48xf32>
    %245 = vector.shape_cast %244 : vector<48xf32> to vector<48x1xf32>
    %246 = tpu.reciprocal %245 {approx = true} : vector<48x1xf32> -> vector<48x1xf32>
    %247 = vector.broadcast %246 : vector<48x1xf32> to vector<48x48xf32>
    %248 = arith.mulf %243, %247 : vector<48x48xf32>
    %249 = arith.truncf %248 : vector<48x48xf32> to vector<48x48xbf16>
    %cst_108 = arith.constant dense<0.000000e+00> : vector<48x64xf32>
    %250 = tpu.matmul %249, %234, %cst_108 {dimension_numbers = #tpu.dot_dimension_numbers<[1], [0], [0], [1], [0, 0, 1, 1], [], []>} : vector<48x48xbf16>, vector<48x64xbf16>, vector<48x64xf32> -> vector<48x64xf32>
    %251 = tpu.concatenate %228, %250 in 1 : vector<48x64xf32>, vector<48x64xf32> -> vector<48x128xf32>
    %252 = arith.truncf %251 : vector<48x128xf32> to vector<48x128xbf16>
    %cst_109 = arith.constant dense<0.000000e+00> : vector<48x64xf32>
    %253 = tpu.matmul %252, %206, %cst_109 {dimension_numbers = #tpu.dot_dimension_numbers<[1], [0], [0], [1], [0, 0, 1, 1], [], []>} : vector<48x128xbf16>, vector<128x64xbf16>, vector<48x64xf32> -> vector<48x64xf32>
    %254 = arith.addf %170, %253 : vector<48x64xf32>
    %c1_110 = arith.constant 1 : index
    %c0_111 = arith.constant 0 : index
    %c0_112 = arith.constant 0 : index
    %255 = vector.load %arg14[%c1_110, %c0_111, %c0_112] : memref<2x1x64xf32, #tpu.memory_space<vmem>>, vector<1x1x64xf32>
    %256 = vector.shape_cast %255 : vector<1x1x64xf32> to vector<1x64xf32>
    %257 = vector.broadcast %256 : vector<1x64xf32> to vector<48x64xf32>
    %258 = arith.addf %254, %257 : vector<48x64xf32>
    %c1_113 = arith.constant 1 : index
    %c0_114 = arith.constant 0 : index
    %c0_115 = arith.constant 0 : index
    %259 = vector.load %arg15[%c1_113, %c0_114, %c0_115] : memref<2x1x64xf32, #tpu.memory_space<vmem>>, vector<1x1x64xf32>
    %260 = vector.shape_cast %259 : vector<1x1x64xf32> to vector<1x64xf32>
    %c1_116 = arith.constant 1 : index
    %c0_117 = arith.constant 0 : index
    %c0_118 = arith.constant 0 : index
    %261 = vector.load %arg16[%c1_116, %c0_117, %c0_118] : memref<2x1x64xf32, #tpu.memory_space<vmem>>, vector<1x1x64xf32>
    %262 = vector.shape_cast %261 : vector<1x1x64xf32> to vector<1x64xf32>
    %cst_119 = arith.constant dense<0.000000e+00> : vector<48xf32>
    %263 = vector.multi_reduction <add>, %258, %cst_119 [1] : vector<48x64xf32> to vector<48xf32>
    %264 = vector.shape_cast %263 : vector<48xf32> to vector<48x1xf32>
    %cst_120 = arith.constant 6.400000e+01 : f32
    %265 = vector.broadcast %cst_120 : f32 to vector<48x1xf32>
    %266 = arith.divf %264, %265 : vector<48x1xf32>
    %267 = vector.broadcast %266 : vector<48x1xf32> to vector<48x64xf32>
    %268 = arith.subf %258, %267 : vector<48x64xf32>
    %269 = arith.mulf %268, %268 : vector<48x64xf32>
    %cst_121 = arith.constant dense<0.000000e+00> : vector<48xf32>
    %270 = vector.multi_reduction <add>, %269, %cst_121 [1] : vector<48x64xf32> to vector<48xf32>
    %271 = vector.shape_cast %270 : vector<48xf32> to vector<48x1xf32>
    %cst_122 = arith.constant 6.400000e+01 : f32
    %272 = vector.broadcast %cst_122 : f32 to vector<48x1xf32>
    %273 = arith.divf %271, %272 : vector<48x1xf32>
    %274 = vector.broadcast %266 : vector<48x1xf32> to vector<48x64xf32>
    %275 = arith.subf %258, %274 : vector<48x64xf32>
    %cst_123 = arith.constant 9.99999974E-6 : f32
    %276 = vector.broadcast %cst_123 : f32 to vector<48x1xf32>
    %277 = arith.addf %273, %276 : vector<48x1xf32>
    %278 = math.rsqrt %277 : vector<48x1xf32>
    %279 = vector.broadcast %278 : vector<48x1xf32> to vector<48x64xf32>
    %280 = arith.mulf %275, %279 : vector<48x64xf32>
    %281 = vector.broadcast %260 : vector<1x64xf32> to vector<48x64xf32>
    %282 = arith.mulf %280, %281 : vector<48x64xf32>
    %283 = vector.broadcast %262 : vector<1x64xf32> to vector<48x64xf32>
    %284 = arith.addf %282, %283 : vector<48x64xf32>
    %285 = arith.truncf %284 : vector<48x64xf32> to vector<48x64xbf16>
    %c1_124 = arith.constant 1 : index
    %c0_125 = arith.constant 0 : index
    %c0_126 = arith.constant 0 : index
    %286 = vector.load %arg17[%c1_124, %c0_125, %c0_126] : memref<2x64x256xbf16, #tpu.memory_space<vmem>>, vector<1x64x256xbf16>
    %287 = vector.shape_cast %286 : vector<1x64x256xbf16> to vector<64x256xbf16>
    %cst_127 = arith.constant dense<0.000000e+00> : vector<48x256xf32>
    %288 = tpu.matmul %285, %287, %cst_127 {dimension_numbers = #tpu.dot_dimension_numbers<[1], [0], [0], [1], [0, 0, 1, 1], [], []>} : vector<48x64xbf16>, vector<64x256xbf16>, vector<48x256xf32> -> vector<48x256xf32>
    %c1_128 = arith.constant 1 : index
    %c0_129 = arith.constant 0 : index
    %c0_130 = arith.constant 0 : index
    %289 = vector.load %arg18[%c1_128, %c0_129, %c0_130] : memref<2x1x256xf32, #tpu.memory_space<vmem>>, vector<1x1x256xf32>
    %290 = vector.shape_cast %289 : vector<1x1x256xf32> to vector<1x256xf32>
    %291 = vector.broadcast %290 : vector<1x256xf32> to vector<48x256xf32>
    %292 = arith.addf %288, %291 : vector<48x256xf32>
    %cst_131 = arith.constant 1.702000e+00 : f32
    %293 = vector.broadcast %cst_131 : f32 to vector<48x256xf32>
    %294 = arith.mulf %293, %292 : vector<48x256xf32>
    %295 = arith.negf %294 : vector<48x256xf32>
    %296 = math.exp %295 : vector<48x256xf32>
    %cst_132 = arith.constant 1.000000e+00 : f32
    %297 = vector.broadcast %cst_132 : f32 to vector<48x256xf32>
    %298 = arith.addf %297, %296 : vector<48x256xf32>
    %299 = arith.divf %297, %298 : vector<48x256xf32>
    %300 = arith.mulf %292, %299 : vector<48x256xf32>
    %301 = arith.truncf %300 : vector<48x256xf32> to vector<48x256xbf16>
    %c1_133 = arith.constant 1 : index
    %c0_134 = arith.constant 0 : index
    %c0_135 = arith.constant 0 : index
    %302 = vector.load %arg19[%c1_133, %c0_134, %c0_135] : memref<2x256x64xbf16, #tpu.memory_space<vmem>>, vector<1x256x64xbf16>
    %303 = vector.shape_cast %302 : vector<1x256x64xbf16> to vector<256x64xbf16>
    %cst_136 = arith.constant dense<0.000000e+00> : vector<48x64xf32>
    %304 = tpu.matmul %301, %303, %cst_136 {dimension_numbers = #tpu.dot_dimension_numbers<[1], [0], [0], [1], [0, 0, 1, 1], [], []>} : vector<48x256xbf16>, vector<256x64xbf16>, vector<48x64xf32> -> vector<48x64xf32>
    %305 = arith.addf %258, %304 : vector<48x64xf32>
    %c1_137 = arith.constant 1 : index
    %c0_138 = arith.constant 0 : index
    %c0_139 = arith.constant 0 : index
    %306 = vector.load %arg20[%c1_137, %c0_138, %c0_139] : memref<2x1x64xf32, #tpu.memory_space<vmem>>, vector<1x1x64xf32>
    %307 = vector.shape_cast %306 : vector<1x1x64xf32> to vector<1x64xf32>
    %308 = vector.broadcast %307 : vector<1x64xf32> to vector<48x64xf32>
    %309 = arith.addf %305, %308 : vector<48x64xf32>
    %310 = arith.truncf %309 : vector<48x64xf32> to vector<48x64xbf16>
    %c0_140 = arith.constant 0 : index
    %c0_141 = arith.constant 0 : index
    %311 = vector.load %arg21[%c0_140, %c0_141] : memref<64x128xbf16, #tpu.memory_space<vmem>>, vector<64x128xbf16>
    %cst_142 = arith.constant dense<0.000000e+00> : vector<48x128xf32>
    %312 = tpu.matmul %310, %311, %cst_142 {dimension_numbers = #tpu.dot_dimension_numbers<[1], [0], [0], [1], [0, 0, 1, 1], [], []>} : vector<48x64xbf16>, vector<64x128xbf16>, vector<48x128xf32> -> vector<48x128xf32>
    %c0_143 = arith.constant 0 : index
    %c0_144 = arith.constant 0 : index
    %313 = vector.load %arg23[%c0_143, %c0_144] : memref<48x128xf32, #tpu.memory_space<vmem>>, vector<48x128xf32>
    %314 = arith.addf %312, %313 : vector<48x128xf32>
    %c0_145 = arith.constant 0 : index
    %c0_146 = arith.constant 0 : index
    %c0_147 = arith.constant 0 : index
    %315 = vector.load %arg2[%c0_145, %c0_146, %c0_147] : memref<1x16x1xi32, #tpu.memory_space<vmem>>, vector<1x16x1xi32>
    %316 = vector.shape_cast %315 : vector<1x16x1xi32> to vector<16x1xi32>
    %317 = tpu.iota {dimensions = array<i32: 1>} : vector<16x256xi32>
    %318 = vector.broadcast %316 : vector<16x1xi32> to vector<16x256xi32>
    %319 = arith.cmpi eq, %318, %317 : vector<16x256xi32>
    %cst_148 = arith.constant 1.000000e+00 : f32
    %cst_149 = arith.constant 0.000000e+00 : f32
    %320 = vector.broadcast %cst_148 : f32 to vector<16x256xf32>
    %321 = vector.broadcast %cst_149 : f32 to vector<16x256xf32>
    %322 = arith.select %319, %320, %321 : vector<16x256xi1>, vector<16x256xf32>
    %323 = arith.truncf %322 : vector<16x256xf32> to vector<16x256xbf16>
    %c0_150 = arith.constant 0 : index
    %c0_151 = arith.constant 0 : index
    %324 = vector.load %arg22[%c0_150, %c0_151] : memref<256x128xbf16, #tpu.memory_space<vmem>>, vector<256x128xbf16>
    %cst_152 = arith.constant dense<0.000000e+00> : vector<16x128xf32>
    %325 = tpu.matmul %323, %324, %cst_152 {dimension_numbers = #tpu.dot_dimension_numbers<[1], [0], [0], [1], [0, 0, 1, 1], [], []>} : vector<16x256xbf16>, vector<256x128xbf16>, vector<16x128xf32> -> vector<16x128xf32>
    %c0_153 = arith.constant 0 : index
    %c0_154 = arith.constant 0 : index
    %326 = vector.load %arg24[%c0_153, %c0_154] : memref<16x128xf32, #tpu.memory_space<vmem>>, vector<16x128xf32>
    %327 = arith.addf %325, %326 : vector<16x128xf32>
    %328 = tpu.concatenate %314, %327 in 0 : vector<48x128xf32>, vector<16x128xf32> -> vector<64x128xf32>
    %c0_155 = arith.constant 0 : index
    %c0_156 = arith.constant 0 : index
    %329 = vector.load %arg25[%c0_155, %c0_156] : memref<64x64xf32, #tpu.memory_space<vmem>>, vector<64x64xf32>
    %c0_157 = arith.constant 0 : index
    %c0_158 = arith.constant 0 : index
    %c0_159 = arith.constant 0 : index
    %330 = vector.load %arg3[%c0_157, %c0_158, %c0_159] : memref<1x1x64xf32, #tpu.memory_space<vmem>>, vector<1x1x64xf32>
    %331 = vector.shape_cast %330 : vector<1x1x64xf32> to vector<1x64xf32>
    %332 = vector.broadcast %331 : vector<1x64xf32> to vector<64x64xf32>
    %333 = arith.addf %329, %332 : vector<64x64xf32>
    %c0_160 = arith.constant 0 : index
    %c0_161 = arith.constant 0 : index
    %c0_162 = arith.constant 0 : index
    %334 = vector.load %arg26[%c0_160, %c0_161, %c0_162] : memref<2x1x128xf32, #tpu.memory_space<vmem>>, vector<1x1x128xf32>
    %335 = vector.shape_cast %334 : vector<1x1x128xf32> to vector<1x128xf32>
    %c0_163 = arith.constant 0 : index
    %c0_164 = arith.constant 0 : index
    %c0_165 = arith.constant 0 : index
    %336 = vector.load %arg27[%c0_163, %c0_164, %c0_165] : memref<2x1x128xf32, #tpu.memory_space<vmem>>, vector<1x1x128xf32>
    %337 = vector.shape_cast %336 : vector<1x1x128xf32> to vector<1x128xf32>
    %cst_166 = arith.constant dense<0.000000e+00> : vector<64xf32>
    %338 = vector.multi_reduction <add>, %328, %cst_166 [1] : vector<64x128xf32> to vector<64xf32>
    %339 = vector.shape_cast %338 : vector<64xf32> to vector<64x1xf32>
    %cst_167 = arith.constant 1.280000e+02 : f32
    %340 = vector.broadcast %cst_167 : f32 to vector<64x1xf32>
    %341 = arith.divf %339, %340 : vector<64x1xf32>
    %342 = vector.broadcast %341 : vector<64x1xf32> to vector<64x128xf32>
    %343 = arith.subf %328, %342 : vector<64x128xf32>
    %344 = arith.mulf %343, %343 : vector<64x128xf32>
    %cst_168 = arith.constant dense<0.000000e+00> : vector<64xf32>
    %345 = vector.multi_reduction <add>, %344, %cst_168 [1] : vector<64x128xf32> to vector<64xf32>
    %346 = vector.shape_cast %345 : vector<64xf32> to vector<64x1xf32>
    %cst_169 = arith.constant 1.280000e+02 : f32
    %347 = vector.broadcast %cst_169 : f32 to vector<64x1xf32>
    %348 = arith.divf %346, %347 : vector<64x1xf32>
    %349 = vector.broadcast %341 : vector<64x1xf32> to vector<64x128xf32>
    %350 = arith.subf %328, %349 : vector<64x128xf32>
    %cst_170 = arith.constant 9.99999974E-6 : f32
    %351 = vector.broadcast %cst_170 : f32 to vector<64x1xf32>
    %352 = arith.addf %348, %351 : vector<64x1xf32>
    %353 = math.rsqrt %352 : vector<64x1xf32>
    %354 = vector.broadcast %353 : vector<64x1xf32> to vector<64x128xf32>
    %355 = arith.mulf %350, %354 : vector<64x128xf32>
    %356 = vector.broadcast %335 : vector<1x128xf32> to vector<64x128xf32>
    %357 = arith.mulf %355, %356 : vector<64x128xf32>
    %358 = vector.broadcast %337 : vector<1x128xf32> to vector<64x128xf32>
    %359 = arith.addf %357, %358 : vector<64x128xf32>
    %360 = arith.truncf %359 : vector<64x128xf32> to vector<64x128xbf16>
    %c0_171 = arith.constant 0 : index
    %c0_172 = arith.constant 0 : index
    %c0_173 = arith.constant 0 : index
    %361 = vector.load %arg28[%c0_171, %c0_172, %c0_173] : memref<2x128x768xbf16, #tpu.memory_space<vmem>>, vector<1x128x768xbf16>
    %362 = vector.shape_cast %361 : vector<1x128x768xbf16> to vector<128x768xbf16>
    %cst_174 = arith.constant dense<0.000000e+00> : vector<64x768xf32>
    %363 = tpu.matmul %360, %362, %cst_174 {dimension_numbers = #tpu.dot_dimension_numbers<[1], [0], [0], [1], [0, 0, 1, 1], [], []>} : vector<64x128xbf16>, vector<128x768xbf16>, vector<64x768xf32> -> vector<64x768xf32>
    %c0_175 = arith.constant 0 : index
    %c0_176 = arith.constant 0 : index
    %c0_177 = arith.constant 0 : index
    %364 = vector.load %arg29[%c0_175, %c0_176, %c0_177] : memref<2x256x128xbf16, #tpu.memory_space<vmem>>, vector<1x256x128xbf16>
    %365 = vector.shape_cast %364 : vector<1x256x128xbf16> to vector<256x128xbf16>
    %366 = vector.extract_strided_slice %363 {offsets = [0, 0], sizes = [64, 64], strides = [1, 1]} : vector<64x768xf32> to vector<64x64xf32>
    %367 = arith.truncf %366 : vector<64x64xf32> to vector<64x64xbf16>
    %368 = vector.extract_strided_slice %363 {offsets = [0, 256], sizes = [64, 64], strides = [1, 1]} : vector<64x768xf32> to vector<64x64xf32>
    %369 = arith.truncf %368 : vector<64x64xf32> to vector<64x64xbf16>
    %370 = vector.extract_strided_slice %363 {offsets = [0, 512], sizes = [64, 64], strides = [1, 1]} : vector<64x768xf32> to vector<64x64xf32>
    %371 = arith.truncf %370 : vector<64x64xf32> to vector<64x64xbf16>
    %cst_178 = arith.constant dense<0.000000e+00> : vector<64x64xf32>
    %372 = tpu.matmul %367, %369, %cst_178 {dimension_numbers = #tpu.dot_dimension_numbers<[1], [1], [0], [0], [0, 0, 1, 0], [], []>} : vector<64x64xbf16>, vector<64x64xbf16>, vector<64x64xf32> -> vector<64x64xf32>
    %cst_179 = arith.constant 0.176776692 : f32
    %373 = vector.broadcast %cst_179 : f32 to vector<64x64xf32>
    %374 = arith.mulf %372, %373 : vector<64x64xf32>
    %375 = arith.addf %374, %333 : vector<64x64xf32>
    %cst_180 = arith.constant dense<0xFF800000> : vector<64xf32>
    %376 = vector.multi_reduction <maximumf>, %375, %cst_180 [1] : vector<64x64xf32> to vector<64xf32>
    %377 = vector.shape_cast %376 : vector<64xf32> to vector<64x1xf32>
    %378 = vector.broadcast %377 : vector<64x1xf32> to vector<64x64xf32>
    %379 = arith.subf %375, %378 : vector<64x64xf32>
    %380 = math.exp %379 : vector<64x64xf32>
    %cst_181 = arith.constant dense<0.000000e+00> : vector<64xf32>
    %381 = vector.multi_reduction <add>, %380, %cst_181 [1] : vector<64x64xf32> to vector<64xf32>
    %382 = vector.shape_cast %381 : vector<64xf32> to vector<64x1xf32>
    %383 = tpu.reciprocal %382 {approx = true} : vector<64x1xf32> -> vector<64x1xf32>
    %384 = vector.broadcast %383 : vector<64x1xf32> to vector<64x64xf32>
    %385 = arith.mulf %380, %384 : vector<64x64xf32>
    %386 = arith.truncf %385 : vector<64x64xf32> to vector<64x64xbf16>
    %cst_182 = arith.constant dense<0.000000e+00> : vector<64x64xf32>
    %387 = tpu.matmul %386, %371, %cst_182 {dimension_numbers = #tpu.dot_dimension_numbers<[1], [0], [0], [1], [0, 0, 1, 1], [], []>} : vector<64x64xbf16>, vector<64x64xbf16>, vector<64x64xf32> -> vector<64x64xf32>
    %388 = vector.extract_strided_slice %363 {offsets = [0, 64], sizes = [64, 64], strides = [1, 1]} : vector<64x768xf32> to vector<64x64xf32>
    %389 = arith.truncf %388 : vector<64x64xf32> to vector<64x64xbf16>
    %390 = vector.extract_strided_slice %363 {offsets = [0, 320], sizes = [64, 64], strides = [1, 1]} : vector<64x768xf32> to vector<64x64xf32>
    %391 = arith.truncf %390 : vector<64x64xf32> to vector<64x64xbf16>
    %392 = vector.extract_strided_slice %363 {offsets = [0, 576], sizes = [64, 64], strides = [1, 1]} : vector<64x768xf32> to vector<64x64xf32>
    %393 = arith.truncf %392 : vector<64x64xf32> to vector<64x64xbf16>
    %cst_183 = arith.constant dense<0.000000e+00> : vector<64x64xf32>
    %394 = tpu.matmul %389, %391, %cst_183 {dimension_numbers = #tpu.dot_dimension_numbers<[1], [1], [0], [0], [0, 0, 1, 0], [], []>} : vector<64x64xbf16>, vector<64x64xbf16>, vector<64x64xf32> -> vector<64x64xf32>
    %cst_184 = arith.constant 0.176776692 : f32
    %395 = vector.broadcast %cst_184 : f32 to vector<64x64xf32>
    %396 = arith.mulf %394, %395 : vector<64x64xf32>
    %397 = arith.addf %396, %333 : vector<64x64xf32>
    %cst_185 = arith.constant dense<0xFF800000> : vector<64xf32>
    %398 = vector.multi_reduction <maximumf>, %397, %cst_185 [1] : vector<64x64xf32> to vector<64xf32>
    %399 = vector.shape_cast %398 : vector<64xf32> to vector<64x1xf32>
    %400 = vector.broadcast %399 : vector<64x1xf32> to vector<64x64xf32>
    %401 = arith.subf %397, %400 : vector<64x64xf32>
    %402 = math.exp %401 : vector<64x64xf32>
    %cst_186 = arith.constant dense<0.000000e+00> : vector<64xf32>
    %403 = vector.multi_reduction <add>, %402, %cst_186 [1] : vector<64x64xf32> to vector<64xf32>
    %404 = vector.shape_cast %403 : vector<64xf32> to vector<64x1xf32>
    %405 = tpu.reciprocal %404 {approx = true} : vector<64x1xf32> -> vector<64x1xf32>
    %406 = vector.broadcast %405 : vector<64x1xf32> to vector<64x64xf32>
    %407 = arith.mulf %402, %406 : vector<64x64xf32>
    %408 = arith.truncf %407 : vector<64x64xf32> to vector<64x64xbf16>
    %cst_187 = arith.constant dense<0.000000e+00> : vector<64x64xf32>
    %409 = tpu.matmul %408, %393, %cst_187 {dimension_numbers = #tpu.dot_dimension_numbers<[1], [0], [0], [1], [0, 0, 1, 1], [], []>} : vector<64x64xbf16>, vector<64x64xbf16>, vector<64x64xf32> -> vector<64x64xf32>
    %410 = vector.extract_strided_slice %363 {offsets = [0, 128], sizes = [64, 64], strides = [1, 1]} : vector<64x768xf32> to vector<64x64xf32>
    %411 = arith.truncf %410 : vector<64x64xf32> to vector<64x64xbf16>
    %412 = vector.extract_strided_slice %363 {offsets = [0, 384], sizes = [64, 64], strides = [1, 1]} : vector<64x768xf32> to vector<64x64xf32>
    %413 = arith.truncf %412 : vector<64x64xf32> to vector<64x64xbf16>
    %414 = vector.extract_strided_slice %363 {offsets = [0, 640], sizes = [64, 64], strides = [1, 1]} : vector<64x768xf32> to vector<64x64xf32>
    %415 = arith.truncf %414 : vector<64x64xf32> to vector<64x64xbf16>
    %cst_188 = arith.constant dense<0.000000e+00> : vector<64x64xf32>
    %416 = tpu.matmul %411, %413, %cst_188 {dimension_numbers = #tpu.dot_dimension_numbers<[1], [1], [0], [0], [0, 0, 1, 0], [], []>} : vector<64x64xbf16>, vector<64x64xbf16>, vector<64x64xf32> -> vector<64x64xf32>
    %cst_189 = arith.constant 0.176776692 : f32
    %417 = vector.broadcast %cst_189 : f32 to vector<64x64xf32>
    %418 = arith.mulf %416, %417 : vector<64x64xf32>
    %419 = arith.addf %418, %333 : vector<64x64xf32>
    %cst_190 = arith.constant dense<0xFF800000> : vector<64xf32>
    %420 = vector.multi_reduction <maximumf>, %419, %cst_190 [1] : vector<64x64xf32> to vector<64xf32>
    %421 = vector.shape_cast %420 : vector<64xf32> to vector<64x1xf32>
    %422 = vector.broadcast %421 : vector<64x1xf32> to vector<64x64xf32>
    %423 = arith.subf %419, %422 : vector<64x64xf32>
    %424 = math.exp %423 : vector<64x64xf32>
    %cst_191 = arith.constant dense<0.000000e+00> : vector<64xf32>
    %425 = vector.multi_reduction <add>, %424, %cst_191 [1] : vector<64x64xf32> to vector<64xf32>
    %426 = vector.shape_cast %425 : vector<64xf32> to vector<64x1xf32>
    %427 = tpu.reciprocal %426 {approx = true} : vector<64x1xf32> -> vector<64x1xf32>
    %428 = vector.broadcast %427 : vector<64x1xf32> to vector<64x64xf32>
    %429 = arith.mulf %424, %428 : vector<64x64xf32>
    %430 = arith.truncf %429 : vector<64x64xf32> to vector<64x64xbf16>
    %cst_192 = arith.constant dense<0.000000e+00> : vector<64x64xf32>
    %431 = tpu.matmul %430, %415, %cst_192 {dimension_numbers = #tpu.dot_dimension_numbers<[1], [0], [0], [1], [0, 0, 1, 1], [], []>} : vector<64x64xbf16>, vector<64x64xbf16>, vector<64x64xf32> -> vector<64x64xf32>
    %432 = vector.extract_strided_slice %363 {offsets = [0, 192], sizes = [64, 64], strides = [1, 1]} : vector<64x768xf32> to vector<64x64xf32>
    %433 = arith.truncf %432 : vector<64x64xf32> to vector<64x64xbf16>
    %434 = vector.extract_strided_slice %363 {offsets = [0, 448], sizes = [64, 64], strides = [1, 1]} : vector<64x768xf32> to vector<64x64xf32>
    %435 = arith.truncf %434 : vector<64x64xf32> to vector<64x64xbf16>
    %436 = vector.extract_strided_slice %363 {offsets = [0, 704], sizes = [64, 64], strides = [1, 1]} : vector<64x768xf32> to vector<64x64xf32>
    %437 = arith.truncf %436 : vector<64x64xf32> to vector<64x64xbf16>
    %cst_193 = arith.constant dense<0.000000e+00> : vector<64x64xf32>
    %438 = tpu.matmul %433, %435, %cst_193 {dimension_numbers = #tpu.dot_dimension_numbers<[1], [1], [0], [0], [0, 0, 1, 0], [], []>} : vector<64x64xbf16>, vector<64x64xbf16>, vector<64x64xf32> -> vector<64x64xf32>
    %cst_194 = arith.constant 0.176776692 : f32
    %439 = vector.broadcast %cst_194 : f32 to vector<64x64xf32>
    %440 = arith.mulf %438, %439 : vector<64x64xf32>
    %441 = arith.addf %440, %333 : vector<64x64xf32>
    %cst_195 = arith.constant dense<0xFF800000> : vector<64xf32>
    %442 = vector.multi_reduction <maximumf>, %441, %cst_195 [1] : vector<64x64xf32> to vector<64xf32>
    %443 = vector.shape_cast %442 : vector<64xf32> to vector<64x1xf32>
    %444 = vector.broadcast %443 : vector<64x1xf32> to vector<64x64xf32>
    %445 = arith.subf %441, %444 : vector<64x64xf32>
    %446 = math.exp %445 : vector<64x64xf32>
    %cst_196 = arith.constant dense<0.000000e+00> : vector<64xf32>
    %447 = vector.multi_reduction <add>, %446, %cst_196 [1] : vector<64x64xf32> to vector<64xf32>
    %448 = vector.shape_cast %447 : vector<64xf32> to vector<64x1xf32>
    %449 = tpu.reciprocal %448 {approx = true} : vector<64x1xf32> -> vector<64x1xf32>
    %450 = vector.broadcast %449 : vector<64x1xf32> to vector<64x64xf32>
    %451 = arith.mulf %446, %450 : vector<64x64xf32>
    %452 = arith.truncf %451 : vector<64x64xf32> to vector<64x64xbf16>
    %cst_197 = arith.constant dense<0.000000e+00> : vector<64x64xf32>
    %453 = tpu.matmul %452, %437, %cst_197 {dimension_numbers = #tpu.dot_dimension_numbers<[1], [0], [0], [1], [0, 0, 1, 1], [], []>} : vector<64x64xbf16>, vector<64x64xbf16>, vector<64x64xf32> -> vector<64x64xf32>
    %454 = tpu.concatenate %387, %409, %431, %453 in 1 : vector<64x64xf32>, vector<64x64xf32>, vector<64x64xf32>, vector<64x64xf32> -> vector<64x256xf32>
    %455 = arith.truncf %454 : vector<64x256xf32> to vector<64x256xbf16>
    %cst_198 = arith.constant dense<0.000000e+00> : vector<64x128xf32>
    %456 = tpu.matmul %455, %365, %cst_198 {dimension_numbers = #tpu.dot_dimension_numbers<[1], [0], [0], [1], [0, 0, 1, 1], [], []>} : vector<64x256xbf16>, vector<256x128xbf16>, vector<64x128xf32> -> vector<64x128xf32>
    %457 = arith.addf %328, %456 : vector<64x128xf32>
    %c0_199 = arith.constant 0 : index
    %c0_200 = arith.constant 0 : index
    %c0_201 = arith.constant 0 : index
    %458 = vector.load %arg30[%c0_199, %c0_200, %c0_201] : memref<2x1x128xf32, #tpu.memory_space<vmem>>, vector<1x1x128xf32>
    %459 = vector.shape_cast %458 : vector<1x1x128xf32> to vector<1x128xf32>
    %c0_202 = arith.constant 0 : index
    %c0_203 = arith.constant 0 : index
    %c0_204 = arith.constant 0 : index
    %460 = vector.load %arg31[%c0_202, %c0_203, %c0_204] : memref<2x1x128xf32, #tpu.memory_space<vmem>>, vector<1x1x128xf32>
    %461 = vector.shape_cast %460 : vector<1x1x128xf32> to vector<1x128xf32>
    %cst_205 = arith.constant dense<0.000000e+00> : vector<64xf32>
    %462 = vector.multi_reduction <add>, %457, %cst_205 [1] : vector<64x128xf32> to vector<64xf32>
    %463 = vector.shape_cast %462 : vector<64xf32> to vector<64x1xf32>
    %cst_206 = arith.constant 1.280000e+02 : f32
    %464 = vector.broadcast %cst_206 : f32 to vector<64x1xf32>
    %465 = arith.divf %463, %464 : vector<64x1xf32>
    %466 = vector.broadcast %465 : vector<64x1xf32> to vector<64x128xf32>
    %467 = arith.subf %457, %466 : vector<64x128xf32>
    %468 = arith.mulf %467, %467 : vector<64x128xf32>
    %cst_207 = arith.constant dense<0.000000e+00> : vector<64xf32>
    %469 = vector.multi_reduction <add>, %468, %cst_207 [1] : vector<64x128xf32> to vector<64xf32>
    %470 = vector.shape_cast %469 : vector<64xf32> to vector<64x1xf32>
    %cst_208 = arith.constant 1.280000e+02 : f32
    %471 = vector.broadcast %cst_208 : f32 to vector<64x1xf32>
    %472 = arith.divf %470, %471 : vector<64x1xf32>
    %473 = vector.broadcast %465 : vector<64x1xf32> to vector<64x128xf32>
    %474 = arith.subf %457, %473 : vector<64x128xf32>
    %cst_209 = arith.constant 9.99999974E-6 : f32
    %475 = vector.broadcast %cst_209 : f32 to vector<64x1xf32>
    %476 = arith.addf %472, %475 : vector<64x1xf32>
    %477 = math.rsqrt %476 : vector<64x1xf32>
    %478 = vector.broadcast %477 : vector<64x1xf32> to vector<64x128xf32>
    %479 = arith.mulf %474, %478 : vector<64x128xf32>
    %480 = vector.broadcast %459 : vector<1x128xf32> to vector<64x128xf32>
    %481 = arith.mulf %479, %480 : vector<64x128xf32>
    %482 = vector.broadcast %461 : vector<1x128xf32> to vector<64x128xf32>
    %483 = arith.addf %481, %482 : vector<64x128xf32>
    %484 = arith.truncf %483 : vector<64x128xf32> to vector<64x128xbf16>
    %c0_210 = arith.constant 0 : index
    %c0_211 = arith.constant 0 : index
    %c0_212 = arith.constant 0 : index
    %485 = vector.load %arg32[%c0_210, %c0_211, %c0_212] : memref<2x128x512xbf16, #tpu.memory_space<vmem>>, vector<1x128x512xbf16>
    %486 = vector.shape_cast %485 : vector<1x128x512xbf16> to vector<128x512xbf16>
    %cst_213 = arith.constant dense<0.000000e+00> : vector<64x512xf32>
    %487 = tpu.matmul %484, %486, %cst_213 {dimension_numbers = #tpu.dot_dimension_numbers<[1], [0], [0], [1], [0, 0, 1, 1], [], []>} : vector<64x128xbf16>, vector<128x512xbf16>, vector<64x512xf32> -> vector<64x512xf32>
    %c0_214 = arith.constant 0 : index
    %c0_215 = arith.constant 0 : index
    %c0_216 = arith.constant 0 : index
    %488 = vector.load %arg33[%c0_214, %c0_215, %c0_216] : memref<2x1x512xf32, #tpu.memory_space<vmem>>, vector<1x1x512xf32>
    %489 = vector.shape_cast %488 : vector<1x1x512xf32> to vector<1x512xf32>
    %490 = vector.broadcast %489 : vector<1x512xf32> to vector<64x512xf32>
    %491 = arith.addf %487, %490 : vector<64x512xf32>
    %cst_217 = arith.constant 5.000000e-01 : f32
    %492 = vector.broadcast %cst_217 : f32 to vector<64x512xf32>
    %493 = arith.mulf %492, %491 : vector<64x512xf32>
    %cst_218 = arith.constant 0.707106769 : f32
    %494 = vector.broadcast %cst_218 : f32 to vector<64x512xf32>
    %495 = arith.mulf %491, %494 : vector<64x512xf32>
    %496 = math.erf %495 : vector<64x512xf32>
    %cst_219 = arith.constant 1.000000e+00 : f32
    %497 = vector.broadcast %cst_219 : f32 to vector<64x512xf32>
    %498 = arith.addf %497, %496 : vector<64x512xf32>
    %499 = arith.mulf %493, %498 : vector<64x512xf32>
    %500 = arith.truncf %499 : vector<64x512xf32> to vector<64x512xbf16>
    %c0_220 = arith.constant 0 : index
    %c0_221 = arith.constant 0 : index
    %c0_222 = arith.constant 0 : index
    %501 = vector.load %arg34[%c0_220, %c0_221, %c0_222] : memref<2x512x128xbf16, #tpu.memory_space<vmem>>, vector<1x512x128xbf16>
    %502 = vector.shape_cast %501 : vector<1x512x128xbf16> to vector<512x128xbf16>
    %cst_223 = arith.constant dense<0.000000e+00> : vector<64x128xf32>
    %503 = tpu.matmul %500, %502, %cst_223 {dimension_numbers = #tpu.dot_dimension_numbers<[1], [0], [0], [1], [0, 0, 1, 1], [], []>} : vector<64x512xbf16>, vector<512x128xbf16>, vector<64x128xf32> -> vector<64x128xf32>
    %504 = arith.addf %457, %503 : vector<64x128xf32>
    %c0_224 = arith.constant 0 : index
    %c0_225 = arith.constant 0 : index
    %c0_226 = arith.constant 0 : index
    %505 = vector.load %arg35[%c0_224, %c0_225, %c0_226] : memref<2x1x128xf32, #tpu.memory_space<vmem>>, vector<1x1x128xf32>
    %506 = vector.shape_cast %505 : vector<1x1x128xf32> to vector<1x128xf32>
    %507 = vector.broadcast %506 : vector<1x128xf32> to vector<64x128xf32>
    %508 = arith.addf %504, %507 : vector<64x128xf32>
    %c1_227 = arith.constant 1 : index
    %c0_228 = arith.constant 0 : index
    %c0_229 = arith.constant 0 : index
    %509 = vector.load %arg26[%c1_227, %c0_228, %c0_229] : memref<2x1x128xf32, #tpu.memory_space<vmem>>, vector<1x1x128xf32>
    %510 = vector.shape_cast %509 : vector<1x1x128xf32> to vector<1x128xf32>
    %c1_230 = arith.constant 1 : index
    %c0_231 = arith.constant 0 : index
    %c0_232 = arith.constant 0 : index
    %511 = vector.load %arg27[%c1_230, %c0_231, %c0_232] : memref<2x1x128xf32, #tpu.memory_space<vmem>>, vector<1x1x128xf32>
    %512 = vector.shape_cast %511 : vector<1x1x128xf32> to vector<1x128xf32>
    %cst_233 = arith.constant dense<0.000000e+00> : vector<64xf32>
    %513 = vector.multi_reduction <add>, %508, %cst_233 [1] : vector<64x128xf32> to vector<64xf32>
    %514 = vector.shape_cast %513 : vector<64xf32> to vector<64x1xf32>
    %cst_234 = arith.constant 1.280000e+02 : f32
    %515 = vector.broadcast %cst_234 : f32 to vector<64x1xf32>
    %516 = arith.divf %514, %515 : vector<64x1xf32>
    %517 = vector.broadcast %516 : vector<64x1xf32> to vector<64x128xf32>
    %518 = arith.subf %508, %517 : vector<64x128xf32>
    %519 = arith.mulf %518, %518 : vector<64x128xf32>
    %cst_235 = arith.constant dense<0.000000e+00> : vector<64xf32>
    %520 = vector.multi_reduction <add>, %519, %cst_235 [1] : vector<64x128xf32> to vector<64xf32>
    %521 = vector.shape_cast %520 : vector<64xf32> to vector<64x1xf32>
    %cst_236 = arith.constant 1.280000e+02 : f32
    %522 = vector.broadcast %cst_236 : f32 to vector<64x1xf32>
    %523 = arith.divf %521, %522 : vector<64x1xf32>
    %524 = vector.broadcast %516 : vector<64x1xf32> to vector<64x128xf32>
    %525 = arith.subf %508, %524 : vector<64x128xf32>
    %cst_237 = arith.constant 9.99999974E-6 : f32
    %526 = vector.broadcast %cst_237 : f32 to vector<64x1xf32>
    %527 = arith.addf %523, %526 : vector<64x1xf32>
    %528 = math.rsqrt %527 : vector<64x1xf32>
    %529 = vector.broadcast %528 : vector<64x1xf32> to vector<64x128xf32>
    %530 = arith.mulf %525, %529 : vector<64x128xf32>
    %531 = vector.broadcast %510 : vector<1x128xf32> to vector<64x128xf32>
    %532 = arith.mulf %530, %531 : vector<64x128xf32>
    %533 = vector.broadcast %512 : vector<1x128xf32> to vector<64x128xf32>
    %534 = arith.addf %532, %533 : vector<64x128xf32>
    %535 = arith.truncf %534 : vector<64x128xf32> to vector<64x128xbf16>
    %c1_238 = arith.constant 1 : index
    %c0_239 = arith.constant 0 : index
    %c0_240 = arith.constant 0 : index
    %536 = vector.load %arg28[%c1_238, %c0_239, %c0_240] : memref<2x128x768xbf16, #tpu.memory_space<vmem>>, vector<1x128x768xbf16>
    %537 = vector.shape_cast %536 : vector<1x128x768xbf16> to vector<128x768xbf16>
    %cst_241 = arith.constant dense<0.000000e+00> : vector<64x768xf32>
    %538 = tpu.matmul %535, %537, %cst_241 {dimension_numbers = #tpu.dot_dimension_numbers<[1], [0], [0], [1], [0, 0, 1, 1], [], []>} : vector<64x128xbf16>, vector<128x768xbf16>, vector<64x768xf32> -> vector<64x768xf32>
    %c1_242 = arith.constant 1 : index
    %c0_243 = arith.constant 0 : index
    %c0_244 = arith.constant 0 : index
    %539 = vector.load %arg29[%c1_242, %c0_243, %c0_244] : memref<2x256x128xbf16, #tpu.memory_space<vmem>>, vector<1x256x128xbf16>
    %540 = vector.shape_cast %539 : vector<1x256x128xbf16> to vector<256x128xbf16>
    %541 = vector.extract_strided_slice %538 {offsets = [0, 0], sizes = [64, 64], strides = [1, 1]} : vector<64x768xf32> to vector<64x64xf32>
    %542 = arith.truncf %541 : vector<64x64xf32> to vector<64x64xbf16>
    %543 = vector.extract_strided_slice %538 {offsets = [0, 256], sizes = [64, 64], strides = [1, 1]} : vector<64x768xf32> to vector<64x64xf32>
    %544 = arith.truncf %543 : vector<64x64xf32> to vector<64x64xbf16>
    %545 = vector.extract_strided_slice %538 {offsets = [0, 512], sizes = [64, 64], strides = [1, 1]} : vector<64x768xf32> to vector<64x64xf32>
    %546 = arith.truncf %545 : vector<64x64xf32> to vector<64x64xbf16>
    %cst_245 = arith.constant dense<0.000000e+00> : vector<64x64xf32>
    %547 = tpu.matmul %542, %544, %cst_245 {dimension_numbers = #tpu.dot_dimension_numbers<[1], [1], [0], [0], [0, 0, 1, 0], [], []>} : vector<64x64xbf16>, vector<64x64xbf16>, vector<64x64xf32> -> vector<64x64xf32>
    %cst_246 = arith.constant 0.176776692 : f32
    %548 = vector.broadcast %cst_246 : f32 to vector<64x64xf32>
    %549 = arith.mulf %547, %548 : vector<64x64xf32>
    %550 = arith.addf %549, %333 : vector<64x64xf32>
    %cst_247 = arith.constant dense<0xFF800000> : vector<64xf32>
    %551 = vector.multi_reduction <maximumf>, %550, %cst_247 [1] : vector<64x64xf32> to vector<64xf32>
    %552 = vector.shape_cast %551 : vector<64xf32> to vector<64x1xf32>
    %553 = vector.broadcast %552 : vector<64x1xf32> to vector<64x64xf32>
    %554 = arith.subf %550, %553 : vector<64x64xf32>
    %555 = math.exp %554 : vector<64x64xf32>
    %cst_248 = arith.constant dense<0.000000e+00> : vector<64xf32>
    %556 = vector.multi_reduction <add>, %555, %cst_248 [1] : vector<64x64xf32> to vector<64xf32>
    %557 = vector.shape_cast %556 : vector<64xf32> to vector<64x1xf32>
    %558 = tpu.reciprocal %557 {approx = true} : vector<64x1xf32> -> vector<64x1xf32>
    %559 = vector.broadcast %558 : vector<64x1xf32> to vector<64x64xf32>
    %560 = arith.mulf %555, %559 : vector<64x64xf32>
    %561 = arith.truncf %560 : vector<64x64xf32> to vector<64x64xbf16>
    %cst_249 = arith.constant dense<0.000000e+00> : vector<64x64xf32>
    %562 = tpu.matmul %561, %546, %cst_249 {dimension_numbers = #tpu.dot_dimension_numbers<[1], [0], [0], [1], [0, 0, 1, 1], [], []>} : vector<64x64xbf16>, vector<64x64xbf16>, vector<64x64xf32> -> vector<64x64xf32>
    %563 = vector.extract_strided_slice %538 {offsets = [0, 64], sizes = [64, 64], strides = [1, 1]} : vector<64x768xf32> to vector<64x64xf32>
    %564 = arith.truncf %563 : vector<64x64xf32> to vector<64x64xbf16>
    %565 = vector.extract_strided_slice %538 {offsets = [0, 320], sizes = [64, 64], strides = [1, 1]} : vector<64x768xf32> to vector<64x64xf32>
    %566 = arith.truncf %565 : vector<64x64xf32> to vector<64x64xbf16>
    %567 = vector.extract_strided_slice %538 {offsets = [0, 576], sizes = [64, 64], strides = [1, 1]} : vector<64x768xf32> to vector<64x64xf32>
    %568 = arith.truncf %567 : vector<64x64xf32> to vector<64x64xbf16>
    %cst_250 = arith.constant dense<0.000000e+00> : vector<64x64xf32>
    %569 = tpu.matmul %564, %566, %cst_250 {dimension_numbers = #tpu.dot_dimension_numbers<[1], [1], [0], [0], [0, 0, 1, 0], [], []>} : vector<64x64xbf16>, vector<64x64xbf16>, vector<64x64xf32> -> vector<64x64xf32>
    %cst_251 = arith.constant 0.176776692 : f32
    %570 = vector.broadcast %cst_251 : f32 to vector<64x64xf32>
    %571 = arith.mulf %569, %570 : vector<64x64xf32>
    %572 = arith.addf %571, %333 : vector<64x64xf32>
    %cst_252 = arith.constant dense<0xFF800000> : vector<64xf32>
    %573 = vector.multi_reduction <maximumf>, %572, %cst_252 [1] : vector<64x64xf32> to vector<64xf32>
    %574 = vector.shape_cast %573 : vector<64xf32> to vector<64x1xf32>
    %575 = vector.broadcast %574 : vector<64x1xf32> to vector<64x64xf32>
    %576 = arith.subf %572, %575 : vector<64x64xf32>
    %577 = math.exp %576 : vector<64x64xf32>
    %cst_253 = arith.constant dense<0.000000e+00> : vector<64xf32>
    %578 = vector.multi_reduction <add>, %577, %cst_253 [1] : vector<64x64xf32> to vector<64xf32>
    %579 = vector.shape_cast %578 : vector<64xf32> to vector<64x1xf32>
    %580 = tpu.reciprocal %579 {approx = true} : vector<64x1xf32> -> vector<64x1xf32>
    %581 = vector.broadcast %580 : vector<64x1xf32> to vector<64x64xf32>
    %582 = arith.mulf %577, %581 : vector<64x64xf32>
    %583 = arith.truncf %582 : vector<64x64xf32> to vector<64x64xbf16>
    %cst_254 = arith.constant dense<0.000000e+00> : vector<64x64xf32>
    %584 = tpu.matmul %583, %568, %cst_254 {dimension_numbers = #tpu.dot_dimension_numbers<[1], [0], [0], [1], [0, 0, 1, 1], [], []>} : vector<64x64xbf16>, vector<64x64xbf16>, vector<64x64xf32> -> vector<64x64xf32>
    %585 = vector.extract_strided_slice %538 {offsets = [0, 128], sizes = [64, 64], strides = [1, 1]} : vector<64x768xf32> to vector<64x64xf32>
    %586 = arith.truncf %585 : vector<64x64xf32> to vector<64x64xbf16>
    %587 = vector.extract_strided_slice %538 {offsets = [0, 384], sizes = [64, 64], strides = [1, 1]} : vector<64x768xf32> to vector<64x64xf32>
    %588 = arith.truncf %587 : vector<64x64xf32> to vector<64x64xbf16>
    %589 = vector.extract_strided_slice %538 {offsets = [0, 640], sizes = [64, 64], strides = [1, 1]} : vector<64x768xf32> to vector<64x64xf32>
    %590 = arith.truncf %589 : vector<64x64xf32> to vector<64x64xbf16>
    %cst_255 = arith.constant dense<0.000000e+00> : vector<64x64xf32>
    %591 = tpu.matmul %586, %588, %cst_255 {dimension_numbers = #tpu.dot_dimension_numbers<[1], [1], [0], [0], [0, 0, 1, 0], [], []>} : vector<64x64xbf16>, vector<64x64xbf16>, vector<64x64xf32> -> vector<64x64xf32>
    %cst_256 = arith.constant 0.176776692 : f32
    %592 = vector.broadcast %cst_256 : f32 to vector<64x64xf32>
    %593 = arith.mulf %591, %592 : vector<64x64xf32>
    %594 = arith.addf %593, %333 : vector<64x64xf32>
    %cst_257 = arith.constant dense<0xFF800000> : vector<64xf32>
    %595 = vector.multi_reduction <maximumf>, %594, %cst_257 [1] : vector<64x64xf32> to vector<64xf32>
    %596 = vector.shape_cast %595 : vector<64xf32> to vector<64x1xf32>
    %597 = vector.broadcast %596 : vector<64x1xf32> to vector<64x64xf32>
    %598 = arith.subf %594, %597 : vector<64x64xf32>
    %599 = math.exp %598 : vector<64x64xf32>
    %cst_258 = arith.constant dense<0.000000e+00> : vector<64xf32>
    %600 = vector.multi_reduction <add>, %599, %cst_258 [1] : vector<64x64xf32> to vector<64xf32>
    %601 = vector.shape_cast %600 : vector<64xf32> to vector<64x1xf32>
    %602 = tpu.reciprocal %601 {approx = true} : vector<64x1xf32> -> vector<64x1xf32>
    %603 = vector.broadcast %602 : vector<64x1xf32> to vector<64x64xf32>
    %604 = arith.mulf %599, %603 : vector<64x64xf32>
    %605 = arith.truncf %604 : vector<64x64xf32> to vector<64x64xbf16>
    %cst_259 = arith.constant dense<0.000000e+00> : vector<64x64xf32>
    %606 = tpu.matmul %605, %590, %cst_259 {dimension_numbers = #tpu.dot_dimension_numbers<[1], [0], [0], [1], [0, 0, 1, 1], [], []>} : vector<64x64xbf16>, vector<64x64xbf16>, vector<64x64xf32> -> vector<64x64xf32>
    %607 = vector.extract_strided_slice %538 {offsets = [0, 192], sizes = [64, 64], strides = [1, 1]} : vector<64x768xf32> to vector<64x64xf32>
    %608 = arith.truncf %607 : vector<64x64xf32> to vector<64x64xbf16>
    %609 = vector.extract_strided_slice %538 {offsets = [0, 448], sizes = [64, 64], strides = [1, 1]} : vector<64x768xf32> to vector<64x64xf32>
    %610 = arith.truncf %609 : vector<64x64xf32> to vector<64x64xbf16>
    %611 = vector.extract_strided_slice %538 {offsets = [0, 704], sizes = [64, 64], strides = [1, 1]} : vector<64x768xf32> to vector<64x64xf32>
    %612 = arith.truncf %611 : vector<64x64xf32> to vector<64x64xbf16>
    %cst_260 = arith.constant dense<0.000000e+00> : vector<64x64xf32>
    %613 = tpu.matmul %608, %610, %cst_260 {dimension_numbers = #tpu.dot_dimension_numbers<[1], [1], [0], [0], [0, 0, 1, 0], [], []>} : vector<64x64xbf16>, vector<64x64xbf16>, vector<64x64xf32> -> vector<64x64xf32>
    %cst_261 = arith.constant 0.176776692 : f32
    %614 = vector.broadcast %cst_261 : f32 to vector<64x64xf32>
    %615 = arith.mulf %613, %614 : vector<64x64xf32>
    %616 = arith.addf %615, %333 : vector<64x64xf32>
    %cst_262 = arith.constant dense<0xFF800000> : vector<64xf32>
    %617 = vector.multi_reduction <maximumf>, %616, %cst_262 [1] : vector<64x64xf32> to vector<64xf32>
    %618 = vector.shape_cast %617 : vector<64xf32> to vector<64x1xf32>
    %619 = vector.broadcast %618 : vector<64x1xf32> to vector<64x64xf32>
    %620 = arith.subf %616, %619 : vector<64x64xf32>
    %621 = math.exp %620 : vector<64x64xf32>
    %cst_263 = arith.constant dense<0.000000e+00> : vector<64xf32>
    %622 = vector.multi_reduction <add>, %621, %cst_263 [1] : vector<64x64xf32> to vector<64xf32>
    %623 = vector.shape_cast %622 : vector<64xf32> to vector<64x1xf32>
    %624 = tpu.reciprocal %623 {approx = true} : vector<64x1xf32> -> vector<64x1xf32>
    %625 = vector.broadcast %624 : vector<64x1xf32> to vector<64x64xf32>
    %626 = arith.mulf %621, %625 : vector<64x64xf32>
    %627 = arith.truncf %626 : vector<64x64xf32> to vector<64x64xbf16>
    %cst_264 = arith.constant dense<0.000000e+00> : vector<64x64xf32>
    %628 = tpu.matmul %627, %612, %cst_264 {dimension_numbers = #tpu.dot_dimension_numbers<[1], [0], [0], [1], [0, 0, 1, 1], [], []>} : vector<64x64xbf16>, vector<64x64xbf16>, vector<64x64xf32> -> vector<64x64xf32>
    %629 = tpu.concatenate %562, %584, %606, %628 in 1 : vector<64x64xf32>, vector<64x64xf32>, vector<64x64xf32>, vector<64x64xf32> -> vector<64x256xf32>
    %630 = arith.truncf %629 : vector<64x256xf32> to vector<64x256xbf16>
    %cst_265 = arith.constant dense<0.000000e+00> : vector<64x128xf32>
    %631 = tpu.matmul %630, %540, %cst_265 {dimension_numbers = #tpu.dot_dimension_numbers<[1], [0], [0], [1], [0, 0, 1, 1], [], []>} : vector<64x256xbf16>, vector<256x128xbf16>, vector<64x128xf32> -> vector<64x128xf32>
    %632 = arith.addf %508, %631 : vector<64x128xf32>
    %c1_266 = arith.constant 1 : index
    %c0_267 = arith.constant 0 : index
    %c0_268 = arith.constant 0 : index
    %633 = vector.load %arg30[%c1_266, %c0_267, %c0_268] : memref<2x1x128xf32, #tpu.memory_space<vmem>>, vector<1x1x128xf32>
    %634 = vector.shape_cast %633 : vector<1x1x128xf32> to vector<1x128xf32>
    %c1_269 = arith.constant 1 : index
    %c0_270 = arith.constant 0 : index
    %c0_271 = arith.constant 0 : index
    %635 = vector.load %arg31[%c1_269, %c0_270, %c0_271] : memref<2x1x128xf32, #tpu.memory_space<vmem>>, vector<1x1x128xf32>
    %636 = vector.shape_cast %635 : vector<1x1x128xf32> to vector<1x128xf32>
    %cst_272 = arith.constant dense<0.000000e+00> : vector<64xf32>
    %637 = vector.multi_reduction <add>, %632, %cst_272 [1] : vector<64x128xf32> to vector<64xf32>
    %638 = vector.shape_cast %637 : vector<64xf32> to vector<64x1xf32>
    %cst_273 = arith.constant 1.280000e+02 : f32
    %639 = vector.broadcast %cst_273 : f32 to vector<64x1xf32>
    %640 = arith.divf %638, %639 : vector<64x1xf32>
    %641 = vector.broadcast %640 : vector<64x1xf32> to vector<64x128xf32>
    %642 = arith.subf %632, %641 : vector<64x128xf32>
    %643 = arith.mulf %642, %642 : vector<64x128xf32>
    %cst_274 = arith.constant dense<0.000000e+00> : vector<64xf32>
    %644 = vector.multi_reduction <add>, %643, %cst_274 [1] : vector<64x128xf32> to vector<64xf32>
    %645 = vector.shape_cast %644 : vector<64xf32> to vector<64x1xf32>
    %cst_275 = arith.constant 1.280000e+02 : f32
    %646 = vector.broadcast %cst_275 : f32 to vector<64x1xf32>
    %647 = arith.divf %645, %646 : vector<64x1xf32>
    %648 = vector.broadcast %640 : vector<64x1xf32> to vector<64x128xf32>
    %649 = arith.subf %632, %648 : vector<64x128xf32>
    %cst_276 = arith.constant 9.99999974E-6 : f32
    %650 = vector.broadcast %cst_276 : f32 to vector<64x1xf32>
    %651 = arith.addf %647, %650 : vector<64x1xf32>
    %652 = math.rsqrt %651 : vector<64x1xf32>
    %653 = vector.broadcast %652 : vector<64x1xf32> to vector<64x128xf32>
    %654 = arith.mulf %649, %653 : vector<64x128xf32>
    %655 = vector.broadcast %634 : vector<1x128xf32> to vector<64x128xf32>
    %656 = arith.mulf %654, %655 : vector<64x128xf32>
    %657 = vector.broadcast %636 : vector<1x128xf32> to vector<64x128xf32>
    %658 = arith.addf %656, %657 : vector<64x128xf32>
    %659 = arith.truncf %658 : vector<64x128xf32> to vector<64x128xbf16>
    %c1_277 = arith.constant 1 : index
    %c0_278 = arith.constant 0 : index
    %c0_279 = arith.constant 0 : index
    %660 = vector.load %arg32[%c1_277, %c0_278, %c0_279] : memref<2x128x512xbf16, #tpu.memory_space<vmem>>, vector<1x128x512xbf16>
    %661 = vector.shape_cast %660 : vector<1x128x512xbf16> to vector<128x512xbf16>
    %cst_280 = arith.constant dense<0.000000e+00> : vector<64x512xf32>
    %662 = tpu.matmul %659, %661, %cst_280 {dimension_numbers = #tpu.dot_dimension_numbers<[1], [0], [0], [1], [0, 0, 1, 1], [], []>} : vector<64x128xbf16>, vector<128x512xbf16>, vector<64x512xf32> -> vector<64x512xf32>
    %c1_281 = arith.constant 1 : index
    %c0_282 = arith.constant 0 : index
    %c0_283 = arith.constant 0 : index
    %663 = vector.load %arg33[%c1_281, %c0_282, %c0_283] : memref<2x1x512xf32, #tpu.memory_space<vmem>>, vector<1x1x512xf32>
    %664 = vector.shape_cast %663 : vector<1x1x512xf32> to vector<1x512xf32>
    %665 = vector.broadcast %664 : vector<1x512xf32> to vector<64x512xf32>
    %666 = arith.addf %662, %665 : vector<64x512xf32>
    %cst_284 = arith.constant 5.000000e-01 : f32
    %667 = vector.broadcast %cst_284 : f32 to vector<64x512xf32>
    %668 = arith.mulf %667, %666 : vector<64x512xf32>
    %cst_285 = arith.constant 0.707106769 : f32
    %669 = vector.broadcast %cst_285 : f32 to vector<64x512xf32>
    %670 = arith.mulf %666, %669 : vector<64x512xf32>
    %671 = math.erf %670 : vector<64x512xf32>
    %cst_286 = arith.constant 1.000000e+00 : f32
    %672 = vector.broadcast %cst_286 : f32 to vector<64x512xf32>
    %673 = arith.addf %672, %671 : vector<64x512xf32>
    %674 = arith.mulf %668, %673 : vector<64x512xf32>
    %675 = arith.truncf %674 : vector<64x512xf32> to vector<64x512xbf16>
    %c1_287 = arith.constant 1 : index
    %c0_288 = arith.constant 0 : index
    %c0_289 = arith.constant 0 : index
    %676 = vector.load %arg34[%c1_287, %c0_288, %c0_289] : memref<2x512x128xbf16, #tpu.memory_space<vmem>>, vector<1x512x128xbf16>
    %677 = vector.shape_cast %676 : vector<1x512x128xbf16> to vector<512x128xbf16>
    %cst_290 = arith.constant dense<0.000000e+00> : vector<64x128xf32>
    %678 = tpu.matmul %675, %677, %cst_290 {dimension_numbers = #tpu.dot_dimension_numbers<[1], [0], [0], [1], [0, 0, 1, 1], [], []>} : vector<64x512xbf16>, vector<512x128xbf16>, vector<64x128xf32> -> vector<64x128xf32>
    %679 = arith.addf %632, %678 : vector<64x128xf32>
    %c1_291 = arith.constant 1 : index
    %c0_292 = arith.constant 0 : index
    %c0_293 = arith.constant 0 : index
    %680 = vector.load %arg35[%c1_291, %c0_292, %c0_293] : memref<2x1x128xf32, #tpu.memory_space<vmem>>, vector<1x1x128xf32>
    %681 = vector.shape_cast %680 : vector<1x1x128xf32> to vector<1x128xf32>
    %682 = vector.broadcast %681 : vector<1x128xf32> to vector<64x128xf32>
    %683 = arith.addf %679, %682 : vector<64x128xf32>
    %c0_294 = arith.constant 0 : index
    %c0_295 = arith.constant 0 : index
    %684 = vector.load %arg36[%c0_294, %c0_295] : memref<1x128xf32, #tpu.memory_space<vmem>>, vector<1x128xf32>
    %c0_296 = arith.constant 0 : index
    %c0_297 = arith.constant 0 : index
    %685 = vector.load %arg37[%c0_296, %c0_297] : memref<1x128xf32, #tpu.memory_space<vmem>>, vector<1x128xf32>
    %cst_298 = arith.constant dense<0.000000e+00> : vector<64xf32>
    %686 = vector.multi_reduction <add>, %683, %cst_298 [1] : vector<64x128xf32> to vector<64xf32>
    %687 = vector.shape_cast %686 : vector<64xf32> to vector<64x1xf32>
    %cst_299 = arith.constant 1.280000e+02 : f32
    %688 = vector.broadcast %cst_299 : f32 to vector<64x1xf32>
    %689 = arith.divf %687, %688 : vector<64x1xf32>
    %690 = vector.broadcast %689 : vector<64x1xf32> to vector<64x128xf32>
    %691 = arith.subf %683, %690 : vector<64x128xf32>
    %692 = arith.mulf %691, %691 : vector<64x128xf32>
    %cst_300 = arith.constant dense<0.000000e+00> : vector<64xf32>
    %693 = vector.multi_reduction <add>, %692, %cst_300 [1] : vector<64x128xf32> to vector<64xf32>
    %694 = vector.shape_cast %693 : vector<64xf32> to vector<64x1xf32>
    %cst_301 = arith.constant 1.280000e+02 : f32
    %695 = vector.broadcast %cst_301 : f32 to vector<64x1xf32>
    %696 = arith.divf %694, %695 : vector<64x1xf32>
    %697 = vector.broadcast %689 : vector<64x1xf32> to vector<64x128xf32>
    %698 = arith.subf %683, %697 : vector<64x128xf32>
    %cst_302 = arith.constant 9.99999974E-6 : f32
    %699 = vector.broadcast %cst_302 : f32 to vector<64x1xf32>
    %700 = arith.addf %696, %699 : vector<64x1xf32>
    %701 = math.rsqrt %700 : vector<64x1xf32>
    %702 = vector.broadcast %701 : vector<64x1xf32> to vector<64x128xf32>
    %703 = arith.mulf %698, %702 : vector<64x128xf32>
    %704 = vector.broadcast %684 : vector<1x128xf32> to vector<64x128xf32>
    %705 = arith.mulf %703, %704 : vector<64x128xf32>
    %706 = vector.broadcast %685 : vector<1x128xf32> to vector<64x128xf32>
    %707 = arith.addf %705, %706 : vector<64x128xf32>
    %c0_303 = arith.constant 0 : index
    %c0_304 = arith.constant 0 : index
    %c0_305 = arith.constant 0 : index
    %708 = vector.load %arg40[%c0_303, %c0_304, %c0_305] : memref<1x64x128xf32, #tpu.memory_space<vmem>>, vector<1x64x128xf32>
    %709 = vector.shape_cast %708 : vector<1x64x128xf32> to vector<64x128xf32>
    %710 = vector.shape_cast %707 : vector<64x128xf32> to vector<1x64x128xf32>
    tpu.vector_store %arg40[%c0_303, %c0_304, %c0_305], %710 {strides = array<i32>} : memref<1x64x128xf32, #tpu.memory_space<vmem>>, vector<1x64x128xf32>,
    %711 = vector.extract_strided_slice %707 {offsets = [48, 0], sizes = [16, 128], strides = [1, 1]} : vector<64x128xf32> to vector<16x128xf32>
    %712 = arith.truncf %711 : vector<16x128xf32> to vector<16x128xbf16>
    %c0_306 = arith.constant 0 : index
    %c0_307 = arith.constant 0 : index
    %713 = vector.load %arg38[%c0_306, %c0_307] : memref<128x256xbf16, #tpu.memory_space<vmem>>, vector<128x256xbf16>
    %cst_308 = arith.constant dense<0.000000e+00> : vector<16x256xf32>
    %714 = tpu.matmul %712, %713, %cst_308 {dimension_numbers = #tpu.dot_dimension_numbers<[1], [0], [0], [1], [0, 0, 1, 1], [], []>} : vector<16x128xbf16>, vector<128x256xbf16>, vector<16x256xf32> -> vector<16x256xf32>
    %c0_309 = arith.constant 0 : index
    %c0_310 = arith.constant 0 : index
    %715 = vector.load %arg39[%c0_309, %c0_310] : memref<1x256xf32, #tpu.memory_space<vmem>>, vector<1x256xf32>
    %716 = vector.broadcast %715 : vector<1x256xf32> to vector<16x256xf32>
    %717 = arith.addf %714, %716 : vector<16x256xf32>
    %c0_311 = arith.constant 0 : index
    %c0_312 = arith.constant 0 : index
    %c0_313 = arith.constant 0 : index
    %718 = vector.load %arg41[%c0_311, %c0_312, %c0_313] : memref<1x16x256xf32, #tpu.memory_space<vmem>>, vector<1x16x256xf32>
    %719 = vector.shape_cast %718 : vector<1x16x256xf32> to vector<16x256xf32>
    %720 = vector.shape_cast %717 : vector<16x256xf32> to vector<1x16x256xf32>
    tpu.vector_store %arg41[%c0_311, %c0_312, %c0_313], %720 {strides = array<i32>} : memref<1x16x256xf32, #tpu.memory_space<vmem>>, vector<1x16x256xf32>,
    return
  }
  func.func @transform_0(%arg0: i32) -> (i32, i32, i32) {
    %c0_i32 = arith.constant 0 : i32
    %c0_i32_0 = arith.constant 0 : i32
    %c0_i32_1 = arith.constant 0 : i32
    return %arg0, %c0_i32, %c0_i32_0 : i32, i32, i32
  }
  func.func @transform_1(%arg0: i32) -> (i32, i32, i32) {
    %c0_i32 = arith.constant 0 : i32
    %c0_i32_0 = arith.constant 0 : i32
    %c0_i32_1 = arith.constant 0 : i32
    return %arg0, %c0_i32, %c0_i32_0 : i32, i32, i32
  }
  func.func @transform_2(%arg0: i32) -> (i32, i32, i32) {
    %c0_i32 = arith.constant 0 : i32
    %c0_i32_0 = arith.constant 0 : i32
    %c0_i32_1 = arith.constant 0 : i32
    return %arg0, %c0_i32, %c0_i32_0 : i32, i32, i32
  }
  func.func @transform_3(%arg0: i32) -> (i32, i32) {
    %c0_i32 = arith.constant 0 : i32
    %c0_i32_0 = arith.constant 0 : i32
    %c0_i32_1 = arith.constant 0 : i32
    return %c0_i32, %c0_i32_0 : i32, i32
  }
  func.func @transform_4(%arg0: i32) -> (i32, i32) {
    %c0_i32 = arith.constant 0 : i32
    %c0_i32_0 = arith.constant 0 : i32
    %c0_i32_1 = arith.constant 0 : i32
    return %c0_i32, %c0_i32_0 : i32, i32
  }
  func.func @transform_5(%arg0: i32) -> (i32, i32) {
    %c0_i32 = arith.constant 0 : i32
    %c0_i32_0 = arith.constant 0 : i32
    %c0_i32_1 = arith.constant 0 : i32
    return %c0_i32, %c0_i32_0 : i32, i32
  }
  func.func @transform_6(%arg0: i32) -> (i32, i32) {
    %c0_i32 = arith.constant 0 : i32
    %c0_i32_0 = arith.constant 0 : i32
    %c0_i32_1 = arith.constant 0 : i32
    return %c0_i32, %c0_i32_0 : i32, i32
  }
  func.func @transform_7(%arg0: i32) -> (i32, i32) {
    %c0_i32 = arith.constant 0 : i32
    %c0_i32_0 = arith.constant 0 : i32
    %c0_i32_1 = arith.constant 0 : i32
    return %c0_i32, %c0_i32_0 : i32, i32
  }
  func.func @transform_8(%arg0: i32) -> (i32, i32, i32) {
    %c0_i32 = arith.constant 0 : i32
    %c0_i32_0 = arith.constant 0 : i32
    %c0_i32_1 = arith.constant 0 : i32
    %c0_i32_2 = arith.constant 0 : i32
    return %c0_i32, %c0_i32_0, %c0_i32_1 : i32, i32, i32
  }
  func.func @transform_9(%arg0: i32) -> (i32, i32, i32) {
    %c0_i32 = arith.constant 0 : i32
    %c0_i32_0 = arith.constant 0 : i32
    %c0_i32_1 = arith.constant 0 : i32
    %c0_i32_2 = arith.constant 0 : i32
    return %c0_i32, %c0_i32_0, %c0_i32_1 : i32, i32, i32
  }
  func.func @transform_10(%arg0: i32) -> (i32, i32, i32) {
    %c0_i32 = arith.constant 0 : i32
    %c0_i32_0 = arith.constant 0 : i32
    %c0_i32_1 = arith.constant 0 : i32
    %c0_i32_2 = arith.constant 0 : i32
    return %c0_i32, %c0_i32_0, %c0_i32_1 : i32, i32, i32
  }
  func.func @transform_11(%arg0: i32) -> (i32, i32, i32) {
    %c0_i32 = arith.constant 0 : i32
    %c0_i32_0 = arith.constant 0 : i32
    %c0_i32_1 = arith.constant 0 : i32
    %c0_i32_2 = arith.constant 0 : i32
    return %c0_i32, %c0_i32_0, %c0_i32_1 : i32, i32, i32
  }
  func.func @transform_12(%arg0: i32) -> (i32, i32, i32) {
    %c0_i32 = arith.constant 0 : i32
    %c0_i32_0 = arith.constant 0 : i32
    %c0_i32_1 = arith.constant 0 : i32
    %c0_i32_2 = arith.constant 0 : i32
    return %c0_i32, %c0_i32_0, %c0_i32_1 : i32, i32, i32
  }
  func.func @transform_13(%arg0: i32) -> (i32, i32, i32) {
    %c0_i32 = arith.constant 0 : i32
    %c0_i32_0 = arith.constant 0 : i32
    %c0_i32_1 = arith.constant 0 : i32
    %c0_i32_2 = arith.constant 0 : i32
    return %c0_i32, %c0_i32_0, %c0_i32_1 : i32, i32, i32
  }
  func.func @transform_14(%arg0: i32) -> (i32, i32, i32) {
    %c0_i32 = arith.constant 0 : i32
    %c0_i32_0 = arith.constant 0 : i32
    %c0_i32_1 = arith.constant 0 : i32
    %c0_i32_2 = arith.constant 0 : i32
    return %c0_i32, %c0_i32_0, %c0_i32_1 : i32, i32, i32
  }
  func.func @transform_15(%arg0: i32) -> (i32, i32, i32) {
    %c0_i32 = arith.constant 0 : i32
    %c0_i32_0 = arith.constant 0 : i32
    %c0_i32_1 = arith.constant 0 : i32
    %c0_i32_2 = arith.constant 0 : i32
    return %c0_i32, %c0_i32_0, %c0_i32_1 : i32, i32, i32
  }
  func.func @transform_16(%arg0: i32) -> (i32, i32, i32) {
    %c0_i32 = arith.constant 0 : i32
    %c0_i32_0 = arith.constant 0 : i32
    %c0_i32_1 = arith.constant 0 : i32
    %c0_i32_2 = arith.constant 0 : i32
    return %c0_i32, %c0_i32_0, %c0_i32_1 : i32, i32, i32
  }
  func.func @transform_17(%arg0: i32) -> (i32, i32, i32) {
    %c0_i32 = arith.constant 0 : i32
    %c0_i32_0 = arith.constant 0 : i32
    %c0_i32_1 = arith.constant 0 : i32
    %c0_i32_2 = arith.constant 0 : i32
    return %c0_i32, %c0_i32_0, %c0_i32_1 : i32, i32, i32
  }
  func.func @transform_18(%arg0: i32) -> (i32, i32, i32) {
    %c0_i32 = arith.constant 0 : i32
    %c0_i32_0 = arith.constant 0 : i32
    %c0_i32_1 = arith.constant 0 : i32
    %c0_i32_2 = arith.constant 0 : i32
    return %c0_i32, %c0_i32_0, %c0_i32_1 : i32, i32, i32
  }
  func.func @transform_19(%arg0: i32) -> (i32, i32, i32) {
    %c0_i32 = arith.constant 0 : i32
    %c0_i32_0 = arith.constant 0 : i32
    %c0_i32_1 = arith.constant 0 : i32
    %c0_i32_2 = arith.constant 0 : i32
    return %c0_i32, %c0_i32_0, %c0_i32_1 : i32, i32, i32
  }
  func.func @transform_20(%arg0: i32) -> (i32, i32) {
    %c0_i32 = arith.constant 0 : i32
    %c0_i32_0 = arith.constant 0 : i32
    %c0_i32_1 = arith.constant 0 : i32
    return %c0_i32, %c0_i32_0 : i32, i32
  }
  func.func @transform_21(%arg0: i32) -> (i32, i32) {
    %c0_i32 = arith.constant 0 : i32
    %c0_i32_0 = arith.constant 0 : i32
    %c0_i32_1 = arith.constant 0 : i32
    return %c0_i32, %c0_i32_0 : i32, i32
  }
  func.func @transform_22(%arg0: i32) -> (i32, i32) {
    %c0_i32 = arith.constant 0 : i32
    %c0_i32_0 = arith.constant 0 : i32
    %c0_i32_1 = arith.constant 0 : i32
    return %c0_i32, %c0_i32_0 : i32, i32
  }
  func.func @transform_23(%arg0: i32) -> (i32, i32) {
    %c0_i32 = arith.constant 0 : i32
    %c0_i32_0 = arith.constant 0 : i32
    %c0_i32_1 = arith.constant 0 : i32
    return %c0_i32, %c0_i32_0 : i32, i32
  }
  func.func @transform_24(%arg0: i32) -> (i32, i32) {
    %c0_i32 = arith.constant 0 : i32
    %c0_i32_0 = arith.constant 0 : i32
    %c0_i32_1 = arith.constant 0 : i32
    return %c0_i32, %c0_i32_0 : i32, i32
  }
  func.func @transform_25(%arg0: i32) -> (i32, i32, i32) {
    %c0_i32 = arith.constant 0 : i32
    %c0_i32_0 = arith.constant 0 : i32
    %c0_i32_1 = arith.constant 0 : i32
    %c0_i32_2 = arith.constant 0 : i32
    return %c0_i32, %c0_i32_0, %c0_i32_1 : i32, i32, i32
  }
  func.func @transform_26(%arg0: i32) -> (i32, i32, i32) {
    %c0_i32 = arith.constant 0 : i32
    %c0_i32_0 = arith.constant 0 : i32
    %c0_i32_1 = arith.constant 0 : i32
    %c0_i32_2 = arith.constant 0 : i32
    return %c0_i32, %c0_i32_0, %c0_i32_1 : i32, i32, i32
  }
  func.func @transform_27(%arg0: i32) -> (i32, i32, i32) {
    %c0_i32 = arith.constant 0 : i32
    %c0_i32_0 = arith.constant 0 : i32
    %c0_i32_1 = arith.constant 0 : i32
    %c0_i32_2 = arith.constant 0 : i32
    return %c0_i32, %c0_i32_0, %c0_i32_1 : i32, i32, i32
  }
  func.func @transform_28(%arg0: i32) -> (i32, i32, i32) {
    %c0_i32 = arith.constant 0 : i32
    %c0_i32_0 = arith.constant 0 : i32
    %c0_i32_1 = arith.constant 0 : i32
    %c0_i32_2 = arith.constant 0 : i32
    return %c0_i32, %c0_i32_0, %c0_i32_1 : i32, i32, i32
  }
  func.func @transform_29(%arg0: i32) -> (i32, i32, i32) {
    %c0_i32 = arith.constant 0 : i32
    %c0_i32_0 = arith.constant 0 : i32
    %c0_i32_1 = arith.constant 0 : i32
    %c0_i32_2 = arith.constant 0 : i32
    return %c0_i32, %c0_i32_0, %c0_i32_1 : i32, i32, i32
  }
  func.func @transform_30(%arg0: i32) -> (i32, i32, i32) {
    %c0_i32 = arith.constant 0 : i32
    %c0_i32_0 = arith.constant 0 : i32
    %c0_i32_1 = arith.constant 0 : i32
    %c0_i32_2 = arith.constant 0 : i32
    return %c0_i32, %c0_i32_0, %c0_i32_1 : i32, i32, i32
  }
  func.func @transform_31(%arg0: i32) -> (i32, i32, i32) {
    %c0_i32 = arith.constant 0 : i32
    %c0_i32_0 = arith.constant 0 : i32
    %c0_i32_1 = arith.constant 0 : i32
    %c0_i32_2 = arith.constant 0 : i32
    return %c0_i32, %c0_i32_0, %c0_i32_1 : i32, i32, i32
  }
  func.func @transform_32(%arg0: i32) -> (i32, i32, i32) {
    %c0_i32 = arith.constant 0 : i32
    %c0_i32_0 = arith.constant 0 : i32
    %c0_i32_1 = arith.constant 0 : i32
    %c0_i32_2 = arith.constant 0 : i32
    return %c0_i32, %c0_i32_0, %c0_i32_1 : i32, i32, i32
  }
  func.func @transform_33(%arg0: i32) -> (i32, i32, i32) {
    %c0_i32 = arith.constant 0 : i32
    %c0_i32_0 = arith.constant 0 : i32
    %c0_i32_1 = arith.constant 0 : i32
    %c0_i32_2 = arith.constant 0 : i32
    return %c0_i32, %c0_i32_0, %c0_i32_1 : i32, i32, i32
  }
  func.func @transform_34(%arg0: i32) -> (i32, i32, i32) {
    %c0_i32 = arith.constant 0 : i32
    %c0_i32_0 = arith.constant 0 : i32
    %c0_i32_1 = arith.constant 0 : i32
    %c0_i32_2 = arith.constant 0 : i32
    return %c0_i32, %c0_i32_0, %c0_i32_1 : i32, i32, i32
  }
  func.func @transform_35(%arg0: i32) -> (i32, i32) {
    %c0_i32 = arith.constant 0 : i32
    %c0_i32_0 = arith.constant 0 : i32
    %c0_i32_1 = arith.constant 0 : i32
    return %c0_i32, %c0_i32_0 : i32, i32
  }
  func.func @transform_36(%arg0: i32) -> (i32, i32) {
    %c0_i32 = arith.constant 0 : i32
    %c0_i32_0 = arith.constant 0 : i32
    %c0_i32_1 = arith.constant 0 : i32
    return %c0_i32, %c0_i32_0 : i32, i32
  }
  func.func @transform_37(%arg0: i32) -> (i32, i32) {
    %c0_i32 = arith.constant 0 : i32
    %c0_i32_0 = arith.constant 0 : i32
    %c0_i32_1 = arith.constant 0 : i32
    return %c0_i32, %c0_i32_0 : i32, i32
  }
  func.func @transform_38(%arg0: i32) -> (i32, i32) {
    %c0_i32 = arith.constant 0 : i32
    %c0_i32_0 = arith.constant 0 : i32
    %c0_i32_1 = arith.constant 0 : i32
    return %c0_i32, %c0_i32_0 : i32, i32
  }
  func.func @transform_39(%arg0: i32) -> (i32, i32, i32) {
    %c0_i32 = arith.constant 0 : i32
    %c0_i32_0 = arith.constant 0 : i32
    %c0_i32_1 = arith.constant 0 : i32
    return %arg0, %c0_i32, %c0_i32_0 : i32, i32, i32
  }
  func.func @transform_40(%arg0: i32) -> (i32, i32, i32) {
    %c0_i32 = arith.constant 0 : i32
    %c0_i32_0 = arith.constant 0 : i32
    %c0_i32_1 = arith.constant 0 : i32
    return %arg0, %c0_i32, %c0_i32_0 : i32, i32, i32
  }
}

</mosaic_0001>

<llo_original>
// kernel: multimodal_captioner.1
$region0: #{multimodal_captioner.1}
  #allocation0 [shape = 'u32[]', space=smem, size = 0x4, offset = 0x4, fixed_abs, tag = 'smem constant byte address 0x4 - core index']
  #allocation1 [shape = 'u32[144,128]{1,0:T(1,128)}', space=vmem, size = 0x12000, scoped, tag = 'internal scratch']
  %s0 = inlined_call_operand.smem [shape: u32[41], index: -1, kind: input, shape index: {}]
  %s1 = sld [smem:[%s0]]
  %s2 = scalar_lea.smem %s0, 1
  %s3 = sld [smem:[%s2]]
  %s4 = scalar_lea.smem %s0, 2
  %s5 = sld [smem:[%s4]]
  %s6 = scalar_lea.smem %s0, 3
  %s7 = sld [smem:[%s6]]
  %s8 = scalar_lea.smem %s0, 4
  %s9 = sld [smem:[%s8]]
  %s10 = scalar_lea.smem %s0, 5
  %s11 = sld [smem:[%s10]]
  %s12 = scalar_lea.smem %s0, 6
  %s13 = sld [smem:[%s12]]
  %s14 = scalar_lea.smem %s0, 7
  %s15 = sld [smem:[%s14]]
  %s16 = scalar_lea.smem %s0, 8
  %s17 = sld [smem:[%s16]]
  %s18 = scalar_lea.smem %s0, 9
  %s19 = sld [smem:[%s18]]
  %s20 = scalar_lea.smem %s0, 10
  %s21 = sld [smem:[%s20]]
  %s22 = scalar_lea.smem %s0, 11
  %s23 = sld [smem:[%s22]]
  %s24 = scalar_lea.smem %s0, 12
  %s25 = sld [smem:[%s24]]
  %s26 = scalar_lea.smem %s0, 13
  %s27 = sld [smem:[%s26]]
  %s28 = scalar_lea.smem %s0, 14
  %s29 = sld [smem:[%s28]]
  %s30 = scalar_lea.smem %s0, 15
  %s31 = sld [smem:[%s30]]
  %s32 = scalar_lea.smem %s0, 16
  %s33 = sld [smem:[%s32]]
  %s34 = scalar_lea.smem %s0, 17
  %s35 = sld [smem:[%s34]]
  %s36 = scalar_lea.smem %s0, 18
  %s37 = sld [smem:[%s36]]
  %s38 = scalar_lea.smem %s0, 19
  %s39 = sld [smem:[%s38]]
  %s40 = scalar_lea.smem %s0, 20
  %s41 = sld [smem:[%s40]]
  %s42 = scalar_lea.smem %s0, 21
  %s43 = sld [smem:[%s42]]
  %s44 = scalar_lea.smem %s0, 22
  %s45 = sld [smem:[%s44]]
  %s46 = scalar_lea.smem %s0, 23
  %s47 = sld [smem:[%s46]]
  %s48 = scalar_lea.smem %s0, 24
  %s49 = sld [smem:[%s48]]
  %s50 = scalar_lea.smem %s0, 25
  %s51 = sld [smem:[%s50]]
  %s52 = scalar_lea.smem %s0, 26
  %s53 = sld [smem:[%s52]]
  %s54 = scalar_lea.smem %s0, 27
  %s55 = sld [smem:[%s54]]
  %s56 = scalar_lea.smem %s0, 28
  %s57 = sld [smem:[%s56]]
  %s58 = scalar_lea.smem %s0, 29
  %s59 = sld [smem:[%s58]]
  %s60 = scalar_lea.smem %s0, 30
  %s61 = sld [smem:[%s60]]
  %s62 = scalar_lea.smem %s0, 31
  %s63 = sld [smem:[%s62]]
  %s64 = scalar_lea.smem %s0, 32
  %s65 = sld [smem:[%s64]]
  %s66 = scalar_lea.smem %s0, 33
  %s67 = sld [smem:[%s66]]
  %s68 = scalar_lea.smem %s0, 34
  %s69 = sld [smem:[%s68]]
  %s70 = scalar_lea.smem %s0, 35
  %s71 = sld [smem:[%s70]]
  %s72 = scalar_lea.smem %s0, 36
  %s73 = sld [smem:[%s72]]
  %s74 = scalar_lea.smem %s0, 37
  %s75 = sld [smem:[%s74]]
  %s76 = scalar_lea.smem %s0, 38
  %s77 = sld [smem:[%s76]]
  %s78 = scalar_lea.smem %s0, 39
  %s79 = sld [smem:[%s78]]
  %s80 = scalar_lea.smem %s0, 40
  %s81 = sld [smem:[%s80]]
  %82 = xla_tuple %s79, %s81
  %s83 = sld [smem:[#allocation0]]
  $region274: #{multimodal_captioner.1} parent=0
    _
  %s85 = ssub.s32 1, %s83
  %s86 = scalar_select 0, %s85, %s83
  $region1: #{multimodal_captioner.1} parent=0
    #allocation2 [shape = 'u8[12288]{0}', space=vmem, size = 0x3000, scoped, tag = 'input window, operand 3, single buffered']
    #allocation3 [shape = 's32[1]{0}', space=sflag, size = 0x4, scoped, tag = 'scoped memory for multimodal_captioner.1']
    #allocation4 [shape = 's32[1]{0}', space=sflag, size = 0x4, scoped, tag = 'scoped memory for multimodal_captioner.1']
    #allocation5 [shape = 'u8[24576]{0}', space=vmem, size = 0x6000, scoped, tag = 'input window, operand 4, single buffered']
    #allocation6 [shape = 's32[1]{0}', space=sflag, size = 0x4, scoped, tag = 'scoped memory for multimodal_captioner.1']
    #allocation7 [shape = 'u8[24576]{0}', space=vmem, size = 0x6000, scoped, tag = 'input window, operand 5, single buffered']
    #allocation8 [shape = 'u8[512]{0}', space=vmem, size = 0x400, scoped, tag = 'input window, operand 7, single buffered']
    #allocation9 [shape = 's32[1]{0}', space=sflag, size = 0x4, scoped, tag = 'scoped memory for multimodal_captioner.1']
    #allocation10 [shape = 'u8[1024]{0}', space=vmem, size = 0x400, scoped, tag = 'input window, operand 8, single buffered']
    #allocation11 [shape = 'u8[1024]{0}', space=vmem, size = 0x400, scoped, tag = 'input window, operand 9, single buffered']
    #allocation12 [shape = 's32[1]{0}', space=sflag, size = 0x4, scoped, tag = 'scoped memory for multimodal_captioner.1']
    #allocation13 [shape = 'u8[3072]{0}', space=vmem, size = 0xc00, scoped, tag = 'input window, operand 11, single buffered']
    #allocation14 [shape = 'u8[1024]{0}', space=vmem, size = 0x400, scoped, tag = 'input window, operand 13, single buffered']
    #allocation15 [shape = 's32[1]{0}', space=sflag, size = 0x4, scoped, tag = 'scoped memory for multimodal_captioner.1']
    #allocation16 [shape = 'u8[1024]{0}', space=vmem, size = 0x400, scoped, tag = 'input window, operand 14, single buffered']
    #allocation17 [shape = 'u8[1024]{0}', space=vmem, size = 0x400, scoped, tag = 'input window, operand 15, single buffered']
    #allocation18 [shape = 's32[1]{0}', space=sflag, size = 0x4, scoped, tag = 'scoped memory for multimodal_captioner.1']
    #allocation19 [shape = 'u8[65536]{0}', space=vmem, size = 0x10000, scoped, tag = 'input window, operand 16, single buffered']
    #allocation20 [shape = 'u8[2048]{0}', space=vmem, size = 0x800, scoped, tag = 'input window, operand 17, single buffered']
    #allocation21 [shape = 's32[1]{0}', space=sflag, size = 0x4, scoped, tag = 'scoped memory for multimodal_captioner.1']
    #allocation22 [shape = 'u8[1024]{0}', space=vmem, size = 0x400, scoped, tag = 'input window, operand 19, single buffered']
    #allocation23 [shape = 'u8[16384]{0}', space=vmem, size = 0x4000, scoped, tag = 'input window, operand 20, single buffered']
    #allocation24 [shape = 's32[1]{0}', space=sflag, size = 0x4, scoped, tag = 'scoped memory for multimodal_captioner.1']
    #allocation25 [shape = 'u8[65536]{0}', space=vmem, size = 0x10000, scoped, tag = 'input window, operand 21, single buffered']
    #allocation26 [shape = 'u8[24576]{0}', space=vmem, size = 0x6000, scoped, tag = 'input window, operand 22, single buffered']
    #allocation27 [shape = 's32[1]{0}', space=sflag, size = 0x4, scoped, tag = 'scoped memory for multimodal_captioner.1']
    #allocation28 [shape = 'u8[8192]{0}', space=vmem, size = 0x2000, scoped, tag = 'input window, operand 23, single buffered']
    #allocation29 [shape = 'u8[32768]{0}', space=vmem, size = 0x8000, scoped, tag = 'input window, operand 24, single buffered']
    #allocation30 [shape = 's32[1]{0}', space=sflag, size = 0x4, scoped, tag = 'scoped memory for multimodal_captioner.1']
    #allocation31 [shape = 'u8[1024]{0}', space=vmem, size = 0x400, scoped, tag = 'input window, operand 25, single buffered']
    #allocation32 [shape = 'u8[1024]{0}', space=vmem, size = 0x400, scoped, tag = 'input window, operand 29, single buffered']
    #allocation33 [shape = 's32[1]{0}', space=sflag, size = 0x4, scoped, tag = 'scoped memory for multimodal_captioner.1']
    #allocation34 [shape = 'u8[1024]{0}', space=vmem, size = 0x400, scoped, tag = 'input window, operand 30, single buffered']
    #allocation35 [shape = 'u8[512]{0}', space=vmem, size = 0x400, scoped, tag = 'input window, operand 35, single buffered']
    #allocation36 [shape = 's32[1]{0}', space=sflag, size = 0x4, scoped, tag = 'scoped memory for multimodal_captioner.1']
    #allocation37 [shape = 'u8[512]{0}', space=vmem, size = 0x400, scoped, tag = 'input window, operand 36, single buffered']
    #allocation38 [shape = 'u8[65536]{0}', space=vmem, size = 0x10000, scoped, tag = 'input window, operand 37, single buffered']
    #allocation39 [shape = 's32[1]{0}', space=sflag, size = 0x4, scoped, tag = 'scoped memory for multimodal_captioner.1']
    #allocation40 [shape = 'u8[1024]{0}', space=vmem, size = 0x400, scoped, tag = 'input window, operand 38, single buffered']
    #allocation41 [shape = 'u8[16384]{0}', space=vmem, size = 0x4000, scoped, tag = 'output window, operand 1, single buffered']
    %87 = vsyncpa [#allocation3], 0
    %88 = vsyncpa [#allocation6], 0
    %89 = vsyncpa [#allocation9], 0
    %90 = vsyncpa [#allocation12], 0
    %91 = vsyncpa [#allocation15], 0
    %92 = vsyncpa [#allocation18], 0
    %93 = vsyncpa [#allocation21], 0
    %94 = vsyncpa [#allocation24], 0
    %95 = vsyncpa [#allocation27], 0
    %96 = vsyncpa [#allocation30], 0
    %97 = vsyncpa [#allocation33], 0
    %98 = vsyncpa [#allocation36], 0
    %99 = vsyncpa [#allocation39], 0
    %100 = vsyncpa [#allocation4], 0
    // Predicated region
    $region2: #{multimodal_captioner.1} parent=1 // pred_check
      _
    $region3: #{multimodal_captioner.1} parent=1 // pred_check_branch
      %102 = sbr.rel (0) target = $region5
    $region4: #{multimodal_captioner.1} parent=1 // pred_region
      _
    $region5: #{multimodal_captioner.1} parent=1 // pred_fallthru
      _
    // Predicated region
    $region6: #{multimodal_captioner.1} parent=1 // pred_check
      _
    $region7: #{multimodal_captioner.1} parent=1 // pred_check_branch
      %104 = sbr.rel (0) target = $region9
    $region8: #{multimodal_captioner.1} parent=1 // pred_region
      _
    $region9: #{multimodal_captioner.1} parent=1 // pred_fallthru
      _
    // Predicated region
    $region10: #{multimodal_captioner.1} parent=1 // pred_check
      _
    $region11: #{multimodal_captioner.1} parent=1 // pred_check_branch
      %106 = sbr.rel (0) target = $region13
    $region12: #{multimodal_captioner.1} parent=1 // pred_region
      _
    $region13: #{multimodal_captioner.1} parent=1 // pred_fallthru
      _
    // Predicated region
    $region14: #{multimodal_captioner.1} parent=1 // pred_check
      _
    $region15: #{multimodal_captioner.1} parent=1 // pred_check_branch
      %108 = sbr.rel (0) target = $region17
    $region16: #{multimodal_captioner.1} parent=1 // pred_region
      %s110 = ssub.s32 384, 384
      %111 = vsyncadd [#allocation3], %s110
      %s112 = sshll.u32 [#allocation2], 4
      %s113 = int_to_ptr.vmem [resolvable:$true] %s112
      %118 = dma.hbm_to_vmem [thread:$0]  %s7, 384, %s113, [#allocation3], 64, 64, 4
    $region17: #{multimodal_captioner.1} parent=1 // pred_fallthru
      _
    // Predicated region
    $region18: #{multimodal_captioner.1} parent=1 // pred_check
      _
    $region19: #{multimodal_captioner.1} parent=1 // pred_check_branch
      %120 = sbr.rel (0) target = $region21
    $region20: #{multimodal_captioner.1} parent=1 // pred_region
      %s122 = ssub.s32 768, 768
      %123 = vsyncadd [#allocation6], %s122
      %s124 = sshll.u32 [#allocation5], 4
      %s125 = int_to_ptr.vmem [resolvable:$true] %s124
      %130 = dma.hbm_to_vmem [thread:$0]  %s9, 768, %s125, [#allocation6], 128, 128, 8
    $region21: #{multimodal_captioner.1} parent=1 // pred_fallthru
      _
    // Predicated region
    $region22: #{multimodal_captioner.1} parent=1 // pred_check
      _
    $region23: #{multimodal_captioner.1} parent=1 // pred_check_branch
      %132 = sbr.rel (0) target = $region25
    $region24: #{multimodal_captioner.1} parent=1 // pred_region
      %s134 = ssub.s32 768, 768
      %135 = vsyncadd [#allocation6], %s134
      %s136 = sshll.u32 [#allocation7], 4
      %s137 = int_to_ptr.vmem [resolvable:$true] %s136
      %142 = dma.hbm_to_vmem [thread:$0]  %s11, 768, %s137, [#allocation6], 128, 128, 8
    $region25: #{multimodal_captioner.1} parent=1 // pred_fallthru
      _
    // Predicated region
    $region26: #{multimodal_captioner.1} parent=1 // pred_check
      _
    $region27: #{multimodal_captioner.1} parent=1 // pred_check_branch
      %144 = sbr.rel (0) target = $region29
    $region28: #{multimodal_captioner.1} parent=1 // pred_region
      _
    $region29: #{multimodal_captioner.1} parent=1 // pred_fallthru
      _
    // Predicated region
    $region30: #{multimodal_captioner.1} parent=1 // pred_check
      _
    $region31: #{multimodal_captioner.1} parent=1 // pred_check_branch
      %146 = sbr.rel (0) target = $region33
    $region32: #{multimodal_captioner.1} parent=1 // pred_region
      %s148 = ssub.s32 16, 16
      %149 = vsyncadd [#allocation9], %s148
      %s151 = sshll.u32 [#allocation8], 4
      %s152 = int_to_ptr.vmem [resolvable:$true] %s151
      %154 = dma.hbm_to_vmem [thread:$0]  %s15, 16, %s152, [#allocation9]
    $region33: #{multimodal_captioner.1} parent=1 // pred_fallthru
      _
    // Predicated region
    $region34: #{multimodal_captioner.1} parent=1 // pred_check
      _
    $region35: #{multimodal_captioner.1} parent=1 // pred_check_branch
      %156 = sbr.rel (0) target = $region37
    $region36: #{multimodal_captioner.1} parent=1 // pred_region
      %s158 = ssub.s32 32, 32
      %159 = vsyncadd [#allocation9], %s158
      %s160 = sshll.u32 [#allocation10], 4
      %s161 = int_to_ptr.vmem [resolvable:$true] %s160
      %166 = dma.hbm_to_vmem [thread:$0]  %s17, 32, %s161, [#allocation9], 16, 16, 1
    $region37: #{multimodal_captioner.1} parent=1 // pred_fallthru
      _
    // Predicated region
    $region38: #{multimodal_captioner.1} parent=1 // pred_check
      _
    $region39: #{multimodal_captioner.1} parent=1 // pred_check_branch
      %168 = sbr.rel (0) target = $region41
    $region40: #{multimodal_captioner.1} parent=1 // pred_region
      %s170 = ssub.s32 32, 32
      %171 = vsyncadd [#allocation12], %s170
      %s172 = sshll.u32 [#allocation11], 4
      %s173 = int_to_ptr.vmem [resolvable:$true] %s172
      %178 = dma.hbm_to_vmem [thread:$0]  %s19, 32, %s173, [#allocation12], 16, 16, 1
    $region41: #{multimodal_captioner.1} parent=1 // pred_fallthru
      _
    // Predicated region
    $region42: #{multimodal_captioner.1} parent=1 // pred_check
      _
    $region43: #{multimodal_captioner.1} parent=1 // pred_check_branch
      %180 = sbr.rel (0) target = $region45
    $region44: #{multimodal_captioner.1} parent=1 // pred_region
      _
    $region45: #{multimodal_captioner.1} parent=1 // pred_fallthru
      _
    // Predicated region
    $region46: #{multimodal_captioner.1} parent=1 // pred_check
      _
    $region47: #{multimodal_captioner.1} parent=1 // pred_check_branch
      %182 = sbr.rel (0) target = $region49
    $region48: #{multimodal_captioner.1} parent=1 // pred_region
      %s184 = ssub.s32 96, 96
      %185 = vsyncadd [#allocation12], %s184
      %s186 = sshll.u32 [#allocation13], 4
      %s187 = int_to_ptr.vmem [resolvable:$true] %s186
      %192 = dma.hbm_to_vmem [thread:$0]  %s23, 96, %s187, [#allocation12], 48, 48, 3
    $region49: #{multimodal_captioner.1} parent=1 // pred_fallthru
      _
    // Predicated region
    $region50: #{multimodal_captioner.1} parent=1 // pred_check
      _
    $region51: #{multimodal_captioner.1} parent=1 // pred_check_branch
      %194 = sbr.rel (0) target = $region53
    $region52: #{multimodal_captioner.1} parent=1 // pred_region
      _
    $region53: #{multimodal_captioner.1} parent=1 // pred_fallthru
      _
    // Predicated region
    $region54: #{multimodal_captioner.1} parent=1 // pred_check
      _
    $region55: #{multimodal_captioner.1} parent=1 // pred_check_branch
      %196 = sbr.rel (0) target = $region57
    $region56: #{multimodal_captioner.1} parent=1 // pred_region
      %s198 = ssub.s32 32, 32
      %199 = vsyncadd [#allocation15], %s198
      %s200 = sshll.u32 [#allocation14], 4
      %s201 = int_to_ptr.vmem [resolvable:$true] %s200
      %206 = dma.hbm_to_vmem [thread:$0]  %s27, 32, %s201, [#allocation15], 16, 16, 1
    $region57: #{multimodal_captioner.1} parent=1 // pred_fallthru
      _
    // Predicated region
    $region58: #{multimodal_captioner.1} parent=1 // pred_check
      _
    $region59: #{multimodal_captioner.1} parent=1 // pred_check_branch
      %208 = sbr.rel (0) target = $region61
    $region60: #{multimodal_captioner.1} parent=1 // pred_region
      %s210 = ssub.s32 32, 32
      %211 = vsyncadd [#allocation15], %s210
      %s212 = sshll.u32 [#allocation16], 4
      %s213 = int_to_ptr.vmem [resolvable:$true] %s212
      %218 = dma.hbm_to_vmem [thread:$0]  %s29, 32, %s213, [#allocation15], 16, 16, 1
    $region61: #{multimodal_captioner.1} parent=1 // pred_fallthru
      _
    // Predicated region
    $region62: #{multimodal_captioner.1} parent=1 // pred_check
      _
    $region63: #{multimodal_captioner.1} parent=1 // pred_check_branch
      %220 = sbr.rel (0) target = $region65
    $region64: #{multimodal_captioner.1} parent=1 // pred_region
      %s222 = ssub.s32 32, 32
      %223 = vsyncadd [#allocation18], %s222
      %s224 = sshll.u32 [#allocation17], 4
      %s225 = int_to_ptr.vmem [resolvable:$true] %s224
      %230 = dma.hbm_to_vmem [thread:$0]  %s31, 32, %s225, [#allocation18], 16, 16, 1
    $region65: #{multimodal_captioner.1} parent=1 // pred_fallthru
      _
    // Predicated region
    $region66: #{multimodal_captioner.1} parent=1 // pred_check
      _
    $region67: #{multimodal_captioner.1} parent=1 // pred_check_branch
      %232 = sbr.rel (0) target = $region69
    $region68: #{multimodal_captioner.1} parent=1 // pred_region
      %s234 = ssub.s32 2048, 2048
      %235 = vsyncadd [#allocation18], %s234
      %s236 = sshll.u32 [#allocation19], 4
      %s237 = int_to_ptr.vmem [resolvable:$true] %s236
      %242 = dma.hbm_to_vmem [thread:$0]  %s33, 2048, %s237, [#allocation18], 128, 128, 8
    $region69: #{multimodal_captioner.1} parent=1 // pred_fallthru
      _
    // Predicated region
    $region70: #{multimodal_captioner.1} parent=1 // pred_check
      _
    $region71: #{multimodal_captioner.1} parent=1 // pred_check_branch
      %244 = sbr.rel (0) target = $region73
    $region72: #{multimodal_captioner.1} parent=1 // pred_region
      %s246 = ssub.s32 64, 64
      %247 = vsyncadd [#allocation21], %s246
      %s248 = sshll.u32 [#allocation20], 4
      %s249 = int_to_ptr.vmem [resolvable:$true] %s248
      %254 = dma.hbm_to_vmem [thread:$0]  %s35, 64, %s249, [#allocation21], 32, 32, 2
    $region73: #{multimodal_captioner.1} parent=1 // pred_fallthru
      _
    // Predicated region
    $region74: #{multimodal_captioner.1} parent=1 // pred_check
      _
    $region75: #{multimodal_captioner.1} parent=1 // pred_check_branch
      %256 = sbr.rel (0) target = $region77
    $region76: #{multimodal_captioner.1} parent=1 // pred_region
      _
    $region77: #{multimodal_captioner.1} parent=1 // pred_fallthru
      _
    // Predicated region
    $region78: #{multimodal_captioner.1} parent=1 // pred_check
      _
    $region79: #{multimodal_captioner.1} parent=1 // pred_check_branch
      %258 = sbr.rel (0) target = $region81
    $region80: #{multimodal_captioner.1} parent=1 // pred_region
      %s260 = ssub.s32 32, 32
      %261 = vsyncadd [#allocation21], %s260
      %s262 = sshll.u32 [#allocation22], 4
      %s263 = int_to_ptr.vmem [resolvable:$true] %s262
      %268 = dma.hbm_to_vmem [thread:$0]  %s39, 32, %s263, [#allocation21], 16, 16, 1
    $region81: #{multimodal_captioner.1} parent=1 // pred_fallthru
      _
    // Predicated region
    $region82: #{multimodal_captioner.1} parent=1 // pred_check
      _
    $region83: #{multimodal_captioner.1} parent=1 // pred_check_branch
      %270 = sbr.rel (0) target = $region85
    $region84: #{multimodal_captioner.1} parent=1 // pred_region
      %s272 = ssub.s32 512, 512
      %273 = vsyncadd [#allocation24], %s272
      %s274 = sshll.u32 [#allocation23], 4
      %s275 = int_to_ptr.vmem [resolvable:$true] %s274
      %280 = dma.hbm_to_vmem [thread:$0]  %s41, 512, %s275, [#allocation24], 64, 64, 4
    $region85: #{multimodal_captioner.1} parent=1 // pred_fallthru
      _
    // Predicated region
    $region86: #{multimodal_captioner.1} parent=1 // pred_check
      _
    $region87: #{multimodal_captioner.1} parent=1 // pred_check_branch
      %282 = sbr.rel (0) target = $region89
    $region88: #{multimodal_captioner.1} parent=1 // pred_region
      %s284 = ssub.s32 2048, 2048
      %285 = vsyncadd [#allocation24], %s284
      %s286 = sshll.u32 [#allocation25], 4
      %s287 = int_to_ptr.vmem [resolvable:$true] %s286
      %292 = dma.hbm_to_vmem [thread:$0]  %s43, 2048, %s287, [#allocation24], 64, 64, 4
    $region89: #{multimodal_captioner.1} parent=1 // pred_fallthru
      _
    // Predicated region
    $region90: #{multimodal_captioner.1} parent=1 // pred_check
      _
    $region91: #{multimodal_captioner.1} parent=1 // pred_check_branch
      %294 = sbr.rel (0) target = $region93
    $region92: #{multimodal_captioner.1} parent=1 // pred_region
      %s296 = ssub.s32 768, 768
      %297 = vsyncadd [#allocation27], %s296
      %s298 = sshll.u32 [#allocation26], 4
      %s299 = int_to_ptr.vmem [resolvable:$true] %s298
      %304 = dma.hbm_to_vmem [thread:$0]  %s45, 768, %s299, [#allocation27], 128, 128, 8
    $region93: #{multimodal_captioner.1} parent=1 // pred_fallthru
      _
    // Predicated region
    $region94: #{multimodal_captioner.1} parent=1 // pred_check
      _
    $region95: #{multimodal_captioner.1} parent=1 // pred_check_branch
      %306 = sbr.rel (0) target = $region97
    $region96: #{multimodal_captioner.1} parent=1 // pred_region
      %s308 = ssub.s32 256, 256
      %309 = vsyncadd [#allocation27], %s308
      %s310 = sshll.u32 [#allocation28], 4
      %s311 = int_to_ptr.vmem [resolvable:$true] %s310
      %316 = dma.hbm_to_vmem [thread:$0]  %s47, 256, %s311, [#allocation27], 128, 128, 8
    $region97: #{multimodal_captioner.1} parent=1 // pred_fallthru
      _
    // Predicated region
    $region98: #{multimodal_captioner.1} parent=1 // pred_check
      _
    $region99: #{multimodal_captioner.1} parent=1 // pred_check_branch
      %318 = sbr.rel (0) target = $region101
    $region100: #{multimodal_captioner.1} parent=1 // pred_region
      %s320 = ssub.s32 1024, 1024
      %321 = vsyncadd [#allocation30], %s320
      %s322 = sshll.u32 [#allocation29], 4
      %s323 = int_to_ptr.vmem [resolvable:$true] %s322
      %328 = dma.hbm_to_vmem [thread:$0]  %s49, 1024, %s323, [#allocation30], 128, 128, 8
    $region101: #{multimodal_captioner.1} parent=1 // pred_fallthru
      _
    // Predicated region
    $region102: #{multimodal_captioner.1} parent=1 // pred_check
      _
    $region103: #{multimodal_captioner.1} parent=1 // pred_check_branch
      %330 = sbr.rel (0) target = $region105
    $region104: #{multimodal_captioner.1} parent=1 // pred_region
      %s332 = ssub.s32 32, 32
      %333 = vsyncadd [#allocation30], %s332
      %s334 = sshll.u32 [#allocation31], 4
      %s335 = int_to_ptr.vmem [resolvable:$true] %s334
      %340 = dma.hbm_to_vmem [thread:$0]  %s51, 32, %s335, [#allocation30], 16, 16, 1
    $region105: #{multimodal_captioner.1} parent=1 // pred_fallthru
      _
    // Predicated region
    $region106: #{multimodal_captioner.1} parent=1 // pred_check
      _
    $region107: #{multimodal_captioner.1} parent=1 // pred_check_branch
      %342 = sbr.rel (0) target = $region109
    $region108: #{multimodal_captioner.1} parent=1 // pred_region
      _
    $region109: #{multimodal_captioner.1} parent=1 // pred_fallthru
      _
    // Predicated region
    $region110: #{multimodal_captioner.1} parent=1 // pred_check
      _
    $region111: #{multimodal_captioner.1} parent=1 // pred_check_branch
      %344 = sbr.rel (0) target = $region113
    $region112: #{multimodal_captioner.1} parent=1 // pred_region
      _
    $region113: #{multimodal_captioner.1} parent=1 // pred_fallthru
      _
    // Predicated region
    $region114: #{multimodal_captioner.1} parent=1 // pred_check
      _
    $region115: #{multimodal_captioner.1} parent=1 // pred_check_branch
      %346 = sbr.rel (0) target = $region117
    $region116: #{multimodal_captioner.1} parent=1 // pred_region
      _
    $region117: #{multimodal_captioner.1} parent=1 // pred_fallthru
      _
    // Predicated region
    $region118: #{multimodal_captioner.1} parent=1 // pred_check
      _
    $region119: #{multimodal_captioner.1} parent=1 // pred_check_branch
      %348 = sbr.rel (0) target = $region121
    $region120: #{multimodal_captioner.1} parent=1 // pred_region
      %s350 = ssub.s32 32, 32
      %351 = vsyncadd [#allocation33], %s350
      %s352 = sshll.u32 [#allocation32], 4
      %s353 = int_to_ptr.vmem [resolvable:$true] %s352
      %358 = dma.hbm_to_vmem [thread:$0]  %s59, 32, %s353, [#allocation33], 16, 16, 1
    $region121: #{multimodal_captioner.1} parent=1 // pred_fallthru
      _
    // Predicated region
    $region122: #{multimodal_captioner.1} parent=1 // pred_check
      _
    $region123: #{multimodal_captioner.1} parent=1 // pred_check_branch
      %360 = sbr.rel (0) target = $region125
    $region124: #{multimodal_captioner.1} parent=1 // pred_region
      %s362 = ssub.s32 32, 32
      %363 = vsyncadd [#allocation33], %s362
      %s364 = sshll.u32 [#allocation34], 4
      %s365 = int_to_ptr.vmem [resolvable:$true] %s364
      %370 = dma.hbm_to_vmem [thread:$0]  %s61, 32, %s365, [#allocation33], 16, 16, 1
    $region125: #{multimodal_captioner.1} parent=1 // pred_fallthru
      _
    // Predicated region
    $region126: #{multimodal_captioner.1} parent=1 // pred_check
      _
    $region127: #{multimodal_captioner.1} parent=1 // pred_check_branch
      %372 = sbr.rel (0) target = $region129
    $region128: #{multimodal_captioner.1} parent=1 // pred_region
      _
    $region129: #{multimodal_captioner.1} parent=1 // pred_fallthru
      _
    // Predicated region
    $region130: #{multimodal_captioner.1} parent=1 // pred_check
      _
    $region131: #{multimodal_captioner.1} parent=1 // pred_check_branch
      %374 = sbr.rel (0) target = $region133
    $region132: #{multimodal_captioner.1} parent=1 // pred_region
      _
    $region133: #{multimodal_captioner.1} parent=1 // pred_fallthru
      _
    // Predicated region
    $region134: #{multimodal_captioner.1} parent=1 // pred_check
      _
    $region135: #{multimodal_captioner.1} parent=1 // pred_check_branch
      %376 = sbr.rel (0) target = $region137
    $region136: #{multimodal_captioner.1} parent=1 // pred_region
      _
    $region137: #{multimodal_captioner.1} parent=1 // pred_fallthru
      _
    // Predicated region
    $region138: #{multimodal_captioner.1} parent=1 // pred_check
      _
    $region139: #{multimodal_captioner.1} parent=1 // pred_check_branch
      %378 = sbr.rel (0) target = $region141
    $region140: #{multimodal_captioner.1} parent=1 // pred_region
      _
    $region141: #{multimodal_captioner.1} parent=1 // pred_fallthru
      _
    // Predicated region
    $region142: #{multimodal_captioner.1} parent=1 // pred_check
      _
    $region143: #{multimodal_captioner.1} parent=1 // pred_check_branch
      %380 = sbr.rel (0) target = $region145
    $region144: #{multimodal_captioner.1} parent=1 // pred_region
      %s382 = ssub.s32 16, 16
      %383 = vsyncadd [#allocation36], %s382
      %s385 = sshll.u32 [#allocation35], 4
      %s386 = int_to_ptr.vmem [resolvable:$true] %s385
      %388 = dma.hbm_to_vmem [thread:$0]  %s71, 16, %s386, [#allocation36]
    $region145: #{multimodal_captioner.1} parent=1 // pred_fallthru
      _
    // Predicated region
    $region146: #{multimodal_captioner.1} parent=1 // pred_check
      _
    $region147: #{multimodal_captioner.1} parent=1 // pred_check_branch
      %390 = sbr.rel (0) target = $region149
    $region148: #{multimodal_captioner.1} parent=1 // pred_region
      %s392 = ssub.s32 16, 16
      %393 = vsyncadd [#allocation36], %s392
      %s395 = sshll.u32 [#allocation37], 4
      %s396 = int_to_ptr.vmem [resolvable:$true] %s395
      %398 = dma.hbm_to_vmem [thread:$0]  %s73, 16, %s396, [#allocation36]
    $region149: #{multimodal_captioner.1} parent=1 // pred_fallthru
      _
    // Predicated region
    $region150: #{multimodal_captioner.1} parent=1 // pred_check
      _
    $region151: #{multimodal_captioner.1} parent=1 // pred_check_branch
      %400 = sbr.rel (0) target = $region153
    $region152: #{multimodal_captioner.1} parent=1 // pred_region
      %s402 = ssub.s32 2048, 2048
      %403 = vsyncadd [#allocation39], %s402
      %s404 = sshll.u32 [#allocation38], 4
      %s405 = int_to_ptr.vmem [resolvable:$true] %s404
      %410 = dma.hbm_to_vmem [thread:$0]  %s75, 2048, %s405, [#allocation39], 128, 128, 8
    $region153: #{multimodal_captioner.1} parent=1 // pred_fallthru
      _
    // Predicated region
    $region154: #{multimodal_captioner.1} parent=1 // pred_check
      _
    $region155: #{multimodal_captioner.1} parent=1 // pred_check_branch
      %412 = sbr.rel (0) target = $region157
    $region156: #{multimodal_captioner.1} parent=1 // pred_region
      %s414 = ssub.s32 32, 32
      %415 = vsyncadd [#allocation39], %s414
      %s417 = sshll.u32 [#allocation40], 4
      %s418 = int_to_ptr.vmem [resolvable:$true] %s417
      %420 = dma.hbm_to_vmem [thread:$0]  %s77, 32, %s418, [#allocation39]
    $region157: #{multimodal_captioner.1} parent=1 // pred_fallthru
      _
    // Predicated region
    $region158: #{multimodal_captioner.1} parent=1 // pred_check
      _
    $region159: #{multimodal_captioner.1} parent=1 // pred_check_branch
      %422 = sbr.rel (0) target = $region161
    $region160: #{multimodal_captioner.1} parent=1 // pred_region
      %423 = dma.done [#allocation3], 384
    $region161: #{multimodal_captioner.1} parent=1 // pred_fallthru
      _
    // Predicated region
    $region162: #{multimodal_captioner.1} parent=1 // pred_check
      _
    $region163: #{multimodal_captioner.1} parent=1 // pred_check_branch
      %425 = sbr.rel (0) target = $region165
    $region164: #{multimodal_captioner.1} parent=1 // pred_region
      %426 = dma.done [#allocation6], 768
    $region165: #{multimodal_captioner.1} parent=1 // pred_fallthru
      _
    // Predicated region
    $region166: #{multimodal_captioner.1} parent=1 // pred_check
      _
    $region167: #{multimodal_captioner.1} parent=1 // pred_check_branch
      %428 = sbr.rel (0) target = $region169
    $region168: #{multimodal_captioner.1} parent=1 // pred_region
      %429 = dma.done [#allocation6], 768
    $region169: #{multimodal_captioner.1} parent=1 // pred_fallthru
      _
    // Predicated region
    $region170: #{multimodal_captioner.1} parent=1 // pred_check
      _
    $region171: #{multimodal_captioner.1} parent=1 // pred_check_branch
      %431 = sbr.rel (0) target = $region173
    $region172: #{multimodal_captioner.1} parent=1 // pred_region
      %432 = dma.done [#allocation9], 16
    $region173: #{multimodal_captioner.1} parent=1 // pred_fallthru
      _
    // Predicated region
    $region174: #{multimodal_captioner.1} parent=1 // pred_check
      _
    $region175: #{multimodal_captioner.1} parent=1 // pred_check_branch
      %434 = sbr.rel (0) target = $region177
    $region176: #{multimodal_captioner.1} parent=1 // pred_region
      %435 = dma.done [#allocation9], 32
    $region177: #{multimodal_captioner.1} parent=1 // pred_fallthru
      _
    // Predicated region
    $region178: #{multimodal_captioner.1} parent=1 // pred_check
      _
    $region179: #{multimodal_captioner.1} parent=1 // pred_check_branch
      %437 = sbr.rel (0) target = $region181
    $region180: #{multimodal_captioner.1} parent=1 // pred_region
      %438 = dma.done [#allocation12], 32
    $region181: #{multimodal_captioner.1} parent=1 // pred_fallthru
      _
    // Predicated region
    $region182: #{multimodal_captioner.1} parent=1 // pred_check
      _
    $region183: #{multimodal_captioner.1} parent=1 // pred_check_branch
      %440 = sbr.rel (0) target = $region185
    $region184: #{multimodal_captioner.1} parent=1 // pred_region
      %441 = dma.done [#allocation12], 96
    $region185: #{multimodal_captioner.1} parent=1 // pred_fallthru
      _
    // Predicated region
    $region186: #{multimodal_captioner.1} parent=1 // pred_check
      _
    $region187: #{multimodal_captioner.1} parent=1 // pred_check_branch
      %443 = sbr.rel (0) target = $region189
    $region188: #{multimodal_captioner.1} parent=1 // pred_region
      %444 = dma.done [#allocation15], 32
    $region189: #{multimodal_captioner.1} parent=1 // pred_fallthru
      _
    // Predicated region
    $region190: #{multimodal_captioner.1} parent=1 // pred_check
      _
    $region191: #{multimodal_captioner.1} parent=1 // pred_check_branch
      %446 = sbr.rel (0) target = $region193
    $region192: #{multimodal_captioner.1} parent=1 // pred_region
      %447 = dma.done [#allocation15], 32
    $region193: #{multimodal_captioner.1} parent=1 // pred_fallthru
      _
    // Predicated region
    $region194: #{multimodal_captioner.1} parent=1 // pred_check
      _
    $region195: #{multimodal_captioner.1} parent=1 // pred_check_branch
      %449 = sbr.rel (0) target = $region197
    $region196: #{multimodal_captioner.1} parent=1 // pred_region
      %450 = dma.done [#allocation18], 32
    $region197: #{multimodal_captioner.1} parent=1 // pred_fallthru
      _
    // Predicated region
    $region198: #{multimodal_captioner.1} parent=1 // pred_check
      _
    $region199: #{multimodal_captioner.1} parent=1 // pred_check_branch
      %452 = sbr.rel (0) target = $region201
    $region200: #{multimodal_captioner.1} parent=1 // pred_region
      %453 = dma.done [#allocation18], 2048
    $region201: #{multimodal_captioner.1} parent=1 // pred_fallthru
      _
    // Predicated region
    $region202: #{multimodal_captioner.1} parent=1 // pred_check
      _
    $region203: #{multimodal_captioner.1} parent=1 // pred_check_branch
      %455 = sbr.rel (0) target = $region205
    $region204: #{multimodal_captioner.1} parent=1 // pred_region
      %456 = dma.done [#allocation21], 64
    $region205: #{multimodal_captioner.1} parent=1 // pred_fallthru
      _
    // Predicated region
    $region206: #{multimodal_captioner.1} parent=1 // pred_check
      _
    $region207: #{multimodal_captioner.1} parent=1 // pred_check_branch
      %458 = sbr.rel (0) target = $region209
    $region208: #{multimodal_captioner.1} parent=1 // pred_region
      %459 = dma.done [#allocation21], 32
    $region209: #{multimodal_captioner.1} parent=1 // pred_fallthru
      _
    // Predicated region
    $region210: #{multimodal_captioner.1} parent=1 // pred_check
      _
    $region211: #{multimodal_captioner.1} parent=1 // pred_check_branch
      %461 = sbr.rel (0) target = $region213
    $region212: #{multimodal_captioner.1} parent=1 // pred_region
      %462 = dma.done [#allocation24], 512
    $region213: #{multimodal_captioner.1} parent=1 // pred_fallthru
      _
    // Predicated region
    $region214: #{multimodal_captioner.1} parent=1 // pred_check
      _
    $region215: #{multimodal_captioner.1} parent=1 // pred_check_branch
      %464 = sbr.rel (0) target = $region217
    $region216: #{multimodal_captioner.1} parent=1 // pred_region
      %465 = dma.done [#allocation24], 2048
    $region217: #{multimodal_captioner.1} parent=1 // pred_fallthru
      _
    // Predicated region
    $region218: #{multimodal_captioner.1} parent=1 // pred_check
      _
    $region219: #{multimodal_captioner.1} parent=1 // pred_check_branch
      %467 = sbr.rel (0) target = $region221
    $region220: #{multimodal_captioner.1} parent=1 // pred_region
      %468 = dma.done [#allocation27], 768
    $region221: #{multimodal_captioner.1} parent=1 // pred_fallthru
      _
    // Predicated region
    $region222: #{multimodal_captioner.1} parent=1 // pred_check
      _
    $region223: #{multimodal_captioner.1} parent=1 // pred_check_branch
      %470 = sbr.rel (0) target = $region225
    $region224: #{multimodal_captioner.1} parent=1 // pred_region
      %471 = dma.done [#allocation27], 256
    $region225: #{multimodal_captioner.1} parent=1 // pred_fallthru
      _
    // Predicated region
    $region226: #{multimodal_captioner.1} parent=1 // pred_check
      _
    $region227: #{multimodal_captioner.1} parent=1 // pred_check_branch
      %473 = sbr.rel (0) target = $region229
    $region228: #{multimodal_captioner.1} parent=1 // pred_region
      %474 = dma.done [#allocation30], 1024
    $region229: #{multimodal_captioner.1} parent=1 // pred_fallthru
      _
    // Predicated region
    $region230: #{multimodal_captioner.1} parent=1 // pred_check
      _
    $region231: #{multimodal_captioner.1} parent=1 // pred_check_branch
      %476 = sbr.rel (0) target = $region233
    $region232: #{multimodal_captioner.1} parent=1 // pred_region
      %477 = dma.done [#allocation30], 32
    $region233: #{multimodal_captioner.1} parent=1 // pred_fallthru
      _
    // Predicated region
    $region234: #{multimodal_captioner.1} parent=1 // pred_check
      _
    $region235: #{multimodal_captioner.1} parent=1 // pred_check_branch
      %479 = sbr.rel (0) target = $region237
    $region236: #{multimodal_captioner.1} parent=1 // pred_region
      %480 = dma.done [#allocation33], 32
    $region237: #{multimodal_captioner.1} parent=1 // pred_fallthru
      _
    // Predicated region
    $region238: #{multimodal_captioner.1} parent=1 // pred_check
      _
    $region239: #{multimodal_captioner.1} parent=1 // pred_check_branch
      %482 = sbr.rel (0) target = $region241
    $region240: #{multimodal_captioner.1} parent=1 // pred_region
      %483 = dma.done [#allocation33], 32
    $region241: #{multimodal_captioner.1} parent=1 // pred_fallthru
      _
    // Predicated region
    $region242: #{multimodal_captioner.1} parent=1 // pred_check
      _
    $region243: #{multimodal_captioner.1} parent=1 // pred_check_branch
      %485 = sbr.rel (0) target = $region245
    $region244: #{multimodal_captioner.1} parent=1 // pred_region
      %486 = dma.done [#allocation36], 16
    $region245: #{multimodal_captioner.1} parent=1 // pred_fallthru
      _
    // Predicated region
    $region246: #{multimodal_captioner.1} parent=1 // pred_check
      _
    $region247: #{multimodal_captioner.1} parent=1 // pred_check_branch
      %488 = sbr.rel (0) target = $region249
    $region248: #{multimodal_captioner.1} parent=1 // pred_region
      %489 = dma.done [#allocation36], 16
    $region249: #{multimodal_captioner.1} parent=1 // pred_fallthru
      _
    // Predicated region
    $region250: #{multimodal_captioner.1} parent=1 // pred_check
      _
    $region251: #{multimodal_captioner.1} parent=1 // pred_check_branch
      %491 = sbr.rel (0) target = $region253
    $region252: #{multimodal_captioner.1} parent=1 // pred_region
      %492 = dma.done [#allocation39], 2048
    $region253: #{multimodal_captioner.1} parent=1 // pred_fallthru
      _
    // Predicated region
    $region254: #{multimodal_captioner.1} parent=1 // pred_check
      _
    $region255: #{multimodal_captioner.1} parent=1 // pred_check_branch
      %494 = sbr.rel (0) target = $region257
    $region256: #{multimodal_captioner.1} parent=1 // pred_region
      %495 = dma.done [#allocation39], 32
    $region257: #{multimodal_captioner.1} parent=1 // pred_fallthru
      _
    %v497 = vld [vmem:[%s1] sm:$0xff]
    %v498 = vld [vmem:[%s1 + $0x8] sm:$0xff]
    %v499 = vld [vmem:[%s1 + $0x10] sm:$0xff]
    %v500 = vld [vmem:[%s1 + $0x18] sm:$0xff]
    %v501 = vld [vmem:[%s1 + $0x20] sm:$0xff]
    %v502 = vld [vmem:[%s1 + $0x28] sm:$0xff]
    %v503 = vpack.c.bf16 %v498, %v497
    %v504 = vpack.c.bf16 %v500, %v499
    %v505 = vpack.c.bf16 %v502, %v501
    %v506 = vld [vmem:[#allocation2] sm:$0xf]
    %v507 = vld [vmem:[#allocation2 + $0x4] sm:$0xf]
    %v508 = vld [vmem:[#allocation2 + $0x8] sm:$0xf]
    %v509 = vld [vmem:[#allocation2 + $0xc] sm:$0xf]
    %v510 = vld [vmem:[#allocation2 + $0x10] sm:$0xf]
    %v511 = vld [vmem:[#allocation2 + $0x14] sm:$0xf]
    %v512 = vld [vmem:[#allocation5] sm:$0xff]
    %v513 = vld [vmem:[#allocation5 + $0x8] sm:$0xff]
    %v514 = vld [vmem:[#allocation5 + $0x10] sm:$0xff]
    %v515 = vld [vmem:[#allocation5 + $0x18] sm:$0xff]
    %v516 = vld [vmem:[#allocation5 + $0x20] sm:$0xff]
    %v517 = vld [vmem:[#allocation5 + $0x28] sm:$0xff]
    %v524 = vunpack.c.l.b16 %v506
    %v525 = vunpack.c.l.b16 %v507
    %v526 = vunpack.c.l.b16 %v508
    %v527 = vunpack.c.l.b16 %v509
    %v528 = vunpack.c.l.b16 %v510
    %v529 = vunpack.c.l.b16 %v511
    %v530 = vpack.c.b16 %v525, %v524
    %v531 = vpack.c.b16 %v527, %v526
    %v532 = vpack.c.b16 %v529, %v528
    %vm536 = vcmask 392192
    %v538 = vsel %vm536, %v503, 0
    %v541 = vsel %vm536, %v504, 0
    %v544 = vsel %vm536, %v505, 0
    %546 = vmatprep.subr.bf16.mxu0 0
    %547 = vmatpush1.bf16.msra.mxu0 0
    %548 = vmatprep.subr.bf16.mxu0 0
    %549 = vmatpush1.bf16.msra.mxu0 0
    %550 = vmatprep.subr.bf16.mxu0 0
    %551 = vmatpush1.bf16.msra.mxu0 0
    %552 = vmatprep.subr.bf16.mxu0 0
    %553 = vmatpush1.bf16.msra.mxu0 0
    %554 = vmatprep.subr.bf16.mxu0 0
    %555 = vmatpush1.bf16.msra.mxu0 0
    %556 = vmatprep.subr.bf16.mxu0 0
    %557 = vmatpush1.bf16.msra.mxu0 %v532
    %558 = vmatprep.subr.bf16.mxu0 0
    %559 = vmatpush1.bf16.msra.mxu0 %v531
    %560 = vmatprep.subr.bf16.mxu0 0
    %561 = vmatpush1.bf16.msra.mxu0 %v530
    %562 = vmatprep.subr.bf16.mxu0 0
    %563 = vmatpush2.bf16.msra.mxu0 0
    %564 = vmatprep.subr.bf16.mxu0 0
    %565 = vmatpush2.bf16.msra.mxu0 0
    %566 = vmatprep.subr.bf16.mxu0 0
    %567 = vmatpush2.bf16.msra.mxu0 0
    %568 = vmatprep.subr.bf16.mxu0 0
    %569 = vmatpush2.bf16.msra.mxu0 0
    %570 = vmatprep.subr.bf16.mxu0 0
    %571 = vmatpush2.bf16.msra.mxu0 0
    %572 = vmatprep.subr.bf16.mxu0 0
    %573 = vmatpush2.bf16.msra.mxu0 0
    %574 = vmatprep.subr.bf16.mxu0 0
    %575 = vmatpush2.bf16.msra.mxu0 0
    %576 = vmatprep.subr.bf16.mxu0 0
    %577 = vmatpush2.bf16.msra.mxu0 0
    %578 = vmatprep.mubr.bf16.mxu0 0
    %579 = vmatmul.mubr.bf16.gmra.mxu0 %v538
    %v580 = vpop.f32.mrf.mxu0
    %v581 = vadd.f32 %v512, %v580
    %v582 = vpop.f32.mrf.mxu0
    %v583 = vpop.f32.mrf.mxu0
    %v584 = vadd.f32 %v513, %v583
    %v585 = vpop.f32.mrf.mxu0
    %586 = vmatprep.mubr.bf16.mxu0 0
    %587 = vmatmul.mubr.bf16.gmra.mxu0 %v541
    %v588 = vpop.f32.mrf.mxu0
    %v589 = vadd.f32 %v514, %v588
    %v590 = vpop.f32.mrf.mxu0
    %v591 = vpop.f32.mrf.mxu0
    %v592 = vadd.f32 %v515, %v591
    %v593 = vpop.f32.mrf.mxu0
    %594 = vmatprep.mubr.bf16.mxu0 0
    %595 = vmatmul.mubr.bf16.gmra.mxu0 %v544
    %v596 = vpop.f32.mrf.mxu0
    %v597 = vadd.f32 %v516, %v596
    %v598 = vpop.f32.mrf.mxu0
    %v599 = vpop.f32.mrf.mxu0
    %v600 = vadd.f32 %v517, %v599
    %v601 = vpop.f32.mrf.mxu0
    %602 = vdwg.mxu0
    %v603 = vld [vmem:[%s13] sm:$0x1]
    %v604 = vld [vmem:[#allocation8] sm:$0x1]
    %vm605 = vcmask 523264
    %v606 = vsel %vm605, %v581, 0.0
    %607 = vadd.xlane.f32.xlu0 %v606
    %v608 = vpop.xlane.xlu0 %607
    %v609 = vsel %vm605, %v584, 0.0
    %610 = vadd.xlane.f32.xlu0 %v609
    %v611 = vpop.xlane.xlu0 %610
    %v612 = vsel %vm605, %v589, 0.0
    %613 = vadd.xlane.f32.xlu0 %v612
    %v614 = vpop.xlane.xlu0 %613
    %v615 = vsel %vm605, %v592, 0.0
    %616 = vadd.xlane.f32.xlu0 %v615
    %v617 = vpop.xlane.xlu0 %616
    %v618 = vsel %vm605, %v597, 0.0
    %619 = vadd.xlane.f32.xlu0 %v618
    %v620 = vpop.xlane.xlu0 %619
    %v621 = vsel %vm605, %v600, 0.0
    %622 = vadd.xlane.f32.xlu0 %v621
    %v623 = vpop.xlane.xlu0 %622
    %v624 = vrcp.pop 64.0
    %v625 = vmul.f32 %v608, %v624
    %v626 = vmul.f32 %v611, %v624
    %v627 = vmul.f32 %v614, %v624
    %v628 = vmul.f32 %v617, %v624
    %v629 = vmul.f32 %v620, %v624
    %v630 = vmul.f32 %v623, %v624
    %v631 = vsub.f32 %v581, %v625
    %v632 = vsub.f32 %v584, %v626
    %v633 = vsub.f32 %v589, %v627
    %v634 = vsub.f32 %v592, %v628
    %v635 = vsub.f32 %v597, %v629
    %v636 = vsub.f32 %v600, %v630
    %v637 = vmul.f32 %v631, %v631
    %v638 = vmul.f32 %v632, %v632
    %v639 = vmul.f32 %v633, %v633
    %v640 = vmul.f32 %v634, %v634
    %v641 = vmul.f32 %v635, %v635
    %v642 = vmul.f32 %v636, %v636
    %v643 = vsel %vm605, %v637, 0.0
    %644 = vadd.xlane.f32.xlu0 %v643
    %v645 = vpop.xlane.xlu0 %644
    %v646 = vsel %vm605, %v638, 0.0
    %647 = vadd.xlane.f32.xlu0 %v646
    %v648 = vpop.xlane.xlu0 %647
    %v649 = vsel %vm605, %v639, 0.0
    %650 = vadd.xlane.f32.xlu0 %v649
    %v651 = vpop.xlane.xlu0 %650
    %v652 = vsel %vm605, %v640, 0.0
    %653 = vadd.xlane.f32.xlu0 %v652
    %v654 = vpop.xlane.xlu0 %653
    %v655 = vsel %vm605, %v641, 0.0
    %656 = vadd.xlane.f32.xlu0 %v655
    %v657 = vpop.xlane.xlu0 %656
    %v658 = vsel %vm605, %v642, 0.0
    %659 = vadd.xlane.f32.xlu0 %v658
    %v660 = vpop.xlane.xlu0 %659
    %v661 = vmul.f32 %v645, %v624
    %v662 = vmul.f32 %v648, %v624
    %v663 = vmul.f32 %v651, %v624
    %v664 = vmul.f32 %v654, %v624
    %v665 = vmul.f32 %v657, %v624
    %v666 = vmul.f32 %v660, %v624
    %v667 = vadd.f32 %v661, 1e-05
    %v668 = vadd.f32 %v662, 1e-05
    %v669 = vadd.f32 %v663, 1e-05
    %v670 = vadd.f32 %v664, 1e-05
    %v671 = vadd.f32 %v665, 1e-05
    %v672 = vadd.f32 %v666, 1e-05
    %v673 = vrsqrt.pop %v667
    %v674 = vrsqrt.pop %v668
    %v675 = vrsqrt.pop %v669
    %v676 = vrsqrt.pop %v670
    %v677 = vrsqrt.pop %v671
    %v678 = vrsqrt.pop %v672
    %v679 = vmul.f32 %v631, %v673
    %v680 = vmul.f32 %v632, %v674
    %v681 = vmul.f32 %v633, %v675
    %v682 = vmul.f32 %v634, %v676
    %v683 = vmul.f32 %v635, %v677
    %v684 = vmul.f32 %v636, %v678
    %v686 = vlaneseq
    %v687 = vshrl.u32 %v686, 7
    %v688 = vsub.s32 0, %v687
    %v689 = vrot.slane %v603, %v688
    %v691 = vmul.f32 %v679, %v689
    %v692 = vmul.f32 %v680, %v689
    %v693 = vmul.f32 %v681, %v689
    %v694 = vmul.f32 %v682, %v689
    %v695 = vmul.f32 %v683, %v689
    %v696 = vmul.f32 %v684, %v689
    %v698 = vlaneseq
    %v699 = vshrl.u32 %v698, 7
    %v700 = vsub.s32 0, %v699
    %v701 = vrot.slane %v604, %v700
    %v703 = vadd.f32 %v691, %v701
    %v704 = vadd.f32 %v692, %v701
    %v705 = vadd.f32 %v693, %v701
    %v706 = vadd.f32 %v694, %v701
    %v707 = vadd.f32 %v695, %v701
    %v708 = vadd.f32 %v696, %v701
    %v709 = vld [vmem:[#allocation7] sm:$0xff]
    %v710 = vld [vmem:[#allocation7 + $0x8] sm:$0xff]
    %v711 = vld [vmem:[#allocation7 + $0x10] sm:$0xff]
    %v712 = vld [vmem:[#allocation7 + $0x18] sm:$0xff]
    %v713 = vld [vmem:[#allocation7 + $0x20] sm:$0xff]
    %v714 = vld [vmem:[#allocation7 + $0x28] sm:$0xff]
    %v715 = vld [vmem:[#allocation10] sm:$0x1]
    %v716 = vld [vmem:[#allocation11] sm:$0x1]
    %v717 = vsel %vm605, %v703, 0.0
    %718 = vadd.xlane.f32.xlu0 %v717
    %v719 = vpop.xlane.xlu0 %718
    %v720 = vsel %vm605, %v704, 0.0
    %721 = vadd.xlane.f32.xlu0 %v720
    %v722 = vpop.xlane.xlu0 %721
    %v723 = vsel %vm605, %v705, 0.0
    %724 = vadd.xlane.f32.xlu0 %v723
    %v725 = vpop.xlane.xlu0 %724
    %v726 = vsel %vm605, %v706, 0.0
    %727 = vadd.xlane.f32.xlu0 %v726
    %v728 = vpop.xlane.xlu0 %727
    %v729 = vsel %vm605, %v707, 0.0
    %730 = vadd.xlane.f32.xlu0 %v729
    %v731 = vpop.xlane.xlu0 %730
    %v732 = vsel %vm605, %v708, 0.0
    %733 = vadd.xlane.f32.xlu0 %v732
    %v734 = vpop.xlane.xlu0 %733
    %v735 = vmul.f32 %v719, %v624
    %v736 = vmul.f32 %v722, %v624
    %v737 = vmul.f32 %v725, %v624
    %v738 = vmul.f32 %v728, %v624
    %v739 = vmul.f32 %v731, %v624
    %v740 = vmul.f32 %v734, %v624
    %v741 = vsub.f32 %v703, %v735
    %v742 = vsub.f32 %v704, %v736
    %v743 = vsub.f32 %v705, %v737
    %v744 = vsub.f32 %v706, %v738
    %v745 = vsub.f32 %v707, %v739
    %v746 = vsub.f32 %v708, %v740
    %v747 = vmul.f32 %v741, %v741
    %v748 = vmul.f32 %v742, %v742
    %v749 = vmul.f32 %v743, %v743
    %v750 = vmul.f32 %v744, %v744
    %v751 = vmul.f32 %v745, %v745
    %v752 = vmul.f32 %v746, %v746
    %v753 = vsel %vm605, %v747, 0.0
    %754 = vadd.xlane.f32.xlu0 %v753
    %v755 = vpop.xlane.xlu0 %754
    %v756 = vsel %vm605, %v748, 0.0
    %757 = vadd.xlane.f32.xlu0 %v756
    %v758 = vpop.xlane.xlu0 %757
    %v759 = vsel %vm605, %v749, 0.0
    %760 = vadd.xlane.f32.xlu0 %v759
    %v761 = vpop.xlane.xlu0 %760
    %v762 = vsel %vm605, %v750, 0.0
    %763 = vadd.xlane.f32.xlu0 %v762
    %v764 = vpop.xlane.xlu0 %763
    %v765 = vsel %vm605, %v751, 0.0
    %766 = vadd.xlane.f32.xlu0 %v765
    %v767 = vpop.xlane.xlu0 %766
    %v768 = vsel %vm605, %v752, 0.0
    %769 = vadd.xlane.f32.xlu0 %v768
    %v770 = vpop.xlane.xlu0 %769
    %v771 = vmul.f32 %v755, %v624
    %v772 = vmul.f32 %v758, %v624
    %v773 = vmul.f32 %v761, %v624
    %v774 = vmul.f32 %v764, %v624
    %v775 = vmul.f32 %v767, %v624
    %v776 = vmul.f32 %v770, %v624
    %v777 = vadd.f32 %v771, 1e-05
    %v778 = vadd.f32 %v772, 1e-05
    %v779 = vadd.f32 %v773, 1e-05
    %v780 = vadd.f32 %v774, 1e-05
    %v781 = vadd.f32 %v775, 1e-05
    %v782 = vadd.f32 %v776, 1e-05
    %v783 = vrsqrt.pop %v777
    %v784 = vrsqrt.pop %v778
    %v785 = vrsqrt.pop %v779
    %v786 = vrsqrt.pop %v780
    %v787 = vrsqrt.pop %v781
    %v788 = vrsqrt.pop %v782
    %v789 = vmul.f32 %v741, %v783
    %v790 = vmul.f32 %v742, %v784
    %v791 = vmul.f32 %v743, %v785
    %v792 = vmul.f32 %v744, %v786
    %v793 = vmul.f32 %v745, %v787
    %v794 = vmul.f32 %v746, %v788
    %v796 = vlaneseq
    %v797 = vshrl.u32 %v796, 7
    %v798 = vsub.s32 0, %v797
    %v799 = vrot.slane %v715, %v798
    %v801 = vmul.f32 %v789, %v799
    %v802 = vmul.f32 %v790, %v799
    %v803 = vmul.f32 %v791, %v799
    %v804 = vmul.f32 %v792, %v799
    %v805 = vmul.f32 %v793, %v799
    %v806 = vmul.f32 %v794, %v799
    %v808 = vlaneseq
    %v809 = vshrl.u32 %v808, 7
    %v810 = vsub.s32 0, %v809
    %v811 = vrot.slane %v716, %v810
    %v813 = vadd.f32 %v801, %v811
    %v814 = vadd.f32 %v802, %v811
    %v815 = vadd.f32 %v803, %v811
    %v816 = vadd.f32 %v804, %v811
    %v817 = vadd.f32 %v805, %v811
    %v818 = vadd.f32 %v806, %v811
    %v819 = vpack.c.bf16 %v814, %v813
    %v820 = vpack.c.bf16 %v816, %v815
    %v821 = vpack.c.bf16 %v818, %v817
    %v822 = vld [vmem:[%s21] sm:$0xff]
    %v823 = vld [vmem:[%s21 + $0x8] sm:$0xf]
    %v824 = vld [vmem:[%s21 + $0xc] sm:$0xff]
    %v825 = vld [vmem:[%s21 + $0x14] sm:$0xf]
    %v826 = vld [vmem:[%s21 + $0x18] sm:$0xff]
    %v827 = vld [vmem:[%s21 + $0x20] sm:$0xf]
    %v828 = vld [vmem:[%s21 + $0x24] sm:$0xff]
    %v829 = vld [vmem:[%s21 + $0x2c] sm:$0xf]
    %v830 = vld [vmem:[%s21 + $0x30] sm:$0xff]
    %v831 = vld [vmem:[%s21 + $0x38] sm:$0xf]
    %v832 = vld [vmem:[%s21 + $0x3c] sm:$0xff]
    %v833 = vld [vmem:[%s21 + $0x44] sm:$0xf]
    %v834 = vld [vmem:[%s21 + $0x48] sm:$0xff]
    %v835 = vld [vmem:[%s21 + $0x50] sm:$0xf]
    %v836 = vld [vmem:[%s21 + $0x54] sm:$0xff]
    %v837 = vld [vmem:[%s21 + $0x5c] sm:$0xf]
    %v838 = vld [vmem:[#allocation13] sm:$0x7]
    %v840 = vlaneseq
    %v841 = vshrl.u32 %v840, 7
    %v842 = vsub.s32 0, %v841
    %v843 = vrot.slane %v838, %v842
    %v844 = vlaneseq
    %v845 = vshrl.u32 %v844, 7
    %v846 = vsub.s32 1, %v845
    %v847 = vrot.slane %v838, %v846
    %v848 = vlaneseq
    %v849 = vshrl.u32 %v848, 7
    %v850 = vsub.s32 2, %v849
    %v851 = vrot.slane %v838, %v850
    %v871 = vunpack.c.l.b16 %v822
    %v872 = vunpack.c.h.b16 %v822
    %v873 = vunpack.c.l.b16 %v823
    %v874 = vunpack.c.l.b16 %v824
    %v875 = vunpack.c.h.b16 %v824
    %v876 = vunpack.c.l.b16 %v825
    %v877 = vunpack.c.l.b16 %v826
    %v878 = vunpack.c.h.b16 %v826
    %v879 = vunpack.c.l.b16 %v827
    %v880 = vunpack.c.l.b16 %v828
    %v881 = vunpack.c.h.b16 %v828
    %v882 = vunpack.c.l.b16 %v829
    %v883 = vunpack.c.l.b16 %v830
    %v884 = vunpack.c.h.b16 %v830
    %v885 = vunpack.c.l.b16 %v831
    %v886 = vunpack.c.l.b16 %v832
    %v887 = vunpack.c.h.b16 %v832
    %v888 = vunpack.c.l.b16 %v833
    %v889 = vunpack.c.l.b16 %v834
    %v890 = vunpack.c.h.b16 %v834
    %v891 = vunpack.c.l.b16 %v835
    %v892 = vunpack.c.l.b16 %v836
    %v893 = vunpack.c.h.b16 %v836
    %v894 = vunpack.c.l.b16 %v837
    %v895 = vpack.c.b16 %v874, %v871
    %v896 = vpack.c.b16 %v875, %v872
    %v897 = vpack.c.b16 %v876, %v873
    %v898 = vpack.c.b16 %v880, %v877
    %v899 = vpack.c.b16 %v881, %v878
    %v900 = vpack.c.b16 %v882, %v879
    %v901 = vpack.c.b16 %v886, %v883
    %v902 = vpack.c.b16 %v887, %v884
    %v903 = vpack.c.b16 %v888, %v885
    %v904 = vpack.c.b16 %v892, %v889
    %v905 = vpack.c.b16 %v893, %v890
    %v906 = vpack.c.b16 %v894, %v891
    %v920 = vsel %vm605, %v819, 0
    %v923 = vsel %vm605, %v820, 0
    %v926 = vsel %vm605, %v821, 0
    %928 = vmatprep.subr.bf16.mxu0 0
    %929 = vmatpush1.bf16.msra.mxu0 0
    %930 = vmatprep.subr.bf16.mxu0 0
    %931 = vmatpush1.bf16.msra.mxu0 0
    %932 = vmatprep.subr.bf16.mxu0 0
    %933 = vmatpush1.bf16.msra.mxu0 0
    %934 = vmatprep.subr.bf16.mxu0 0
    %935 = vmatpush1.bf16.msra.mxu0 0
    %936 = vmatprep.subr.bf16.mxu0 %v905
    %937 = vmatpush1.bf16.msra.mxu0 %v904
    %938 = vmatprep.subr.bf16.mxu0 %v902
    %939 = vmatpush1.bf16.msra.mxu0 %v901
    %940 = vmatprep.subr.bf16.mxu0 %v899
    %941 = vmatpush1.bf16.msra.mxu0 %v898
    %942 = vmatprep.subr.bf16.mxu0 %v896
    %943 = vmatpush1.bf16.msra.mxu0 %v895
    %944 = vmatprep.subr.bf16.mxu0 0
    %945 = vmatpush2.bf16.msra.mxu0 0
    %946 = vmatprep.subr.bf16.mxu0 0
    %947 = vmatpush2.bf16.msra.mxu0 0
    %948 = vmatprep.subr.bf16.mxu0 0
    %949 = vmatpush2.bf16.msra.mxu0 0
    %950 = vmatprep.subr.bf16.mxu0 0
    %951 = vmatpush2.bf16.msra.mxu0 0
    %952 = vmatprep.subr.bf16.mxu0 0
    %953 = vmatpush2.bf16.msra.mxu0 0
    %954 = vmatprep.subr.bf16.mxu0 0
    %955 = vmatpush2.bf16.msra.mxu0 0
    %956 = vmatprep.subr.bf16.mxu0 0
    %957 = vmatpush2.bf16.msra.mxu0 0
    %958 = vmatprep.subr.bf16.mxu0 0
    %959 = vmatpush2.bf16.msra.mxu0 0
    %960 = vmatprep.mubr.bf16.mxu0 0
    %961 = vmatmul.mubr.bf16.gmra.mxu0 %v920
    %v962 = vpop.f32.mrf.mxu0
    %v963 = vadd.f32 %v843, %v962
    %v964 = vpop.f32.mrf.mxu0
    %v965 = vadd.f32 %v847, %v964
    %v966 = vpop.f32.mrf.mxu0
    %v967 = vadd.f32 %v843, %v966
    %v968 = vpop.f32.mrf.mxu0
    %v969 = vadd.f32 %v847, %v968
    %970 = vmatprep.mubr.bf16.mxu0 0
    %971 = vmatmul.mubr.bf16.gmra.mxu0 %v923
    %v972 = vpop.f32.mrf.mxu0
    %v973 = vadd.f32 %v843, %v972
    %v974 = vpop.f32.mrf.mxu0
    %v975 = vadd.f32 %v847, %v974
    %v976 = vpop.f32.mrf.mxu0
    %v977 = vadd.f32 %v843, %v976
    %v978 = vpop.f32.mrf.mxu0
    %v979 = vadd.f32 %v847, %v978
    %980 = vmatprep.mubr.bf16.mxu0 0
    %981 = vmatmul.mubr.bf16.gmra.mxu0 %v926
    %v982 = vpop.f32.mrf.mxu0
    %v983 = vadd.f32 %v843, %v982
    %v984 = vpop.f32.mrf.mxu0
    %v985 = vadd.f32 %v847, %v984
    %v986 = vpop.f32.mrf.mxu0
    %v987 = vadd.f32 %v843, %v986
    %v988 = vpop.f32.mrf.mxu0
    %v989 = vadd.f32 %v847, %v988
    %990 = vdwg.mxu0
    %991 = vmatprep.subr.bf16.mxu0 0
    %992 = vmatpush1.bf16.msra.mxu0 0
    %993 = vmatprep.subr.bf16.mxu0 0
    %994 = vmatpush1.bf16.msra.mxu0 0
    %995 = vmatprep.subr.bf16.mxu0 0
    %996 = vmatpush1.bf16.msra.mxu0 0
    %997 = vmatprep.subr.bf16.mxu0 0
    %998 = vmatpush1.bf16.msra.mxu0 0
    %999 = vmatprep.subr.bf16.mxu0 0
    %1000 = vmatpush1.bf16.msra.mxu0 %v906
    %1001 = vmatprep.subr.bf16.mxu0 0
    %1002 = vmatpush1.bf16.msra.mxu0 %v903
    %1003 = vmatprep.subr.bf16.mxu0 0
    %1004 = vmatpush1.bf16.msra.mxu0 %v900
    %1005 = vmatprep.subr.bf16.mxu0 0
    %1006 = vmatpush1.bf16.msra.mxu0 %v897
    %1007 = vmatprep.subr.bf16.mxu0 0
    %1008 = vmatpush2.bf16.msra.mxu0 0
    %1009 = vmatprep.subr.bf16.mxu0 0
    %1010 = vmatpush2.bf16.msra.mxu0 0
    %1011 = vmatprep.subr.bf16.mxu0 0
    %1012 = vmatpush2.bf16.msra.mxu0 0
    %1013 = vmatprep.subr.bf16.mxu0 0
    %1014 = vmatpush2.bf16.msra.mxu0 0
    %1015 = vmatprep.subr.bf16.mxu0 0
    %1016 = vmatpush2.bf16.msra.mxu0 0
    %1017 = vmatprep.subr.bf16.mxu0 0
    %1018 = vmatpush2.bf16.msra.mxu0 0
    %1019 = vmatprep.subr.bf16.mxu0 0
    %1020 = vmatpush2.bf16.msra.mxu0 0
    %1021 = vmatprep.subr.bf16.mxu0 0
    %1022 = vmatpush2.bf16.msra.mxu0 0
    %1023 = vmatprep.mubr.bf16.mxu0 0
    %1024 = vmatmul.mubr.bf16.gmra.mxu0 %v920
    %v1025 = vpop.f32.mrf.mxu0
    %v1026 = vadd.f32 %v851, %v1025
    %v1027 = vpop.f32.mrf.mxu0
    %v1028 = vpop.f32.mrf.mxu0
    %v1029 = vadd.f32 %v851, %v1028
    %v1030 = vpop.f32.mrf.mxu0
    %1031 = vmatprep.mubr.bf16.mxu0 0
    %1032 = vmatmul.mubr.bf16.gmra.mxu0 %v923
    %v1033 = vpop.f32.mrf.mxu0
    %v1034 = vadd.f32 %v851, %v1033
    %v1035 = vpop.f32.mrf.mxu0
    %v1036 = vpop.f32.mrf.mxu0
    %v1037 = vadd.f32 %v851, %v1036
    %v1038 = vpop.f32.mrf.mxu0
    %1039 = vmatprep.mubr.bf16.mxu0 0
    %1040 = vmatmul.mubr.bf16.gmra.mxu0 %v926
    %v1041 = vpop.f32.mrf.mxu0
    %v1042 = vadd.f32 %v851, %v1041
    %v1043 = vpop.f32.mrf.mxu0
    %v1044 = vpop.f32.mrf.mxu0
    %v1045 = vadd.f32 %v851, %v1044
    %v1046 = vpop.f32.mrf.mxu0
    %1047 = vdwg.mxu0
    %v1048 = vld [vmem:[%s25] sm:$0xf]
    %v1049 = vld [vmem:[%s25 + $0x4] sm:$0xf]
    %v1050 = vld [vmem:[%s25 + $0x8] sm:$0xf]
    %v1051 = vld [vmem:[%s25 + $0xc] sm:$0xf]
    %v1052 = vld [vmem:[%s25 + $0x10] sm:$0xf]
    %v1053 = vld [vmem:[%s25 + $0x14] sm:$0xf]
    %v1054 = vld [vmem:[%s25 + $0x18] sm:$0xf]
    %v1055 = vld [vmem:[%s25 + $0x1c] sm:$0xf]
    %v1056 = vld [vmem:[%s25 + $0x20] sm:$0xf]
    %v1057 = vld [vmem:[%s25 + $0x24] sm:$0xf]
    %v1058 = vld [vmem:[%s25 + $0x28] sm:$0xf]
    %v1059 = vld [vmem:[%s25 + $0x2c] sm:$0xf]
    %v1060 = vld [vmem:[%s25 + $0x30] sm:$0xf]
    %v1061 = vld [vmem:[%s25 + $0x34] sm:$0xf]
    %v1062 = vld [vmem:[%s25 + $0x38] sm:$0xf]
    %v1063 = vld [vmem:[%s25 + $0x3c] sm:$0xf]
    %v1064 = vpack.c.bf16 %v967, %v963
    %v1065 = vpack.c.bf16 %v977, %v973
    %v1066 = vpack.c.bf16 %v987, %v983
    %v1067 = vpack.c.bf16 %v969, %v965
    %v1068 = vpack.c.bf16 %v979, %v975
    %v1069 = vpack.c.bf16 %v989, %v985
    %v1070 = vpack.c.bf16 %v1029, %v1026
    %v1071 = vpack.c.bf16 %v1037, %v1034
    %v1072 = vpack.c.bf16 %v1045, %v1042
    %v1074 = vsel %vm605, %v1064, 0
    %v1077 = vsel %vm605, %v1065, 0
    %v1080 = vsel %vm605, %v1066, 0
    %v1083 = vsel %vm605, %v1067, 0
    %v1086 = vsel %vm605, %v1068, 0
    %v1089 = vsel %vm605, %v1069, 0
    %1091 = vmatprep.subr.bf16.mxu0 0
    %1092 = vmatpush1.bf16.xpose.msra.mxu0 0
    %1093 = vmatprep.subr.bf16.mxu0 0
    %1094 = vmatpush1.bf16.xpose.msra.mxu0 0
    %1095 = vmatprep.subr.bf16.mxu0 0
    %1096 = vmatpush1.bf16.xpose.msra.mxu0 0
    %1097 = vmatprep.subr.bf16.mxu0 0
    %1098 = vmatpush1.bf16.xpose.msra.mxu0 0
    %1099 = vmatprep.subr.bf16.mxu0 0
    %1100 = vmatpush1.bf16.xpose.msra.mxu0 0
    %1101 = vmatprep.subr.bf16.mxu0 0
    %1102 = vmatpush1.bf16.xpose.msra.mxu0 %v1089
    %1103 = vmatprep.subr.bf16.mxu0 0
    %1104 = vmatpush1.bf16.xpose.msra.mxu0 %v1086
    %1105 = vmatprep.subr.bf16.mxu0 0
    %1106 = vmatpush1.bf16.xpose.msra.mxu0 %v1083
    %1107 = vmatprep.subr.bf16.mxu0 0
    %1108 = vmatpush2.bf16.xpose.msra.mxu0 0
    %1109 = vmatprep.subr.bf16.mxu0 0
    %1110 = vmatpush2.bf16.xpose.msra.mxu0 0
    %1111 = vmatprep.subr.bf16.mxu0 0
    %1112 = vmatpush2.bf16.xpose.msra.mxu0 0
    %1113 = vmatprep.subr.bf16.mxu0 0
    %1114 = vmatpush2.bf16.xpose.msra.mxu0 0
    %1115 = vmatprep.subr.bf16.mxu0 0
    %1116 = vmatpush2.bf16.xpose.msra.mxu0 0
    %1117 = vmatprep.subr.bf16.mxu0 0
    %1118 = vmatpush2.bf16.xpose.msra.mxu0 0
    %1119 = vmatprep.subr.bf16.mxu0 0
    %1120 = vmatpush2.bf16.xpose.msra.mxu0 0
    %1121 = vmatprep.subr.bf16.mxu0 0
    %1122 = vmatpush2.bf16.xpose.msra.mxu0 0
    %1123 = vmatprep.mubr.bf16.mxu0 0
    %1124 = vmatmul.mubr.bf16.gmra.mxu0 %v1074
    %v1125 = vpop.f32.mrf.mxu0
    %v1126 = vadd.f32 0.0, %v1125
    %v1127 = vpop.f32.mrf.mxu0
    %v1128 = vpop.f32.mrf.mxu0
    %v1129 = vadd.f32 0.0, %v1128
    %v1130 = vpop.f32.mrf.mxu0
    %1131 = vmatprep.mubr.bf16.mxu0 0
    %1132 = vmatmul.mubr.bf16.gmra.mxu0 %v1077
    %v1133 = vpop.f32.mrf.mxu0
    %v1134 = vadd.f32 0.0, %v1133
    %v1135 = vpop.f32.mrf.mxu0
    %v1136 = vpop.f32.mrf.mxu0
    %v1137 = vadd.f32 0.0, %v1136
    %v1138 = vpop.f32.mrf.mxu0
    %1139 = vmatprep.mubr.bf16.mxu0 0
    %1140 = vmatmul.mubr.bf16.gmra.mxu0 %v1080
    %v1141 = vpop.f32.mrf.mxu0
    %v1142 = vadd.f32 0.0, %v1141
    %v1143 = vpop.f32.mrf.mxu0
    %v1144 = vpop.f32.mrf.mxu0
    %v1145 = vadd.f32 0.0, %v1144
    %v1146 = vpop.f32.mrf.mxu0
    %1147 = vdwg.mxu0
    %v1148 = vmul.f32 %v1126, 0.17677669
    %v1149 = vmul.f32 %v1129, 0.17677669
    %v1150 = vmul.f32 %v1134, 0.17677669
    %v1151 = vmul.f32 %v1137, 0.17677669
    %v1152 = vmul.f32 %v1142, 0.17677669
    %v1153 = vmul.f32 %v1145, 0.17677669
    %v1154 = vadd.f32 %v1148, %v709
    %v1155 = vadd.f32 %v1149, %v710
    %v1156 = vadd.f32 %v1150, %v711
    %v1157 = vadd.f32 %v1151, %v712
    %v1158 = vadd.f32 %v1152, %v713
    %v1159 = vadd.f32 %v1153, %v714
    %v1160 = vsel %vm536, %v1154, -inf
    %1161 = vmax.xlane.f32.xlu0 %v1160
    %v1162 = vpop.xlane.xlu0 %1161
    %v1163 = vsel %vm536, %v1155, -inf
    %1164 = vmax.xlane.f32.xlu0 %v1163
    %v1165 = vpop.xlane.xlu0 %1164
    %v1166 = vsel %vm536, %v1156, -inf
    %1167 = vmax.xlane.f32.xlu0 %v1166
    %v1168 = vpop.xlane.xlu0 %1167
    %v1169 = vsel %vm536, %v1157, -inf
    %1170 = vmax.xlane.f32.xlu0 %v1169
    %v1171 = vpop.xlane.xlu0 %1170
    %v1172 = vsel %vm536, %v1158, -inf
    %1173 = vmax.xlane.f32.xlu0 %v1172
    %v1174 = vpop.xlane.xlu0 %1173
    %v1175 = vsel %vm536, %v1159, -inf
    %1176 = vmax.xlane.f32.xlu0 %v1175
    %v1177 = vpop.xlane.xlu0 %1176
    %v1178 = vsub.f32 %v1154, %v1162
    %v1179 = vsub.f32 %v1155, %v1165
    %v1180 = vsub.f32 %v1156, %v1168
    %v1181 = vsub.f32 %v1157, %v1171
    %v1182 = vsub.f32 %v1158, %v1174
    %v1183 = vsub.f32 %v1159, %v1177
    %v1184 = vmul.f32 %v1178, 1.442695
    %v1185 = vpow.pop %v1184
    %v1186 = vmul.f32 %v1179, 1.442695
    %v1187 = vpow.pop %v1186
    %v1188 = vmul.f32 %v1180, 1.442695
    %v1189 = vpow.pop %v1188
    %v1190 = vmul.f32 %v1181, 1.442695
    %v1191 = vpow.pop %v1190
    %v1192 = vmul.f32 %v1182, 1.442695
    %v1193 = vpow.pop %v1192
    %v1194 = vmul.f32 %v1183, 1.442695
    %v1195 = vpow.pop %v1194
    %v1196 = vsel %vm536, %v1185, 0.0
    %1197 = vadd.xlane.f32.xlu0 %v1196
    %v1198 = vpop.xlane.xlu0 %1197
    %v1199 = vsel %vm536, %v1187, 0.0
    %1200 = vadd.xlane.f32.xlu0 %v1199
    %v1201 = vpop.xlane.xlu0 %1200
    %v1202 = vsel %vm536, %v1189, 0.0
    %1203 = vadd.xlane.f32.xlu0 %v1202
    %v1204 = vpop.xlane.xlu0 %1203
    %v1205 = vsel %vm536, %v1191, 0.0
    %1206 = vadd.xlane.f32.xlu0 %v1205
    %v1207 = vpop.xlane.xlu0 %1206
    %v1208 = vsel %vm536, %v1193, 0.0
    %1209 = vadd.xlane.f32.xlu0 %v1208
    %v1210 = vpop.xlane.xlu0 %1209
    %v1211 = vsel %vm536, %v1195, 0.0
    %1212 = vadd.xlane.f32.xlu0 %v1211
    %v1213 = vpop.xlane.xlu0 %1212
    %v1214 = vrcp.pop %v1198
    %v1215 = vrcp.pop %v1201
    %v1216 = vrcp.pop %v1204
    %v1217 = vrcp.pop %v1207
    %v1218 = vrcp.pop %v1210
    %v1219 = vrcp.pop %v1213
    %v1220 = vmul.f32 %v1185, %v1214
    %v1221 = vmul.f32 %v1187, %v1215
    %v1222 = vmul.f32 %v1189, %v1216
    %v1223 = vmul.f32 %v1191, %v1217
    %v1224 = vmul.f32 %v1193, %v1218
    %v1225 = vmul.f32 %v1195, %v1219
    %v1226 = vpack.c.bf16 %v1221, %v1220
    %v1227 = vpack.c.bf16 %v1223, %v1222
    %v1228 = vpack.c.bf16 %v1225, %v1224
    %v1230 = vsel %vm536, %v1226, 0
    %v1233 = vsel %vm536, %v1227, 0
    %v1236 = vsel %vm536, %v1228, 0
    %1238 = vmatprep.subr.bf16.mxu0 0
    %1239 = vmatpush1.bf16.msra.mxu0 0
    %1240 = vmatprep.subr.bf16.mxu0 0
    %1241 = vmatpush1.bf16.msra.mxu0 0
    %1242 = vmatprep.subr.bf16.mxu0 0
    %1243 = vmatpush1.bf16.msra.mxu0 0
    %1244 = vmatprep.subr.bf16.mxu0 0
    %1245 = vmatpush1.bf16.msra.mxu0 0
    %1246 = vmatprep.subr.bf16.mxu0 0
    %1247 = vmatpush1.bf16.msra.mxu0 0
    %1248 = vmatprep.subr.bf16.mxu0 0
    %1249 = vmatpush1.bf16.msra.mxu0 %v1072
    %1250 = vmatprep.subr.bf16.mxu0 0
    %1251 = vmatpush1.bf16.msra.mxu0 %v1071
    %1252 = vmatprep.subr.bf16.mxu0 0
    %1253 = vmatpush1.bf16.msra.mxu0 %v1070
    %1254 = vmatprep.subr.bf16.mxu0 0
    %1255 = vmatpush2.bf16.msra.mxu0 0
    %1256 = vmatprep.subr.bf16.mxu0 0
    %1257 = vmatpush2.bf16.msra.mxu0 0
    %1258 = vmatprep.subr.bf16.mxu0 0
    %1259 = vmatpush2.bf16.msra.mxu0 0
    %1260 = vmatprep.subr.bf16.mxu0 0
    %1261 = vmatpush2.bf16.msra.mxu0 0
    %1262 = vmatprep.subr.bf16.mxu0 0
    %1263 = vmatpush2.bf16.msra.mxu0 0
    %1264 = vmatprep.subr.bf16.mxu0 0
    %1265 = vmatpush2.bf16.msra.mxu0 0
    %1266 = vmatprep.subr.bf16.mxu0 0
    %1267 = vmatpush2.bf16.msra.mxu0 0
    %1268 = vmatprep.subr.bf16.mxu0 0
    %1269 = vmatpush2.bf16.msra.mxu0 0
    %1270 = vmatprep.mubr.bf16.mxu0 0
    %1271 = vmatmul.mubr.bf16.gmra.mxu0 %v1230
    %v1272 = vpop.f32.mrf.mxu0
    %v1273 = vadd.f32 0.0, %v1272
    %v1274 = vpop.f32.mrf.mxu0
    %v1275 = vpop.f32.mrf.mxu0
    %v1276 = vadd.f32 0.0, %v1275
    %v1277 = vpop.f32.mrf.mxu0
    %1278 = vmatprep.mubr.bf16.mxu0 0
    %1279 = vmatmul.mubr.bf16.gmra.mxu0 %v1233
    %v1280 = vpop.f32.mrf.mxu0
    %v1281 = vadd.f32 0.0, %v1280
    %v1282 = vpop.f32.mrf.mxu0
    %v1283 = vpop.f32.mrf.mxu0
    %v1284 = vadd.f32 0.0, %v1283
    %v1285 = vpop.f32.mrf.mxu0
    %1286 = vmatprep.mubr.bf16.mxu0 0
    %1287 = vmatmul.mubr.bf16.gmra.mxu0 %v1236
    %v1288 = vpop.f32.mrf.mxu0
    %v1289 = vadd.f32 0.0, %v1288
    %v1290 = vpop.f32.mrf.mxu0
    %v1291 = vpop.f32.mrf.mxu0
    %v1292 = vadd.f32 0.0, %v1291
    %v1293 = vpop.f32.mrf.mxu0
    %1294 = vdwg.mxu0
    %1298 = vrot.lane.b32.xlu0 %v1064, 64
    %v1299 = vpop.permute.xlu0 %1298
    %1300 = vrot.lane.b32.xlu0 %v1065, 64
    %v1301 = vpop.permute.xlu0 %1300
    %1302 = vrot.lane.b32.xlu0 %v1066, 64
    %v1303 = vpop.permute.xlu0 %1302
    %1307 = vrot.lane.b32.xlu0 %v1067, 64
    %v1308 = vpop.permute.xlu0 %1307
    %1309 = vrot.lane.b32.xlu0 %v1068, 64
    %v1310 = vpop.permute.xlu0 %1309
    %1311 = vrot.lane.b32.xlu0 %v1069, 64
    %v1312 = vpop.permute.xlu0 %1311
    %v1314 = vsel %vm605, %v1299, 0
    %v1317 = vsel %vm605, %v1301, 0
    %v1320 = vsel %vm605, %v1303, 0
    %v1323 = vsel %vm605, %v1308, 0
    %v1326 = vsel %vm605, %v1310, 0
    %v1329 = vsel %vm605, %v1312, 0
    %1331 = vmatprep.subr.bf16.mxu0 0
    %1332 = vmatpush1.bf16.xpose.msra.mxu0 0
    %1333 = vmatprep.subr.bf16.mxu0 0
    %1334 = vmatpush1.bf16.xpose.msra.mxu0 0
    %1335 = vmatprep.subr.bf16.mxu0 0
    %1336 = vmatpush1.bf16.xpose.msra.mxu0 0
    %1337 = vmatprep.subr.bf16.mxu0 0
    %1338 = vmatpush1.bf16.xpose.msra.mxu0 0
    %1339 = vmatprep.subr.bf16.mxu0 0
    %1340 = vmatpush1.bf16.xpose.msra.mxu0 0
    %1341 = vmatprep.subr.bf16.mxu0 0
    %1342 = vmatpush1.bf16.xpose.msra.mxu0 %v1329
    %1343 = vmatprep.subr.bf16.mxu0 0
    %1344 = vmatpush1.bf16.xpose.msra.mxu0 %v1326
    %1345 = vmatprep.subr.bf16.mxu0 0
    %1346 = vmatpush1.bf16.xpose.msra.mxu0 %v1323
    %1347 = vmatprep.subr.bf16.mxu0 0
    %1348 = vmatpush2.bf16.xpose.msra.mxu0 0
    %1349 = vmatprep.subr.bf16.mxu0 0
    %1350 = vmatpush2.bf16.xpose.msra.mxu0 0
    %1351 = vmatprep.subr.bf16.mxu0 0
    %1352 = vmatpush2.bf16.xpose.msra.mxu0 0
    %1353 = vmatprep.subr.bf16.mxu0 0
    %1354 = vmatpush2.bf16.xpose.msra.mxu0 0
    %1355 = vmatprep.subr.bf16.mxu0 0
    %1356 = vmatpush2.bf16.xpose.msra.mxu0 0
    %1357 = vmatprep.subr.bf16.mxu0 0
    %1358 = vmatpush2.bf16.xpose.msra.mxu0 0
    %1359 = vmatprep.subr.bf16.mxu0 0
    %1360 = vmatpush2.bf16.xpose.msra.mxu0 0
    %1361 = vmatprep.subr.bf16.mxu0 0
    %1362 = vmatpush2.bf16.xpose.msra.mxu0 0
    %1363 = vmatprep.mubr.bf16.mxu0 0
    %1364 = vmatmul.mubr.bf16.gmra.mxu0 %v1314
    %v1365 = vpop.f32.mrf.mxu0
    %v1366 = vadd.f32 0.0, %v1365
    %v1367 = vpop.f32.mrf.mxu0
    %v1368 = vpop.f32.mrf.mxu0
    %v1369 = vadd.f32 0.0, %v1368
    %v1370 = vpop.f32.mrf.mxu0
    %1371 = vmatprep.mubr.bf16.mxu0 0
    %1372 = vmatmul.mubr.bf16.gmra.mxu0 %v1317
    %v1373 = vpop.f32.mrf.mxu0
    %v1374 = vadd.f32 0.0, %v1373
    %v1375 = vpop.f32.mrf.mxu0
    %v1376 = vpop.f32.mrf.mxu0
    %v1377 = vadd.f32 0.0, %v1376
    %v1378 = vpop.f32.mrf.mxu0
    %1379 = vmatprep.mubr.bf16.mxu0 0
    %1380 = vmatmul.mubr.bf16.gmra.mxu0 %v1320
    %v1381 = vpop.f32.mrf.mxu0
    %v1382 = vadd.f32 0.0, %v1381
    %v1383 = vpop.f32.mrf.mxu0
    %v1384 = vpop.f32.mrf.mxu0
    %v1385 = vadd.f32 0.0, %v1384
    %v1386 = vpop.f32.mrf.mxu0
    %1387 = vdwg.mxu0
    %v1388 = vmul.f32 %v1366, 0.17677669
    %v1389 = vmul.f32 %v1369, 0.17677669
    %v1390 = vmul.f32 %v1374, 0.17677669
    %v1391 = vmul.f32 %v1377, 0.17677669
    %v1392 = vmul.f32 %v1382, 0.17677669
    %v1393 = vmul.f32 %v1385, 0.17677669
    %v1394 = vadd.f32 %v1388, %v709
    %v1395 = vadd.f32 %v1389, %v710
    %v1396 = vadd.f32 %v1390, %v711
    %v1397 = vadd.f32 %v1391, %v712
    %v1398 = vadd.f32 %v1392, %v713
    %v1399 = vadd.f32 %v1393, %v714
    %v1400 = vsel %vm536, %v1394, -inf
    %1401 = vmax.xlane.f32.xlu0 %v1400
    %v1402 = vpop.xlane.xlu0 %1401
    %v1403 = vsel %vm536, %v1395, -inf
    %1404 = vmax.xlane.f32.xlu0 %v1403
    %v1405 = vpop.xlane.xlu0 %1404
    %v1406 = vsel %vm536, %v1396, -inf
    %1407 = vmax.xlane.f32.xlu0 %v1406
    %v1408 = vpop.xlane.xlu0 %1407
    %v1409 = vsel %vm536, %v1397, -inf
    %1410 = vmax.xlane.f32.xlu0 %v1409
    %v1411 = vpop.xlane.xlu0 %1410
    %v1412 = vsel %vm536, %v1398, -inf
    %1413 = vmax.xlane.f32.xlu0 %v1412
    %v1414 = vpop.xlane.xlu0 %1413
    %v1415 = vsel %vm536, %v1399, -inf
    %1416 = vmax.xlane.f32.xlu0 %v1415
    %v1417 = vpop.xlane.xlu0 %1416
    %v1418 = vsub.f32 %v1394, %v1402
    %v1419 = vsub.f32 %v1395, %v1405
    %v1420 = vsub.f32 %v1396, %v1408
    %v1421 = vsub.f32 %v1397, %v1411
    %v1422 = vsub.f32 %v1398, %v1414
    %v1423 = vsub.f32 %v1399, %v1417
    %v1424 = vmul.f32 %v1418, 1.442695
    %v1425 = vpow.pop %v1424
    %v1426 = vmul.f32 %v1419, 1.442695
    %v1427 = vpow.pop %v1426
    %v1428 = vmul.f32 %v1420, 1.442695
    %v1429 = vpow.pop %v1428
    %v1430 = vmul.f32 %v1421, 1.442695
    %v1431 = vpow.pop %v1430
    %v1432 = vmul.f32 %v1422, 1.442695
    %v1433 = vpow.pop %v1432
    %v1434 = vmul.f32 %v1423, 1.442695
    %v1435 = vpow.pop %v1434
    %v1436 = vsel %vm536, %v1425, 0.0
    %1437 = vadd.xlane.f32.xlu0 %v1436
    %v1438 = vpop.xlane.xlu0 %1437
    %v1439 = vsel %vm536, %v1427, 0.0
    %1440 = vadd.xlane.f32.xlu0 %v1439
    %v1441 = vpop.xlane.xlu0 %1440
    %v1442 = vsel %vm536, %v1429, 0.0
    %1443 = vadd.xlane.f32.xlu0 %v1442
    %v1444 = vpop.xlane.xlu0 %1443
    %v1445 = vsel %vm536, %v1431, 0.0
    %1446 = vadd.xlane.f32.xlu0 %v1445
    %v1447 = vpop.xlane.xlu0 %1446
    %v1448 = vsel %vm536, %v1433, 0.0
    %1449 = vadd.xlane.f32.xlu0 %v1448
    %v1450 = vpop.xlane.xlu0 %1449
    %v1451 = vsel %vm536, %v1435, 0.0
    %1452 = vadd.xlane.f32.xlu0 %v1451
    %v1453 = vpop.xlane.xlu0 %1452
    %v1454 = vrcp.pop %v1438
    %v1455 = vrcp.pop %v1441
    %v1456 = vrcp.pop %v1444
    %v1457 = vrcp.pop %v1447
    %v1458 = vrcp.pop %v1450
    %v1459 = vrcp.pop %v1453
    %v1460 = vmul.f32 %v1425, %v1454
    %v1461 = vmul.f32 %v1427, %v1455
    %v1462 = vmul.f32 %v1429, %v1456
    %v1463 = vmul.f32 %v1431, %v1457
    %v1464 = vmul.f32 %v1433, %v1458
    %v1465 = vmul.f32 %v1435, %v1459
    %v1466 = vpack.c.bf16 %v1461, %v1460
    %v1467 = vpack.c.bf16 %v1463, %v1462
    %v1468 = vpack.c.bf16 %v1465, %v1464
    %1472 = vrot.lane.b32.xlu0 %v1070, 64
    %v1473 = vpop.permute.xlu0 %1472
    %1474 = vrot.lane.b32.xlu0 %v1071, 64
    %v1475 = vpop.permute.xlu0 %1474
    %1476 = vrot.lane.b32.xlu0 %v1072, 64
    %v1477 = vpop.permute.xlu0 %1476
    %v1482 = vsel %vm536, %v1466, 0
    %v1485 = vsel %vm536, %v1467, 0
    %v1488 = vsel %vm536, %v1468, 0
    %1490 = vmatprep.subr.bf16.mxu0 0
    %1491 = vmatpush1.bf16.msra.mxu0 0
    %1492 = vmatprep.subr.bf16.mxu0 0
    %1493 = vmatpush1.bf16.msra.mxu0 0
    %1494 = vmatprep.subr.bf16.mxu0 0
    %1495 = vmatpush1.bf16.msra.mxu0 0
    %1496 = vmatprep.subr.bf16.mxu0 0
    %1497 = vmatpush1.bf16.msra.mxu0 0
    %1498 = vmatprep.subr.bf16.mxu0 0
    %1499 = vmatpush1.bf16.msra.mxu0 0
    %1500 = vmatprep.subr.bf16.mxu0 0
    %1501 = vmatpush1.bf16.msra.mxu0 %v1477
    %1502 = vmatprep.subr.bf16.mxu0 0
    %1503 = vmatpush1.bf16.msra.mxu0 %v1475
    %1504 = vmatprep.subr.bf16.mxu0 0
    %1505 = vmatpush1.bf16.msra.mxu0 %v1473
    %1506 = vmatprep.subr.bf16.mxu0 0
    %1507 = vmatpush2.bf16.msra.mxu0 0
    %1508 = vmatprep.subr.bf16.mxu0 0
    %1509 = vmatpush2.bf16.msra.mxu0 0
    %1510 = vmatprep.subr.bf16.mxu0 0
    %1511 = vmatpush2.bf16.msra.mxu0 0
    %1512 = vmatprep.subr.bf16.mxu0 0
    %1513 = vmatpush2.bf16.msra.mxu0 0
    %1514 = vmatprep.subr.bf16.mxu0 0
    %1515 = vmatpush2.bf16.msra.mxu0 0
    %1516 = vmatprep.subr.bf16.mxu0 0
    %1517 = vmatpush2.bf16.msra.mxu0 0
    %1518 = vmatprep.subr.bf16.mxu0 0
    %1519 = vmatpush2.bf16.msra.mxu0 0
    %1520 = vmatprep.subr.bf16.mxu0 0
    %1521 = vmatpush2.bf16.msra.mxu0 0
    %1522 = vmatprep.mubr.bf16.mxu0 0
    %1523 = vmatmul.mubr.bf16.gmra.mxu0 %v1482
    %v1524 = vpop.f32.mrf.mxu0
    %v1525 = vadd.f32 0.0, %v1524
    %v1526 = vpop.f32.mrf.mxu0
    %v1527 = vpop.f32.mrf.mxu0
    %v1528 = vadd.f32 0.0, %v1527
    %v1529 = vpop.f32.mrf.mxu0
    %1530 = vmatprep.mubr.bf16.mxu0 0
    %1531 = vmatmul.mubr.bf16.gmra.mxu0 %v1485
    %v1532 = vpop.f32.mrf.mxu0
    %v1533 = vadd.f32 0.0, %v1532
    %v1534 = vpop.f32.mrf.mxu0
    %v1535 = vpop.f32.mrf.mxu0
    %v1536 = vadd.f32 0.0, %v1535
    %v1537 = vpop.f32.mrf.mxu0
    %1538 = vmatprep.mubr.bf16.mxu0 0
    %1539 = vmatmul.mubr.bf16.gmra.mxu0 %v1488
    %v1540 = vpop.f32.mrf.mxu0
    %v1541 = vadd.f32 0.0, %v1540
    %v1542 = vpop.f32.mrf.mxu0
    %v1543 = vpop.f32.mrf.mxu0
    %v1544 = vadd.f32 0.0, %v1543
    %v1545 = vpop.f32.mrf.mxu0
    %1546 = vdwg.mxu0
    %1553 = vrot.lane.b32.xlu0 %v1525, 64
    %v1554 = vpop.permute.xlu0 %1553
    %1555 = vrot.lane.b32.xlu0 %v1528, 64
    %v1556 = vpop.permute.xlu0 %1555
    %1557 = vrot.lane.b32.xlu0 %v1533, 64
    %v1558 = vpop.permute.xlu0 %1557
    %1559 = vrot.lane.b32.xlu0 %v1536, 64
    %v1560 = vpop.permute.xlu0 %1559
    %1561 = vrot.lane.b32.xlu0 %v1541, 64
    %v1562 = vpop.permute.xlu0 %1561
    %1563 = vrot.lane.b32.xlu0 %v1544, 64
    %v1564 = vpop.permute.xlu0 %1563
    %v1571 = vsel %vm605, %v1273, %v1554
    %v1572 = vsel %vm605, %v1276, %v1556
    %v1573 = vsel %vm605, %v1281, %v1558
    %v1574 = vsel %vm605, %v1284, %v1560
    %v1575 = vsel %vm605, %v1289, %v1562
    %v1576 = vsel %vm605, %v1292, %v1564
    %v1577 = vpack.c.bf16 %v1572, %v1571
    %v1578 = vpack.c.bf16 %v1574, %v1573
    %v1579 = vpack.c.bf16 %v1576, %v1575
    %v1596 = vunpack.c.l.b16 %v1048
    %v1597 = vunpack.c.l.b16 %v1049
    %v1598 = vunpack.c.l.b16 %v1050
    %v1599 = vunpack.c.l.b16 %v1051
    %v1600 = vunpack.c.l.b16 %v1052
    %v1601 = vunpack.c.l.b16 %v1053
    %v1602 = vunpack.c.l.b16 %v1054
    %v1603 = vunpack.c.l.b16 %v1055
    %v1604 = vunpack.c.l.b16 %v1056
    %v1605 = vunpack.c.l.b16 %v1057
    %v1606 = vunpack.c.l.b16 %v1058
    %v1607 = vunpack.c.l.b16 %v1059
    %v1608 = vunpack.c.l.b16 %v1060
    %v1609 = vunpack.c.l.b16 %v1061
    %v1610 = vunpack.c.l.b16 %v1062
    %v1611 = vunpack.c.l.b16 %v1063
    %v1612 = vpack.c.b16 %v1597, %v1596
    %v1613 = vpack.c.b16 %v1599, %v1598
    %v1614 = vpack.c.b16 %v1601, %v1600
    %v1615 = vpack.c.b16 %v1603, %v1602
    %v1616 = vpack.c.b16 %v1605, %v1604
    %v1617 = vpack.c.b16 %v1607, %v1606
    %v1618 = vpack.c.b16 %v1609, %v1608
    %v1619 = vpack.c.b16 %v1611, %v1610
    %1628 = vmatprep.subr.bf16.mxu0 0
    %1629 = vmatpush1.bf16.msra.mxu0 %v1619
    %1630 = vmatprep.subr.bf16.mxu0 0
    %1631 = vmatpush1.bf16.msra.mxu0 %v1618
    %1632 = vmatprep.subr.bf16.mxu0 0
    %1633 = vmatpush1.bf16.msra.mxu0 %v1617
    %1634 = vmatprep.subr.bf16.mxu0 0
    %1635 = vmatpush1.bf16.msra.mxu0 %v1616
    %1636 = vmatprep.subr.bf16.mxu0 0
    %1637 = vmatpush1.bf16.msra.mxu0 %v1615
    %1638 = vmatprep.subr.bf16.mxu0 0
    %1639 = vmatpush1.bf16.msra.mxu0 %v1614
    %1640 = vmatprep.subr.bf16.mxu0 0
    %1641 = vmatpush1.bf16.msra.mxu0 %v1613
    %1642 = vmatprep.subr.bf16.mxu0 0
    %1643 = vmatpush1.bf16.msra.mxu0 %v1612
    %1644 = vmatprep.subr.bf16.mxu0 0
    %1645 = vmatpush2.bf16.msra.mxu0 0
    %1646 = vmatprep.subr.bf16.mxu0 0
    %1647 = vmatpush2.bf16.msra.mxu0 0
    %1648 = vmatprep.subr.bf16.mxu0 0
    %1649 = vmatpush2.bf16.msra.mxu0 0
    %1650 = vmatprep.subr.bf16.mxu0 0
    %1651 = vmatpush2.bf16.msra.mxu0 0
    %1652 = vmatprep.subr.bf16.mxu0 0
    %1653 = vmatpush2.bf16.msra.mxu0 0
    %1654 = vmatprep.subr.bf16.mxu0 0
    %1655 = vmatpush2.bf16.msra.mxu0 0
    %1656 = vmatprep.subr.bf16.mxu0 0
    %1657 = vmatpush2.bf16.msra.mxu0 0
    %1658 = vmatprep.subr.bf16.mxu0 0
    %1659 = vmatpush2.bf16.msra.mxu0 0
    %1660 = vmatprep.mubr.bf16.mxu0 0
    %1661 = vmatmul.mubr.bf16.gmra.mxu0 %v1577
    %v1662 = vpop.f32.mrf.mxu0
    %v1663 = vadd.f32 0.0, %v1662
    %v1664 = vpop.f32.mrf.mxu0
    %v1665 = vpop.f32.mrf.mxu0
    %v1666 = vadd.f32 0.0, %v1665
    %v1667 = vpop.f32.mrf.mxu0
    %1668 = vmatprep.mubr.bf16.mxu0 0
    %1669 = vmatmul.mubr.bf16.gmra.mxu0 %v1578
    %v1670 = vpop.f32.mrf.mxu0
    %v1671 = vadd.f32 0.0, %v1670
    %v1672 = vpop.f32.mrf.mxu0
    %v1673 = vpop.f32.mrf.mxu0
    %v1674 = vadd.f32 0.0, %v1673
    %v1675 = vpop.f32.mrf.mxu0
    %1676 = vmatprep.mubr.bf16.mxu0 0
    %1677 = vmatmul.mubr.bf16.gmra.mxu0 %v1579
    %v1678 = vpop.f32.mrf.mxu0
    %v1679 = vadd.f32 0.0, %v1678
    %v1680 = vpop.f32.mrf.mxu0
    %v1681 = vpop.f32.mrf.mxu0
    %v1682 = vadd.f32 0.0, %v1681
    %v1683 = vpop.f32.mrf.mxu0
    %1684 = vdwg.mxu0
    %v1685 = vadd.f32 %v703, %v1663
    %v1686 = vadd.f32 %v704, %v1666
    %v1687 = vadd.f32 %v705, %v1671
    %v1688 = vadd.f32 %v706, %v1674
    %v1689 = vadd.f32 %v707, %v1679
    %v1690 = vadd.f32 %v708, %v1682
    %v1691 = vld [vmem:[#allocation14] sm:$0x1]
    %v1693 = vlaneseq
    %v1694 = vshrl.u32 %v1693, 7
    %v1695 = vsub.s32 0, %v1694
    %v1696 = vrot.slane %v1691, %v1695
    %v1698 = vadd.f32 %v1685, %v1696
    %v1699 = vadd.f32 %v1686, %v1696
    %v1700 = vadd.f32 %v1687, %v1696
    %v1701 = vadd.f32 %v1688, %v1696
    %v1702 = vadd.f32 %v1689, %v1696
    %v1703 = vadd.f32 %v1690, %v1696
    %v1704 = vld [vmem:[#allocation16] sm:$0x1]
    %v1705 = vld [vmem:[#allocation17] sm:$0x1]
    %v1706 = vsel %vm605, %v1698, 0.0
    %1707 = vadd.xlane.f32.xlu0 %v1706
    %v1708 = vpop.xlane.xlu0 %1707
    %v1709 = vsel %vm605, %v1699, 0.0
    %1710 = vadd.xlane.f32.xlu0 %v1709
    %v1711 = vpop.xlane.xlu0 %1710
    %v1712 = vsel %vm605, %v1700, 0.0
    %1713 = vadd.xlane.f32.xlu0 %v1712
    %v1714 = vpop.xlane.xlu0 %1713
    %v1715 = vsel %vm605, %v1701, 0.0
    %1716 = vadd.xlane.f32.xlu0 %v1715
    %v1717 = vpop.xlane.xlu0 %1716
    %v1718 = vsel %vm605, %v1702, 0.0
    %1719 = vadd.xlane.f32.xlu0 %v1718
    %v1720 = vpop.xlane.xlu0 %1719
    %v1721 = vsel %vm605, %v1703, 0.0
    %1722 = vadd.xlane.f32.xlu0 %v1721
    %v1723 = vpop.xlane.xlu0 %1722
    %v1724 = vmul.f32 %v1708, %v624
    %v1725 = vmul.f32 %v1711, %v624
    %v1726 = vmul.f32 %v1714, %v624
    %v1727 = vmul.f32 %v1717, %v624
    %v1728 = vmul.f32 %v1720, %v624
    %v1729 = vmul.f32 %v1723, %v624
    %v1730 = vsub.f32 %v1698, %v1724
    %v1731 = vsub.f32 %v1699, %v1725
    %v1732 = vsub.f32 %v1700, %v1726
    %v1733 = vsub.f32 %v1701, %v1727
    %v1734 = vsub.f32 %v1702, %v1728
    %v1735 = vsub.f32 %v1703, %v1729
    %v1736 = vmul.f32 %v1730, %v1730
    %v1737 = vmul.f32 %v1731, %v1731
    %v1738 = vmul.f32 %v1732, %v1732
    %v1739 = vmul.f32 %v1733, %v1733
    %v1740 = vmul.f32 %v1734, %v1734
    %v1741 = vmul.f32 %v1735, %v1735
    %v1742 = vsel %vm605, %v1736, 0.0
    %1743 = vadd.xlane.f32.xlu0 %v1742
    %v1744 = vpop.xlane.xlu0 %1743
    %v1745 = vsel %vm605, %v1737, 0.0
    %1746 = vadd.xlane.f32.xlu0 %v1745
    %v1747 = vpop.xlane.xlu0 %1746
    %v1748 = vsel %vm605, %v1738, 0.0
    %1749 = vadd.xlane.f32.xlu0 %v1748
    %v1750 = vpop.xlane.xlu0 %1749
    %v1751 = vsel %vm605, %v1739, 0.0
    %1752 = vadd.xlane.f32.xlu0 %v1751
    %v1753 = vpop.xlane.xlu0 %1752
    %v1754 = vsel %vm605, %v1740, 0.0
    %1755 = vadd.xlane.f32.xlu0 %v1754
    %v1756 = vpop.xlane.xlu0 %1755
    %v1757 = vsel %vm605, %v1741, 0.0
    %1758 = vadd.xlane.f32.xlu0 %v1757
    %v1759 = vpop.xlane.xlu0 %1758
    %v1760 = vmul.f32 %v1744, %v624
    %v1761 = vmul.f32 %v1747, %v624
    %v1762 = vmul.f32 %v1750, %v624
    %v1763 = vmul.f32 %v1753, %v624
    %v1764 = vmul.f32 %v1756, %v624
    %v1765 = vmul.f32 %v1759, %v624
    %v1766 = vadd.f32 %v1760, 1e-05
    %v1767 = vadd.f32 %v1761, 1e-05
    %v1768 = vadd.f32 %v1762, 1e-05
    %v1769 = vadd.f32 %v1763, 1e-05
    %v1770 = vadd.f32 %v1764, 1e-05
    %v1771 = vadd.f32 %v1765, 1e-05
    %v1772 = vrsqrt.pop %v1766
    %v1773 = vrsqrt.pop %v1767
    %v1774 = vrsqrt.pop %v1768
    %v1775 = vrsqrt.pop %v1769
    %v1776 = vrsqrt.pop %v1770
    %v1777 = vrsqrt.pop %v1771
    %v1778 = vmul.f32 %v1730, %v1772
    %v1779 = vmul.f32 %v1731, %v1773
    %v1780 = vmul.f32 %v1732, %v1774
    %v1781 = vmul.f32 %v1733, %v1775
    %v1782 = vmul.f32 %v1734, %v1776
    %v1783 = vmul.f32 %v1735, %v1777
    %v1785 = vlaneseq
    %v1786 = vshrl.u32 %v1785, 7
    %v1787 = vsub.s32 0, %v1786
    %v1788 = vrot.slane %v1704, %v1787
    %v1790 = vmul.f32 %v1778, %v1788
    %v1791 = vmul.f32 %v1779, %v1788
    %v1792 = vmul.f32 %v1780, %v1788
    %v1793 = vmul.f32 %v1781, %v1788
    %v1794 = vmul.f32 %v1782, %v1788
    %v1795 = vmul.f32 %v1783, %v1788
    %v1797 = vlaneseq
    %v1798 = vshrl.u32 %v1797, 7
    %v1799 = vsub.s32 0, %v1798
    %v1800 = vrot.slane %v1705, %v1799
    %v1802 = vadd.f32 %v1790, %v1800
    %v1803 = vadd.f32 %v1791, %v1800
    %v1804 = vadd.f32 %v1792, %v1800
    %v1805 = vadd.f32 %v1793, %v1800
    %v1806 = vadd.f32 %v1794, %v1800
    %v1807 = vadd.f32 %v1795, %v1800
    %v1808 = vpack.c.bf16 %v1803, %v1802
    %v1809 = vpack.c.bf16 %v1805, %v1804
    %v1810 = vpack.c.bf16 %v1807, %v1806
    %v1811 = vld [vmem:[#allocation19] sm:$0xff]
    %v1812 = vld [vmem:[#allocation19 + $0x8] sm:$0xff]
    %v1813 = vld [vmem:[#allocation19 + $0x10] sm:$0xff]
    %v1814 = vld [vmem:[#allocation19 + $0x18] sm:$0xff]
    %v1815 = vld [vmem:[#allocation19 + $0x20] sm:$0xff]
    %v1816 = vld [vmem:[#allocation19 + $0x28] sm:$0xff]
    %v1817 = vld [vmem:[#allocation19 + $0x30] sm:$0xff]
    %v1818 = vld [vmem:[#allocation19 + $0x38] sm:$0xff]
    %v1819 = vld [vmem:[#allocation20] sm:$0x3]
    %v1821 = vlaneseq
    %v1822 = vshrl.u32 %v1821, 7
    %v1823 = vsub.s32 0, %v1822
    %v1824 = vrot.slane %v1819, %v1823
    %v1825 = vlaneseq
    %v1826 = vshrl.u32 %v1825, 7
    %v1827 = vsub.s32 1, %v1826
    %v1828 = vrot.slane %v1819, %v1827
    %v1839 = vunpack.c.l.b16 %v1811
    %v1840 = vunpack.c.h.b16 %v1811
    %v1841 = vunpack.c.l.b16 %v1812
    %v1842 = vunpack.c.h.b16 %v1812
    %v1843 = vunpack.c.l.b16 %v1813
    %v1844 = vunpack.c.h.b16 %v1813
    %v1845 = vunpack.c.l.b16 %v1814
    %v1846 = vunpack.c.h.b16 %v1814
    %v1847 = vunpack.c.l.b16 %v1815
    %v1848 = vunpack.c.h.b16 %v1815
    %v1849 = vunpack.c.l.b16 %v1816
    %v1850 = vunpack.c.h.b16 %v1816
    %v1851 = vunpack.c.l.b16 %v1817
    %v1852 = vunpack.c.h.b16 %v1817
    %v1853 = vunpack.c.l.b16 %v1818
    %v1854 = vunpack.c.h.b16 %v1818
    %v1855 = vpack.c.b16 %v1841, %v1839
    %v1856 = vpack.c.b16 %v1842, %v1840
    %v1857 = vpack.c.b16 %v1845, %v1843
    %v1858 = vpack.c.b16 %v1846, %v1844
    %v1859 = vpack.c.b16 %v1849, %v1847
    %v1860 = vpack.c.b16 %v1850, %v1848
    %v1861 = vpack.c.b16 %v1853, %v1851
    %v1862 = vpack.c.b16 %v1854, %v1852
    %v1872 = vsel %vm605, %v1808, 0
    %v1875 = vsel %vm605, %v1809, 0
    %v1878 = vsel %vm605, %v1810, 0
    %1880 = vmatprep.subr.bf16.mxu0 0
    %1881 = vmatpush1.bf16.msra.mxu0 0
    %1882 = vmatprep.subr.bf16.mxu0 0
    %1883 = vmatpush1.bf16.msra.mxu0 0
    %1884 = vmatprep.subr.bf16.mxu0 0
    %1885 = vmatpush1.bf16.msra.mxu0 0
    %1886 = vmatprep.subr.bf16.mxu0 0
    %1887 = vmatpush1.bf16.msra.mxu0 0
    %1888 = vmatprep.subr.bf16.mxu0 %v1862
    %1889 = vmatpush1.bf16.msra.mxu0 %v1861
    %1890 = vmatprep.subr.bf16.mxu0 %v1860
    %1891 = vmatpush1.bf16.msra.mxu0 %v1859
    %1892 = vmatprep.subr.bf16.mxu0 %v1858
    %1893 = vmatpush1.bf16.msra.mxu0 %v1857
    %1894 = vmatprep.subr.bf16.mxu0 %v1856
    %1895 = vmatpush1.bf16.msra.mxu0 %v1855
    %1896 = vmatprep.subr.bf16.mxu0 0
    %1897 = vmatpush2.bf16.msra.mxu0 0
    %1898 = vmatprep.subr.bf16.mxu0 0
    %1899 = vmatpush2.bf16.msra.mxu0 0
    %1900 = vmatprep.subr.bf16.mxu0 0
    %1901 = vmatpush2.bf16.msra.mxu0 0
    %1902 = vmatprep.subr.bf16.mxu0 0
    %1903 = vmatpush2.bf16.msra.mxu0 0
    %1904 = vmatprep.subr.bf16.mxu0 0
    %1905 = vmatpush2.bf16.msra.mxu0 0
    %1906 = vmatprep.subr.bf16.mxu0 0
    %1907 = vmatpush2.bf16.msra.mxu0 0
    %1908 = vmatprep.subr.bf16.mxu0 0
    %1909 = vmatpush2.bf16.msra.mxu0 0
    %1910 = vmatprep.subr.bf16.mxu0 0
    %1911 = vmatpush2.bf16.msra.mxu0 0
    %1912 = vmatprep.mubr.bf16.mxu0 0
    %1913 = vmatmul.mubr.bf16.gmra.mxu0 %v1872
    %v1914 = vpop.f32.mrf.mxu0
    %v1915 = vadd.f32 %v1824, %v1914
    %v1916 = vpop.f32.mrf.mxu0
    %v1917 = vadd.f32 %v1828, %v1916
    %v1918 = vpop.f32.mrf.mxu0
    %v1919 = vadd.f32 %v1824, %v1918
    %v1920 = vpop.f32.mrf.mxu0
    %v1921 = vadd.f32 %v1828, %v1920
    %1922 = vmatprep.mubr.bf16.mxu0 0
    %1923 = vmatmul.mubr.bf16.gmra.mxu0 %v1875
    %v1924 = vpop.f32.mrf.mxu0
    %v1925 = vadd.f32 %v1824, %v1924
    %v1926 = vpop.f32.mrf.mxu0
    %v1927 = vadd.f32 %v1828, %v1926
    %v1928 = vpop.f32.mrf.mxu0
    %v1929 = vadd.f32 %v1824, %v1928
    %v1930 = vpop.f32.mrf.mxu0
    %v1931 = vadd.f32 %v1828, %v1930
    %1932 = vmatprep.mubr.bf16.mxu0 0
    %1933 = vmatmul.mubr.bf16.gmra.mxu0 %v1878
    %v1934 = vpop.f32.mrf.mxu0
    %v1935 = vadd.f32 %v1824, %v1934
    %v1936 = vpop.f32.mrf.mxu0
    %v1937 = vadd.f32 %v1828, %v1936
    %v1938 = vpop.f32.mrf.mxu0
    %v1939 = vadd.f32 %v1824, %v1938
    %v1940 = vpop.f32.mrf.mxu0
    %v1941 = vadd.f32 %v1828, %v1940
    %1942 = vdwg.mxu0
    %v1943 = vmul.f32 %v1915, 1.702
    %v1944 = vmul.f32 %v1917, 1.702
    %v1945 = vmul.f32 %v1919, 1.702
    %v1946 = vmul.f32 %v1921, 1.702
    %v1947 = vmul.f32 %v1925, 1.702
    %v1948 = vmul.f32 %v1927, 1.702
    %v1949 = vmul.f32 %v1929, 1.702
    %v1950 = vmul.f32 %v1931, 1.702
    %v1951 = vmul.f32 %v1935, 1.702
    %v1952 = vmul.f32 %v1937, 1.702
    %v1953 = vmul.f32 %v1939, 1.702
    %v1954 = vmul.f32 %v1941, 1.702
    %v1955 = vxor.u32 %v1943, 2147483648
    %v1956 = vxor.u32 %v1944, 2147483648
    %v1957 = vxor.u32 %v1945, 2147483648
    %v1958 = vxor.u32 %v1946, 2147483648
    %v1959 = vxor.u32 %v1947, 2147483648
    %v1960 = vxor.u32 %v1948, 2147483648
    %v1961 = vxor.u32 %v1949, 2147483648
    %v1962 = vxor.u32 %v1950, 2147483648
    %v1963 = vxor.u32 %v1951, 2147483648
    %v1964 = vxor.u32 %v1952, 2147483648
    %v1965 = vxor.u32 %v1953, 2147483648
    %v1966 = vxor.u32 %v1954, 2147483648
    %v1967 = vmul.f32 %v1955, 1.442695
    %v1968 = vpow.pop %v1967
    %v1969 = vmul.f32 %v1956, 1.442695
    %v1970 = vpow.pop %v1969
    %v1971 = vmul.f32 %v1957, 1.442695
    %v1972 = vpow.pop %v1971
    %v1973 = vmul.f32 %v1958, 1.442695
    %v1974 = vpow.pop %v1973
    %v1975 = vmul.f32 %v1959, 1.442695
    %v1976 = vpow.pop %v1975
    %v1977 = vmul.f32 %v1960, 1.442695
    %v1978 = vpow.pop %v1977
    %v1979 = vmul.f32 %v1961, 1.442695
    %v1980 = vpow.pop %v1979
    %v1981 = vmul.f32 %v1962, 1.442695
    %v1982 = vpow.pop %v1981
    %v1983 = vmul.f32 %v1963, 1.442695
    %v1984 = vpow.pop %v1983
    %v1985 = vmul.f32 %v1964, 1.442695
    %v1986 = vpow.pop %v1985
    %v1987 = vmul.f32 %v1965, 1.442695
    %v1988 = vpow.pop %v1987
    %v1989 = vmul.f32 %v1966, 1.442695
    %v1990 = vpow.pop %v1989
    %v1991 = vadd.f32 %v1968, 1.0
    %v1992 = vadd.f32 %v1970, 1.0
    %v1993 = vadd.f32 %v1972, 1.0
    %v1994 = vadd.f32 %v1974, 1.0
    %v1995 = vadd.f32 %v1976, 1.0
    %v1996 = vadd.f32 %v1978, 1.0
    %v1997 = vadd.f32 %v1980, 1.0
    %v1998 = vadd.f32 %v1982, 1.0
    %v1999 = vadd.f32 %v1984, 1.0
    %v2000 = vadd.f32 %v1986, 1.0
    %v2001 = vadd.f32 %v1988, 1.0
    %v2002 = vadd.f32 %v1990, 1.0
    %v2003 = vrcp.pop %v1991
    %v2004 = vmul.f32 1.0, %v2003
    %v2005 = vrcp.pop %v1992
    %v2006 = vmul.f32 1.0, %v2005
    %v2007 = vrcp.pop %v1993
    %v2008 = vmul.f32 1.0, %v2007
    %v2009 = vrcp.pop %v1994
    %v2010 = vmul.f32 1.0, %v2009
    %v2011 = vrcp.pop %v1995
    %v2012 = vmul.f32 1.0, %v2011
    %v2013 = vrcp.pop %v1996
    %v2014 = vmul.f32 1.0, %v2013
    %v2015 = vrcp.pop %v1997
    %v2016 = vmul.f32 1.0, %v2015
    %v2017 = vrcp.pop %v1998
    %v2018 = vmul.f32 1.0, %v2017
    %v2019 = vrcp.pop %v1999
    %v2020 = vmul.f32 1.0, %v2019
    %v2021 = vrcp.pop %v2000
    %v2022 = vmul.f32 1.0, %v2021
    %v2023 = vrcp.pop %v2001
    %v2024 = vmul.f32 1.0, %v2023
    %v2025 = vrcp.pop %v2002
    %v2026 = vmul.f32 1.0, %v2025
    %v2027 = vmul.f32 %v1915, %v2004
    %v2028 = vmul.f32 %v1917, %v2006
    %v2029 = vmul.f32 %v1919, %v2008
    %v2030 = vmul.f32 %v1921, %v2010
    %v2031 = vmul.f32 %v1925, %v2012
    %v2032 = vmul.f32 %v1927, %v2014
    %v2033 = vmul.f32 %v1929, %v2016
    %v2034 = vmul.f32 %v1931, %v2018
    %v2035 = vmul.f32 %v1935, %v2020
    %v2036 = vmul.f32 %v1937, %v2022
    %v2037 = vmul.f32 %v1939, %v2024
    %v2038 = vmul.f32 %v1941, %v2026
    %v2039 = vpack.c.bf16 %v2029, %v2027
    %v2040 = vpack.c.bf16 %v2030, %v2028
    %v2041 = vpack.c.bf16 %v2033, %v2031
    %v2042 = vpack.c.bf16 %v2034, %v2032
    %v2043 = vpack.c.bf16 %v2037, %v2035
    %v2044 = vpack.c.bf16 %v2038, %v2036
    %v2045 = vld [vmem:[%s37] sm:$0xf]
    %v2046 = vld [vmem:[%s37 + $0x4] sm:$0xf]
    %v2047 = vld [vmem:[%s37 + $0x8] sm:$0xf]
    %v2048 = vld [vmem:[%s37 + $0xc] sm:$0xf]
    %v2049 = vld [vmem:[%s37 + $0x10] sm:$0xf]
    %v2050 = vld [vmem:[%s37 + $0x14] sm:$0xf]
    %v2051 = vld [vmem:[%s37 + $0x18] sm:$0xf]
    %v2052 = vld [vmem:[%s37 + $0x1c] sm:$0xf]
    %v2053 = vld [vmem:[%s37 + $0x20] sm:$0xf]
    %v2054 = vld [vmem:[%s37 + $0x24] sm:$0xf]
    %v2055 = vld [vmem:[%s37 + $0x28] sm:$0xf]
    %v2056 = vld [vmem:[%s37 + $0x2c] sm:$0xf]
    %v2057 = vld [vmem:[%s37 + $0x30] sm:$0xf]
    %v2058 = vld [vmem:[%s37 + $0x34] sm:$0xf]
    %v2059 = vld [vmem:[%s37 + $0x38] sm:$0xf]
    %v2060 = vld [vmem:[%s37 + $0x3c] sm:$0xf]
    %v2061 = vld [vmem:[%s37 + $0x40] sm:$0xf]
    %v2062 = vld [vmem:[%s37 + $0x44] sm:$0xf]
    %v2063 = vld [vmem:[%s37 + $0x48] sm:$0xf]
    %v2064 = vld [vmem:[%s37 + $0x4c] sm:$0xf]
    %v2065 = vld [vmem:[%s37 + $0x50] sm:$0xf]
    %v2066 = vld [vmem:[%s37 + $0x54] sm:$0xf]
    %v2067 = vld [vmem:[%s37 + $0x58] sm:$0xf]
    %v2068 = vld [vmem:[%s37 + $0x5c] sm:$0xf]
    %v2069 = vld [vmem:[%s37 + $0x60] sm:$0xf]
    %v2070 = vld [vmem:[%s37 + $0x64] sm:$0xf]
    %v2071 = vld [vmem:[%s37 + $0x68] sm:$0xf]
    %v2072 = vld [vmem:[%s37 + $0x6c] sm:$0xf]
    %v2073 = vld [vmem:[%s37 + $0x70] sm:$0xf]
    %v2074 = vld [vmem:[%s37 + $0x74] sm:$0xf]
    %v2075 = vld [vmem:[%s37 + $0x78] sm:$0xf]
    %v2076 = vld [vmem:[%s37 + $0x7c] sm:$0xf]
    %v2109 = vunpack.c.l.b16 %v2045
    %v2110 = vunpack.c.l.b16 %v2046
    %v2111 = vunpack.c.l.b16 %v2047
    %v2112 = vunpack.c.l.b16 %v2048
    %v2113 = vunpack.c.l.b16 %v2049
    %v2114 = vunpack.c.l.b16 %v2050
    %v2115 = vunpack.c.l.b16 %v2051
    %v2116 = vunpack.c.l.b16 %v2052
    %v2117 = vunpack.c.l.b16 %v2053
    %v2118 = vunpack.c.l.b16 %v2054
    %v2119 = vunpack.c.l.b16 %v2055
    %v2120 = vunpack.c.l.b16 %v2056
    %v2121 = vunpack.c.l.b16 %v2057
    %v2122 = vunpack.c.l.b16 %v2058
    %v2123 = vunpack.c.l.b16 %v2059
    %v2124 = vunpack.c.l.b16 %v2060
    %v2125 = vunpack.c.l.b16 %v2061
    %v2126 = vunpack.c.l.b16 %v2062
    %v2127 = vunpack.c.l.b16 %v2063
    %v2128 = vunpack.c.l.b16 %v2064
    %v2129 = vunpack.c.l.b16 %v2065
    %v2130 = vunpack.c.l.b16 %v2066
    %v2131 = vunpack.c.l.b16 %v2067
    %v2132 = vunpack.c.l.b16 %v2068
    %v2133 = vunpack.c.l.b16 %v2069
    %v2134 = vunpack.c.l.b16 %v2070
    %v2135 = vunpack.c.l.b16 %v2071
    %v2136 = vunpack.c.l.b16 %v2072
    %v2137 = vunpack.c.l.b16 %v2073
    %v2138 = vunpack.c.l.b16 %v2074
    %v2139 = vunpack.c.l.b16 %v2075
    %v2140 = vunpack.c.l.b16 %v2076
    %v2141 = vpack.c.b16 %v2110, %v2109
    %v2142 = vpack.c.b16 %v2112, %v2111
    %v2143 = vpack.c.b16 %v2114, %v2113
    %v2144 = vpack.c.b16 %v2116, %v2115
    %v2145 = vpack.c.b16 %v2118, %v2117
    %v2146 = vpack.c.b16 %v2120, %v2119
    %v2147 = vpack.c.b16 %v2122, %v2121
    %v2148 = vpack.c.b16 %v2124, %v2123
    %v2149 = vpack.c.b16 %v2126, %v2125
    %v2150 = vpack.c.b16 %v2128, %v2127
    %v2151 = vpack.c.b16 %v2130, %v2129
    %v2152 = vpack.c.b16 %v2132, %v2131
    %v2153 = vpack.c.b16 %v2134, %v2133
    %v2154 = vpack.c.b16 %v2136, %v2135
    %v2155 = vpack.c.b16 %v2138, %v2137
    %v2156 = vpack.c.b16 %v2140, %v2139
    %2173 = vmatprep.subr.bf16.mxu0 0
    %2174 = vmatpush1.bf16.msra.mxu0 %v2148
    %2175 = vmatprep.subr.bf16.mxu0 0
    %2176 = vmatpush1.bf16.msra.mxu0 %v2147
    %2177 = vmatprep.subr.bf16.mxu0 0
    %2178 = vmatpush1.bf16.msra.mxu0 %v2146
    %2179 = vmatprep.subr.bf16.mxu0 0
    %2180 = vmatpush1.bf16.msra.mxu0 %v2145
    %2181 = vmatprep.subr.bf16.mxu0 0
    %2182 = vmatpush1.bf16.msra.mxu0 %v2144
    %2183 = vmatprep.subr.bf16.mxu0 0
    %2184 = vmatpush1.bf16.msra.mxu0 %v2143
    %2185 = vmatprep.subr.bf16.mxu0 0
    %2186 = vmatpush1.bf16.msra.mxu0 %v2142
    %2187 = vmatprep.subr.bf16.mxu0 0
    %2188 = vmatpush1.bf16.msra.mxu0 %v2141
    %2189 = vmatprep.subr.bf16.mxu0 0
    %2190 = vmatpush2.bf16.msra.mxu0 %v2156
    %2191 = vmatprep.subr.bf16.mxu0 0
    %2192 = vmatpush2.bf16.msra.mxu0 %v2155
    %2193 = vmatprep.subr.bf16.mxu0 0
    %2194 = vmatpush2.bf16.msra.mxu0 %v2154
    %2195 = vmatprep.subr.bf16.mxu0 0
    %2196 = vmatpush2.bf16.msra.mxu0 %v2153
    %2197 = vmatprep.subr.bf16.mxu0 0
    %2198 = vmatpush2.bf16.msra.mxu0 %v2152
    %2199 = vmatprep.subr.bf16.mxu0 0
    %2200 = vmatpush2.bf16.msra.mxu0 %v2151
    %2201 = vmatprep.subr.bf16.mxu0 0
    %2202 = vmatpush2.bf16.msra.mxu0 %v2150
    %2203 = vmatprep.subr.bf16.mxu0 0
    %2204 = vmatpush2.bf16.msra.mxu0 %v2149
    %2205 = vmatprep.mubr.bf16.mxu0 %v2040
    %2206 = vmatmul.mubr.bf16.gmra.mxu0 %v2039
    %v2207 = vpop.f32.mrf.mxu0
    %v2208 = vadd.f32 0.0, %v2207
    %v2209 = vpop.f32.mrf.mxu0
    %v2210 = vpop.f32.mrf.mxu0
    %v2211 = vadd.f32 0.0, %v2210
    %v2212 = vpop.f32.mrf.mxu0
    %2213 = vmatprep.mubr.bf16.mxu0 %v2042
    %2214 = vmatmul.mubr.bf16.gmra.mxu0 %v2041
    %v2215 = vpop.f32.mrf.mxu0
    %v2216 = vadd.f32 0.0, %v2215
    %v2217 = vpop.f32.mrf.mxu0
    %v2218 = vpop.f32.mrf.mxu0
    %v2219 = vadd.f32 0.0, %v2218
    %v2220 = vpop.f32.mrf.mxu0
    %2221 = vmatprep.mubr.bf16.mxu0 %v2044
    %2222 = vmatmul.mubr.bf16.gmra.mxu0 %v2043
    %v2223 = vpop.f32.mrf.mxu0
    %v2224 = vadd.f32 0.0, %v2223
    %v2225 = vpop.f32.mrf.mxu0
    %v2226 = vpop.f32.mrf.mxu0
    %v2227 = vadd.f32 0.0, %v2226
    %v2228 = vpop.f32.mrf.mxu0
    %2229 = vdwg.mxu0
    %v2230 = vadd.f32 %v1698, %v2208
    %v2231 = vadd.f32 %v1699, %v2211
    %v2232 = vadd.f32 %v1700, %v2216
    %v2233 = vadd.f32 %v1701, %v2219
    %v2234 = vadd.f32 %v1702, %v2224
    %v2235 = vadd.f32 %v1703, %v2227
    %v2236 = vld [vmem:[#allocation22] sm:$0x1]
    %v2238 = vlaneseq
    %v2239 = vshrl.u32 %v2238, 7
    %v2240 = vsub.s32 0, %v2239
    %v2241 = vrot.slane %v2236, %v2240
    %v2243 = vadd.f32 %v2230, %v2241
    %v2244 = vadd.f32 %v2231, %v2241
    %v2245 = vadd.f32 %v2232, %v2241
    %v2246 = vadd.f32 %v2233, %v2241
    %v2247 = vadd.f32 %v2234, %v2241
    %v2248 = vadd.f32 %v2235, %v2241
    %s2249 = scalar_lea.vmem [#allocation10], 1
    %v2250 = vld [vmem:[%s2249] sm:$0x1]
    %s2251 = scalar_lea.vmem [#allocation11], 1
    %v2252 = vld [vmem:[%s2251] sm:$0x1]
    %v2253 = vsel %vm605, %v2243, 0.0
    %2254 = vadd.xlane.f32.xlu0 %v2253
    %v2255 = vpop.xlane.xlu0 %2254
    %v2256 = vsel %vm605, %v2244, 0.0
    %2257 = vadd.xlane.f32.xlu0 %v2256
    %v2258 = vpop.xlane.xlu0 %2257
    %v2259 = vsel %vm605, %v2245, 0.0
    %2260 = vadd.xlane.f32.xlu0 %v2259
    %v2261 = vpop.xlane.xlu0 %2260
    %v2262 = vsel %vm605, %v2246, 0.0
    %2263 = vadd.xlane.f32.xlu0 %v2262
    %v2264 = vpop.xlane.xlu0 %2263
    %v2265 = vsel %vm605, %v2247, 0.0
    %2266 = vadd.xlane.f32.xlu0 %v2265
    %v2267 = vpop.xlane.xlu0 %2266
    %v2268 = vsel %vm605, %v2248, 0.0
    %2269 = vadd.xlane.f32.xlu0 %v2268
    %v2270 = vpop.xlane.xlu0 %2269
    %v2271 = vmul.f32 %v2255, %v624
    %v2272 = vmul.f32 %v2258, %v624
    %v2273 = vmul.f32 %v2261, %v624
    %v2274 = vmul.f32 %v2264, %v624
    %v2275 = vmul.f32 %v2267, %v624
    %v2276 = vmul.f32 %v2270, %v624
    %v2277 = vsub.f32 %v2243, %v2271
    %v2278 = vsub.f32 %v2244, %v2272
    %v2279 = vsub.f32 %v2245, %v2273
    %v2280 = vsub.f32 %v2246, %v2274
    %v2281 = vsub.f32 %v2247, %v2275
    %v2282 = vsub.f32 %v2248, %v2276
    %v2283 = vmul.f32 %v2277, %v2277
    %v2284 = vmul.f32 %v2278, %v2278
    %v2285 = vmul.f32 %v2279, %v2279
    %v2286 = vmul.f32 %v2280, %v2280
    %v2287 = vmul.f32 %v2281, %v2281
    %v2288 = vmul.f32 %v2282, %v2282
    %v2289 = vsel %vm605, %v2283, 0.0
    %2290 = vadd.xlane.f32.xlu0 %v2289
    %v2291 = vpop.xlane.xlu0 %2290
    %v2292 = vsel %vm605, %v2284, 0.0
    %2293 = vadd.xlane.f32.xlu0 %v2292
    %v2294 = vpop.xlane.xlu0 %2293
    %v2295 = vsel %vm605, %v2285, 0.0
    %2296 = vadd.xlane.f32.xlu0 %v2295
    %v2297 = vpop.xlane.xlu0 %2296
    %v2298 = vsel %vm605, %v2286, 0.0
    %2299 = vadd.xlane.f32.xlu0 %v2298
    %v2300 = vpop.xlane.xlu0 %2299
    %v2301 = vsel %vm605, %v2287, 0.0
    %2302 = vadd.xlane.f32.xlu0 %v2301
    %v2303 = vpop.xlane.xlu0 %2302
    %v2304 = vsel %vm605, %v2288, 0.0
    %2305 = vadd.xlane.f32.xlu0 %v2304
    %v2306 = vpop.xlane.xlu0 %2305
    %v2307 = vmul.f32 %v2291, %v624
    %v2308 = vmul.f32 %v2294, %v624
    %v2309 = vmul.f32 %v2297, %v624
    %v2310 = vmul.f32 %v2300, %v624
    %v2311 = vmul.f32 %v2303, %v624
    %v2312 = vmul.f32 %v2306, %v624
    %v2313 = vadd.f32 %v2307, 1e-05
    %v2314 = vadd.f32 %v2308, 1e-05
    %v2315 = vadd.f32 %v2309, 1e-05
    %v2316 = vadd.f32 %v2310, 1e-05
    %v2317 = vadd.f32 %v2311, 1e-05
    %v2318 = vadd.f32 %v2312, 1e-05
    %v2319 = vrsqrt.pop %v2313
    %v2320 = vrsqrt.pop %v2314
    %v2321 = vrsqrt.pop %v2315
    %v2322 = vrsqrt.pop %v2316
    %v2323 = vrsqrt.pop %v2317
    %v2324 = vrsqrt.pop %v2318
    %v2325 = vmul.f32 %v2277, %v2319
    %v2326 = vmul.f32 %v2278, %v2320
    %v2327 = vmul.f32 %v2279, %v2321
    %v2328 = vmul.f32 %v2280, %v2322
    %v2329 = vmul.f32 %v2281, %v2323
    %v2330 = vmul.f32 %v2282, %v2324
    %v2332 = vlaneseq
    %v2333 = vshrl.u32 %v2332, 7
    %v2334 = vsub.s32 0, %v2333
    %v2335 = vrot.slane %v2250, %v2334
    %v2337 = vmul.f32 %v2325, %v2335
    %v2338 = vmul.f32 %v2326, %v2335
    %v2339 = vmul.f32 %v2327, %v2335
    %v2340 = vmul.f32 %v2328, %v2335
    %v2341 = vmul.f32 %v2329, %v2335
    %v2342 = vmul.f32 %v2330, %v2335
    %v2344 = vlaneseq
    %v2345 = vshrl.u32 %v2344, 7
    %v2346 = vsub.s32 0, %v2345
    %v2347 = vrot.slane %v2252, %v2346
    %v2349 = vadd.f32 %v2337, %v2347
    %v2350 = vadd.f32 %v2338, %v2347
    %v2351 = vadd.f32 %v2339, %v2347
    %v2352 = vadd.f32 %v2340, %v2347
    %v2353 = vadd.f32 %v2341, %v2347
    %v2354 = vadd.f32 %v2342, %v2347
    %v2355 = vpack.c.bf16 %v2350, %v2349
    %v2356 = vpack.c.bf16 %v2352, %v2351
    %v2357 = vpack.c.bf16 %v2354, %v2353
    %s2358 = scalar_lea.vmem %s21, 96
    %v2359 = vld [vmem:[%s2358] sm:$0xff]
    %v2360 = vld [vmem:[%s2358 + $0x8] sm:$0xf]
    %v2361 = vld [vmem:[%s2358 + $0xc] sm:$0xff]
    %v2362 = vld [vmem:[%s2358 + $0x14] sm:$0xf]
    %v2363 = vld [vmem:[%s2358 + $0x18] sm:$0xff]
    %v2364 = vld [vmem:[%s2358 + $0x20] sm:$0xf]
    %v2365 = vld [vmem:[%s2358 + $0x24] sm:$0xff]
    %v2366 = vld [vmem:[%s2358 + $0x2c] sm:$0xf]
    %v2367 = vld [vmem:[%s2358 + $0x30] sm:$0xff]
    %v2368 = vld [vmem:[%s2358 + $0x38] sm:$0xf]
    %v2369 = vld [vmem:[%s2358 + $0x3c] sm:$0xff]
    %v2370 = vld [vmem:[%s2358 + $0x44] sm:$0xf]
    %v2371 = vld [vmem:[%s2358 + $0x48] sm:$0xff]
    %v2372 = vld [vmem:[%s2358 + $0x50] sm:$0xf]
    %v2373 = vld [vmem:[%s2358 + $0x54] sm:$0xff]
    %v2374 = vld [vmem:[%s2358 + $0x5c] sm:$0xf]
    %s2375 = scalar_lea.vmem [#allocation13], 3
    %v2376 = vld [vmem:[%s2375] sm:$0x7]
    %v2378 = vlaneseq
    %v2379 = vshrl.u32 %v2378, 7
    %v2380 = vsub.s32 0, %v2379
    %v2381 = vrot.slane %v2376, %v2380
    %v2382 = vlaneseq
    %v2383 = vshrl.u32 %v2382, 7
    %v2384 = vsub.s32 1, %v2383
    %v2385 = vrot.slane %v2376, %v2384
    %v2386 = vlaneseq
    %v2387 = vshrl.u32 %v2386, 7
    %v2388 = vsub.s32 2, %v2387
    %v2389 = vrot.slane %v2376, %v2388
    %v2409 = vunpack.c.l.b16 %v2359
    %v2410 = vunpack.c.h.b16 %v2359
    %v2411 = vunpack.c.l.b16 %v2360
    %v2412 = vunpack.c.l.b16 %v2361
    %v2413 = vunpack.c.h.b16 %v2361
    %v2414 = vunpack.c.l.b16 %v2362
    %v2415 = vunpack.c.l.b16 %v2363
    %v2416 = vunpack.c.h.b16 %v2363
    %v2417 = vunpack.c.l.b16 %v2364
    %v2418 = vunpack.c.l.b16 %v2365
    %v2419 = vunpack.c.h.b16 %v2365
    %v2420 = vunpack.c.l.b16 %v2366
    %v2421 = vunpack.c.l.b16 %v2367
    %v2422 = vunpack.c.h.b16 %v2367
    %v2423 = vunpack.c.l.b16 %v2368
    %v2424 = vunpack.c.l.b16 %v2369
    %v2425 = vunpack.c.h.b16 %v2369
    %v2426 = vunpack.c.l.b16 %v2370
    %v2427 = vunpack.c.l.b16 %v2371
    %v2428 = vunpack.c.h.b16 %v2371
    %v2429 = vunpack.c.l.b16 %v2372
    %v2430 = vunpack.c.l.b16 %v2373
    %v2431 = vunpack.c.h.b16 %v2373
    %v2432 = vunpack.c.l.b16 %v2374
    %v2433 = vpack.c.b16 %v2412, %v2409
    %v2434 = vpack.c.b16 %v2413, %v2410
    %v2435 = vpack.c.b16 %v2414, %v2411
    %v2436 = vpack.c.b16 %v2418, %v2415
    %v2437 = vpack.c.b16 %v2419, %v2416
    %v2438 = vpack.c.b16 %v2420, %v2417
    %v2439 = vpack.c.b16 %v2424, %v2421
    %v2440 = vpack.c.b16 %v2425, %v2422
    %v2441 = vpack.c.b16 %v2426, %v2423
    %v2442 = vpack.c.b16 %v2430, %v2427
    %v2443 = vpack.c.b16 %v2431, %v2428
    %v2444 = vpack.c.b16 %v2432, %v2429
    %v2458 = vsel %vm605, %v2355, 0
    %v2461 = vsel %vm605, %v2356, 0
    %v2464 = vsel %vm605, %v2357, 0
    %2466 = vmatprep.subr.bf16.mxu0 0
    %2467 = vmatpush1.bf16.msra.mxu0 0
    %2468 = vmatprep.subr.bf16.mxu0 0
    %2469 = vmatpush1.bf16.msra.mxu0 0
    %2470 = vmatprep.subr.bf16.mxu0 0
    %2471 = vmatpush1.bf16.msra.mxu0 0
    %2472 = vmatprep.subr.bf16.mxu0 0
    %2473 = vmatpush1.bf16.msra.mxu0 0
    %2474 = vmatprep.subr.bf16.mxu0 %v2443
    %2475 = vmatpush1.bf16.msra.mxu0 %v2442
    %2476 = vmatprep.subr.bf16.mxu0 %v2440
    %2477 = vmatpush1.bf16.msra.mxu0 %v2439
    %2478 = vmatprep.subr.bf16.mxu0 %v2437
    %2479 = vmatpush1.bf16.msra.mxu0 %v2436
    %2480 = vmatprep.subr.bf16.mxu0 %v2434
    %2481 = vmatpush1.bf16.msra.mxu0 %v2433
    %2482 = vmatprep.subr.bf16.mxu0 0
    %2483 = vmatpush2.bf16.msra.mxu0 0
    %2484 = vmatprep.subr.bf16.mxu0 0
    %2485 = vmatpush2.bf16.msra.mxu0 0
    %2486 = vmatprep.subr.bf16.mxu0 0
    %2487 = vmatpush2.bf16.msra.mxu0 0
    %2488 = vmatprep.subr.bf16.mxu0 0
    %2489 = vmatpush2.bf16.msra.mxu0 0
    %2490 = vmatprep.subr.bf16.mxu0 0
    %2491 = vmatpush2.bf16.msra.mxu0 0
    %2492 = vmatprep.subr.bf16.mxu0 0
    %2493 = vmatpush2.bf16.msra.mxu0 0
    %2494 = vmatprep.subr.bf16.mxu0 0
    %2495 = vmatpush2.bf16.msra.mxu0 0
    %2496 = vmatprep.subr.bf16.mxu0 0
    %2497 = vmatpush2.bf16.msra.mxu0 0
    %2498 = vmatprep.mubr.bf16.mxu0 0
    %2499 = vmatmul.mubr.bf16.gmra.mxu0 %v2458
    %v2500 = vpop.f32.mrf.mxu0
    %v2501 = vadd.f32 %v2381, %v2500
    %v2502 = vpop.f32.mrf.mxu0
    %v2503 = vadd.f32 %v2385, %v2502
    %v2504 = vpop.f32.mrf.mxu0
    %v2505 = vadd.f32 %v2381, %v2504
    %v2506 = vpop.f32.mrf.mxu0
    %v2507 = vadd.f32 %v2385, %v2506
    %2508 = vmatprep.mubr.bf16.mxu0 0
    %2509 = vmatmul.mubr.bf16.gmra.mxu0 %v2461
    %v2510 = vpop.f32.mrf.mxu0
    %v2511 = vadd.f32 %v2381, %v2510
    %v2512 = vpop.f32.mrf.mxu0
    %v2513 = vadd.f32 %v2385, %v2512
    %v2514 = vpop.f32.mrf.mxu0
    %v2515 = vadd.f32 %v2381, %v2514
    %v2516 = vpop.f32.mrf.mxu0
    %v2517 = vadd.f32 %v2385, %v2516
    %2518 = vmatprep.mubr.bf16.mxu0 0
    %2519 = vmatmul.mubr.bf16.gmra.mxu0 %v2464
    %v2520 = vpop.f32.mrf.mxu0
    %v2521 = vadd.f32 %v2381, %v2520
    %v2522 = vpop.f32.mrf.mxu0
    %v2523 = vadd.f32 %v2385, %v2522
    %v2524 = vpop.f32.mrf.mxu0
    %v2525 = vadd.f32 %v2381, %v2524
    %v2526 = vpop.f32.mrf.mxu0
    %v2527 = vadd.f32 %v2385, %v2526
    %2528 = vdwg.mxu0
    %2529 = vmatprep.subr.bf16.mxu0 0
    %2530 = vmatpush1.bf16.msra.mxu0 0
    %2531 = vmatprep.subr.bf16.mxu0 0
    %2532 = vmatpush1.bf16.msra.mxu0 0
    %2533 = vmatprep.subr.bf16.mxu0 0
    %2534 = vmatpush1.bf16.msra.mxu0 0
    %2535 = vmatprep.subr.bf16.mxu0 0
    %2536 = vmatpush1.bf16.msra.mxu0 0
    %2537 = vmatprep.subr.bf16.mxu0 0
    %2538 = vmatpush1.bf16.msra.mxu0 %v2444
    %2539 = vmatprep.subr.bf16.mxu0 0
    %2540 = vmatpush1.bf16.msra.mxu0 %v2441
    %2541 = vmatprep.subr.bf16.mxu0 0
    %2542 = vmatpush1.bf16.msra.mxu0 %v2438
    %2543 = vmatprep.subr.bf16.mxu0 0
    %2544 = vmatpush1.bf16.msra.mxu0 %v2435
    %2545 = vmatprep.subr.bf16.mxu0 0
    %2546 = vmatpush2.bf16.msra.mxu0 0
    %2547 = vmatprep.subr.bf16.mxu0 0
    %2548 = vmatpush2.bf16.msra.mxu0 0
    %2549 = vmatprep.subr.bf16.mxu0 0
    %2550 = vmatpush2.bf16.msra.mxu0 0
    %2551 = vmatprep.subr.bf16.mxu0 0
    %2552 = vmatpush2.bf16.msra.mxu0 0
    %2553 = vmatprep.subr.bf16.mxu0 0
    %2554 = vmatpush2.bf16.msra.mxu0 0
    %2555 = vmatprep.subr.bf16.mxu0 0
    %2556 = vmatpush2.bf16.msra.mxu0 0
    %2557 = vmatprep.subr.bf16.mxu0 0
    %2558 = vmatpush2.bf16.msra.mxu0 0
    %2559 = vmatprep.subr.bf16.mxu0 0
    %2560 = vmatpush2.bf16.msra.mxu0 0
    %2561 = vmatprep.mubr.bf16.mxu0 0
    %2562 = vmatmul.mubr.bf16.gmra.mxu0 %v2458
    %v2563 = vpop.f32.mrf.mxu0
    %v2564 = vadd.f32 %v2389, %v2563
    %v2565 = vpop.f32.mrf.mxu0
    %v2566 = vpop.f32.mrf.mxu0
    %v2567 = vadd.f32 %v2389, %v2566
    %v2568 = vpop.f32.mrf.mxu0
    %2569 = vmatprep.mubr.bf16.mxu0 0
    %2570 = vmatmul.mubr.bf16.gmra.mxu0 %v2461
    %v2571 = vpop.f32.mrf.mxu0
    %v2572 = vadd.f32 %v2389, %v2571
    %v2573 = vpop.f32.mrf.mxu0
    %v2574 = vpop.f32.mrf.mxu0
    %v2575 = vadd.f32 %v2389, %v2574
    %v2576 = vpop.f32.mrf.mxu0
    %2577 = vmatprep.mubr.bf16.mxu0 0
    %2578 = vmatmul.mubr.bf16.gmra.mxu0 %v2464
    %v2579 = vpop.f32.mrf.mxu0
    %v2580 = vadd.f32 %v2389, %v2579
    %v2581 = vpop.f32.mrf.mxu0
    %v2582 = vpop.f32.mrf.mxu0
    %v2583 = vadd.f32 %v2389, %v2582
    %v2584 = vpop.f32.mrf.mxu0
    %2585 = vdwg.mxu0
    %s2586 = scalar_lea.vmem %s25, 64
    %v2587 = vld [vmem:[%s2586] sm:$0xf]
    %v2588 = vld [vmem:[%s2586 + $0x4] sm:$0xf]
    %v2589 = vld [vmem:[%s2586 + $0x8] sm:$0xf]
    %v2590 = vld [vmem:[%s2586 + $0xc] sm:$0xf]
    %v2591 = vld [vmem:[%s2586 + $0x10] sm:$0xf]
    %v2592 = vld [vmem:[%s2586 + $0x14] sm:$0xf]
    %v2593 = vld [vmem:[%s2586 + $0x18] sm:$0xf]
    %v2594 = vld [vmem:[%s2586 + $0x1c] sm:$0xf]
    %v2595 = vld [vmem:[%s2586 + $0x20] sm:$0xf]
    %v2596 = vld [vmem:[%s2586 + $0x24] sm:$0xf]
    %v2597 = vld [vmem:[%s2586 + $0x28] sm:$0xf]
    %v2598 = vld [vmem:[%s2586 + $0x2c] sm:$0xf]
    %v2599 = vld [vmem:[%s2586 + $0x30] sm:$0xf]
    %v2600 = vld [vmem:[%s2586 + $0x34] sm:$0xf]
    %v2601 = vld [vmem:[%s2586 + $0x38] sm:$0xf]
    %v2602 = vld [vmem:[%s2586 + $0x3c] sm:$0xf]
    %v2603 = vpack.c.bf16 %v2505, %v2501
    %v2604 = vpack.c.bf16 %v2515, %v2511
    %v2605 = vpack.c.bf16 %v2525, %v2521
    %v2606 = vpack.c.bf16 %v2507, %v2503
    %v2607 = vpack.c.bf16 %v2517, %v2513
    %v2608 = vpack.c.bf16 %v2527, %v2523
    %v2609 = vpack.c.bf16 %v2567, %v2564
    %v2610 = vpack.c.bf16 %v2575, %v2572
    %v2611 = vpack.c.bf16 %v2583, %v2580
    %v2613 = vsel %vm605, %v2603, 0
    %v2616 = vsel %vm605, %v2604, 0
    %v2619 = vsel %vm605, %v2605, 0
    %v2622 = vsel %vm605, %v2606, 0
    %v2625 = vsel %vm605, %v2607, 0
    %v2628 = vsel %vm605, %v2608, 0
    %2630 = vmatprep.subr.bf16.mxu0 0
    %2631 = vmatpush1.bf16.xpose.msra.mxu0 0
    %2632 = vmatprep.subr.bf16.mxu0 0
    %2633 = vmatpush1.bf16.xpose.msra.mxu0 0
    %2634 = vmatprep.subr.bf16.mxu0 0
    %2635 = vmatpush1.bf16.xpose.msra.mxu0 0
    %2636 = vmatprep.subr.bf16.mxu0 0
    %2637 = vmatpush1.bf16.xpose.msra.mxu0 0
    %2638 = vmatprep.subr.bf16.mxu0 0
    %2639 = vmatpush1.bf16.xpose.msra.mxu0 0
    %2640 = vmatprep.subr.bf16.mxu0 0
    %2641 = vmatpush1.bf16.xpose.msra.mxu0 %v2628
    %2642 = vmatprep.subr.bf16.mxu0 0
    %2643 = vmatpush1.bf16.xpose.msra.mxu0 %v2625
    %2644 = vmatprep.subr.bf16.mxu0 0
    %2645 = vmatpush1.bf16.xpose.msra.mxu0 %v2622
    %2646 = vmatprep.subr.bf16.mxu0 0
    %2647 = vmatpush2.bf16.xpose.msra.mxu0 0
    %2648 = vmatprep.subr.bf16.mxu0 0
    %2649 = vmatpush2.bf16.xpose.msra.mxu0 0
    %2650 = vmatprep.subr.bf16.mxu0 0
    %2651 = vmatpush2.bf16.xpose.msra.mxu0 0
    %2652 = vmatprep.subr.bf16.mxu0 0
    %2653 = vmatpush2.bf16.xpose.msra.mxu0 0
    %2654 = vmatprep.subr.bf16.mxu0 0
    %2655 = vmatpush2.bf16.xpose.msra.mxu0 0
    %2656 = vmatprep.subr.bf16.mxu0 0
    %2657 = vmatpush2.bf16.xpose.msra.mxu0 0
    %2658 = vmatprep.subr.bf16.mxu0 0
    %2659 = vmatpush2.bf16.xpose.msra.mxu0 0
    %2660 = vmatprep.subr.bf16.mxu0 0
    %2661 = vmatpush2.bf16.xpose.msra.mxu0 0
    %2662 = vmatprep.mubr.bf16.mxu0 0
    %2663 = vmatmul.mubr.bf16.gmra.mxu0 %v2613
    %v2664 = vpop.f32.mrf.mxu0
    %v2665 = vadd.f32 0.0, %v2664
    %v2666 = vpop.f32.mrf.mxu0
    %v2667 = vpop.f32.mrf.mxu0
    %v2668 = vadd.f32 0.0, %v2667
    %v2669 = vpop.f32.mrf.mxu0
    %2670 = vmatprep.mubr.bf16.mxu0 0
    %2671 = vmatmul.mubr.bf16.gmra.mxu0 %v2616
    %v2672 = vpop.f32.mrf.mxu0
    %v2673 = vadd.f32 0.0, %v2672
    %v2674 = vpop.f32.mrf.mxu0
    %v2675 = vpop.f32.mrf.mxu0
    %v2676 = vadd.f32 0.0, %v2675
    %v2677 = vpop.f32.mrf.mxu0
    %2678 = vmatprep.mubr.bf16.mxu0 0
    %2679 = vmatmul.mubr.bf16.gmra.mxu0 %v2619
    %v2680 = vpop.f32.mrf.mxu0
    %v2681 = vadd.f32 0.0, %v2680
    %v2682 = vpop.f32.mrf.mxu0
    %v2683 = vpop.f32.mrf.mxu0
    %v2684 = vadd.f32 0.0, %v2683
    %v2685 = vpop.f32.mrf.mxu0
    %2686 = vdwg.mxu0
    %v2687 = vmul.f32 %v2665, 0.17677669
    %v2688 = vmul.f32 %v2668, 0.17677669
    %v2689 = vmul.f32 %v2673, 0.17677669
    %v2690 = vmul.f32 %v2676, 0.17677669
    %v2691 = vmul.f32 %v2681, 0.17677669
    %v2692 = vmul.f32 %v2684, 0.17677669
    %v2693 = vadd.f32 %v2687, %v709
    %v2694 = vadd.f32 %v2688, %v710
    %v2695 = vadd.f32 %v2689, %v711
    %v2696 = vadd.f32 %v2690, %v712
    %v2697 = vadd.f32 %v2691, %v713
    %v2698 = vadd.f32 %v2692, %v714
    %v2699 = vsel %vm536, %v2693, -inf
    %2700 = vmax.xlane.f32.xlu0 %v2699
    %v2701 = vpop.xlane.xlu0 %2700
    %v2702 = vsel %vm536, %v2694, -inf
    %2703 = vmax.xlane.f32.xlu0 %v2702
    %v2704 = vpop.xlane.xlu0 %2703
    %v2705 = vsel %vm536, %v2695, -inf
    %2706 = vmax.xlane.f32.xlu0 %v2705
    %v2707 = vpop.xlane.xlu0 %2706
    %v2708 = vsel %vm536, %v2696, -inf
    %2709 = vmax.xlane.f32.xlu0 %v2708
    %v2710 = vpop.xlane.xlu0 %2709
    %v2711 = vsel %vm536, %v2697, -inf
    %2712 = vmax.xlane.f32.xlu0 %v2711
    %v2713 = vpop.xlane.xlu0 %2712
    %v2714 = vsel %vm536, %v2698, -inf
    %2715 = vmax.xlane.f32.xlu0 %v2714
    %v2716 = vpop.xlane.xlu0 %2715
    %v2717 = vsub.f32 %v2693, %v2701
    %v2718 = vsub.f32 %v2694, %v2704
    %v2719 = vsub.f32 %v2695, %v2707
    %v2720 = vsub.f32 %v2696, %v2710
    %v2721 = vsub.f32 %v2697, %v2713
    %v2722 = vsub.f32 %v2698, %v2716
    %v2723 = vmul.f32 %v2717, 1.442695
    %v2724 = vpow.pop %v2723
    %v2725 = vmul.f32 %v2718, 1.442695
    %v2726 = vpow.pop %v2725
    %v2727 = vmul.f32 %v2719, 1.442695
    %v2728 = vpow.pop %v2727
    %v2729 = vmul.f32 %v2720, 1.442695
    %v2730 = vpow.pop %v2729
    %v2731 = vmul.f32 %v2721, 1.442695
    %v2732 = vpow.pop %v2731
    %v2733 = vmul.f32 %v2722, 1.442695
    %v2734 = vpow.pop %v2733
    %v2735 = vsel %vm536, %v2724, 0.0
    %2736 = vadd.xlane.f32.xlu0 %v2735
    %v2737 = vpop.xlane.xlu0 %2736
    %v2738 = vsel %vm536, %v2726, 0.0
    %2739 = vadd.xlane.f32.xlu0 %v2738
    %v2740 = vpop.xlane.xlu0 %2739
    %v2741 = vsel %vm536, %v2728, 0.0
    %2742 = vadd.xlane.f32.xlu0 %v2741
    %v2743 = vpop.xlane.xlu0 %2742
    %v2744 = vsel %vm536, %v2730, 0.0
    %2745 = vadd.xlane.f32.xlu0 %v2744
    %v2746 = vpop.xlane.xlu0 %2745
    %v2747 = vsel %vm536, %v2732, 0.0
    %2748 = vadd.xlane.f32.xlu0 %v2747
    %v2749 = vpop.xlane.xlu0 %2748
    %v2750 = vsel %vm536, %v2734, 0.0
    %2751 = vadd.xlane.f32.xlu0 %v2750
    %v2752 = vpop.xlane.xlu0 %2751
    %v2753 = vrcp.pop %v2737
    %v2754 = vrcp.pop %v2740
    %v2755 = vrcp.pop %v2743
    %v2756 = vrcp.pop %v2746
    %v2757 = vrcp.pop %v2749
    %v2758 = vrcp.pop %v2752
    %v2759 = vmul.f32 %v2724, %v2753
    %v2760 = vmul.f32 %v2726, %v2754
    %v2761 = vmul.f32 %v2728, %v2755
    %v2762 = vmul.f32 %v2730, %v2756
    %v2763 = vmul.f32 %v2732, %v2757
    %v2764 = vmul.f32 %v2734, %v2758
    %v2765 = vpack.c.bf16 %v2760, %v2759
    %v2766 = vpack.c.bf16 %v2762, %v2761
    %v2767 = vpack.c.bf16 %v2764, %v2763
    %v2769 = vsel %vm536, %v2765, 0
    %v2772 = vsel %vm536, %v2766, 0
    %v2775 = vsel %vm536, %v2767, 0
    %2777 = vmatprep.subr.bf16.mxu0 0
    %2778 = vmatpush1.bf16.msra.mxu0 0
    %2779 = vmatprep.subr.bf16.mxu0 0
    %2780 = vmatpush1.bf16.msra.mxu0 0
    %2781 = vmatprep.subr.bf16.mxu0 0
    %2782 = vmatpush1.bf16.msra.mxu0 0
    %2783 = vmatprep.subr.bf16.mxu0 0
    %2784 = vmatpush1.bf16.msra.mxu0 0
    %2785 = vmatprep.subr.bf16.mxu0 0
    %2786 = vmatpush1.bf16.msra.mxu0 0
    %2787 = vmatprep.subr.bf16.mxu0 0
    %2788 = vmatpush1.bf16.msra.mxu0 %v2611
    %2789 = vmatprep.subr.bf16.mxu0 0
    %2790 = vmatpush1.bf16.msra.mxu0 %v2610
    %2791 = vmatprep.subr.bf16.mxu0 0
    %2792 = vmatpush1.bf16.msra.mxu0 %v2609
    %2793 = vmatprep.subr.bf16.mxu0 0
    %2794 = vmatpush2.bf16.msra.mxu0 0
    %2795 = vmatprep.subr.bf16.mxu0 0
    %2796 = vmatpush2.bf16.msra.mxu0 0
    %2797 = vmatprep.subr.bf16.mxu0 0
    %2798 = vmatpush2.bf16.msra.mxu0 0
    %2799 = vmatprep.subr.bf16.mxu0 0
    %2800 = vmatpush2.bf16.msra.mxu0 0
    %2801 = vmatprep.subr.bf16.mxu0 0
    %2802 = vmatpush2.bf16.msra.mxu0 0
    %2803 = vmatprep.subr.bf16.mxu0 0
    %2804 = vmatpush2.bf16.msra.mxu0 0
    %2805 = vmatprep.subr.bf16.mxu0 0
    %2806 = vmatpush2.bf16.msra.mxu0 0
    %2807 = vmatprep.subr.bf16.mxu0 0
    %2808 = vmatpush2.bf16.msra.mxu0 0
    %2809 = vmatprep.mubr.bf16.mxu0 0
    %2810 = vmatmul.mubr.bf16.gmra.mxu0 %v2769
    %v2811 = vpop.f32.mrf.mxu0
    %v2812 = vadd.f32 0.0, %v2811
    %v2813 = vpop.f32.mrf.mxu0
    %v2814 = vpop.f32.mrf.mxu0
    %v2815 = vadd.f32 0.0, %v2814
    %v2816 = vpop.f32.mrf.mxu0
    %2817 = vmatprep.mubr.bf16.mxu0 0
    %2818 = vmatmul.mubr.bf16.gmra.mxu0 %v2772
    %v2819 = vpop.f32.mrf.mxu0
    %v2820 = vadd.f32 0.0, %v2819
    %v2821 = vpop.f32.mrf.mxu0
    %v2822 = vpop.f32.mrf.mxu0
    %v2823 = vadd.f32 0.0, %v2822
    %v2824 = vpop.f32.mrf.mxu0
    %2825 = vmatprep.mubr.bf16.mxu0 0
    %2826 = vmatmul.mubr.bf16.gmra.mxu0 %v2775
    %v2827 = vpop.f32.mrf.mxu0
    %v2828 = vadd.f32 0.0, %v2827
    %v2829 = vpop.f32.mrf.mxu0
    %v2830 = vpop.f32.mrf.mxu0
    %v2831 = vadd.f32 0.0, %v2830
    %v2832 = vpop.f32.mrf.mxu0
    %2833 = vdwg.mxu0
    %2837 = vrot.lane.b32.xlu0 %v2603, 64
    %v2838 = vpop.permute.xlu0 %2837
    %2839 = vrot.lane.b32.xlu0 %v2604, 64
    %v2840 = vpop.permute.xlu0 %2839
    %2841 = vrot.lane.b32.xlu0 %v2605, 64
    %v2842 = vpop.permute.xlu0 %2841
    %2846 = vrot.lane.b32.xlu0 %v2606, 64
    %v2847 = vpop.permute.xlu0 %2846
    %2848 = vrot.lane.b32.xlu0 %v2607, 64
    %v2849 = vpop.permute.xlu0 %2848
    %2850 = vrot.lane.b32.xlu0 %v2608, 64
    %v2851 = vpop.permute.xlu0 %2850
    %v2853 = vsel %vm605, %v2838, 0
    %v2856 = vsel %vm605, %v2840, 0
    %v2859 = vsel %vm605, %v2842, 0
    %v2862 = vsel %vm605, %v2847, 0
    %v2865 = vsel %vm605, %v2849, 0
    %v2868 = vsel %vm605, %v2851, 0
    %2870 = vmatprep.subr.bf16.mxu0 0
    %2871 = vmatpush1.bf16.xpose.msra.mxu0 0
    %2872 = vmatprep.subr.bf16.mxu0 0
    %2873 = vmatpush1.bf16.xpose.msra.mxu0 0
    %2874 = vmatprep.subr.bf16.mxu0 0
    %2875 = vmatpush1.bf16.xpose.msra.mxu0 0
    %2876 = vmatprep.subr.bf16.mxu0 0
    %2877 = vmatpush1.bf16.xpose.msra.mxu0 0
    %2878 = vmatprep.subr.bf16.mxu0 0
    %2879 = vmatpush1.bf16.xpose.msra.mxu0 0
    %2880 = vmatprep.subr.bf16.mxu0 0
    %2881 = vmatpush1.bf16.xpose.msra.mxu0 %v2868
    %2882 = vmatprep.subr.bf16.mxu0 0
    %2883 = vmatpush1.bf16.xpose.msra.mxu0 %v2865
    %2884 = vmatprep.subr.bf16.mxu0 0
    %2885 = vmatpush1.bf16.xpose.msra.mxu0 %v2862
    %2886 = vmatprep.subr.bf16.mxu0 0
    %2887 = vmatpush2.bf16.xpose.msra.mxu0 0
    %2888 = vmatprep.subr.bf16.mxu0 0
    %2889 = vmatpush2.bf16.xpose.msra.mxu0 0
    %2890 = vmatprep.subr.bf16.mxu0 0
    %2891 = vmatpush2.bf16.xpose.msra.mxu0 0
    %2892 = vmatprep.subr.bf16.mxu0 0
    %2893 = vmatpush2.bf16.xpose.msra.mxu0 0
    %2894 = vmatprep.subr.bf16.mxu0 0
    %2895 = vmatpush2.bf16.xpose.msra.mxu0 0
    %2896 = vmatprep.subr.bf16.mxu0 0
    %2897 = vmatpush2.bf16.xpose.msra.mxu0 0
    %2898 = vmatprep.subr.bf16.mxu0 0
    %2899 = vmatpush2.bf16.xpose.msra.mxu0 0
    %2900 = vmatprep.subr.bf16.mxu0 0
    %2901 = vmatpush2.bf16.xpose.msra.mxu0 0
    %2902 = vmatprep.mubr.bf16.mxu0 0
    %2903 = vmatmul.mubr.bf16.gmra.mxu0 %v2853
    %v2904 = vpop.f32.mrf.mxu0
    %v2905 = vadd.f32 0.0, %v2904
    %v2906 = vpop.f32.mrf.mxu0
    %v2907 = vpop.f32.mrf.mxu0
    %v2908 = vadd.f32 0.0, %v2907
    %v2909 = vpop.f32.mrf.mxu0
    %2910 = vmatprep.mubr.bf16.mxu0 0
    %2911 = vmatmul.mubr.bf16.gmra.mxu0 %v2856
    %v2912 = vpop.f32.mrf.mxu0
    %v2913 = vadd.f32 0.0, %v2912
    %v2914 = vpop.f32.mrf.mxu0
    %v2915 = vpop.f32.mrf.mxu0
    %v2916 = vadd.f32 0.0, %v2915
    %v2917 = vpop.f32.mrf.mxu0
    %2918 = vmatprep.mubr.bf16.mxu0 0
    %2919 = vmatmul.mubr.bf16.gmra.mxu0 %v2859
    %v2920 = vpop.f32.mrf.mxu0
    %v2921 = vadd.f32 0.0, %v2920
    %v2922 = vpop.f32.mrf.mxu0
    %v2923 = vpop.f32.mrf.mxu0
    %v2924 = vadd.f32 0.0, %v2923
    %v2925 = vpop.f32.mrf.mxu0
    %2926 = vdwg.mxu0
    %v2927 = vmul.f32 %v2905, 0.17677669
    %v2928 = vmul.f32 %v2908, 0.17677669
    %v2929 = vmul.f32 %v2913, 0.17677669
    %v2930 = vmul.f32 %v2916, 0.17677669
    %v2931 = vmul.f32 %v2921, 0.17677669
    %v2932 = vmul.f32 %v2924, 0.17677669
    %v2933 = vadd.f32 %v2927, %v709
    %v2934 = vadd.f32 %v2928, %v710
    %v2935 = vadd.f32 %v2929, %v711
    %v2936 = vadd.f32 %v2930, %v712
    %v2937 = vadd.f32 %v2931, %v713
    %v2938 = vadd.f32 %v2932, %v714
    %v2939 = vsel %vm536, %v2933, -inf
    %2940 = vmax.xlane.f32.xlu0 %v2939
    %v2941 = vpop.xlane.xlu0 %2940
    %v2942 = vsel %vm536, %v2934, -inf
    %2943 = vmax.xlane.f32.xlu0 %v2942
    %v2944 = vpop.xlane.xlu0 %2943
    %v2945 = vsel %vm536, %v2935, -inf
    %2946 = vmax.xlane.f32.xlu0 %v2945
    %v2947 = vpop.xlane.xlu0 %2946
    %v2948 = vsel %vm536, %v2936, -inf
    %2949 = vmax.xlane.f32.xlu0 %v2948
    %v2950 = vpop.xlane.xlu0 %2949
    %v2951 = vsel %vm536, %v2937, -inf
    %2952 = vmax.xlane.f32.xlu0 %v2951
    %v2953 = vpop.xlane.xlu0 %2952
    %v2954 = vsel %vm536, %v2938, -inf
    %2955 = vmax.xlane.f32.xlu0 %v2954
    %v2956 = vpop.xlane.xlu0 %2955
    %v2957 = vsub.f32 %v2933, %v2941
    %v2958 = vsub.f32 %v2934, %v2944
    %v2959 = vsub.f32 %v2935, %v2947
    %v2960 = vsub.f32 %v2936, %v2950
    %v2961 = vsub.f32 %v2937, %v2953
    %v2962 = vsub.f32 %v2938, %v2956
    %v2963 = vmul.f32 %v2957, 1.442695
    %v2964 = vpow.pop %v2963
    %v2965 = vmul.f32 %v2958, 1.442695
    %v2966 = vpow.pop %v2965
    %v2967 = vmul.f32 %v2959, 1.442695
    %v2968 = vpow.pop %v2967
    %v2969 = vmul.f32 %v2960, 1.442695
    %v2970 = vpow.pop %v2969
    %v2971 = vmul.f32 %v2961, 1.442695
    %v2972 = vpow.pop %v2971
    %v2973 = vmul.f32 %v2962, 1.442695
    %v2974 = vpow.pop %v2973
    %v2975 = vsel %vm536, %v2964, 0.0
    %2976 = vadd.xlane.f32.xlu0 %v2975
    %v2977 = vpop.xlane.xlu0 %2976
    %v2978 = vsel %vm536, %v2966, 0.0
    %2979 = vadd.xlane.f32.xlu0 %v2978
    %v2980 = vpop.xlane.xlu0 %2979
    %v2981 = vsel %vm536, %v2968, 0.0
    %2982 = vadd.xlane.f32.xlu0 %v2981
    %v2983 = vpop.xlane.xlu0 %2982
    %v2984 = vsel %vm536, %v2970, 0.0
    %2985 = vadd.xlane.f32.xlu0 %v2984
    %v2986 = vpop.xlane.xlu0 %2985
    %v2987 = vsel %vm536, %v2972, 0.0
    %2988 = vadd.xlane.f32.xlu0 %v2987
    %v2989 = vpop.xlane.xlu0 %2988
    %v2990 = vsel %vm536, %v2974, 0.0
    %2991 = vadd.xlane.f32.xlu0 %v2990
    %v2992 = vpop.xlane.xlu0 %2991
    %v2993 = vrcp.pop %v2977
    %v2994 = vrcp.pop %v2980
    %v2995 = vrcp.pop %v2983
    %v2996 = vrcp.pop %v2986
    %v2997 = vrcp.pop %v2989
    %v2998 = vrcp.pop %v2992
    %v2999 = vmul.f32 %v2964, %v2993
    %v3000 = vmul.f32 %v2966, %v2994
    %v3001 = vmul.f32 %v2968, %v2995
    %v3002 = vmul.f32 %v2970, %v2996
    %v3003 = vmul.f32 %v2972, %v2997
    %v3004 = vmul.f32 %v2974, %v2998
    %v3005 = vpack.c.bf16 %v3000, %v2999
    %v3006 = vpack.c.bf16 %v3002, %v3001
    %v3007 = vpack.c.bf16 %v3004, %v3003
    %3011 = vrot.lane.b32.xlu0 %v2609, 64
    %v3012 = vpop.permute.xlu0 %3011
    %3013 = vrot.lane.b32.xlu0 %v2610, 64
    %v3014 = vpop.permute.xlu0 %3013
    %3015 = vrot.lane.b32.xlu0 %v2611, 64
    %v3016 = vpop.permute.xlu0 %3015
    %v3021 = vsel %vm536, %v3005, 0
    %v3024 = vsel %vm536, %v3006, 0
    %v3027 = vsel %vm536, %v3007, 0
    %3029 = vmatprep.subr.bf16.mxu0 0
    %3030 = vmatpush1.bf16.msra.mxu0 0
    %3031 = vmatprep.subr.bf16.mxu0 0
    %3032 = vmatpush1.bf16.msra.mxu0 0
    %3033 = vmatprep.subr.bf16.mxu0 0
    %3034 = vmatpush1.bf16.msra.mxu0 0
    %3035 = vmatprep.subr.bf16.mxu0 0
    %3036 = vmatpush1.bf16.msra.mxu0 0
    %3037 = vmatprep.subr.bf16.mxu0 0
    %3038 = vmatpush1.bf16.msra.mxu0 0
    %3039 = vmatprep.subr.bf16.mxu0 0
    %3040 = vmatpush1.bf16.msra.mxu0 %v3016
    %3041 = vmatprep.subr.bf16.mxu0 0
    %3042 = vmatpush1.bf16.msra.mxu0 %v3014
    %3043 = vmatprep.subr.bf16.mxu0 0
    %3044 = vmatpush1.bf16.msra.mxu0 %v3012
    %3045 = vmatprep.subr.bf16.mxu0 0
    %3046 = vmatpush2.bf16.msra.mxu0 0
    %3047 = vmatprep.subr.bf16.mxu0 0
    %3048 = vmatpush2.bf16.msra.mxu0 0
    %3049 = vmatprep.subr.bf16.mxu0 0
    %3050 = vmatpush2.bf16.msra.mxu0 0
    %3051 = vmatprep.subr.bf16.mxu0 0
    %3052 = vmatpush2.bf16.msra.mxu0 0
    %3053 = vmatprep.subr.bf16.mxu0 0
    %3054 = vmatpush2.bf16.msra.mxu0 0
    %3055 = vmatprep.subr.bf16.mxu0 0
    %3056 = vmatpush2.bf16.msra.mxu0 0
    %3057 = vmatprep.subr.bf16.mxu0 0
    %3058 = vmatpush2.bf16.msra.mxu0 0
    %3059 = vmatprep.subr.bf16.mxu0 0
    %3060 = vmatpush2.bf16.msra.mxu0 0
    %3061 = vmatprep.mubr.bf16.mxu0 0
    %3062 = vmatmul.mubr.bf16.gmra.mxu0 %v3021
    %v3063 = vpop.f32.mrf.mxu0
    %v3064 = vadd.f32 0.0, %v3063
    %v3065 = vpop.f32.mrf.mxu0
    %v3066 = vpop.f32.mrf.mxu0
    %v3067 = vadd.f32 0.0, %v3066
    %v3068 = vpop.f32.mrf.mxu0
    %3069 = vmatprep.mubr.bf16.mxu0 0
    %3070 = vmatmul.mubr.bf16.gmra.mxu0 %v3024
    %v3071 = vpop.f32.mrf.mxu0
    %v3072 = vadd.f32 0.0, %v3071
    %v3073 = vpop.f32.mrf.mxu0
    %v3074 = vpop.f32.mrf.mxu0
    %v3075 = vadd.f32 0.0, %v3074
    %v3076 = vpop.f32.mrf.mxu0
    %3077 = vmatprep.mubr.bf16.mxu0 0
    %3078 = vmatmul.mubr.bf16.gmra.mxu0 %v3027
    %v3079 = vpop.f32.mrf.mxu0
    %v3080 = vadd.f32 0.0, %v3079
    %v3081 = vpop.f32.mrf.mxu0
    %v3082 = vpop.f32.mrf.mxu0
    %v3083 = vadd.f32 0.0, %v3082
    %v3084 = vpop.f32.mrf.mxu0
    %3085 = vdwg.mxu0
    %3092 = vrot.lane.b32.xlu0 %v3064, 64
    %v3093 = vpop.permute.xlu0 %3092
    %3094 = vrot.lane.b32.xlu0 %v3067, 64
    %v3095 = vpop.permute.xlu0 %3094
    %3096 = vrot.lane.b32.xlu0 %v3072, 64
    %v3097 = vpop.permute.xlu0 %3096
    %3098 = vrot.lane.b32.xlu0 %v3075, 64
    %v3099 = vpop.permute.xlu0 %3098
    %3100 = vrot.lane.b32.xlu0 %v3080, 64
    %v3101 = vpop.permute.xlu0 %3100
    %3102 = vrot.lane.b32.xlu0 %v3083, 64
    %v3103 = vpop.permute.xlu0 %3102
    %v3110 = vsel %vm605, %v2812, %v3093
    %v3111 = vsel %vm605, %v2815, %v3095
    %v3112 = vsel %vm605, %v2820, %v3097
    %v3113 = vsel %vm605, %v2823, %v3099
    %v3114 = vsel %vm605, %v2828, %v3101
    %v3115 = vsel %vm605, %v2831, %v3103
    %v3116 = vpack.c.bf16 %v3111, %v3110
    %v3117 = vpack.c.bf16 %v3113, %v3112
    %v3118 = vpack.c.bf16 %v3115, %v3114
    %v3135 = vunpack.c.l.b16 %v2587
    %v3136 = vunpack.c.l.b16 %v2588
    %v3137 = vunpack.c.l.b16 %v2589
    %v3138 = vunpack.c.l.b16 %v2590
    %v3139 = vunpack.c.l.b16 %v2591
    %v3140 = vunpack.c.l.b16 %v2592
    %v3141 = vunpack.c.l.b16 %v2593
    %v3142 = vunpack.c.l.b16 %v2594
    %v3143 = vunpack.c.l.b16 %v2595
    %v3144 = vunpack.c.l.b16 %v2596
    %v3145 = vunpack.c.l.b16 %v2597
    %v3146 = vunpack.c.l.b16 %v2598
    %v3147 = vunpack.c.l.b16 %v2599
    %v3148 = vunpack.c.l.b16 %v2600
    %v3149 = vunpack.c.l.b16 %v2601
    %v3150 = vunpack.c.l.b16 %v2602
    %v3151 = vpack.c.b16 %v3136, %v3135
    %v3152 = vpack.c.b16 %v3138, %v3137
    %v3153 = vpack.c.b16 %v3140, %v3139
    %v3154 = vpack.c.b16 %v3142, %v3141
    %v3155 = vpack.c.b16 %v3144, %v3143
    %v3156 = vpack.c.b16 %v3146, %v3145
    %v3157 = vpack.c.b16 %v3148, %v3147
    %v3158 = vpack.c.b16 %v3150, %v3149
    %3167 = vmatprep.subr.bf16.mxu0 0
    %3168 = vmatpush1.bf16.msra.mxu0 %v3158
    %3169 = vmatprep.subr.bf16.mxu0 0
    %3170 = vmatpush1.bf16.msra.mxu0 %v3157
    %3171 = vmatprep.subr.bf16.mxu0 0
    %3172 = vmatpush1.bf16.msra.mxu0 %v3156
    %3173 = vmatprep.subr.bf16.mxu0 0
    %3174 = vmatpush1.bf16.msra.mxu0 %v3155
    %3175 = vmatprep.subr.bf16.mxu0 0
    %3176 = vmatpush1.bf16.msra.mxu0 %v3154
    %3177 = vmatprep.subr.bf16.mxu0 0
    %3178 = vmatpush1.bf16.msra.mxu0 %v3153
    %3179 = vmatprep.subr.bf16.mxu0 0
    %3180 = vmatpush1.bf16.msra.mxu0 %v3152
    %3181 = vmatprep.subr.bf16.mxu0 0
    %3182 = vmatpush1.bf16.msra.mxu0 %v3151
    %3183 = vmatprep.subr.bf16.mxu0 0
    %3184 = vmatpush2.bf16.msra.mxu0 0
    %3185 = vmatprep.subr.bf16.mxu0 0
    %3186 = vmatpush2.bf16.msra.mxu0 0
    %3187 = vmatprep.subr.bf16.mxu0 0
    %3188 = vmatpush2.bf16.msra.mxu0 0
    %3189 = vmatprep.subr.bf16.mxu0 0
    %3190 = vmatpush2.bf16.msra.mxu0 0
    %3191 = vmatprep.subr.bf16.mxu0 0
    %3192 = vmatpush2.bf16.msra.mxu0 0
    %3193 = vmatprep.subr.bf16.mxu0 0
    %3194 = vmatpush2.bf16.msra.mxu0 0
    %3195 = vmatprep.subr.bf16.mxu0 0
    %3196 = vmatpush2.bf16.msra.mxu0 0
    %3197 = vmatprep.subr.bf16.mxu0 0
    %3198 = vmatpush2.bf16.msra.mxu0 0
    %3199 = vmatprep.mubr.bf16.mxu0 0
    %3200 = vmatmul.mubr.bf16.gmra.mxu0 %v3116
    %v3201 = vpop.f32.mrf.mxu0
    %v3202 = vadd.f32 0.0, %v3201
    %v3203 = vpop.f32.mrf.mxu0
    %v3204 = vpop.f32.mrf.mxu0
    %v3205 = vadd.f32 0.0, %v3204
    %v3206 = vpop.f32.mrf.mxu0
    %3207 = vmatprep.mubr.bf16.mxu0 0
    %3208 = vmatmul.mubr.bf16.gmra.mxu0 %v3117
    %v3209 = vpop.f32.mrf.mxu0
    %v3210 = vadd.f32 0.0, %v3209
    %v3211 = vpop.f32.mrf.mxu0
    %v3212 = vpop.f32.mrf.mxu0
    %v3213 = vadd.f32 0.0, %v3212
    %v3214 = vpop.f32.mrf.mxu0
    %3215 = vmatprep.mubr.bf16.mxu0 0
    %3216 = vmatmul.mubr.bf16.gmra.mxu0 %v3118
    %v3217 = vpop.f32.mrf.mxu0
    %v3218 = vadd.f32 0.0, %v3217
    %v3219 = vpop.f32.mrf.mxu0
    %v3220 = vpop.f32.mrf.mxu0
    %v3221 = vadd.f32 0.0, %v3220
    %v3222 = vpop.f32.mrf.mxu0
    %3223 = vdwg.mxu0
    %v3224 = vadd.f32 %v2243, %v3202
    %v3225 = vadd.f32 %v2244, %v3205
    %v3226 = vadd.f32 %v2245, %v3210
    %v3227 = vadd.f32 %v2246, %v3213
    %v3228 = vadd.f32 %v2247, %v3218
    %v3229 = vadd.f32 %v2248, %v3221
    %s3230 = scalar_lea.vmem [#allocation14], 1
    %v3231 = vld [vmem:[%s3230] sm:$0x1]
    %v3233 = vlaneseq
    %v3234 = vshrl.u32 %v3233, 7
    %v3235 = vsub.s32 0, %v3234
    %v3236 = vrot.slane %v3231, %v3235
    %v3238 = vadd.f32 %v3224, %v3236
    %v3239 = vadd.f32 %v3225, %v3236
    %v3240 = vadd.f32 %v3226, %v3236
    %v3241 = vadd.f32 %v3227, %v3236
    %v3242 = vadd.f32 %v3228, %v3236
    %v3243 = vadd.f32 %v3229, %v3236
    %s3244 = scalar_lea.vmem [#allocation16], 1
    %v3245 = vld [vmem:[%s3244] sm:$0x1]
    %s3246 = scalar_lea.vmem [#allocation17], 1
    %v3247 = vld [vmem:[%s3246] sm:$0x1]
    %v3248 = vsel %vm605, %v3238, 0.0
    %3249 = vadd.xlane.f32.xlu0 %v3248
    %v3250 = vpop.xlane.xlu0 %3249
    %v3251 = vsel %vm605, %v3239, 0.0
    %3252 = vadd.xlane.f32.xlu0 %v3251
    %v3253 = vpop.xlane.xlu0 %3252
    %v3254 = vsel %vm605, %v3240, 0.0
    %3255 = vadd.xlane.f32.xlu0 %v3254
    %v3256 = vpop.xlane.xlu0 %3255
    %v3257 = vsel %vm605, %v3241, 0.0
    %3258 = vadd.xlane.f32.xlu0 %v3257
    %v3259 = vpop.xlane.xlu0 %3258
    %v3260 = vsel %vm605, %v3242, 0.0
    %3261 = vadd.xlane.f32.xlu0 %v3260
    %v3262 = vpop.xlane.xlu0 %3261
    %v3263 = vsel %vm605, %v3243, 0.0
    %3264 = vadd.xlane.f32.xlu0 %v3263
    %v3265 = vpop.xlane.xlu0 %3264
    %v3266 = vmul.f32 %v3250, %v624
    %v3267 = vmul.f32 %v3253, %v624
    %v3268 = vmul.f32 %v3256, %v624
    %v3269 = vmul.f32 %v3259, %v624
    %v3270 = vmul.f32 %v3262, %v624
    %v3271 = vmul.f32 %v3265, %v624
    %v3272 = vsub.f32 %v3238, %v3266
    %v3273 = vsub.f32 %v3239, %v3267
    %v3274 = vsub.f32 %v3240, %v3268
    %v3275 = vsub.f32 %v3241, %v3269
    %v3276 = vsub.f32 %v3242, %v3270
    %v3277 = vsub.f32 %v3243, %v3271
    %v3278 = vmul.f32 %v3272, %v3272
    %v3279 = vmul.f32 %v3273, %v3273
    %v3280 = vmul.f32 %v3274, %v3274
    %v3281 = vmul.f32 %v3275, %v3275
    %v3282 = vmul.f32 %v3276, %v3276
    %v3283 = vmul.f32 %v3277, %v3277
    %v3284 = vsel %vm605, %v3278, 0.0
    %3285 = vadd.xlane.f32.xlu0 %v3284
    %v3286 = vpop.xlane.xlu0 %3285
    %v3287 = vsel %vm605, %v3279, 0.0
    %3288 = vadd.xlane.f32.xlu0 %v3287
    %v3289 = vpop.xlane.xlu0 %3288
    %v3290 = vsel %vm605, %v3280, 0.0
    %3291 = vadd.xlane.f32.xlu0 %v3290
    %v3292 = vpop.xlane.xlu0 %3291
    %v3293 = vsel %vm605, %v3281, 0.0
    %3294 = vadd.xlane.f32.xlu0 %v3293
    %v3295 = vpop.xlane.xlu0 %3294
    %v3296 = vsel %vm605, %v3282, 0.0
    %3297 = vadd.xlane.f32.xlu0 %v3296
    %v3298 = vpop.xlane.xlu0 %3297
    %v3299 = vsel %vm605, %v3283, 0.0
    %3300 = vadd.xlane.f32.xlu0 %v3299
    %v3301 = vpop.xlane.xlu0 %3300
    %v3302 = vmul.f32 %v3286, %v624
    %v3303 = vmul.f32 %v3289, %v624
    %v3304 = vmul.f32 %v3292, %v624
    %v3305 = vmul.f32 %v3295, %v624
    %v3306 = vmul.f32 %v3298, %v624
    %v3307 = vmul.f32 %v3301, %v624
    %v3308 = vadd.f32 %v3302, 1e-05
    %v3309 = vadd.f32 %v3303, 1e-05
    %v3310 = vadd.f32 %v3304, 1e-05
    %v3311 = vadd.f32 %v3305, 1e-05
    %v3312 = vadd.f32 %v3306, 1e-05
    %v3313 = vadd.f32 %v3307, 1e-05
    %v3314 = vrsqrt.pop %v3308
    %v3315 = vrsqrt.pop %v3309
    %v3316 = vrsqrt.pop %v3310
    %v3317 = vrsqrt.pop %v3311
    %v3318 = vrsqrt.pop %v3312
    %v3319 = vrsqrt.pop %v3313
    %v3320 = vmul.f32 %v3272, %v3314
    %v3321 = vmul.f32 %v3273, %v3315
    %v3322 = vmul.f32 %v3274, %v3316
    %v3323 = vmul.f32 %v3275, %v3317
    %v3324 = vmul.f32 %v3276, %v3318
    %v3325 = vmul.f32 %v3277, %v3319
    %v3327 = vlaneseq
    %v3328 = vshrl.u32 %v3327, 7
    %v3329 = vsub.s32 0, %v3328
    %v3330 = vrot.slane %v3245, %v3329
    %v3332 = vmul.f32 %v3320, %v3330
    %v3333 = vmul.f32 %v3321, %v3330
    %v3334 = vmul.f32 %v3322, %v3330
    %v3335 = vmul.f32 %v3323, %v3330
    %v3336 = vmul.f32 %v3324, %v3330
    %v3337 = vmul.f32 %v3325, %v3330
    %v3339 = vlaneseq
    %v3340 = vshrl.u32 %v3339, 7
    %v3341 = vsub.s32 0, %v3340
    %v3342 = vrot.slane %v3247, %v3341
    %v3344 = vadd.f32 %v3332, %v3342
    %v3345 = vadd.f32 %v3333, %v3342
    %v3346 = vadd.f32 %v3334, %v3342
    %v3347 = vadd.f32 %v3335, %v3342
    %v3348 = vadd.f32 %v3336, %v3342
    %v3349 = vadd.f32 %v3337, %v3342
    %v3350 = vpack.c.bf16 %v3345, %v3344
    %v3351 = vpack.c.bf16 %v3347, %v3346
    %v3352 = vpack.c.bf16 %v3349, %v3348
    %s3353 = scalar_lea.vmem [#allocation19], 64
    %v3354 = vld [vmem:[%s3353] sm:$0xff]
    %v3355 = vld [vmem:[%s3353 + $0x8] sm:$0xff]
    %v3356 = vld [vmem:[%s3353 + $0x10] sm:$0xff]
    %v3357 = vld [vmem:[%s3353 + $0x18] sm:$0xff]
    %v3358 = vld [vmem:[%s3353 + $0x20] sm:$0xff]
    %v3359 = vld [vmem:[%s3353 + $0x28] sm:$0xff]
    %v3360 = vld [vmem:[%s3353 + $0x30] sm:$0xff]
    %v3361 = vld [vmem:[%s3353 + $0x38] sm:$0xff]
    %s3362 = scalar_lea.vmem [#allocation20], 2
    %v3363 = vld [vmem:[%s3362] sm:$0x3]
    %v3365 = vlaneseq
    %v3366 = vshrl.u32 %v3365, 7
    %v3367 = vsub.s32 0, %v3366
    %v3368 = vrot.slane %v3363, %v3367
    %v3369 = vlaneseq
    %v3370 = vshrl.u32 %v3369, 7
    %v3371 = vsub.s32 1, %v3370
    %v3372 = vrot.slane %v3363, %v3371
    %v3383 = vunpack.c.l.b16 %v3354
    %v3384 = vunpack.c.h.b16 %v3354
    %v3385 = vunpack.c.l.b16 %v3355
    %v3386 = vunpack.c.h.b16 %v3355
    %v3387 = vunpack.c.l.b16 %v3356
    %v3388 = vunpack.c.h.b16 %v3356
    %v3389 = vunpack.c.l.b16 %v3357
    %v3390 = vunpack.c.h.b16 %v3357
    %v3391 = vunpack.c.l.b16 %v3358
    %v3392 = vunpack.c.h.b16 %v3358
    %v3393 = vunpack.c.l.b16 %v3359
    %v3394 = vunpack.c.h.b16 %v3359
    %v3395 = vunpack.c.l.b16 %v3360
    %v3396 = vunpack.c.h.b16 %v3360
    %v3397 = vunpack.c.l.b16 %v3361
    %v3398 = vunpack.c.h.b16 %v3361
    %v3399 = vpack.c.b16 %v3385, %v3383
    %v3400 = vpack.c.b16 %v3386, %v3384
    %v3401 = vpack.c.b16 %v3389, %v3387
    %v3402 = vpack.c.b16 %v3390, %v3388
    %v3403 = vpack.c.b16 %v3393, %v3391
    %v3404 = vpack.c.b16 %v3394, %v3392
    %v3405 = vpack.c.b16 %v3397, %v3395
    %v3406 = vpack.c.b16 %v3398, %v3396
    %v3416 = vsel %vm605, %v3350, 0
    %v3419 = vsel %vm605, %v3351, 0
    %v3422 = vsel %vm605, %v3352, 0
    %3424 = vmatprep.subr.bf16.mxu0 0
    %3425 = vmatpush1.bf16.msra.mxu0 0
    %3426 = vmatprep.subr.bf16.mxu0 0
    %3427 = vmatpush1.bf16.msra.mxu0 0
    %3428 = vmatprep.subr.bf16.mxu0 0
    %3429 = vmatpush1.bf16.msra.mxu0 0
    %3430 = vmatprep.subr.bf16.mxu0 0
    %3431 = vmatpush1.bf16.msra.mxu0 0
    %3432 = vmatprep.subr.bf16.mxu0 %v3406
    %3433 = vmatpush1.bf16.msra.mxu0 %v3405
    %3434 = vmatprep.subr.bf16.mxu0 %v3404
    %3435 = vmatpush1.bf16.msra.mxu0 %v3403
    %3436 = vmatprep.subr.bf16.mxu0 %v3402
    %3437 = vmatpush1.bf16.msra.mxu0 %v3401
    %3438 = vmatprep.subr.bf16.mxu0 %v3400
    %3439 = vmatpush1.bf16.msra.mxu0 %v3399
    %3440 = vmatprep.subr.bf16.mxu0 0
    %3441 = vmatpush2.bf16.msra.mxu0 0
    %3442 = vmatprep.subr.bf16.mxu0 0
    %3443 = vmatpush2.bf16.msra.mxu0 0
    %3444 = vmatprep.subr.bf16.mxu0 0
    %3445 = vmatpush2.bf16.msra.mxu0 0
    %3446 = vmatprep.subr.bf16.mxu0 0
    %3447 = vmatpush2.bf16.msra.mxu0 0
    %3448 = vmatprep.subr.bf16.mxu0 0
    %3449 = vmatpush2.bf16.msra.mxu0 0
    %3450 = vmatprep.subr.bf16.mxu0 0
    %3451 = vmatpush2.bf16.msra.mxu0 0
    %3452 = vmatprep.subr.bf16.mxu0 0
    %3453 = vmatpush2.bf16.msra.mxu0 0
    %3454 = vmatprep.subr.bf16.mxu0 0
    %3455 = vmatpush2.bf16.msra.mxu0 0
    %3456 = vmatprep.mubr.bf16.mxu0 0
    %3457 = vmatmul.mubr.bf16.gmra.mxu0 %v3416
    %v3458 = vpop.f32.mrf.mxu0
    %v3459 = vadd.f32 %v3368, %v3458
    %v3460 = vpop.f32.mrf.mxu0
    %v3461 = vadd.f32 %v3372, %v3460
    %v3462 = vpop.f32.mrf.mxu0
    %v3463 = vadd.f32 %v3368, %v3462
    %v3464 = vpop.f32.mrf.mxu0
    %v3465 = vadd.f32 %v3372, %v3464
    %3466 = vmatprep.mubr.bf16.mxu0 0
    %3467 = vmatmul.mubr.bf16.gmra.mxu0 %v3419
    %v3468 = vpop.f32.mrf.mxu0
    %v3469 = vadd.f32 %v3368, %v3468
    %v3470 = vpop.f32.mrf.mxu0
    %v3471 = vadd.f32 %v3372, %v3470
    %v3472 = vpop.f32.mrf.mxu0
    %v3473 = vadd.f32 %v3368, %v3472
    %v3474 = vpop.f32.mrf.mxu0
    %v3475 = vadd.f32 %v3372, %v3474
    %3476 = vmatprep.mubr.bf16.mxu0 0
    %3477 = vmatmul.mubr.bf16.gmra.mxu0 %v3422
    %v3478 = vpop.f32.mrf.mxu0
    %v3479 = vadd.f32 %v3368, %v3478
    %v3480 = vpop.f32.mrf.mxu0
    %v3481 = vadd.f32 %v3372, %v3480
    %v3482 = vpop.f32.mrf.mxu0
    %v3483 = vadd.f32 %v3368, %v3482
    %v3484 = vpop.f32.mrf.mxu0
    %v3485 = vadd.f32 %v3372, %v3484
    %3486 = vdwg.mxu0
    %v3487 = vmul.f32 %v3459, 1.702
    %v3488 = vmul.f32 %v3461, 1.702
    %v3489 = vmul.f32 %v3463, 1.702
    %v3490 = vmul.f32 %v3465, 1.702
    %v3491 = vmul.f32 %v3469, 1.702
    %v3492 = vmul.f32 %v3471, 1.702
    %v3493 = vmul.f32 %v3473, 1.702
    %v3494 = vmul.f32 %v3475, 1.702
    %v3495 = vmul.f32 %v3479, 1.702
    %v3496 = vmul.f32 %v3481, 1.702
    %v3497 = vmul.f32 %v3483, 1.702
    %v3498 = vmul.f32 %v3485, 1.702
    %v3499 = vxor.u32 %v3487, 2147483648
    %v3500 = vxor.u32 %v3488, 2147483648
    %v3501 = vxor.u32 %v3489, 2147483648
    %v3502 = vxor.u32 %v3490, 2147483648
    %v3503 = vxor.u32 %v3491, 2147483648
    %v3504 = vxor.u32 %v3492, 2147483648
    %v3505 = vxor.u32 %v3493, 2147483648
    %v3506 = vxor.u32 %v3494, 2147483648
    %v3507 = vxor.u32 %v3495, 2147483648
    %v3508 = vxor.u32 %v3496, 2147483648
    %v3509 = vxor.u32 %v3497, 2147483648
    %v3510 = vxor.u32 %v3498, 2147483648
    %v3511 = vmul.f32 %v3499, 1.442695
    %v3512 = vpow.pop %v3511
    %v3513 = vmul.f32 %v3500, 1.442695
    %v3514 = vpow.pop %v3513
    %v3515 = vmul.f32 %v3501, 1.442695
    %v3516 = vpow.pop %v3515
    %v3517 = vmul.f32 %v3502, 1.442695
    %v3518 = vpow.pop %v3517
    %v3519 = vmul.f32 %v3503, 1.442695
    %v3520 = vpow.pop %v3519
    %v3521 = vmul.f32 %v3504, 1.442695
    %v3522 = vpow.pop %v3521
    %v3523 = vmul.f32 %v3505, 1.442695
    %v3524 = vpow.pop %v3523
    %v3525 = vmul.f32 %v3506, 1.442695
    %v3526 = vpow.pop %v3525
    %v3527 = vmul.f32 %v3507, 1.442695
    %v3528 = vpow.pop %v3527
    %v3529 = vmul.f32 %v3508, 1.442695
    %v3530 = vpow.pop %v3529
    %v3531 = vmul.f32 %v3509, 1.442695
    %v3532 = vpow.pop %v3531
    %v3533 = vmul.f32 %v3510, 1.442695
    %v3534 = vpow.pop %v3533
    %v3535 = vadd.f32 %v3512, 1.0
    %v3536 = vadd.f32 %v3514, 1.0
    %v3537 = vadd.f32 %v3516, 1.0
    %v3538 = vadd.f32 %v3518, 1.0
    %v3539 = vadd.f32 %v3520, 1.0
    %v3540 = vadd.f32 %v3522, 1.0
    %v3541 = vadd.f32 %v3524, 1.0
    %v3542 = vadd.f32 %v3526, 1.0
    %v3543 = vadd.f32 %v3528, 1.0
    %v3544 = vadd.f32 %v3530, 1.0
    %v3545 = vadd.f32 %v3532, 1.0
    %v3546 = vadd.f32 %v3534, 1.0
    %v3547 = vrcp.pop %v3535
    %v3548 = vmul.f32 1.0, %v3547
    %v3549 = vrcp.pop %v3536
    %v3550 = vmul.f32 1.0, %v3549
    %v3551 = vrcp.pop %v3537
    %v3552 = vmul.f32 1.0, %v3551
    %v3553 = vrcp.pop %v3538
    %v3554 = vmul.f32 1.0, %v3553
    %v3555 = vrcp.pop %v3539
    %v3556 = vmul.f32 1.0, %v3555
    %v3557 = vrcp.pop %v3540
    %v3558 = vmul.f32 1.0, %v3557
    %v3559 = vrcp.pop %v3541
    %v3560 = vmul.f32 1.0, %v3559
    %v3561 = vrcp.pop %v3542
    %v3562 = vmul.f32 1.0, %v3561
    %v3563 = vrcp.pop %v3543
    %v3564 = vmul.f32 1.0, %v3563
    %v3565 = vrcp.pop %v3544
    %v3566 = vmul.f32 1.0, %v3565
    %v3567 = vrcp.pop %v3545
    %v3568 = vmul.f32 1.0, %v3567
    %v3569 = vrcp.pop %v3546
    %v3570 = vmul.f32 1.0, %v3569
    %v3571 = vmul.f32 %v3459, %v3548
    %v3572 = vmul.f32 %v3461, %v3550
    %v3573 = vmul.f32 %v3463, %v3552
    %v3574 = vmul.f32 %v3465, %v3554
    %v3575 = vmul.f32 %v3469, %v3556
    %v3576 = vmul.f32 %v3471, %v3558
    %v3577 = vmul.f32 %v3473, %v3560
    %v3578 = vmul.f32 %v3475, %v3562
    %v3579 = vmul.f32 %v3479, %v3564
    %v3580 = vmul.f32 %v3481, %v3566
    %v3581 = vmul.f32 %v3483, %v3568
    %v3582 = vmul.f32 %v3485, %v3570
    %v3583 = vpack.c.bf16 %v3573, %v3571
    %v3584 = vpack.c.bf16 %v3574, %v3572
    %v3585 = vpack.c.bf16 %v3577, %v3575
    %v3586 = vpack.c.bf16 %v3578, %v3576
    %v3587 = vpack.c.bf16 %v3581, %v3579
    %v3588 = vpack.c.bf16 %v3582, %v3580
    %s3589 = scalar_lea.vmem %s37, 128
    %v3590 = vld [vmem:[%s3589] sm:$0xf]
    %v3591 = vld [vmem:[%s3589 + $0x4] sm:$0xf]
    %v3592 = vld [vmem:[%s3589 + $0x8] sm:$0xf]
    %v3593 = vld [vmem:[%s3589 + $0xc] sm:$0xf]
    %v3594 = vld [vmem:[%s3589 + $0x10] sm:$0xf]
    %v3595 = vld [vmem:[%s3589 + $0x14] sm:$0xf]
    %v3596 = vld [vmem:[%s3589 + $0x18] sm:$0xf]
    %v3597 = vld [vmem:[%s3589 + $0x1c] sm:$0xf]
    %v3598 = vld [vmem:[%s3589 + $0x20] sm:$0xf]
    %v3599 = vld [vmem:[%s3589 + $0x24] sm:$0xf]
    %v3600 = vld [vmem:[%s3589 + $0x28] sm:$0xf]
    %v3601 = vld [vmem:[%s3589 + $0x2c] sm:$0xf]
    %v3602 = vld [vmem:[%s3589 + $0x30] sm:$0xf]
    %v3603 = vld [vmem:[%s3589 + $0x34] sm:$0xf]
    %v3604 = vld [vmem:[%s3589 + $0x38] sm:$0xf]
    %v3605 = vld [vmem:[%s3589 + $0x3c] sm:$0xf]
    %v3606 = vld [vmem:[%s3589 + $0x40] sm:$0xf]
    %v3607 = vld [vmem:[%s3589 + $0x44] sm:$0xf]
    %v3608 = vld [vmem:[%s3589 + $0x48] sm:$0xf]
    %v3609 = vld [vmem:[%s3589 + $0x4c] sm:$0xf]
    %v3610 = vld [vmem:[%s3589 + $0x50] sm:$0xf]
    %v3611 = vld [vmem:[%s3589 + $0x54] sm:$0xf]
    %v3612 = vld [vmem:[%s3589 + $0x58] sm:$0xf]
    %v3613 = vld [vmem:[%s3589 + $0x5c] sm:$0xf]
    %v3614 = vld [vmem:[%s3589 + $0x60] sm:$0xf]
    %v3615 = vld [vmem:[%s3589 + $0x64] sm:$0xf]
    %v3616 = vld [vmem:[%s3589 + $0x68] sm:$0xf]
    %v3617 = vld [vmem:[%s3589 + $0x6c] sm:$0xf]
    %v3618 = vld [vmem:[%s3589 + $0x70] sm:$0xf]
    %v3619 = vld [vmem:[%s3589 + $0x74] sm:$0xf]
    %v3620 = vld [vmem:[%s3589 + $0x78] sm:$0xf]
    %v3621 = vld [vmem:[%s3589 + $0x7c] sm:$0xf]
    %v3654 = vunpack.c.l.b16 %v3590
    %v3655 = vunpack.c.l.b16 %v3591
    %v3656 = vunpack.c.l.b16 %v3592
    %v3657 = vunpack.c.l.b16 %v3593
    %v3658 = vunpack.c.l.b16 %v3594
    %v3659 = vunpack.c.l.b16 %v3595
    %v3660 = vunpack.c.l.b16 %v3596
    %v3661 = vunpack.c.l.b16 %v3597
    %v3662 = vunpack.c.l.b16 %v3598
    %v3663 = vunpack.c.l.b16 %v3599
    %v3664 = vunpack.c.l.b16 %v3600
    %v3665 = vunpack.c.l.b16 %v3601
    %v3666 = vunpack.c.l.b16 %v3602
    %v3667 = vunpack.c.l.b16 %v3603
    %v3668 = vunpack.c.l.b16 %v3604
    %v3669 = vunpack.c.l.b16 %v3605
    %v3670 = vunpack.c.l.b16 %v3606
    %v3671 = vunpack.c.l.b16 %v3607
    %v3672 = vunpack.c.l.b16 %v3608
    %v3673 = vunpack.c.l.b16 %v3609
    %v3674 = vunpack.c.l.b16 %v3610
    %v3675 = vunpack.c.l.b16 %v3611
    %v3676 = vunpack.c.l.b16 %v3612
    %v3677 = vunpack.c.l.b16 %v3613
    %v3678 = vunpack.c.l.b16 %v3614
    %v3679 = vunpack.c.l.b16 %v3615
    %v3680 = vunpack.c.l.b16 %v3616
    %v3681 = vunpack.c.l.b16 %v3617
    %v3682 = vunpack.c.l.b16 %v3618
    %v3683 = vunpack.c.l.b16 %v3619
    %v3684 = vunpack.c.l.b16 %v3620
    %v3685 = vunpack.c.l.b16 %v3621
    %v3686 = vpack.c.b16 %v3655, %v3654
    %v3687 = vpack.c.b16 %v3657, %v3656
    %v3688 = vpack.c.b16 %v3659, %v3658
    %v3689 = vpack.c.b16 %v3661, %v3660
    %v3690 = vpack.c.b16 %v3663, %v3662
    %v3691 = vpack.c.b16 %v3665, %v3664
    %v3692 = vpack.c.b16 %v3667, %v3666
    %v3693 = vpack.c.b16 %v3669, %v3668
    %v3694 = vpack.c.b16 %v3671, %v3670
    %v3695 = vpack.c.b16 %v3673, %v3672
    %v3696 = vpack.c.b16 %v3675, %v3674
    %v3697 = vpack.c.b16 %v3677, %v3676
    %v3698 = vpack.c.b16 %v3679, %v3678
    %v3699 = vpack.c.b16 %v3681, %v3680
    %v3700 = vpack.c.b16 %v3683, %v3682
    %v3701 = vpack.c.b16 %v3685, %v3684
    %3718 = vmatprep.subr.bf16.mxu0 0
    %3719 = vmatpush1.bf16.msra.mxu0 %v3693
    %3720 = vmatprep.subr.bf16.mxu0 0
    %3721 = vmatpush1.bf16.msra.mxu0 %v3692
    %3722 = vmatprep.subr.bf16.mxu0 0
    %3723 = vmatpush1.bf16.msra.mxu0 %v3691
    %3724 = vmatprep.subr.bf16.mxu0 0
    %3725 = vmatpush1.bf16.msra.mxu0 %v3690
    %3726 = vmatprep.subr.bf16.mxu0 0
    %3727 = vmatpush1.bf16.msra.mxu0 %v3689
    %3728 = vmatprep.subr.bf16.mxu0 0
    %3729 = vmatpush1.bf16.msra.mxu0 %v3688
    %3730 = vmatprep.subr.bf16.mxu0 0
    %3731 = vmatpush1.bf16.msra.mxu0 %v3687
    %3732 = vmatprep.subr.bf16.mxu0 0
    %3733 = vmatpush1.bf16.msra.mxu0 %v3686
    %3734 = vmatprep.subr.bf16.mxu0 0
    %3735 = vmatpush2.bf16.msra.mxu0 %v3701
    %3736 = vmatprep.subr.bf16.mxu0 0
    %3737 = vmatpush2.bf16.msra.mxu0 %v3700
    %3738 = vmatprep.subr.bf16.mxu0 0
    %3739 = vmatpush2.bf16.msra.mxu0 %v3699
    %3740 = vmatprep.subr.bf16.mxu0 0
    %3741 = vmatpush2.bf16.msra.mxu0 %v3698
    %3742 = vmatprep.subr.bf16.mxu0 0
    %3743 = vmatpush2.bf16.msra.mxu0 %v3697
    %3744 = vmatprep.subr.bf16.mxu0 0
    %3745 = vmatpush2.bf16.msra.mxu0 %v3696
    %3746 = vmatprep.subr.bf16.mxu0 0
    %3747 = vmatpush2.bf16.msra.mxu0 %v3695
    %3748 = vmatprep.subr.bf16.mxu0 0
    %3749 = vmatpush2.bf16.msra.mxu0 %v3694
    %3750 = vmatprep.mubr.bf16.mxu0 %v3584
    %3751 = vmatmul.mubr.bf16.gmra.mxu0 %v3583
    %v3752 = vpop.f32.mrf.mxu0
    %v3753 = vadd.f32 0.0, %v3752
    %v3754 = vpop.f32.mrf.mxu0
    %v3755 = vpop.f32.mrf.mxu0
    %v3756 = vadd.f32 0.0, %v3755
    %v3757 = vpop.f32.mrf.mxu0
    %3758 = vmatprep.mubr.bf16.mxu0 %v3586
    %3759 = vmatmul.mubr.bf16.gmra.mxu0 %v3585
    %v3760 = vpop.f32.mrf.mxu0
    %v3761 = vadd.f32 0.0, %v3760
    %v3762 = vpop.f32.mrf.mxu0
    %v3763 = vpop.f32.mrf.mxu0
    %v3764 = vadd.f32 0.0, %v3763
    %v3765 = vpop.f32.mrf.mxu0
    %3766 = vmatprep.mubr.bf16.mxu0 %v3588
    %3767 = vmatmul.mubr.bf16.gmra.mxu0 %v3587
    %v3768 = vpop.f32.mrf.mxu0
    %v3769 = vadd.f32 0.0, %v3768
    %v3770 = vpop.f32.mrf.mxu0
    %v3771 = vpop.f32.mrf.mxu0
    %v3772 = vadd.f32 0.0, %v3771
    %v3773 = vpop.f32.mrf.mxu0
    %3774 = vdwg.mxu0
    %v3775 = vadd.f32 %v3238, %v3753
    %v3776 = vadd.f32 %v3239, %v3756
    %v3777 = vadd.f32 %v3240, %v3761
    %v3778 = vadd.f32 %v3241, %v3764
    %v3779 = vadd.f32 %v3242, %v3769
    %v3780 = vadd.f32 %v3243, %v3772
    %s3781 = scalar_lea.vmem [#allocation22], 1
    %v3782 = vld [vmem:[%s3781] sm:$0x1]
    %v3784 = vlaneseq
    %v3785 = vshrl.u32 %v3784, 7
    %v3786 = vsub.s32 0, %v3785
    %v3787 = vrot.slane %v3782, %v3786
    %v3789 = vadd.f32 %v3775, %v3787
    %v3790 = vadd.f32 %v3776, %v3787
    %v3791 = vadd.f32 %v3777, %v3787
    %v3792 = vadd.f32 %v3778, %v3787
    %v3793 = vadd.f32 %v3779, %v3787
    %v3794 = vadd.f32 %v3780, %v3787
    %v3795 = vpack.c.bf16 %v3790, %v3789
    %v3796 = vpack.c.bf16 %v3792, %v3791
    %v3797 = vpack.c.bf16 %v3794, %v3793
    %v3798 = vld [vmem:[#allocation23] sm:$0xf]
    %v3799 = vld [vmem:[#allocation23 + $0x4] sm:$0xf]
    %v3800 = vld [vmem:[#allocation23 + $0x8] sm:$0xf]
    %v3801 = vld [vmem:[#allocation23 + $0xc] sm:$0xf]
    %v3802 = vld [vmem:[#allocation23 + $0x10] sm:$0xf]
    %v3803 = vld [vmem:[#allocation23 + $0x14] sm:$0xf]
    %v3804 = vld [vmem:[#allocation23 + $0x18] sm:$0xf]
    %v3805 = vld [vmem:[#allocation23 + $0x1c] sm:$0xf]
    %v3806 = vld [vmem:[#allocation26] sm:$0xff]
    %v3807 = vld [vmem:[#allocation26 + $0x8] sm:$0xff]
    %v3808 = vld [vmem:[#allocation26 + $0x10] sm:$0xff]
    %v3809 = vld [vmem:[#allocation26 + $0x18] sm:$0xff]
    %v3810 = vld [vmem:[#allocation26 + $0x20] sm:$0xff]
    %v3811 = vld [vmem:[#allocation26 + $0x28] sm:$0xff]
    %v3820 = vunpack.c.l.b16 %v3798
    %v3821 = vunpack.c.l.b16 %v3799
    %v3822 = vunpack.c.l.b16 %v3800
    %v3823 = vunpack.c.l.b16 %v3801
    %v3824 = vunpack.c.l.b16 %v3802
    %v3825 = vunpack.c.l.b16 %v3803
    %v3826 = vunpack.c.l.b16 %v3804
    %v3827 = vunpack.c.l.b16 %v3805
    %v3828 = vpack.c.b16 %v3821, %v3820
    %v3829 = vpack.c.b16 %v3823, %v3822
    %v3830 = vpack.c.b16 %v3825, %v3824
    %v3831 = vpack.c.b16 %v3827, %v3826
    %v3837 = vsel %vm605, %v3795, 0
    %v3840 = vsel %vm605, %v3796, 0
    %v3843 = vsel %vm605, %v3797, 0
    %3845 = vmatprep.subr.bf16.mxu0 0
    %3846 = vmatpush1.bf16.msra.mxu0 0
    %3847 = vmatprep.subr.bf16.mxu0 0
    %3848 = vmatpush1.bf16.msra.mxu0 0
    %3849 = vmatprep.subr.bf16.mxu0 0
    %3850 = vmatpush1.bf16.msra.mxu0 0
    %3851 = vmatprep.subr.bf16.mxu0 0
    %3852 = vmatpush1.bf16.msra.mxu0 0
    %3853 = vmatprep.subr.bf16.mxu0 0
    %3854 = vmatpush1.bf16.msra.mxu0 %v3831
    %3855 = vmatprep.subr.bf16.mxu0 0
    %3856 = vmatpush1.bf16.msra.mxu0 %v3830
    %3857 = vmatprep.subr.bf16.mxu0 0
    %3858 = vmatpush1.bf16.msra.mxu0 %v3829
    %3859 = vmatprep.subr.bf16.mxu0 0
    %3860 = vmatpush1.bf16.msra.mxu0 %v3828
    %3861 = vmatprep.subr.bf16.mxu0 0
    %3862 = vmatpush2.bf16.msra.mxu0 0
    %3863 = vmatprep.subr.bf16.mxu0 0
    %3864 = vmatpush2.bf16.msra.mxu0 0
    %3865 = vmatprep.subr.bf16.mxu0 0
    %3866 = vmatpush2.bf16.msra.mxu0 0
    %3867 = vmatprep.subr.bf16.mxu0 0
    %3868 = vmatpush2.bf16.msra.mxu0 0
    %3869 = vmatprep.subr.bf16.mxu0 0
    %3870 = vmatpush2.bf16.msra.mxu0 0
    %3871 = vmatprep.subr.bf16.mxu0 0
    %3872 = vmatpush2.bf16.msra.mxu0 0
    %3873 = vmatprep.subr.bf16.mxu0 0
    %3874 = vmatpush2.bf16.msra.mxu0 0
    %3875 = vmatprep.subr.bf16.mxu0 0
    %3876 = vmatpush2.bf16.msra.mxu0 0
    %3877 = vmatprep.mubr.bf16.mxu0 0
    %3878 = vmatmul.mubr.bf16.gmra.mxu0 %v3837
    %v3879 = vpop.f32.mrf.mxu0
    %v3880 = vadd.f32 %v3806, %v3879
    %v3881 = vpop.f32.mrf.mxu0
    %v3882 = vpop.f32.mrf.mxu0
    %v3883 = vadd.f32 %v3807, %v3882
    %v3884 = vpop.f32.mrf.mxu0
    %3885 = vmatprep.mubr.bf16.mxu0 0
    %3886 = vmatmul.mubr.bf16.gmra.mxu0 %v3840
    %v3887 = vpop.f32.mrf.mxu0
    %v3888 = vadd.f32 %v3808, %v3887
    %v3889 = vpop.f32.mrf.mxu0
    %v3890 = vpop.f32.mrf.mxu0
    %v3891 = vadd.f32 %v3809, %v3890
    %v3892 = vpop.f32.mrf.mxu0
    %3893 = vmatprep.mubr.bf16.mxu0 0
    %3894 = vmatmul.mubr.bf16.gmra.mxu0 %v3843
    %v3895 = vpop.f32.mrf.mxu0
    %v3896 = vadd.f32 %v3810, %v3895
    %v3897 = vpop.f32.mrf.mxu0
    %v3898 = vpop.f32.mrf.mxu0
    %v3899 = vadd.f32 %v3811, %v3898
    %v3900 = vpop.f32.mrf.mxu0
    %3901 = vdwg.mxu0
    %v3902 = vld [vmem:[%s3] sm:$0xff]
    %v3903 = vld [vmem:[%s3 + $0x8] sm:$0xff]
    %v3904 = vlaneseq
    %v3905 = vand.u32 %v3904, 127
    %v3906 = vadd.s32 %v3905, 128
    %3907 = vset.pattern.permute.xlu0 0
    %3908 = vperm.xlu0 %3907, %v3902
    %v3909 = vpop.permute.xlu0 %3908
    %3910 = vset.pattern.permute.xlu0 0
    %3911 = vperm.xlu0 %3910, %v3903
    %v3912 = vpop.permute.xlu0 %3911
    %vm3913 = vcmp.eq.s32.totalorder %v3909, %v3905
    %vm3914 = vcmp.eq.s32.totalorder %v3909, %v3906
    %vm3915 = vcmp.eq.s32.totalorder %v3912, %v3905
    %vm3916 = vcmp.eq.s32.totalorder %v3912, %v3906
    %v3917 = vsel %vm3913, 1.0, 0.0
    %v3918 = vsel %vm3914, 1.0, 0.0
    %v3919 = vsel %vm3915, 1.0, 0.0
    %v3920 = vsel %vm3916, 1.0, 0.0
    %v3921 = vpack.c.bf16 %v3919, %v3917
    %v3922 = vpack.c.bf16 %v3920, %v3918
    %v3923 = vld [vmem:[#allocation25] sm:$0xf]
    %v3924 = vld [vmem:[#allocation25 + $0x4] sm:$0xf]
    %v3925 = vld [vmem:[#allocation25 + $0x8] sm:$0xf]
    %v3926 = vld [vmem:[#allocation25 + $0xc] sm:$0xf]
    %v3927 = vld [vmem:[#allocation25 + $0x10] sm:$0xf]
    %v3928 = vld [vmem:[#allocation25 + $0x14] sm:$0xf]
    %v3929 = vld [vmem:[#allocation25 + $0x18] sm:$0xf]
    %v3930 = vld [vmem:[#allocation25 + $0x1c] sm:$0xf]
    %v3931 = vld [vmem:[#allocation25 + $0x20] sm:$0xf]
    %v3932 = vld [vmem:[#allocation25 + $0x24] sm:$0xf]
    %v3933 = vld [vmem:[#allocation25 + $0x28] sm:$0xf]
    %v3934 = vld [vmem:[#allocation25 + $0x2c] sm:$0xf]
    %v3935 = vld [vmem:[#allocation25 + $0x30] sm:$0xf]
    %v3936 = vld [vmem:[#allocation25 + $0x34] sm:$0xf]
    %v3937 = vld [vmem:[#allocation25 + $0x38] sm:$0xf]
    %v3938 = vld [vmem:[#allocation25 + $0x3c] sm:$0xf]
    %v3939 = vld [vmem:[#allocation25 + $0x40] sm:$0xf]
    %v3940 = vld [vmem:[#allocation25 + $0x44] sm:$0xf]
    %v3941 = vld [vmem:[#allocation25 + $0x48] sm:$0xf]
    %v3942 = vld [vmem:[#allocation25 + $0x4c] sm:$0xf]
    %v3943 = vld [vmem:[#allocation25 + $0x50] sm:$0xf]
    %v3944 = vld [vmem:[#allocation25 + $0x54] sm:$0xf]
    %v3945 = vld [vmem:[#allocation25 + $0x58] sm:$0xf]
    %v3946 = vld [vmem:[#allocation25 + $0x5c] sm:$0xf]
    %v3947 = vld [vmem:[#allocation25 + $0x60] sm:$0xf]
    %v3948 = vld [vmem:[#allocation25 + $0x64] sm:$0xf]
    %v3949 = vld [vmem:[#allocation25 + $0x68] sm:$0xf]
    %v3950 = vld [vmem:[#allocation25 + $0x6c] sm:$0xf]
    %v3951 = vld [vmem:[#allocation25 + $0x70] sm:$0xf]
    %v3952 = vld [vmem:[#allocation25 + $0x74] sm:$0xf]
    %v3953 = vld [vmem:[#allocation25 + $0x78] sm:$0xf]
    %v3954 = vld [vmem:[#allocation25 + $0x7c] sm:$0xf]
    %v3955 = vld [vmem:[#allocation28] sm:$0xff]
    %v3956 = vld [vmem:[#allocation28 + $0x8] sm:$0xff]
    %v3989 = vunpack.c.l.b16 %v3923
    %v3990 = vunpack.c.l.b16 %v3924
    %v3991 = vunpack.c.l.b16 %v3925
    %v3992 = vunpack.c.l.b16 %v3926
    %v3993 = vunpack.c.l.b16 %v3927
    %v3994 = vunpack.c.l.b16 %v3928
    %v3995 = vunpack.c.l.b16 %v3929
    %v3996 = vunpack.c.l.b16 %v3930
    %v3997 = vunpack.c.l.b16 %v3931
    %v3998 = vunpack.c.l.b16 %v3932
    %v3999 = vunpack.c.l.b16 %v3933
    %v4000 = vunpack.c.l.b16 %v3934
    %v4001 = vunpack.c.l.b16 %v3935
    %v4002 = vunpack.c.l.b16 %v3936
    %v4003 = vunpack.c.l.b16 %v3937
    %v4004 = vunpack.c.l.b16 %v3938
    %v4005 = vunpack.c.l.b16 %v3939
    %v4006 = vunpack.c.l.b16 %v3940
    %v4007 = vunpack.c.l.b16 %v3941
    %v4008 = vunpack.c.l.b16 %v3942
    %v4009 = vunpack.c.l.b16 %v3943
    %v4010 = vunpack.c.l.b16 %v3944
    %v4011 = vunpack.c.l.b16 %v3945
    %v4012 = vunpack.c.l.b16 %v3946
    %v4013 = vunpack.c.l.b16 %v3947
    %v4014 = vunpack.c.l.b16 %v3948
    %v4015 = vunpack.c.l.b16 %v3949
    %v4016 = vunpack.c.l.b16 %v3950
    %v4017 = vunpack.c.l.b16 %v3951
    %v4018 = vunpack.c.l.b16 %v3952
    %v4019 = vunpack.c.l.b16 %v3953
    %v4020 = vunpack.c.l.b16 %v3954
    %v4021 = vpack.c.b16 %v3990, %v3989
    %v4022 = vpack.c.b16 %v3992, %v3991
    %v4023 = vpack.c.b16 %v3994, %v3993
    %v4024 = vpack.c.b16 %v3996, %v3995
    %v4025 = vpack.c.b16 %v3998, %v3997
    %v4026 = vpack.c.b16 %v4000, %v3999
    %v4027 = vpack.c.b16 %v4002, %v4001
    %v4028 = vpack.c.b16 %v4004, %v4003
    %v4029 = vpack.c.b16 %v4006, %v4005
    %v4030 = vpack.c.b16 %v4008, %v4007
    %v4031 = vpack.c.b16 %v4010, %v4009
    %v4032 = vpack.c.b16 %v4012, %v4011
    %v4033 = vpack.c.b16 %v4014, %v4013
    %v4034 = vpack.c.b16 %v4016, %v4015
    %v4035 = vpack.c.b16 %v4018, %v4017
    %v4036 = vpack.c.b16 %v4020, %v4019
    %4053 = vmatprep.subr.bf16.mxu0 0
    %4054 = vmatpush1.bf16.msra.mxu0 %v4028
    %4055 = vmatprep.subr.bf16.mxu0 0
    %4056 = vmatpush1.bf16.msra.mxu0 %v4027
    %4057 = vmatprep.subr.bf16.mxu0 0
    %4058 = vmatpush1.bf16.msra.mxu0 %v4026
    %4059 = vmatprep.subr.bf16.mxu0 0
    %4060 = vmatpush1.bf16.msra.mxu0 %v4025
    %4061 = vmatprep.subr.bf16.mxu0 0
    %4062 = vmatpush1.bf16.msra.mxu0 %v4024
    %4063 = vmatprep.subr.bf16.mxu0 0
    %4064 = vmatpush1.bf16.msra.mxu0 %v4023
    %4065 = vmatprep.subr.bf16.mxu0 0
    %4066 = vmatpush1.bf16.msra.mxu0 %v4022
    %4067 = vmatprep.subr.bf16.mxu0 0
    %4068 = vmatpush1.bf16.msra.mxu0 %v4021
    %4069 = vmatprep.subr.bf16.mxu0 0
    %4070 = vmatpush2.bf16.msra.mxu0 %v4036
    %4071 = vmatprep.subr.bf16.mxu0 0
    %4072 = vmatpush2.bf16.msra.mxu0 %v4035
    %4073 = vmatprep.subr.bf16.mxu0 0
    %4074 = vmatpush2.bf16.msra.mxu0 %v4034
    %4075 = vmatprep.subr.bf16.mxu0 0
    %4076 = vmatpush2.bf16.msra.mxu0 %v4033
    %4077 = vmatprep.subr.bf16.mxu0 0
    %4078 = vmatpush2.bf16.msra.mxu0 %v4032
    %4079 = vmatprep.subr.bf16.mxu0 0
    %4080 = vmatpush2.bf16.msra.mxu0 %v4031
    %4081 = vmatprep.subr.bf16.mxu0 0
    %4082 = vmatpush2.bf16.msra.mxu0 %v4030
    %4083 = vmatprep.subr.bf16.mxu0 0
    %4084 = vmatpush2.bf16.msra.mxu0 %v4029
    %4085 = vmatprep.mubr.bf16.mxu0 %v3922
    %4086 = vmatmul.mubr.bf16.gmra.mxu0 %v3921
    %v4087 = vpop.f32.mrf.mxu0
    %v4088 = vadd.f32 %v3955, %v4087
    %v4089 = vpop.f32.mrf.mxu0
    %v4090 = vpop.f32.mrf.mxu0
    %v4091 = vadd.f32 %v3956, %v4090
    %v4092 = vpop.f32.mrf.mxu0
    %4093 = vdwg.mxu0
    %v4094 = vld [vmem:[#allocation29] sm:$0xff]
    %v4095 = vld [vmem:[#allocation29 + $0x8] sm:$0xff]
    %v4096 = vld [vmem:[#allocation29 + $0x10] sm:$0xff]
    %v4097 = vld [vmem:[#allocation29 + $0x18] sm:$0xff]
    %v4098 = vld [vmem:[#allocation29 + $0x20] sm:$0xff]
    %v4099 = vld [vmem:[#allocation29 + $0x28] sm:$0xff]
    %v4100 = vld [vmem:[#allocation29 + $0x30] sm:$0xff]
    %v4101 = vld [vmem:[#allocation29 + $0x38] sm:$0xff]
    %v4102 = vld [vmem:[%s5] sm:$0x1]
    %v4104 = vlaneseq
    %v4105 = vshrl.u32 %v4104, 7
    %v4106 = vsub.s32 0, %v4105
    %v4107 = vrot.slane %v4102, %v4106
    %v4109 = vadd.f32 %v4094, %v4107
    %v4110 = vadd.f32 %v4095, %v4107
    %v4111 = vadd.f32 %v4096, %v4107
    %v4112 = vadd.f32 %v4097, %v4107
    %v4113 = vadd.f32 %v4098, %v4107
    %v4114 = vadd.f32 %v4099, %v4107
    %v4115 = vadd.f32 %v4100, %v4107
    %v4116 = vadd.f32 %v4101, %v4107
    %v4117 = vld [vmem:[#allocation31] sm:$0x1]
    %v4118 = vld [vmem:[%s53] sm:$0x1]
    %4119 = vadd.xlane.f32.xlu0 %v3880
    %v4120 = vpop.xlane.xlu0 %4119
    %4121 = vadd.xlane.f32.xlu0 %v3883
    %v4122 = vpop.xlane.xlu0 %4121
    %4123 = vadd.xlane.f32.xlu0 %v3888
    %v4124 = vpop.xlane.xlu0 %4123
    %4125 = vadd.xlane.f32.xlu0 %v3891
    %v4126 = vpop.xlane.xlu0 %4125
    %4127 = vadd.xlane.f32.xlu0 %v3896
    %v4128 = vpop.xlane.xlu0 %4127
    %4129 = vadd.xlane.f32.xlu0 %v3899
    %v4130 = vpop.xlane.xlu0 %4129
    %4131 = vadd.xlane.f32.xlu0 %v4088
    %v4132 = vpop.xlane.xlu0 %4131
    %4133 = vadd.xlane.f32.xlu0 %v4091
    %v4134 = vpop.xlane.xlu0 %4133
    %v4135 = vrcp.pop 128.0
    %v4136 = vmul.f32 %v4120, %v4135
    %v4137 = vmul.f32 %v4122, %v4135
    %v4138 = vmul.f32 %v4124, %v4135
    %v4139 = vmul.f32 %v4126, %v4135
    %v4140 = vmul.f32 %v4128, %v4135
    %v4141 = vmul.f32 %v4130, %v4135
    %v4142 = vmul.f32 %v4132, %v4135
    %v4143 = vmul.f32 %v4134, %v4135
    %v4144 = vsub.f32 %v3880, %v4136
    %v4145 = vsub.f32 %v3883, %v4137
    %v4146 = vsub.f32 %v3888, %v4138
    %v4147 = vsub.f32 %v3891, %v4139
    %v4148 = vsub.f32 %v3896, %v4140
    %v4149 = vsub.f32 %v3899, %v4141
    %v4150 = vsub.f32 %v4088, %v4142
    %v4151 = vsub.f32 %v4091, %v4143
    %v4152 = vmul.f32 %v4144, %v4144
    %v4153 = vmul.f32 %v4145, %v4145
    %v4154 = vmul.f32 %v4146, %v4146
    %v4155 = vmul.f32 %v4147, %v4147
    %v4156 = vmul.f32 %v4148, %v4148
    %v4157 = vmul.f32 %v4149, %v4149
    %v4158 = vmul.f32 %v4150, %v4150
    %v4159 = vmul.f32 %v4151, %v4151
    %4160 = vadd.xlane.f32.xlu0 %v4152
    %v4161 = vpop.xlane.xlu0 %4160
    %4162 = vadd.xlane.f32.xlu0 %v4153
    %v4163 = vpop.xlane.xlu0 %4162
    %4164 = vadd.xlane.f32.xlu0 %v4154
    %v4165 = vpop.xlane.xlu0 %4164
    %4166 = vadd.xlane.f32.xlu0 %v4155
    %v4167 = vpop.xlane.xlu0 %4166
    %4168 = vadd.xlane.f32.xlu0 %v4156
    %v4169 = vpop.xlane.xlu0 %4168
    %4170 = vadd.xlane.f32.xlu0 %v4157
    %v4171 = vpop.xlane.xlu0 %4170
    %4172 = vadd.xlane.f32.xlu0 %v4158
    %v4173 = vpop.xlane.xlu0 %4172
    %4174 = vadd.xlane.f32.xlu0 %v4159
    %v4175 = vpop.xlane.xlu0 %4174
    %v4176 = vmul.f32 %v4161, %v4135
    %v4177 = vmul.f32 %v4163, %v4135
    %v4178 = vmul.f32 %v4165, %v4135
    %v4179 = vmul.f32 %v4167, %v4135
    %v4180 = vmul.f32 %v4169, %v4135
    %v4181 = vmul.f32 %v4171, %v4135
    %v4182 = vmul.f32 %v4173, %v4135
    %v4183 = vmul.f32 %v4175, %v4135
    %v4184 = vadd.f32 %v4176, 1e-05
    %v4185 = vadd.f32 %v4177, 1e-05
    %v4186 = vadd.f32 %v4178, 1e-05
    %v4187 = vadd.f32 %v4179, 1e-05
    %v4188 = vadd.f32 %v4180, 1e-05
    %v4189 = vadd.f32 %v4181, 1e-05
    %v4190 = vadd.f32 %v4182, 1e-05
    %v4191 = vadd.f32 %v4183, 1e-05
    %v4192 = vrsqrt.pop %v4184
    %v4193 = vrsqrt.pop %v4185
    %v4194 = vrsqrt.pop %v4186
    %v4195 = vrsqrt.pop %v4187
    %v4196 = vrsqrt.pop %v4188
    %v4197 = vrsqrt.pop %v4189
    %v4198 = vrsqrt.pop %v4190
    %v4199 = vrsqrt.pop %v4191
    %v4200 = vmul.f32 %v4144, %v4192
    %v4201 = vmul.f32 %v4145, %v4193
    %v4202 = vmul.f32 %v4146, %v4194
    %v4203 = vmul.f32 %v4147, %v4195
    %v4204 = vmul.f32 %v4148, %v4196
    %v4205 = vmul.f32 %v4149, %v4197
    %v4206 = vmul.f32 %v4150, %v4198
    %v4207 = vmul.f32 %v4151, %v4199
    %v4209 = vlaneseq
    %v4210 = vshrl.u32 %v4209, 7
    %v4211 = vsub.s32 0, %v4210
    %v4212 = vrot.slane %v4117, %v4211
    %v4214 = vmul.f32 %v4200, %v4212
    %v4215 = vmul.f32 %v4201, %v4212
    %v4216 = vmul.f32 %v4202, %v4212
    %v4217 = vmul.f32 %v4203, %v4212
    %v4218 = vmul.f32 %v4204, %v4212
    %v4219 = vmul.f32 %v4205, %v4212
    %v4220 = vmul.f32 %v4206, %v4212
    %v4221 = vmul.f32 %v4207, %v4212
    %v4223 = vlaneseq
    %v4224 = vshrl.u32 %v4223, 7
    %v4225 = vsub.s32 0, %v4224
    %v4226 = vrot.slane %v4118, %v4225
    %v4228 = vadd.f32 %v4214, %v4226
    %v4229 = vadd.f32 %v4215, %v4226
    %v4230 = vadd.f32 %v4216, %v4226
    %v4231 = vadd.f32 %v4217, %v4226
    %v4232 = vadd.f32 %v4218, %v4226
    %v4233 = vadd.f32 %v4219, %v4226
    %v4234 = vadd.f32 %v4220, %v4226
    %v4235 = vadd.f32 %v4221, %v4226
    %v4236 = vpack.c.bf16 %v4229, %v4228
    %v4237 = vpack.c.bf16 %v4231, %v4230
    %v4238 = vpack.c.bf16 %v4233, %v4232
    %v4239 = vpack.c.bf16 %v4235, %v4234
    %v4240 = vld [vmem:[%s55] sm:$0xff]
    %v4241 = vld [vmem:[%s55 + $0x8] sm:$0xff]
    %v4242 = vld [vmem:[%s55 + $0x10] sm:$0xff]
    %v4243 = vld [vmem:[%s55 + $0x18] sm:$0xff]
    %v4244 = vld [vmem:[%s55 + $0x20] sm:$0xff]
    %v4245 = vld [vmem:[%s55 + $0x28] sm:$0xff]
    %v4246 = vld [vmem:[%s55 + $0x30] sm:$0xff]
    %v4247 = vld [vmem:[%s55 + $0x38] sm:$0xff]
    %v4248 = vld [vmem:[%s55 + $0x40] sm:$0xff]
    %v4249 = vld [vmem:[%s55 + $0x48] sm:$0xff]
    %v4250 = vld [vmem:[%s55 + $0x50] sm:$0xff]
    %v4251 = vld [vmem:[%s55 + $0x58] sm:$0xff]
    %v4252 = vld [vmem:[%s55 + $0x60] sm:$0xff]
    %v4253 = vld [vmem:[%s55 + $0x68] sm:$0xff]
    %v4254 = vld [vmem:[%s55 + $0x70] sm:$0xff]
    %v4255 = vld [vmem:[%s55 + $0x78] sm:$0xff]
    %v4256 = vld [vmem:[%s55 + $0x80] sm:$0xff]
    %v4257 = vld [vmem:[%s55 + $0x88] sm:$0xff]
    %v4258 = vld [vmem:[%s55 + $0x90] sm:$0xff]
    %v4259 = vld [vmem:[%s55 + $0x98] sm:$0xff]
    %v4260 = vld [vmem:[%s55 + $0xa0] sm:$0xff]
    %v4261 = vld [vmem:[%s55 + $0xa8] sm:$0xff]
    %v4262 = vld [vmem:[%s55 + $0xb0] sm:$0xff]
    %v4263 = vld [vmem:[%s55 + $0xb8] sm:$0xff]
    %v4264 = vld [vmem:[%s55 + $0xc0] sm:$0xff]
    %v4265 = vld [vmem:[%s55 + $0xc8] sm:$0xff]
    %v4266 = vld [vmem:[%s55 + $0xd0] sm:$0xff]
    %v4267 = vld [vmem:[%s55 + $0xd8] sm:$0xff]
    %v4268 = vld [vmem:[%s55 + $0xe0] sm:$0xff]
    %v4269 = vld [vmem:[%s55 + $0xe8] sm:$0xff]
    %v4270 = vld [vmem:[%s55 + $0xf0] sm:$0xff]
    %v4271 = vld [vmem:[%s55 + $0xf8] sm:$0xff]
    %v4272 = vld [vmem:[%s55 + $0x100] sm:$0xff]
    %v4273 = vld [vmem:[%s55 + $0x108] sm:$0xff]
    %v4274 = vld [vmem:[%s55 + $0x110] sm:$0xff]
    %v4275 = vld [vmem:[%s55 + $0x118] sm:$0xff]
    %v4276 = vld [vmem:[%s55 + $0x120] sm:$0xff]
    %v4277 = vld [vmem:[%s55 + $0x128] sm:$0xff]
    %v4278 = vld [vmem:[%s55 + $0x130] sm:$0xff]
    %v4279 = vld [vmem:[%s55 + $0x138] sm:$0xff]
    %v4280 = vld [vmem:[%s55 + $0x140] sm:$0xff]
    %v4281 = vld [vmem:[%s55 + $0x148] sm:$0xff]
    %v4282 = vld [vmem:[%s55 + $0x150] sm:$0xff]
    %v4283 = vld [vmem:[%s55 + $0x158] sm:$0xff]
    %v4284 = vld [vmem:[%s55 + $0x160] sm:$0xff]
    %v4285 = vld [vmem:[%s55 + $0x168] sm:$0xff]
    %v4286 = vld [vmem:[%s55 + $0x170] sm:$0xff]
    %v4287 = vld [vmem:[%s55 + $0x178] sm:$0xff]
    %v4336 = vunpack.c.l.b16 %v4240
    %v4337 = vunpack.c.h.b16 %v4240
    %v4338 = vunpack.c.l.b16 %v4241
    %v4339 = vunpack.c.h.b16 %v4241
    %v4340 = vunpack.c.l.b16 %v4242
    %v4341 = vunpack.c.h.b16 %v4242
    %v4342 = vunpack.c.l.b16 %v4243
    %v4343 = vunpack.c.h.b16 %v4243
    %v4344 = vunpack.c.l.b16 %v4244
    %v4345 = vunpack.c.h.b16 %v4244
    %v4346 = vunpack.c.l.b16 %v4245
    %v4347 = vunpack.c.h.b16 %v4245
    %v4348 = vunpack.c.l.b16 %v4246
    %v4349 = vunpack.c.h.b16 %v4246
    %v4350 = vunpack.c.l.b16 %v4247
    %v4351 = vunpack.c.h.b16 %v4247
    %v4352 = vunpack.c.l.b16 %v4248
    %v4353 = vunpack.c.h.b16 %v4248
    %v4354 = vunpack.c.l.b16 %v4249
    %v4355 = vunpack.c.h.b16 %v4249
    %v4356 = vunpack.c.l.b16 %v4250
    %v4357 = vunpack.c.h.b16 %v4250
    %v4358 = vunpack.c.l.b16 %v4251
    %v4359 = vunpack.c.h.b16 %v4251
    %v4360 = vunpack.c.l.b16 %v4252
    %v4361 = vunpack.c.h.b16 %v4252
    %v4362 = vunpack.c.l.b16 %v4253
    %v4363 = vunpack.c.h.b16 %v4253
    %v4364 = vunpack.c.l.b16 %v4254
    %v4365 = vunpack.c.h.b16 %v4254
    %v4366 = vunpack.c.l.b16 %v4255
    %v4367 = vunpack.c.h.b16 %v4255
    %v4368 = vunpack.c.l.b16 %v4256
    %v4369 = vunpack.c.h.b16 %v4256
    %v4370 = vunpack.c.l.b16 %v4257
    %v4371 = vunpack.c.h.b16 %v4257
    %v4372 = vunpack.c.l.b16 %v4258
    %v4373 = vunpack.c.h.b16 %v4258
    %v4374 = vunpack.c.l.b16 %v4259
    %v4375 = vunpack.c.h.b16 %v4259
    %v4376 = vunpack.c.l.b16 %v4260
    %v4377 = vunpack.c.h.b16 %v4260
    %v4378 = vunpack.c.l.b16 %v4261
    %v4379 = vunpack.c.h.b16 %v4261
    %v4380 = vunpack.c.l.b16 %v4262
    %v4381 = vunpack.c.h.b16 %v4262
    %v4382 = vunpack.c.l.b16 %v4263
    %v4383 = vunpack.c.h.b16 %v4263
    %v4384 = vunpack.c.l.b16 %v4264
    %v4385 = vunpack.c.h.b16 %v4264
    %v4386 = vunpack.c.l.b16 %v4265
    %v4387 = vunpack.c.h.b16 %v4265
    %v4388 = vunpack.c.l.b16 %v4266
    %v4389 = vunpack.c.h.b16 %v4266
    %v4390 = vunpack.c.l.b16 %v4267
    %v4391 = vunpack.c.h.b16 %v4267
    %v4392 = vunpack.c.l.b16 %v4268
    %v4393 = vunpack.c.h.b16 %v4268
    %v4394 = vunpack.c.l.b16 %v4269
    %v4395 = vunpack.c.h.b16 %v4269
    %v4396 = vunpack.c.l.b16 %v4270
    %v4397 = vunpack.c.h.b16 %v4270
    %v4398 = vunpack.c.l.b16 %v4271
    %v4399 = vunpack.c.h.b16 %v4271
    %v4400 = vunpack.c.l.b16 %v4272
    %v4401 = vunpack.c.h.b16 %v4272
    %v4402 = vunpack.c.l.b16 %v4273
    %v4403 = vunpack.c.h.b16 %v4273
    %v4404 = vunpack.c.l.b16 %v4274
    %v4405 = vunpack.c.h.b16 %v4274
    %v4406 = vunpack.c.l.b16 %v4275
    %v4407 = vunpack.c.h.b16 %v4275
    %v4408 = vunpack.c.l.b16 %v4276
    %v4409 = vunpack.c.h.b16 %v4276
    %v4410 = vunpack.c.l.b16 %v4277
    %v4411 = vunpack.c.h.b16 %v4277
    %v4412 = vunpack.c.l.b16 %v4278
    %v4413 = vunpack.c.h.b16 %v4278
    %v4414 = vunpack.c.l.b16 %v4279
    %v4415 = vunpack.c.h.b16 %v4279
    %v4416 = vunpack.c.l.b16 %v4280
    %v4417 = vunpack.c.h.b16 %v4280
    %v4418 = vunpack.c.l.b16 %v4281
    %v4419 = vunpack.c.h.b16 %v4281
    %v4420 = vunpack.c.l.b16 %v4282
    %v4421 = vunpack.c.h.b16 %v4282
    %v4422 = vunpack.c.l.b16 %v4283
    %v4423 = vunpack.c.h.b16 %v4283
    %v4424 = vunpack.c.l.b16 %v4284
    %v4425 = vunpack.c.h.b16 %v4284
    %v4426 = vunpack.c.l.b16 %v4285
    %v4427 = vunpack.c.h.b16 %v4285
    %v4428 = vunpack.c.l.b16 %v4286
    %v4429 = vunpack.c.h.b16 %v4286
    %v4430 = vunpack.c.l.b16 %v4287
    %v4431 = vunpack.c.h.b16 %v4287
    %v4432 = vpack.c.b16 %v4342, %v4336
    %v4433 = vpack.c.b16 %v4343, %v4337
    %v4434 = vpack.c.b16 %v4344, %v4338
    %v4435 = vpack.c.b16 %v4345, %v4339
    %v4436 = vpack.c.b16 %v4346, %v4340
    %v4437 = vpack.c.b16 %v4347, %v4341
    %v4438 = vpack.c.b16 %v4354, %v4348
    %v4439 = vpack.c.b16 %v4355, %v4349
    %v4440 = vpack.c.b16 %v4356, %v4350
    %v4441 = vpack.c.b16 %v4357, %v4351
    %v4442 = vpack.c.b16 %v4358, %v4352
    %v4443 = vpack.c.b16 %v4359, %v4353
    %v4444 = vpack.c.b16 %v4366, %v4360
    %v4445 = vpack.c.b16 %v4367, %v4361
    %v4446 = vpack.c.b16 %v4368, %v4362
    %v4447 = vpack.c.b16 %v4369, %v4363
    %v4448 = vpack.c.b16 %v4370, %v4364
    %v4449 = vpack.c.b16 %v4371, %v4365
    %v4450 = vpack.c.b16 %v4378, %v4372
    %v4451 = vpack.c.b16 %v4379, %v4373
    %v4452 = vpack.c.b16 %v4380, %v4374
    %v4453 = vpack.c.b16 %v4381, %v4375
    %v4454 = vpack.c.b16 %v4382, %v4376
    %v4455 = vpack.c.b16 %v4383, %v4377
    %v4456 = vpack.c.b16 %v4390, %v4384
    %v4457 = vpack.c.b16 %v4391, %v4385
    %v4458 = vpack.c.b16 %v4392, %v4386
    %v4459 = vpack.c.b16 %v4393, %v4387
    %v4460 = vpack.c.b16 %v4394, %v4388
    %v4461 = vpack.c.b16 %v4395, %v4389
    %v4462 = vpack.c.b16 %v4402, %v4396
    %v4463 = vpack.c.b16 %v4403, %v4397
    %v4464 = vpack.c.b16 %v4404, %v4398
    %v4465 = vpack.c.b16 %v4405, %v4399
    %v4466 = vpack.c.b16 %v4406, %v4400
    %v4467 = vpack.c.b16 %v4407, %v4401
    %v4468 = vpack.c.b16 %v4414, %v4408
    %v4469 = vpack.c.b16 %v4415, %v4409
    %v4470 = vpack.c.b16 %v4416, %v4410
    %v4471 = vpack.c.b16 %v4417, %v4411
    %v4472 = vpack.c.b16 %v4418, %v4412
    %v4473 = vpack.c.b16 %v4419, %v4413
    %v4474 = vpack.c.b16 %v4426, %v4420
    %v4475 = vpack.c.b16 %v4427, %v4421
    %v4476 = vpack.c.b16 %v4428, %v4422
    %v4477 = vpack.c.b16 %v4429, %v4423
    %v4478 = vpack.c.b16 %v4430, %v4424
    %v4479 = vpack.c.b16 %v4431, %v4425
    %4528 = vmatprep.subr.bf16.mxu0 %v4475
    %4529 = vmatpush1.bf16.msra.mxu0 %v4474
    %4530 = vmatprep.subr.bf16.mxu0 %v4469
    %4531 = vmatpush1.bf16.msra.mxu0 %v4468
    %4532 = vmatprep.subr.bf16.mxu0 %v4463
    %4533 = vmatpush1.bf16.msra.mxu0 %v4462
    %4534 = vmatprep.subr.bf16.mxu0 %v4457
    %4535 = vmatpush1.bf16.msra.mxu0 %v4456
    %4536 = vmatprep.subr.bf16.mxu0 %v4451
    %4537 = vmatpush1.bf16.msra.mxu0 %v4450
    %4538 = vmatprep.subr.bf16.mxu0 %v4445
    %4539 = vmatpush1.bf16.msra.mxu0 %v4444
    %4540 = vmatprep.subr.bf16.mxu0 %v4439
    %4541 = vmatpush1.bf16.msra.mxu0 %v4438
    %4542 = vmatprep.subr.bf16.mxu0 %v4433
    %4543 = vmatpush1.bf16.msra.mxu0 %v4432
    %4544 = vmatprep.subr.bf16.mxu0 0
    %4545 = vmatpush2.bf16.msra.mxu0 0
    %4546 = vmatprep.subr.bf16.mxu0 0
    %4547 = vmatpush2.bf16.msra.mxu0 0
    %4548 = vmatprep.subr.bf16.mxu0 0
    %4549 = vmatpush2.bf16.msra.mxu0 0
    %4550 = vmatprep.subr.bf16.mxu0 0
    %4551 = vmatpush2.bf16.msra.mxu0 0
    %4552 = vmatprep.subr.bf16.mxu0 0
    %4553 = vmatpush2.bf16.msra.mxu0 0
    %4554 = vmatprep.subr.bf16.mxu0 0
    %4555 = vmatpush2.bf16.msra.mxu0 0
    %4556 = vmatprep.subr.bf16.mxu0 0
    %4557 = vmatpush2.bf16.msra.mxu0 0
    %4558 = vmatprep.subr.bf16.mxu0 0
    %4559 = vmatpush2.bf16.msra.mxu0 0
    %4560 = vmatprep.mubr.bf16.mxu0 0
    %4561 = vmatmul.mubr.bf16.gmra.mxu0 %v4236
    %v4562 = vpop.f32.mrf.mxu0
    %v4563 = vadd.f32 0.0, %v4562
    %v4564 = vpop.f32.mrf.mxu0
    %v4565 = vadd.f32 0.0, %v4564
    %v4566 = vpop.f32.mrf.mxu0
    %v4567 = vadd.f32 0.0, %v4566
    %v4568 = vpop.f32.mrf.mxu0
    %v4569 = vadd.f32 0.0, %v4568
    %4570 = vmatprep.mubr.bf16.mxu0 0
    %4571 = vmatmul.mubr.bf16.gmra.mxu0 %v4237
    %v4572 = vpop.f32.mrf.mxu0
    %v4573 = vadd.f32 0.0, %v4572
    %v4574 = vpop.f32.mrf.mxu0
    %v4575 = vadd.f32 0.0, %v4574
    %v4576 = vpop.f32.mrf.mxu0
    %v4577 = vadd.f32 0.0, %v4576
    %v4578 = vpop.f32.mrf.mxu0
    %v4579 = vadd.f32 0.0, %v4578
    %4580 = vmatprep.mubr.bf16.mxu0 0
    %4581 = vmatmul.mubr.bf16.gmra.mxu0 %v4238
    %v4582 = vpop.f32.mrf.mxu0
    %v4583 = vadd.f32 0.0, %v4582
    %v4584 = vpop.f32.mrf.mxu0
    %v4585 = vadd.f32 0.0, %v4584
    %v4586 = vpop.f32.mrf.mxu0
    %v4587 = vadd.f32 0.0, %v4586
    %v4588 = vpop.f32.mrf.mxu0
    %v4589 = vadd.f32 0.0, %v4588
    %4590 = vmatprep.mubr.bf16.mxu0 0
    %4591 = vmatmul.mubr.bf16.gmra.mxu0 %v4239
    %v4592 = vpop.f32.mrf.mxu0
    %v4593 = vadd.f32 0.0, %v4592
    %v4594 = vpop.f32.mrf.mxu0
    %v4595 = vadd.f32 0.0, %v4594
    %v4596 = vpop.f32.mrf.mxu0
    %v4597 = vadd.f32 0.0, %v4596
    %v4598 = vpop.f32.mrf.mxu0
    %v4599 = vadd.f32 0.0, %v4598
    %4600 = vdwg.mxu0
    %4601 = vmatprep.subr.bf16.mxu0 %v4477
    %4602 = vmatpush1.bf16.msra.mxu0 %v4476
    %4603 = vmatprep.subr.bf16.mxu0 %v4471
    %4604 = vmatpush1.bf16.msra.mxu0 %v4470
    %4605 = vmatprep.subr.bf16.mxu0 %v4465
    %4606 = vmatpush1.bf16.msra.mxu0 %v4464
    %4607 = vmatprep.subr.bf16.mxu0 %v4459
    %4608 = vmatpush1.bf16.msra.mxu0 %v4458
    %4609 = vmatprep.subr.bf16.mxu0 %v4453
    %4610 = vmatpush1.bf16.msra.mxu0 %v4452
    %4611 = vmatprep.subr.bf16.mxu0 %v4447
    %4612 = vmatpush1.bf16.msra.mxu0 %v4446
    %4613 = vmatprep.subr.bf16.mxu0 %v4441
    %4614 = vmatpush1.bf16.msra.mxu0 %v4440
    %4615 = vmatprep.subr.bf16.mxu0 %v4435
    %4616 = vmatpush1.bf16.msra.mxu0 %v4434
    %4617 = vmatprep.subr.bf16.mxu0 0
    %4618 = vmatpush2.bf16.msra.mxu0 0
    %4619 = vmatprep.subr.bf16.mxu0 0
    %4620 = vmatpush2.bf16.msra.mxu0 0
    %4621 = vmatprep.subr.bf16.mxu0 0
    %4622 = vmatpush2.bf16.msra.mxu0 0
    %4623 = vmatprep.subr.bf16.mxu0 0
    %4624 = vmatpush2.bf16.msra.mxu0 0
    %4625 = vmatprep.subr.bf16.mxu0 0
    %4626 = vmatpush2.bf16.msra.mxu0 0
    %4627 = vmatprep.subr.bf16.mxu0 0
    %4628 = vmatpush2.bf16.msra.mxu0 0
    %4629 = vmatprep.subr.bf16.mxu0 0
    %4630 = vmatpush2.bf16.msra.mxu0 0
    %4631 = vmatprep.subr.bf16.mxu0 0
    %4632 = vmatpush2.bf16.msra.mxu0 0
    %4633 = vmatprep.mubr.bf16.mxu0 0
    %4634 = vmatmul.mubr.bf16.gmra.mxu0 %v4236
    %v4635 = vpop.f32.mrf.mxu0
    %v4636 = vadd.f32 0.0, %v4635
    %v4637 = vpop.f32.mrf.mxu0
    %v4638 = vadd.f32 0.0, %v4637
    %v4639 = vpop.f32.mrf.mxu0
    %v4640 = vadd.f32 0.0, %v4639
    %v4641 = vpop.f32.mrf.mxu0
    %v4642 = vadd.f32 0.0, %v4641
    %4643 = vmatprep.mubr.bf16.mxu0 0
    %4644 = vmatmul.mubr.bf16.gmra.mxu0 %v4237
    %v4645 = vpop.f32.mrf.mxu0
    %v4646 = vadd.f32 0.0, %v4645
    %v4647 = vpop.f32.mrf.mxu0
    %v4648 = vadd.f32 0.0, %v4647
    %v4649 = vpop.f32.mrf.mxu0
    %v4650 = vadd.f32 0.0, %v4649
    %v4651 = vpop.f32.mrf.mxu0
    %v4652 = vadd.f32 0.0, %v4651
    %4653 = vmatprep.mubr.bf16.mxu0 0
    %4654 = vmatmul.mubr.bf16.gmra.mxu0 %v4238
    %v4655 = vpop.f32.mrf.mxu0
    %v4656 = vadd.f32 0.0, %v4655
    %v4657 = vpop.f32.mrf.mxu0
    %v4658 = vadd.f32 0.0, %v4657
    %v4659 = vpop.f32.mrf.mxu0
    %v4660 = vadd.f32 0.0, %v4659
    %v4661 = vpop.f32.mrf.mxu0
    %v4662 = vadd.f32 0.0, %v4661
    %4663 = vmatprep.mubr.bf16.mxu0 0
    %4664 = vmatmul.mubr.bf16.gmra.mxu0 %v4239
    %v4665 = vpop.f32.mrf.mxu0
    %v4666 = vadd.f32 0.0, %v4665
    %v4667 = vpop.f32.mrf.mxu0
    %v4668 = vadd.f32 0.0, %v4667
    %v4669 = vpop.f32.mrf.mxu0
    %v4670 = vadd.f32 0.0, %v4669
    %v4671 = vpop.f32.mrf.mxu0
    %v4672 = vadd.f32 0.0, %v4671
    %4673 = vdwg.mxu0
    %4674 = vmatprep.subr.bf16.mxu0 %v4479
    %4675 = vmatpush1.bf16.msra.mxu0 %v4478
    %4676 = vmatprep.subr.bf16.mxu0 %v4473
    %4677 = vmatpush1.bf16.msra.mxu0 %v4472
    %4678 = vmatprep.subr.bf16.mxu0 %v4467
    %4679 = vmatpush1.bf16.msra.mxu0 %v4466
    %4680 = vmatprep.subr.bf16.mxu0 %v4461
    %4681 = vmatpush1.bf16.msra.mxu0 %v4460
    %4682 = vmatprep.subr.bf16.mxu0 %v4455
    %4683 = vmatpush1.bf16.msra.mxu0 %v4454
    %4684 = vmatprep.subr.bf16.mxu0 %v4449
    %4685 = vmatpush1.bf16.msra.mxu0 %v4448
    %4686 = vmatprep.subr.bf16.mxu0 %v4443
    %4687 = vmatpush1.bf16.msra.mxu0 %v4442
    %4688 = vmatprep.subr.bf16.mxu0 %v4437
    %4689 = vmatpush1.bf16.msra.mxu0 %v4436
    %4690 = vmatprep.subr.bf16.mxu0 0
    %4691 = vmatpush2.bf16.msra.mxu0 0
    %4692 = vmatprep.subr.bf16.mxu0 0
    %4693 = vmatpush2.bf16.msra.mxu0 0
    %4694 = vmatprep.subr.bf16.mxu0 0
    %4695 = vmatpush2.bf16.msra.mxu0 0
    %4696 = vmatprep.subr.bf16.mxu0 0
    %4697 = vmatpush2.bf16.msra.mxu0 0
    %4698 = vmatprep.subr.bf16.mxu0 0
    %4699 = vmatpush2.bf16.msra.mxu0 0
    %4700 = vmatprep.subr.bf16.mxu0 0
    %4701 = vmatpush2.bf16.msra.mxu0 0
    %4702 = vmatprep.subr.bf16.mxu0 0
    %4703 = vmatpush2.bf16.msra.mxu0 0
    %4704 = vmatprep.subr.bf16.mxu0 0
    %4705 = vmatpush2.bf16.msra.mxu0 0
    %4706 = vmatprep.mubr.bf16.mxu0 0
    %4707 = vmatmul.mubr.bf16.gmra.mxu0 %v4236
    %v4708 = vpop.f32.mrf.mxu0
    %v4709 = vadd.f32 0.0, %v4708
    %v4710 = vpop.f32.mrf.mxu0
    %v4711 = vadd.f32 0.0, %v4710
    %v4712 = vpop.f32.mrf.mxu0
    %v4713 = vadd.f32 0.0, %v4712
    %v4714 = vpop.f32.mrf.mxu0
    %v4715 = vadd.f32 0.0, %v4714
    %4716 = vmatprep.mubr.bf16.mxu0 0
    %4717 = vmatmul.mubr.bf16.gmra.mxu0 %v4237
    %v4718 = vpop.f32.mrf.mxu0
    %v4719 = vadd.f32 0.0, %v4718
    %v4720 = vpop.f32.mrf.mxu0
    %v4721 = vadd.f32 0.0, %v4720
    %v4722 = vpop.f32.mrf.mxu0
    %v4723 = vadd.f32 0.0, %v4722
    %v4724 = vpop.f32.mrf.mxu0
    %v4725 = vadd.f32 0.0, %v4724
    %4726 = vmatprep.mubr.bf16.mxu0 0
    %4727 = vmatmul.mubr.bf16.gmra.mxu0 %v4238
    %v4728 = vpop.f32.mrf.mxu0
    %v4729 = vadd.f32 0.0, %v4728
    %v4730 = vpop.f32.mrf.mxu0
    %v4731 = vadd.f32 0.0, %v4730
    %v4732 = vpop.f32.mrf.mxu0
    %v4733 = vadd.f32 0.0, %v4732
    %v4734 = vpop.f32.mrf.mxu0
    %v4735 = vadd.f32 0.0, %v4734
    %4736 = vmatprep.mubr.bf16.mxu0 0
    %4737 = vmatmul.mubr.bf16.gmra.mxu0 %v4239
    %v4738 = vpop.f32.mrf.mxu0
    %v4739 = vadd.f32 0.0, %v4738
    %v4740 = vpop.f32.mrf.mxu0
    %v4741 = vadd.f32 0.0, %v4740
    %v4742 = vpop.f32.mrf.mxu0
    %v4743 = vadd.f32 0.0, %v4742
    %v4744 = vpop.f32.mrf.mxu0
    %v4745 = vadd.f32 0.0, %v4744
    %4746 = vdwg.mxu0
    %v4747 = vld [vmem:[%s57] sm:$0xf]
    %v4748 = vld [vmem:[%s57 + $0x4] sm:$0xf]
    %v4749 = vld [vmem:[%s57 + $0x8] sm:$0xf]
    %v4750 = vld [vmem:[%s57 + $0xc] sm:$0xf]
    %v4751 = vld [vmem:[%s57 + $0x10] sm:$0xf]
    %v4752 = vld [vmem:[%s57 + $0x14] sm:$0xf]
    %v4753 = vld [vmem:[%s57 + $0x18] sm:$0xf]
    %v4754 = vld [vmem:[%s57 + $0x1c] sm:$0xf]
    %v4755 = vld [vmem:[%s57 + $0x20] sm:$0xf]
    %v4756 = vld [vmem:[%s57 + $0x24] sm:$0xf]
    %v4757 = vld [vmem:[%s57 + $0x28] sm:$0xf]
    %v4758 = vld [vmem:[%s57 + $0x2c] sm:$0xf]
    %v4759 = vld [vmem:[%s57 + $0x30] sm:$0xf]
    %v4760 = vld [vmem:[%s57 + $0x34] sm:$0xf]
    %v4761 = vld [vmem:[%s57 + $0x38] sm:$0xf]
    %v4762 = vld [vmem:[%s57 + $0x3c] sm:$0xf]
    %v4763 = vld [vmem:[%s57 + $0x40] sm:$0xf]
    %v4764 = vld [vmem:[%s57 + $0x44] sm:$0xf]
    %v4765 = vld [vmem:[%s57 + $0x48] sm:$0xf]
    %v4766 = vld [vmem:[%s57 + $0x4c] sm:$0xf]
    %v4767 = vld [vmem:[%s57 + $0x50] sm:$0xf]
    %v4768 = vld [vmem:[%s57 + $0x54] sm:$0xf]
    %v4769 = vld [vmem:[%s57 + $0x58] sm:$0xf]
    %v4770 = vld [vmem:[%s57 + $0x5c] sm:$0xf]
    %v4771 = vld [vmem:[%s57 + $0x60] sm:$0xf]
    %v4772 = vld [vmem:[%s57 + $0x64] sm:$0xf]
    %v4773 = vld [vmem:[%s57 + $0x68] sm:$0xf]
    %v4774 = vld [vmem:[%s57 + $0x6c] sm:$0xf]
    %v4775 = vld [vmem:[%s57 + $0x70] sm:$0xf]
    %v4776 = vld [vmem:[%s57 + $0x74] sm:$0xf]
    %v4777 = vld [vmem:[%s57 + $0x78] sm:$0xf]
    %v4778 = vld [vmem:[%s57 + $0x7c] sm:$0xf]
    %v4779 = vpack.c.bf16 %v4567, %v4563
    %v4780 = vpack.c.bf16 %v4577, %v4573
    %v4781 = vpack.c.bf16 %v4587, %v4583
    %v4782 = vpack.c.bf16 %v4597, %v4593
    %v4783 = vpack.c.bf16 %v4640, %v4636
    %v4784 = vpack.c.bf16 %v4650, %v4646
    %v4785 = vpack.c.bf16 %v4660, %v4656
    %v4786 = vpack.c.bf16 %v4670, %v4666
    %v4787 = vpack.c.bf16 %v4713, %v4709
    %v4788 = vpack.c.bf16 %v4723, %v4719
    %v4789 = vpack.c.bf16 %v4733, %v4729
    %v4790 = vpack.c.bf16 %v4743, %v4739
    %v4792 = vsel %vm605, %v4779, 0
    %v4795 = vsel %vm605, %v4780, 0
    %v4798 = vsel %vm605, %v4781, 0
    %v4801 = vsel %vm605, %v4782, 0
    %v4804 = vsel %vm605, %v4783, 0
    %v4807 = vsel %vm605, %v4784, 0
    %v4810 = vsel %vm605, %v4785, 0
    %v4813 = vsel %vm605, %v4786, 0
    %4815 = vmatprep.subr.bf16.mxu0 0
    %4816 = vmatpush1.bf16.xpose.msra.mxu0 0
    %4817 = vmatprep.subr.bf16.mxu0 0
    %4818 = vmatpush1.bf16.xpose.msra.mxu0 0
    %4819 = vmatprep.subr.bf16.mxu0 0
    %4820 = vmatpush1.bf16.xpose.msra.mxu0 0
    %4821 = vmatprep.subr.bf16.mxu0 0
    %4822 = vmatpush1.bf16.xpose.msra.mxu0 0
    %4823 = vmatprep.subr.bf16.mxu0 0
    %4824 = vmatpush1.bf16.xpose.msra.mxu0 %v4813
    %4825 = vmatprep.subr.bf16.mxu0 0
    %4826 = vmatpush1.bf16.xpose.msra.mxu0 %v4810
    %4827 = vmatprep.subr.bf16.mxu0 0
    %4828 = vmatpush1.bf16.xpose.msra.mxu0 %v4807
    %4829 = vmatprep.subr.bf16.mxu0 0
    %4830 = vmatpush1.bf16.xpose.msra.mxu0 %v4804
    %4831 = vmatprep.subr.bf16.mxu0 0
    %4832 = vmatpush2.bf16.xpose.msra.mxu0 0
    %4833 = vmatprep.subr.bf16.mxu0 0
    %4834 = vmatpush2.bf16.xpose.msra.mxu0 0
    %4835 = vmatprep.subr.bf16.mxu0 0
    %4836 = vmatpush2.bf16.xpose.msra.mxu0 0
    %4837 = vmatprep.subr.bf16.mxu0 0
    %4838 = vmatpush2.bf16.xpose.msra.mxu0 0
    %4839 = vmatprep.subr.bf16.mxu0 0
    %4840 = vmatpush2.bf16.xpose.msra.mxu0 0
    %4841 = vmatprep.subr.bf16.mxu0 0
    %4842 = vmatpush2.bf16.xpose.msra.mxu0 0
    %4843 = vmatprep.subr.bf16.mxu0 0
    %4844 = vmatpush2.bf16.xpose.msra.mxu0 0
    %4845 = vmatprep.subr.bf16.mxu0 0
    %4846 = vmatpush2.bf16.xpose.msra.mxu0 0
    %4847 = vmatprep.mubr.bf16.mxu0 0
    %4848 = vmatmul.mubr.bf16.gmra.mxu0 %v4792
    %v4849 = vpop.f32.mrf.mxu0
    %v4850 = vadd.f32 0.0, %v4849
    %v4851 = vpop.f32.mrf.mxu0
    %v4852 = vpop.f32.mrf.mxu0
    %v4853 = vadd.f32 0.0, %v4852
    %v4854 = vpop.f32.mrf.mxu0
    %4855 = vmatprep.mubr.bf16.mxu0 0
    %4856 = vmatmul.mubr.bf16.gmra.mxu0 %v4795
    %v4857 = vpop.f32.mrf.mxu0
    %v4858 = vadd.f32 0.0, %v4857
    %v4859 = vpop.f32.mrf.mxu0
    %v4860 = vpop.f32.mrf.mxu0
    %v4861 = vadd.f32 0.0, %v4860
    %v4862 = vpop.f32.mrf.mxu0
    %4863 = vmatprep.mubr.bf16.mxu0 0
    %4864 = vmatmul.mubr.bf16.gmra.mxu0 %v4798
    %v4865 = vpop.f32.mrf.mxu0
    %v4866 = vadd.f32 0.0, %v4865
    %v4867 = vpop.f32.mrf.mxu0
    %v4868 = vpop.f32.mrf.mxu0
    %v4869 = vadd.f32 0.0, %v4868
    %v4870 = vpop.f32.mrf.mxu0
    %4871 = vmatprep.mubr.bf16.mxu0 0
    %4872 = vmatmul.mubr.bf16.gmra.mxu0 %v4801
    %v4873 = vpop.f32.mrf.mxu0
    %v4874 = vadd.f32 0.0, %v4873
    %v4875 = vpop.f32.mrf.mxu0
    %v4876 = vpop.f32.mrf.mxu0
    %v4877 = vadd.f32 0.0, %v4876
    %v4878 = vpop.f32.mrf.mxu0
    %4879 = vdwg.mxu0
    %v4880 = vmul.f32 %v4850, 0.17677669
    %v4881 = vmul.f32 %v4853, 0.17677669
    %v4882 = vmul.f32 %v4858, 0.17677669
    %v4883 = vmul.f32 %v4861, 0.17677669
    %v4884 = vmul.f32 %v4866, 0.17677669
    %v4885 = vmul.f32 %v4869, 0.17677669
    %v4886 = vmul.f32 %v4874, 0.17677669
    %v4887 = vmul.f32 %v4877, 0.17677669
    %v4888 = vadd.f32 %v4880, %v4109
    %v4889 = vadd.f32 %v4881, %v4110
    %v4890 = vadd.f32 %v4882, %v4111
    %v4891 = vadd.f32 %v4883, %v4112
    %v4892 = vadd.f32 %v4884, %v4113
    %v4893 = vadd.f32 %v4885, %v4114
    %v4894 = vadd.f32 %v4886, %v4115
    %v4895 = vadd.f32 %v4887, %v4116
    %v4896 = vsel %vm605, %v4888, -inf
    %4897 = vmax.xlane.f32.xlu0 %v4896
    %v4898 = vpop.xlane.xlu0 %4897
    %v4899 = vsel %vm605, %v4889, -inf
    %4900 = vmax.xlane.f32.xlu0 %v4899
    %v4901 = vpop.xlane.xlu0 %4900
    %v4902 = vsel %vm605, %v4890, -inf
    %4903 = vmax.xlane.f32.xlu0 %v4902
    %v4904 = vpop.xlane.xlu0 %4903
    %v4905 = vsel %vm605, %v4891, -inf
    %4906 = vmax.xlane.f32.xlu0 %v4905
    %v4907 = vpop.xlane.xlu0 %4906
    %v4908 = vsel %vm605, %v4892, -inf
    %4909 = vmax.xlane.f32.xlu0 %v4908
    %v4910 = vpop.xlane.xlu0 %4909
    %v4911 = vsel %vm605, %v4893, -inf
    %4912 = vmax.xlane.f32.xlu0 %v4911
    %v4913 = vpop.xlane.xlu0 %4912
    %v4914 = vsel %vm605, %v4894, -inf
    %4915 = vmax.xlane.f32.xlu0 %v4914
    %v4916 = vpop.xlane.xlu0 %4915
    %v4917 = vsel %vm605, %v4895, -inf
    %4918 = vmax.xlane.f32.xlu0 %v4917
    %v4919 = vpop.xlane.xlu0 %4918
    %v4920 = vsub.f32 %v4888, %v4898
    %v4921 = vsub.f32 %v4889, %v4901
    %v4922 = vsub.f32 %v4890, %v4904
    %v4923 = vsub.f32 %v4891, %v4907
    %v4924 = vsub.f32 %v4892, %v4910
    %v4925 = vsub.f32 %v4893, %v4913
    %v4926 = vsub.f32 %v4894, %v4916
    %v4927 = vsub.f32 %v4895, %v4919
    %v4928 = vmul.f32 %v4920, 1.442695
    %v4929 = vpow.pop %v4928
    %v4930 = vmul.f32 %v4921, 1.442695
    %v4931 = vpow.pop %v4930
    %v4932 = vmul.f32 %v4922, 1.442695
    %v4933 = vpow.pop %v4932
    %v4934 = vmul.f32 %v4923, 1.442695
    %v4935 = vpow.pop %v4934
    %v4936 = vmul.f32 %v4924, 1.442695
    %v4937 = vpow.pop %v4936
    %v4938 = vmul.f32 %v4925, 1.442695
    %v4939 = vpow.pop %v4938
    %v4940 = vmul.f32 %v4926, 1.442695
    %v4941 = vpow.pop %v4940
    %v4942 = vmul.f32 %v4927, 1.442695
    %v4943 = vpow.pop %v4942
    %v4944 = vsel %vm605, %v4929, 0.0
    %4945 = vadd.xlane.f32.xlu0 %v4944
    %v4946 = vpop.xlane.xlu0 %4945
    %v4947 = vsel %vm605, %v4931, 0.0
    %4948 = vadd.xlane.f32.xlu0 %v4947
    %v4949 = vpop.xlane.xlu0 %4948
    %v4950 = vsel %vm605, %v4933, 0.0
    %4951 = vadd.xlane.f32.xlu0 %v4950
    %v4952 = vpop.xlane.xlu0 %4951
    %v4953 = vsel %vm605, %v4935, 0.0
    %4954 = vadd.xlane.f32.xlu0 %v4953
    %v4955 = vpop.xlane.xlu0 %4954
    %v4956 = vsel %vm605, %v4937, 0.0
    %4957 = vadd.xlane.f32.xlu0 %v4956
    %v4958 = vpop.xlane.xlu0 %4957
    %v4959 = vsel %vm605, %v4939, 0.0
    %4960 = vadd.xlane.f32.xlu0 %v4959
    %v4961 = vpop.xlane.xlu0 %4960
    %v4962 = vsel %vm605, %v4941, 0.0
    %4963 = vadd.xlane.f32.xlu0 %v4962
    %v4964 = vpop.xlane.xlu0 %4963
    %v4965 = vsel %vm605, %v4943, 0.0
    %4966 = vadd.xlane.f32.xlu0 %v4965
    %v4967 = vpop.xlane.xlu0 %4966
    %v4968 = vrcp.pop %v4946
    %v4969 = vrcp.pop %v4949
    %v4970 = vrcp.pop %v4952
    %v4971 = vrcp.pop %v4955
    %v4972 = vrcp.pop %v4958
    %v4973 = vrcp.pop %v4961
    %v4974 = vrcp.pop %v4964
    %v4975 = vrcp.pop %v4967
    %v4976 = vmul.f32 %v4929, %v4968
    %v4977 = vmul.f32 %v4931, %v4969
    %v4978 = vmul.f32 %v4933, %v4970
    %v4979 = vmul.f32 %v4935, %v4971
    %v4980 = vmul.f32 %v4937, %v4972
    %v4981 = vmul.f32 %v4939, %v4973
    %v4982 = vmul.f32 %v4941, %v4974
    %v4983 = vmul.f32 %v4943, %v4975
    %v4984 = vpack.c.bf16 %v4977, %v4976
    %v4985 = vpack.c.bf16 %v4979, %v4978
    %v4986 = vpack.c.bf16 %v4981, %v4980
    %v4987 = vpack.c.bf16 %v4983, %v4982
    %v4989 = vsel %vm605, %v4984, 0
    %v4992 = vsel %vm605, %v4985, 0
    %v4995 = vsel %vm605, %v4986, 0
    %v4998 = vsel %vm605, %v4987, 0
    %5000 = vmatprep.subr.bf16.mxu0 0
    %5001 = vmatpush1.bf16.msra.mxu0 0
    %5002 = vmatprep.subr.bf16.mxu0 0
    %5003 = vmatpush1.bf16.msra.mxu0 0
    %5004 = vmatprep.subr.bf16.mxu0 0
    %5005 = vmatpush1.bf16.msra.mxu0 0
    %5006 = vmatprep.subr.bf16.mxu0 0
    %5007 = vmatpush1.bf16.msra.mxu0 0
    %5008 = vmatprep.subr.bf16.mxu0 0
    %5009 = vmatpush1.bf16.msra.mxu0 %v4790
    %5010 = vmatprep.subr.bf16.mxu0 0
    %5011 = vmatpush1.bf16.msra.mxu0 %v4789
    %5012 = vmatprep.subr.bf16.mxu0 0
    %5013 = vmatpush1.bf16.msra.mxu0 %v4788
    %5014 = vmatprep.subr.bf16.mxu0 0
    %5015 = vmatpush1.bf16.msra.mxu0 %v4787
    %5016 = vmatprep.subr.bf16.mxu0 0
    %5017 = vmatpush2.bf16.msra.mxu0 0
    %5018 = vmatprep.subr.bf16.mxu0 0
    %5019 = vmatpush2.bf16.msra.mxu0 0
    %5020 = vmatprep.subr.bf16.mxu0 0
    %5021 = vmatpush2.bf16.msra.mxu0 0
    %5022 = vmatprep.subr.bf16.mxu0 0
    %5023 = vmatpush2.bf16.msra.mxu0 0
    %5024 = vmatprep.subr.bf16.mxu0 0
    %5025 = vmatpush2.bf16.msra.mxu0 0
    %5026 = vmatprep.subr.bf16.mxu0 0
    %5027 = vmatpush2.bf16.msra.mxu0 0
    %5028 = vmatprep.subr.bf16.mxu0 0
    %5029 = vmatpush2.bf16.msra.mxu0 0
    %5030 = vmatprep.subr.bf16.mxu0 0
    %5031 = vmatpush2.bf16.msra.mxu0 0
    %5032 = vmatprep.mubr.bf16.mxu0 0
    %5033 = vmatmul.mubr.bf16.gmra.mxu0 %v4989
    %v5034 = vpop.f32.mrf.mxu0
    %v5035 = vadd.f32 0.0, %v5034
    %v5036 = vpop.f32.mrf.mxu0
    %v5037 = vpop.f32.mrf.mxu0
    %v5038 = vadd.f32 0.0, %v5037
    %v5039 = vpop.f32.mrf.mxu0
    %5040 = vmatprep.mubr.bf16.mxu0 0
    %5041 = vmatmul.mubr.bf16.gmra.mxu0 %v4992
    %v5042 = vpop.f32.mrf.mxu0
    %v5043 = vadd.f32 0.0, %v5042
    %v5044 = vpop.f32.mrf.mxu0
    %v5045 = vpop.f32.mrf.mxu0
    %v5046 = vadd.f32 0.0, %v5045
    %v5047 = vpop.f32.mrf.mxu0
    %5048 = vmatprep.mubr.bf16.mxu0 0
    %5049 = vmatmul.mubr.bf16.gmra.mxu0 %v4995
    %v5050 = vpop.f32.mrf.mxu0
    %v5051 = vadd.f32 0.0, %v5050
    %v5052 = vpop.f32.mrf.mxu0
    %v5053 = vpop.f32.mrf.mxu0
    %v5054 = vadd.f32 0.0, %v5053
    %v5055 = vpop.f32.mrf.mxu0
    %5056 = vmatprep.mubr.bf16.mxu0 0
    %5057 = vmatmul.mubr.bf16.gmra.mxu0 %v4998
    %v5058 = vpop.f32.mrf.mxu0
    %v5059 = vadd.f32 0.0, %v5058
    %v5060 = vpop.f32.mrf.mxu0
    %v5061 = vpop.f32.mrf.mxu0
    %v5062 = vadd.f32 0.0, %v5061
    %v5063 = vpop.f32.mrf.mxu0
    %5064 = vdwg.mxu0
    %5069 = vrot.lane.b32.xlu0 %v4779, 64
    %v5070 = vpop.permute.xlu0 %5069
    %5071 = vrot.lane.b32.xlu0 %v4780, 64
    %v5072 = vpop.permute.xlu0 %5071
    %5073 = vrot.lane.b32.xlu0 %v4781, 64
    %v5074 = vpop.permute.xlu0 %5073
    %5075 = vrot.lane.b32.xlu0 %v4782, 64
    %v5076 = vpop.permute.xlu0 %5075
    %5081 = vrot.lane.b32.xlu0 %v4783, 64
    %v5082 = vpop.permute.xlu0 %5081
    %5083 = vrot.lane.b32.xlu0 %v4784, 64
    %v5084 = vpop.permute.xlu0 %5083
    %5085 = vrot.lane.b32.xlu0 %v4785, 64
    %v5086 = vpop.permute.xlu0 %5085
    %5087 = vrot.lane.b32.xlu0 %v4786, 64
    %v5088 = vpop.permute.xlu0 %5087
    %v5090 = vsel %vm605, %v5070, 0
    %v5093 = vsel %vm605, %v5072, 0
    %v5096 = vsel %vm605, %v5074, 0
    %v5099 = vsel %vm605, %v5076, 0
    %v5102 = vsel %vm605, %v5082, 0
    %v5105 = vsel %vm605, %v5084, 0
    %v5108 = vsel %vm605, %v5086, 0
    %v5111 = vsel %vm605, %v5088, 0
    %5113 = vmatprep.subr.bf16.mxu0 0
    %5114 = vmatpush1.bf16.xpose.msra.mxu0 0
    %5115 = vmatprep.subr.bf16.mxu0 0
    %5116 = vmatpush1.bf16.xpose.msra.mxu0 0
    %5117 = vmatprep.subr.bf16.mxu0 0
    %5118 = vmatpush1.bf16.xpose.msra.mxu0 0
    %5119 = vmatprep.subr.bf16.mxu0 0
    %5120 = vmatpush1.bf16.xpose.msra.mxu0 0
    %5121 = vmatprep.subr.bf16.mxu0 0
    %5122 = vmatpush1.bf16.xpose.msra.mxu0 %v5111
    %5123 = vmatprep.subr.bf16.mxu0 0
    %5124 = vmatpush1.bf16.xpose.msra.mxu0 %v5108
    %5125 = vmatprep.subr.bf16.mxu0 0
    %5126 = vmatpush1.bf16.xpose.msra.mxu0 %v5105
    %5127 = vmatprep.subr.bf16.mxu0 0
    %5128 = vmatpush1.bf16.xpose.msra.mxu0 %v5102
    %5129 = vmatprep.subr.bf16.mxu0 0
    %5130 = vmatpush2.bf16.xpose.msra.mxu0 0
    %5131 = vmatprep.subr.bf16.mxu0 0
    %5132 = vmatpush2.bf16.xpose.msra.mxu0 0
    %5133 = vmatprep.subr.bf16.mxu0 0
    %5134 = vmatpush2.bf16.xpose.msra.mxu0 0
    %5135 = vmatprep.subr.bf16.mxu0 0
    %5136 = vmatpush2.bf16.xpose.msra.mxu0 0
    %5137 = vmatprep.subr.bf16.mxu0 0
    %5138 = vmatpush2.bf16.xpose.msra.mxu0 0
    %5139 = vmatprep.subr.bf16.mxu0 0
    %5140 = vmatpush2.bf16.xpose.msra.mxu0 0
    %5141 = vmatprep.subr.bf16.mxu0 0
    %5142 = vmatpush2.bf16.xpose.msra.mxu0 0
    %5143 = vmatprep.subr.bf16.mxu0 0
    %5144 = vmatpush2.bf16.xpose.msra.mxu0 0
    %5145 = vmatprep.mubr.bf16.mxu0 0
    %5146 = vmatmul.mubr.bf16.gmra.mxu0 %v5090
    %v5147 = vpop.f32.mrf.mxu0
    %v5148 = vadd.f32 0.0, %v5147
    %v5149 = vpop.f32.mrf.mxu0
    %v5150 = vpop.f32.mrf.mxu0
    %v5151 = vadd.f32 0.0, %v5150
    %v5152 = vpop.f32.mrf.mxu0
    %5153 = vmatprep.mubr.bf16.mxu0 0
    %5154 = vmatmul.mubr.bf16.gmra.mxu0 %v5093
    %v5155 = vpop.f32.mrf.mxu0
    %v5156 = vadd.f32 0.0, %v5155
    %v5157 = vpop.f32.mrf.mxu0
    %v5158 = vpop.f32.mrf.mxu0
    %v5159 = vadd.f32 0.0, %v5158
    %v5160 = vpop.f32.mrf.mxu0
    %5161 = vmatprep.mubr.bf16.mxu0 0
    %5162 = vmatmul.mubr.bf16.gmra.mxu0 %v5096
    %v5163 = vpop.f32.mrf.mxu0
    %v5164 = vadd.f32 0.0, %v5163
    %v5165 = vpop.f32.mrf.mxu0
    %v5166 = vpop.f32.mrf.mxu0
    %v5167 = vadd.f32 0.0, %v5166
    %v5168 = vpop.f32.mrf.mxu0
    %5169 = vmatprep.mubr.bf16.mxu0 0
    %5170 = vmatmul.mubr.bf16.gmra.mxu0 %v5099
    %v5171 = vpop.f32.mrf.mxu0
    %v5172 = vadd.f32 0.0, %v5171
    %v5173 = vpop.f32.mrf.mxu0
    %v5174 = vpop.f32.mrf.mxu0
    %v5175 = vadd.f32 0.0, %v5174
    %v5176 = vpop.f32.mrf.mxu0
    %5177 = vdwg.mxu0
    %v5178 = vmul.f32 %v5148, 0.17677669
    %v5179 = vmul.f32 %v5151, 0.17677669
    %v5180 = vmul.f32 %v5156, 0.17677669
    %v5181 = vmul.f32 %v5159, 0.17677669
    %v5182 = vmul.f32 %v5164, 0.17677669
    %v5183 = vmul.f32 %v5167, 0.17677669
    %v5184 = vmul.f32 %v5172, 0.17677669
    %v5185 = vmul.f32 %v5175, 0.17677669
    %v5186 = vadd.f32 %v5178, %v4109
    %v5187 = vadd.f32 %v5179, %v4110
    %v5188 = vadd.f32 %v5180, %v4111
    %v5189 = vadd.f32 %v5181, %v4112
    %v5190 = vadd.f32 %v5182, %v4113
    %v5191 = vadd.f32 %v5183, %v4114
    %v5192 = vadd.f32 %v5184, %v4115
    %v5193 = vadd.f32 %v5185, %v4116
    %v5194 = vsel %vm605, %v5186, -inf
    %5195 = vmax.xlane.f32.xlu0 %v5194
    %v5196 = vpop.xlane.xlu0 %5195
    %v5197 = vsel %vm605, %v5187, -inf
    %5198 = vmax.xlane.f32.xlu0 %v5197
    %v5199 = vpop.xlane.xlu0 %5198
    %v5200 = vsel %vm605, %v5188, -inf
    %5201 = vmax.xlane.f32.xlu0 %v5200
    %v5202 = vpop.xlane.xlu0 %5201
    %v5203 = vsel %vm605, %v5189, -inf
    %5204 = vmax.xlane.f32.xlu0 %v5203
    %v5205 = vpop.xlane.xlu0 %5204
    %v5206 = vsel %vm605, %v5190, -inf
    %5207 = vmax.xlane.f32.xlu0 %v5206
    %v5208 = vpop.xlane.xlu0 %5207
    %v5209 = vsel %vm605, %v5191, -inf
    %5210 = vmax.xlane.f32.xlu0 %v5209
    %v5211 = vpop.xlane.xlu0 %5210
    %v5212 = vsel %vm605, %v5192, -inf
    %5213 = vmax.xlane.f32.xlu0 %v5212
    %v5214 = vpop.xlane.xlu0 %5213
    %v5215 = vsel %vm605, %v5193, -inf
    %5216 = vmax.xlane.f32.xlu0 %v5215
    %v5217 = vpop.xlane.xlu0 %5216
    %v5218 = vsub.f32 %v5186, %v5196
    %v5219 = vsub.f32 %v5187, %v5199
    %v5220 = vsub.f32 %v5188, %v5202
    %v5221 = vsub.f32 %v5189, %v5205
    %v5222 = vsub.f32 %v5190, %v5208
    %v5223 = vsub.f32 %v5191, %v5211
    %v5224 = vsub.f32 %v5192, %v5214
    %v5225 = vsub.f32 %v5193, %v5217
    %v5226 = vmul.f32 %v5218, 1.442695
    %v5227 = vpow.pop %v5226
    %v5228 = vmul.f32 %v5219, 1.442695
    %v5229 = vpow.pop %v5228
    %v5230 = vmul.f32 %v5220, 1.442695
    %v5231 = vpow.pop %v5230
    %v5232 = vmul.f32 %v5221, 1.442695
    %v5233 = vpow.pop %v5232
    %v5234 = vmul.f32 %v5222, 1.442695
    %v5235 = vpow.pop %v5234
    %v5236 = vmul.f32 %v5223, 1.442695
    %v5237 = vpow.pop %v5236
    %v5238 = vmul.f32 %v5224, 1.442695
    %v5239 = vpow.pop %v5238
    %v5240 = vmul.f32 %v5225, 1.442695
    %v5241 = vpow.pop %v5240
    %v5242 = vsel %vm605, %v5227, 0.0
    %5243 = vadd.xlane.f32.xlu0 %v5242
    %v5244 = vpop.xlane.xlu0 %5243
    %v5245 = vsel %vm605, %v5229, 0.0
    %5246 = vadd.xlane.f32.xlu0 %v5245
    %v5247 = vpop.xlane.xlu0 %5246
    %v5248 = vsel %vm605, %v5231, 0.0
    %5249 = vadd.xlane.f32.xlu0 %v5248
    %v5250 = vpop.xlane.xlu0 %5249
    %v5251 = vsel %vm605, %v5233, 0.0
    %5252 = vadd.xlane.f32.xlu0 %v5251
    %v5253 = vpop.xlane.xlu0 %5252
    %v5254 = vsel %vm605, %v5235, 0.0
    %5255 = vadd.xlane.f32.xlu0 %v5254
    %v5256 = vpop.xlane.xlu0 %5255
    %v5257 = vsel %vm605, %v5237, 0.0
    %5258 = vadd.xlane.f32.xlu0 %v5257
    %v5259 = vpop.xlane.xlu0 %5258
    %v5260 = vsel %vm605, %v5239, 0.0
    %5261 = vadd.xlane.f32.xlu0 %v5260
    %v5262 = vpop.xlane.xlu0 %5261
    %v5263 = vsel %vm605, %v5241, 0.0
    %5264 = vadd.xlane.f32.xlu0 %v5263
    %v5265 = vpop.xlane.xlu0 %5264
    %v5266 = vrcp.pop %v5244
    %v5267 = vrcp.pop %v5247
    %v5268 = vrcp.pop %v5250
    %v5269 = vrcp.pop %v5253
    %v5270 = vrcp.pop %v5256
    %v5271 = vrcp.pop %v5259
    %v5272 = vrcp.pop %v5262
    %v5273 = vrcp.pop %v5265
    %v5274 = vmul.f32 %v5227, %v5266
    %v5275 = vmul.f32 %v5229, %v5267
    %v5276 = vmul.f32 %v5231, %v5268
    %v5277 = vmul.f32 %v5233, %v5269
    %v5278 = vmul.f32 %v5235, %v5270
    %v5279 = vmul.f32 %v5237, %v5271
    %v5280 = vmul.f32 %v5239, %v5272
    %v5281 = vmul.f32 %v5241, %v5273
    %v5282 = vpack.c.bf16 %v5275, %v5274
    %v5283 = vpack.c.bf16 %v5277, %v5276
    %v5284 = vpack.c.bf16 %v5279, %v5278
    %v5285 = vpack.c.bf16 %v5281, %v5280
    %5290 = vrot.lane.b32.xlu0 %v4787, 64
    %v5291 = vpop.permute.xlu0 %5290
    %5292 = vrot.lane.b32.xlu0 %v4788, 64
    %v5293 = vpop.permute.xlu0 %5292
    %5294 = vrot.lane.b32.xlu0 %v4789, 64
    %v5295 = vpop.permute.xlu0 %5294
    %5296 = vrot.lane.b32.xlu0 %v4790, 64
    %v5297 = vpop.permute.xlu0 %5296
    %v5303 = vsel %vm605, %v5282, 0
    %v5306 = vsel %vm605, %v5283, 0
    %v5309 = vsel %vm605, %v5284, 0
    %v5312 = vsel %vm605, %v5285, 0
    %5314 = vmatprep.subr.bf16.mxu0 0
    %5315 = vmatpush1.bf16.msra.mxu0 0
    %5316 = vmatprep.subr.bf16.mxu0 0
    %5317 = vmatpush1.bf16.msra.mxu0 0
    %5318 = vmatprep.subr.bf16.mxu0 0
    %5319 = vmatpush1.bf16.msra.mxu0 0
    %5320 = vmatprep.subr.bf16.mxu0 0
    %5321 = vmatpush1.bf16.msra.mxu0 0
    %5322 = vmatprep.subr.bf16.mxu0 0
    %5323 = vmatpush1.bf16.msra.mxu0 %v5297
    %5324 = vmatprep.subr.bf16.mxu0 0
    %5325 = vmatpush1.bf16.msra.mxu0 %v5295
    %5326 = vmatprep.subr.bf16.mxu0 0
    %5327 = vmatpush1.bf16.msra.mxu0 %v5293
    %5328 = vmatprep.subr.bf16.mxu0 0
    %5329 = vmatpush1.bf16.msra.mxu0 %v5291
    %5330 = vmatprep.subr.bf16.mxu0 0
    %5331 = vmatpush2.bf16.msra.mxu0 0
    %5332 = vmatprep.subr.bf16.mxu0 0
    %5333 = vmatpush2.bf16.msra.mxu0 0
    %5334 = vmatprep.subr.bf16.mxu0 0
    %5335 = vmatpush2.bf16.msra.mxu0 0
    %5336 = vmatprep.subr.bf16.mxu0 0
    %5337 = vmatpush2.bf16.msra.mxu0 0
    %5338 = vmatprep.subr.bf16.mxu0 0
    %5339 = vmatpush2.bf16.msra.mxu0 0
    %5340 = vmatprep.subr.bf16.mxu0 0
    %5341 = vmatpush2.bf16.msra.mxu0 0
    %5342 = vmatprep.subr.bf16.mxu0 0
    %5343 = vmatpush2.bf16.msra.mxu0 0
    %5344 = vmatprep.subr.bf16.mxu0 0
    %5345 = vmatpush2.bf16.msra.mxu0 0
    %5346 = vmatprep.mubr.bf16.mxu0 0
    %5347 = vmatmul.mubr.bf16.gmra.mxu0 %v5303
    %v5348 = vpop.f32.mrf.mxu0
    %v5349 = vadd.f32 0.0, %v5348
    %v5350 = vpop.f32.mrf.mxu0
    %v5351 = vpop.f32.mrf.mxu0
    %v5352 = vadd.f32 0.0, %v5351
    %v5353 = vpop.f32.mrf.mxu0
    %5354 = vmatprep.mubr.bf16.mxu0 0
    %5355 = vmatmul.mubr.bf16.gmra.mxu0 %v5306
    %v5356 = vpop.f32.mrf.mxu0
    %v5357 = vadd.f32 0.0, %v5356
    %v5358 = vpop.f32.mrf.mxu0
    %v5359 = vpop.f32.mrf.mxu0
    %v5360 = vadd.f32 0.0, %v5359
    %v5361 = vpop.f32.mrf.mxu0
    %5362 = vmatprep.mubr.bf16.mxu0 0
    %5363 = vmatmul.mubr.bf16.gmra.mxu0 %v5309
    %v5364 = vpop.f32.mrf.mxu0
    %v5365 = vadd.f32 0.0, %v5364
    %v5366 = vpop.f32.mrf.mxu0
    %v5367 = vpop.f32.mrf.mxu0
    %v5368 = vadd.f32 0.0, %v5367
    %v5369 = vpop.f32.mrf.mxu0
    %5370 = vmatprep.mubr.bf16.mxu0 0
    %5371 = vmatmul.mubr.bf16.gmra.mxu0 %v5312
    %v5372 = vpop.f32.mrf.mxu0
    %v5373 = vadd.f32 0.0, %v5372
    %v5374 = vpop.f32.mrf.mxu0
    %v5375 = vpop.f32.mrf.mxu0
    %v5376 = vadd.f32 0.0, %v5375
    %v5377 = vpop.f32.mrf.mxu0
    %5378 = vdwg.mxu0
    %v5379 = vpack.c.bf16 %v4569, %v4565
    %v5380 = vpack.c.bf16 %v4579, %v4575
    %v5381 = vpack.c.bf16 %v4589, %v4585
    %v5382 = vpack.c.bf16 %v4599, %v4595
    %v5383 = vpack.c.bf16 %v4642, %v4638
    %v5384 = vpack.c.bf16 %v4652, %v4648
    %v5385 = vpack.c.bf16 %v4662, %v4658
    %v5386 = vpack.c.bf16 %v4672, %v4668
    %v5387 = vpack.c.bf16 %v4715, %v4711
    %v5388 = vpack.c.bf16 %v4725, %v4721
    %v5389 = vpack.c.bf16 %v4735, %v4731
    %v5390 = vpack.c.bf16 %v4745, %v4741
    %v5392 = vsel %vm605, %v5379, 0
    %v5395 = vsel %vm605, %v5380, 0
    %v5398 = vsel %vm605, %v5381, 0
    %v5401 = vsel %vm605, %v5382, 0
    %v5404 = vsel %vm605, %v5383, 0
    %v5407 = vsel %vm605, %v5384, 0
    %v5410 = vsel %vm605, %v5385, 0
    %v5413 = vsel %vm605, %v5386, 0
    %5415 = vmatprep.subr.bf16.mxu0 0
    %5416 = vmatpush1.bf16.xpose.msra.mxu0 0
    %5417 = vmatprep.subr.bf16.mxu0 0
    %5418 = vmatpush1.bf16.xpose.msra.mxu0 0
    %5419 = vmatprep.subr.bf16.mxu0 0
    %5420 = vmatpush1.bf16.xpose.msra.mxu0 0
    %5421 = vmatprep.subr.bf16.mxu0 0
    %5422 = vmatpush1.bf16.xpose.msra.mxu0 0
    %5423 = vmatprep.subr.bf16.mxu0 0
    %5424 = vmatpush1.bf16.xpose.msra.mxu0 %v5413
    %5425 = vmatprep.subr.bf16.mxu0 0
    %5426 = vmatpush1.bf16.xpose.msra.mxu0 %v5410
    %5427 = vmatprep.subr.bf16.mxu0 0
    %5428 = vmatpush1.bf16.xpose.msra.mxu0 %v5407
    %5429 = vmatprep.subr.bf16.mxu0 0
    %5430 = vmatpush1.bf16.xpose.msra.mxu0 %v5404
    %5431 = vmatprep.subr.bf16.mxu0 0
    %5432 = vmatpush2.bf16.xpose.msra.mxu0 0
    %5433 = vmatprep.subr.bf16.mxu0 0
    %5434 = vmatpush2.bf16.xpose.msra.mxu0 0
    %5435 = vmatprep.subr.bf16.mxu0 0
    %5436 = vmatpush2.bf16.xpose.msra.mxu0 0
    %5437 = vmatprep.subr.bf16.mxu0 0
    %5438 = vmatpush2.bf16.xpose.msra.mxu0 0
    %5439 = vmatprep.subr.bf16.mxu0 0
    %5440 = vmatpush2.bf16.xpose.msra.mxu0 0
    %5441 = vmatprep.subr.bf16.mxu0 0
    %5442 = vmatpush2.bf16.xpose.msra.mxu0 0
    %5443 = vmatprep.subr.bf16.mxu0 0
    %5444 = vmatpush2.bf16.xpose.msra.mxu0 0
    %5445 = vmatprep.subr.bf16.mxu0 0
    %5446 = vmatpush2.bf16.xpose.msra.mxu0 0
    %5447 = vmatprep.mubr.bf16.mxu0 0
    %5448 = vmatmul.mubr.bf16.gmra.mxu0 %v5392
    %v5449 = vpop.f32.mrf.mxu0
    %v5450 = vadd.f32 0.0, %v5449
    %v5451 = vpop.f32.mrf.mxu0
    %v5452 = vpop.f32.mrf.mxu0
    %v5453 = vadd.f32 0.0, %v5452
    %v5454 = vpop.f32.mrf.mxu0
    %5455 = vmatprep.mubr.bf16.mxu0 0
    %5456 = vmatmul.mubr.bf16.gmra.mxu0 %v5395
    %v5457 = vpop.f32.mrf.mxu0
    %v5458 = vadd.f32 0.0, %v5457
    %v5459 = vpop.f32.mrf.mxu0
    %v5460 = vpop.f32.mrf.mxu0
    %v5461 = vadd.f32 0.0, %v5460
    %v5462 = vpop.f32.mrf.mxu0
    %5463 = vmatprep.mubr.bf16.mxu0 0
    %5464 = vmatmul.mubr.bf16.gmra.mxu0 %v5398
    %v5465 = vpop.f32.mrf.mxu0
    %v5466 = vadd.f32 0.0, %v5465
    %v5467 = vpop.f32.mrf.mxu0
    %v5468 = vpop.f32.mrf.mxu0
    %v5469 = vadd.f32 0.0, %v5468
    %v5470 = vpop.f32.mrf.mxu0
    %5471 = vmatprep.mubr.bf16.mxu0 0
    %5472 = vmatmul.mubr.bf16.gmra.mxu0 %v5401
    %v5473 = vpop.f32.mrf.mxu0
    %v5474 = vadd.f32 0.0, %v5473
    %v5475 = vpop.f32.mrf.mxu0
    %v5476 = vpop.f32.mrf.mxu0
    %v5477 = vadd.f32 0.0, %v5476
    %v5478 = vpop.f32.mrf.mxu0
    %5479 = vdwg.mxu0
    %v5480 = vmul.f32 %v5450, 0.17677669
    %v5481 = vmul.f32 %v5453, 0.17677669
    %v5482 = vmul.f32 %v5458, 0.17677669
    %v5483 = vmul.f32 %v5461, 0.17677669
    %v5484 = vmul.f32 %v5466, 0.17677669
    %v5485 = vmul.f32 %v5469, 0.17677669
    %v5486 = vmul.f32 %v5474, 0.17677669
    %v5487 = vmul.f32 %v5477, 0.17677669
    %v5488 = vadd.f32 %v5480, %v4109
    %v5489 = vadd.f32 %v5481, %v4110
    %v5490 = vadd.f32 %v5482, %v4111
    %v5491 = vadd.f32 %v5483, %v4112
    %v5492 = vadd.f32 %v5484, %v4113
    %v5493 = vadd.f32 %v5485, %v4114
    %v5494 = vadd.f32 %v5486, %v4115
    %v5495 = vadd.f32 %v5487, %v4116
    %v5496 = vsel %vm605, %v5488, -inf
    %5497 = vmax.xlane.f32.xlu0 %v5496
    %v5498 = vpop.xlane.xlu0 %5497
    %v5499 = vsel %vm605, %v5489, -inf
    %5500 = vmax.xlane.f32.xlu0 %v5499
    %v5501 = vpop.xlane.xlu0 %5500
    %v5502 = vsel %vm605, %v5490, -inf
    %5503 = vmax.xlane.f32.xlu0 %v5502
    %v5504 = vpop.xlane.xlu0 %5503
    %v5505 = vsel %vm605, %v5491, -inf
    %5506 = vmax.xlane.f32.xlu0 %v5505
    %v5507 = vpop.xlane.xlu0 %5506
    %v5508 = vsel %vm605, %v5492, -inf
    %5509 = vmax.xlane.f32.xlu0 %v5508
    %v5510 = vpop.xlane.xlu0 %5509
    %v5511 = vsel %vm605, %v5493, -inf
    %5512 = vmax.xlane.f32.xlu0 %v5511
    %v5513 = vpop.xlane.xlu0 %5512
    %v5514 = vsel %vm605, %v5494, -inf
    %5515 = vmax.xlane.f32.xlu0 %v5514
    %v5516 = vpop.xlane.xlu0 %5515
    %v5517 = vsel %vm605, %v5495, -inf
    %5518 = vmax.xlane.f32.xlu0 %v5517
    %v5519 = vpop.xlane.xlu0 %5518
    %v5520 = vsub.f32 %v5488, %v5498
    %v5521 = vsub.f32 %v5489, %v5501
    %v5522 = vsub.f32 %v5490, %v5504
    %v5523 = vsub.f32 %v5491, %v5507
    %v5524 = vsub.f32 %v5492, %v5510
    %v5525 = vsub.f32 %v5493, %v5513
    %v5526 = vsub.f32 %v5494, %v5516
    %v5527 = vsub.f32 %v5495, %v5519
    %v5528 = vmul.f32 %v5520, 1.442695
    %v5529 = vpow.pop %v5528
    %v5530 = vmul.f32 %v5521, 1.442695
    %v5531 = vpow.pop %v5530
    %v5532 = vmul.f32 %v5522, 1.442695
    %v5533 = vpow.pop %v5532
    %v5534 = vmul.f32 %v5523, 1.442695
    %v5535 = vpow.pop %v5534
    %v5536 = vmul.f32 %v5524, 1.442695
    %v5537 = vpow.pop %v5536
    %v5538 = vmul.f32 %v5525, 1.442695
    %v5539 = vpow.pop %v5538
    %v5540 = vmul.f32 %v5526, 1.442695
    %v5541 = vpow.pop %v5540
    %v5542 = vmul.f32 %v5527, 1.442695
    %v5543 = vpow.pop %v5542
    %v5544 = vsel %vm605, %v5529, 0.0
    %5545 = vadd.xlane.f32.xlu0 %v5544
    %v5546 = vpop.xlane.xlu0 %5545
    %v5547 = vsel %vm605, %v5531, 0.0
    %5548 = vadd.xlane.f32.xlu0 %v5547
    %v5549 = vpop.xlane.xlu0 %5548
    %v5550 = vsel %vm605, %v5533, 0.0
    %5551 = vadd.xlane.f32.xlu0 %v5550
    %v5552 = vpop.xlane.xlu0 %5551
    %v5553 = vsel %vm605, %v5535, 0.0
    %5554 = vadd.xlane.f32.xlu0 %v5553
    %v5555 = vpop.xlane.xlu0 %5554
    %v5556 = vsel %vm605, %v5537, 0.0
    %5557 = vadd.xlane.f32.xlu0 %v5556
    %v5558 = vpop.xlane.xlu0 %5557
    %v5559 = vsel %vm605, %v5539, 0.0
    %5560 = vadd.xlane.f32.xlu0 %v5559
    %v5561 = vpop.xlane.xlu0 %5560
    %v5562 = vsel %vm605, %v5541, 0.0
    %5563 = vadd.xlane.f32.xlu0 %v5562
    %v5564 = vpop.xlane.xlu0 %5563
    %v5565 = vsel %vm605, %v5543, 0.0
    %5566 = vadd.xlane.f32.xlu0 %v5565
    %v5567 = vpop.xlane.xlu0 %5566
    %v5568 = vrcp.pop %v5546
    %v5569 = vrcp.pop %v5549
    %v5570 = vrcp.pop %v5552
    %v5571 = vrcp.pop %v5555
    %v5572 = vrcp.pop %v5558
    %v5573 = vrcp.pop %v5561
    %v5574 = vrcp.pop %v5564
    %v5575 = vrcp.pop %v5567
    %v5576 = vmul.f32 %v5529, %v5568
    %v5577 = vmul.f32 %v5531, %v5569
    %v5578 = vmul.f32 %v5533, %v5570
    %v5579 = vmul.f32 %v5535, %v5571
    %v5580 = vmul.f32 %v5537, %v5572
    %v5581 = vmul.f32 %v5539, %v5573
    %v5582 = vmul.f32 %v5541, %v5574
    %v5583 = vmul.f32 %v5543, %v5575
    %v5584 = vpack.c.bf16 %v5577, %v5576
    %v5585 = vpack.c.bf16 %v5579, %v5578
    %v5586 = vpack.c.bf16 %v5581, %v5580
    %v5587 = vpack.c.bf16 %v5583, %v5582
    %v5589 = vsel %vm605, %v5584, 0
    %v5592 = vsel %vm605, %v5585, 0
    %v5595 = vsel %vm605, %v5586, 0
    %v5598 = vsel %vm605, %v5587, 0
    %5600 = vmatprep.subr.bf16.mxu0 0
    %5601 = vmatpush1.bf16.msra.mxu0 0
    %5602 = vmatprep.subr.bf16.mxu0 0
    %5603 = vmatpush1.bf16.msra.mxu0 0
    %5604 = vmatprep.subr.bf16.mxu0 0
    %5605 = vmatpush1.bf16.msra.mxu0 0
    %5606 = vmatprep.subr.bf16.mxu0 0
    %5607 = vmatpush1.bf16.msra.mxu0 0
    %5608 = vmatprep.subr.bf16.mxu0 0
    %5609 = vmatpush1.bf16.msra.mxu0 %v5390
    %5610 = vmatprep.subr.bf16.mxu0 0
    %5611 = vmatpush1.bf16.msra.mxu0 %v5389
    %5612 = vmatprep.subr.bf16.mxu0 0
    %5613 = vmatpush1.bf16.msra.mxu0 %v5388
    %5614 = vmatprep.subr.bf16.mxu0 0
    %5615 = vmatpush1.bf16.msra.mxu0 %v5387
    %5616 = vmatprep.subr.bf16.mxu0 0
    %5617 = vmatpush2.bf16.msra.mxu0 0
    %5618 = vmatprep.subr.bf16.mxu0 0
    %5619 = vmatpush2.bf16.msra.mxu0 0
    %5620 = vmatprep.subr.bf16.mxu0 0
    %5621 = vmatpush2.bf16.msra.mxu0 0
    %5622 = vmatprep.subr.bf16.mxu0 0
    %5623 = vmatpush2.bf16.msra.mxu0 0
    %5624 = vmatprep.subr.bf16.mxu0 0
    %5625 = vmatpush2.bf16.msra.mxu0 0
    %5626 = vmatprep.subr.bf16.mxu0 0
    %5627 = vmatpush2.bf16.msra.mxu0 0
    %5628 = vmatprep.subr.bf16.mxu0 0
    %5629 = vmatpush2.bf16.msra.mxu0 0
    %5630 = vmatprep.subr.bf16.mxu0 0
    %5631 = vmatpush2.bf16.msra.mxu0 0
    %5632 = vmatprep.mubr.bf16.mxu0 0
    %5633 = vmatmul.mubr.bf16.gmra.mxu0 %v5589
    %v5634 = vpop.f32.mrf.mxu0
    %v5635 = vadd.f32 0.0, %v5634
    %v5636 = vpop.f32.mrf.mxu0
    %v5637 = vpop.f32.mrf.mxu0
    %v5638 = vadd.f32 0.0, %v5637
    %v5639 = vpop.f32.mrf.mxu0
    %5640 = vmatprep.mubr.bf16.mxu0 0
    %5641 = vmatmul.mubr.bf16.gmra.mxu0 %v5592
    %v5642 = vpop.f32.mrf.mxu0
    %v5643 = vadd.f32 0.0, %v5642
    %v5644 = vpop.f32.mrf.mxu0
    %v5645 = vpop.f32.mrf.mxu0
    %v5646 = vadd.f32 0.0, %v5645
    %v5647 = vpop.f32.mrf.mxu0
    %5648 = vmatprep.mubr.bf16.mxu0 0
    %5649 = vmatmul.mubr.bf16.gmra.mxu0 %v5595
    %v5650 = vpop.f32.mrf.mxu0
    %v5651 = vadd.f32 0.0, %v5650
    %v5652 = vpop.f32.mrf.mxu0
    %v5653 = vpop.f32.mrf.mxu0
    %v5654 = vadd.f32 0.0, %v5653
    %v5655 = vpop.f32.mrf.mxu0
    %5656 = vmatprep.mubr.bf16.mxu0 0
    %5657 = vmatmul.mubr.bf16.gmra.mxu0 %v5598
    %v5658 = vpop.f32.mrf.mxu0
    %v5659 = vadd.f32 0.0, %v5658
    %v5660 = vpop.f32.mrf.mxu0
    %v5661 = vpop.f32.mrf.mxu0
    %v5662 = vadd.f32 0.0, %v5661
    %v5663 = vpop.f32.mrf.mxu0
    %5664 = vdwg.mxu0
    %5669 = vrot.lane.b32.xlu0 %v5379, 64
    %v5670 = vpop.permute.xlu0 %5669
    %5671 = vrot.lane.b32.xlu0 %v5380, 64
    %v5672 = vpop.permute.xlu0 %5671
    %5673 = vrot.lane.b32.xlu0 %v5381, 64
    %v5674 = vpop.permute.xlu0 %5673
    %5675 = vrot.lane.b32.xlu0 %v5382, 64
    %v5676 = vpop.permute.xlu0 %5675
    %5681 = vrot.lane.b32.xlu0 %v5383, 64
    %v5682 = vpop.permute.xlu0 %5681
    %5683 = vrot.lane.b32.xlu0 %v5384, 64
    %v5684 = vpop.permute.xlu0 %5683
    %5685 = vrot.lane.b32.xlu0 %v5385, 64
    %v5686 = vpop.permute.xlu0 %5685
    %5687 = vrot.lane.b32.xlu0 %v5386, 64
    %v5688 = vpop.permute.xlu0 %5687
    %v5690 = vsel %vm605, %v5670, 0
    %v5693 = vsel %vm605, %v5672, 0
    %v5696 = vsel %vm605, %v5674, 0
    %v5699 = vsel %vm605, %v5676, 0
    %v5702 = vsel %vm605, %v5682, 0
    %v5705 = vsel %vm605, %v5684, 0
    %v5708 = vsel %vm605, %v5686, 0
    %v5711 = vsel %vm605, %v5688, 0
    %5713 = vmatprep.subr.bf16.mxu0 0
    %5714 = vmatpush1.bf16.xpose.msra.mxu0 0
    %5715 = vmatprep.subr.bf16.mxu0 0
    %5716 = vmatpush1.bf16.xpose.msra.mxu0 0
    %5717 = vmatprep.subr.bf16.mxu0 0
    %5718 = vmatpush1.bf16.xpose.msra.mxu0 0
    %5719 = vmatprep.subr.bf16.mxu0 0
    %5720 = vmatpush1.bf16.xpose.msra.mxu0 0
    %5721 = vmatprep.subr.bf16.mxu0 0
    %5722 = vmatpush1.bf16.xpose.msra.mxu0 %v5711
    %5723 = vmatprep.subr.bf16.mxu0 0
    %5724 = vmatpush1.bf16.xpose.msra.mxu0 %v5708
    %5725 = vmatprep.subr.bf16.mxu0 0
    %5726 = vmatpush1.bf16.xpose.msra.mxu0 %v5705
    %5727 = vmatprep.subr.bf16.mxu0 0
    %5728 = vmatpush1.bf16.xpose.msra.mxu0 %v5702
    %5729 = vmatprep.subr.bf16.mxu0 0
    %5730 = vmatpush2.bf16.xpose.msra.mxu0 0
    %5731 = vmatprep.subr.bf16.mxu0 0
    %5732 = vmatpush2.bf16.xpose.msra.mxu0 0
    %5733 = vmatprep.subr.bf16.mxu0 0
    %5734 = vmatpush2.bf16.xpose.msra.mxu0 0
    %5735 = vmatprep.subr.bf16.mxu0 0
    %5736 = vmatpush2.bf16.xpose.msra.mxu0 0
    %5737 = vmatprep.subr.bf16.mxu0 0
    %5738 = vmatpush2.bf16.xpose.msra.mxu0 0
    %5739 = vmatprep.subr.bf16.mxu0 0
    %5740 = vmatpush2.bf16.xpose.msra.mxu0 0
    %5741 = vmatprep.subr.bf16.mxu0 0
    %5742 = vmatpush2.bf16.xpose.msra.mxu0 0
    %5743 = vmatprep.subr.bf16.mxu0 0
    %5744 = vmatpush2.bf16.xpose.msra.mxu0 0
    %5745 = vmatprep.mubr.bf16.mxu0 0
    %5746 = vmatmul.mubr.bf16.gmra.mxu0 %v5690
    %v5747 = vpop.f32.mrf.mxu0
    %v5748 = vadd.f32 0.0, %v5747
    %v5749 = vpop.f32.mrf.mxu0
    %v5750 = vpop.f32.mrf.mxu0
    %v5751 = vadd.f32 0.0, %v5750
    %v5752 = vpop.f32.mrf.mxu0
    %5753 = vmatprep.mubr.bf16.mxu0 0
    %5754 = vmatmul.mubr.bf16.gmra.mxu0 %v5693
    %v5755 = vpop.f32.mrf.mxu0
    %v5756 = vadd.f32 0.0, %v5755
    %v5757 = vpop.f32.mrf.mxu0
    %v5758 = vpop.f32.mrf.mxu0
    %v5759 = vadd.f32 0.0, %v5758
    %v5760 = vpop.f32.mrf.mxu0
    %5761 = vmatprep.mubr.bf16.mxu0 0
    %5762 = vmatmul.mubr.bf16.gmra.mxu0 %v5696
    %v5763 = vpop.f32.mrf.mxu0
    %v5764 = vadd.f32 0.0, %v5763
    %v5765 = vpop.f32.mrf.mxu0
    %v5766 = vpop.f32.mrf.mxu0
    %v5767 = vadd.f32 0.0, %v5766
    %v5768 = vpop.f32.mrf.mxu0
    %5769 = vmatprep.mubr.bf16.mxu0 0
    %5770 = vmatmul.mubr.bf16.gmra.mxu0 %v5699
    %v5771 = vpop.f32.mrf.mxu0
    %v5772 = vadd.f32 0.0, %v5771
    %v5773 = vpop.f32.mrf.mxu0
    %v5774 = vpop.f32.mrf.mxu0
    %v5775 = vadd.f32 0.0, %v5774
    %v5776 = vpop.f32.mrf.mxu0
    %5777 = vdwg.mxu0
    %v5778 = vmul.f32 %v5748, 0.17677669
    %v5779 = vmul.f32 %v5751, 0.17677669
    %v5780 = vmul.f32 %v5756, 0.17677669
    %v5781 = vmul.f32 %v5759, 0.17677669
    %v5782 = vmul.f32 %v5764, 0.17677669
    %v5783 = vmul.f32 %v5767, 0.17677669
    %v5784 = vmul.f32 %v5772, 0.17677669
    %v5785 = vmul.f32 %v5775, 0.17677669
    %v5786 = vadd.f32 %v5778, %v4109
    %v5787 = vadd.f32 %v5779, %v4110
    %v5788 = vadd.f32 %v5780, %v4111
    %v5789 = vadd.f32 %v5781, %v4112
    %v5790 = vadd.f32 %v5782, %v4113
    %v5791 = vadd.f32 %v5783, %v4114
    %v5792 = vadd.f32 %v5784, %v4115
    %v5793 = vadd.f32 %v5785, %v4116
    %v5794 = vsel %vm605, %v5786, -inf
    %5795 = vmax.xlane.f32.xlu0 %v5794
    %v5796 = vpop.xlane.xlu0 %5795
    %v5797 = vsel %vm605, %v5787, -inf
    %5798 = vmax.xlane.f32.xlu0 %v5797
    %v5799 = vpop.xlane.xlu0 %5798
    %v5800 = vsel %vm605, %v5788, -inf
    %5801 = vmax.xlane.f32.xlu0 %v5800
    %v5802 = vpop.xlane.xlu0 %5801
    %v5803 = vsel %vm605, %v5789, -inf
    %5804 = vmax.xlane.f32.xlu0 %v5803
    %v5805 = vpop.xlane.xlu0 %5804
    %v5806 = vsel %vm605, %v5790, -inf
    %5807 = vmax.xlane.f32.xlu0 %v5806
    %v5808 = vpop.xlane.xlu0 %5807
    %v5809 = vsel %vm605, %v5791, -inf
    %5810 = vmax.xlane.f32.xlu0 %v5809
    %v5811 = vpop.xlane.xlu0 %5810
    %v5812 = vsel %vm605, %v5792, -inf
    %5813 = vmax.xlane.f32.xlu0 %v5812
    %v5814 = vpop.xlane.xlu0 %5813
    %v5815 = vsel %vm605, %v5793, -inf
    %5816 = vmax.xlane.f32.xlu0 %v5815
    %v5817 = vpop.xlane.xlu0 %5816
    %v5818 = vsub.f32 %v5786, %v5796
    %v5819 = vsub.f32 %v5787, %v5799
    %v5820 = vsub.f32 %v5788, %v5802
    %v5821 = vsub.f32 %v5789, %v5805
    %v5822 = vsub.f32 %v5790, %v5808
    %v5823 = vsub.f32 %v5791, %v5811
    %v5824 = vsub.f32 %v5792, %v5814
    %v5825 = vsub.f32 %v5793, %v5817
    %v5826 = vmul.f32 %v5818, 1.442695
    %v5827 = vpow.pop %v5826
    %v5828 = vmul.f32 %v5819, 1.442695
    %v5829 = vpow.pop %v5828
    %v5830 = vmul.f32 %v5820, 1.442695
    %v5831 = vpow.pop %v5830
    %v5832 = vmul.f32 %v5821, 1.442695
    %v5833 = vpow.pop %v5832
    %v5834 = vmul.f32 %v5822, 1.442695
    %v5835 = vpow.pop %v5834
    %v5836 = vmul.f32 %v5823, 1.442695
    %v5837 = vpow.pop %v5836
    %v5838 = vmul.f32 %v5824, 1.442695
    %v5839 = vpow.pop %v5838
    %v5840 = vmul.f32 %v5825, 1.442695
    %v5841 = vpow.pop %v5840
    %v5842 = vsel %vm605, %v5827, 0.0
    %5843 = vadd.xlane.f32.xlu0 %v5842
    %v5844 = vpop.xlane.xlu0 %5843
    %v5845 = vsel %vm605, %v5829, 0.0
    %5846 = vadd.xlane.f32.xlu0 %v5845
    %v5847 = vpop.xlane.xlu0 %5846
    %v5848 = vsel %vm605, %v5831, 0.0
    %5849 = vadd.xlane.f32.xlu0 %v5848
    %v5850 = vpop.xlane.xlu0 %5849
    %v5851 = vsel %vm605, %v5833, 0.0
    %5852 = vadd.xlane.f32.xlu0 %v5851
    %v5853 = vpop.xlane.xlu0 %5852
    %v5854 = vsel %vm605, %v5835, 0.0
    %5855 = vadd.xlane.f32.xlu0 %v5854
    %v5856 = vpop.xlane.xlu0 %5855
    %v5857 = vsel %vm605, %v5837, 0.0
    %5858 = vadd.xlane.f32.xlu0 %v5857
    %v5859 = vpop.xlane.xlu0 %5858
    %v5860 = vsel %vm605, %v5839, 0.0
    %5861 = vadd.xlane.f32.xlu0 %v5860
    %v5862 = vpop.xlane.xlu0 %5861
    %v5863 = vsel %vm605, %v5841, 0.0
    %5864 = vadd.xlane.f32.xlu0 %v5863
    %v5865 = vpop.xlane.xlu0 %5864
    %v5866 = vrcp.pop %v5844
    %v5867 = vrcp.pop %v5847
    %v5868 = vrcp.pop %v5850
    %v5869 = vrcp.pop %v5853
    %v5870 = vrcp.pop %v5856
    %v5871 = vrcp.pop %v5859
    %v5872 = vrcp.pop %v5862
    %v5873 = vrcp.pop %v5865
    %v5874 = vmul.f32 %v5827, %v5866
    %v5875 = vmul.f32 %v5829, %v5867
    %v5876 = vmul.f32 %v5831, %v5868
    %v5877 = vmul.f32 %v5833, %v5869
    %v5878 = vmul.f32 %v5835, %v5870
    %v5879 = vmul.f32 %v5837, %v5871
    %v5880 = vmul.f32 %v5839, %v5872
    %v5881 = vmul.f32 %v5841, %v5873
    %v5882 = vpack.c.bf16 %v5875, %v5874
    %v5883 = vpack.c.bf16 %v5877, %v5876
    %v5884 = vpack.c.bf16 %v5879, %v5878
    %v5885 = vpack.c.bf16 %v5881, %v5880
    %5890 = vrot.lane.b32.xlu0 %v5387, 64
    %v5891 = vpop.permute.xlu0 %5890
    %5892 = vrot.lane.b32.xlu0 %v5388, 64
    %v5893 = vpop.permute.xlu0 %5892
    %5894 = vrot.lane.b32.xlu0 %v5389, 64
    %v5895 = vpop.permute.xlu0 %5894
    %5896 = vrot.lane.b32.xlu0 %v5390, 64
    %v5897 = vpop.permute.xlu0 %5896
    %v5903 = vsel %vm605, %v5882, 0
    %v5906 = vsel %vm605, %v5883, 0
    %v5909 = vsel %vm605, %v5884, 0
    %v5912 = vsel %vm605, %v5885, 0
    %5914 = vmatprep.subr.bf16.mxu0 0
    %5915 = vmatpush1.bf16.msra.mxu0 0
    %5916 = vmatprep.subr.bf16.mxu0 0
    %5917 = vmatpush1.bf16.msra.mxu0 0
    %5918 = vmatprep.subr.bf16.mxu0 0
    %5919 = vmatpush1.bf16.msra.mxu0 0
    %5920 = vmatprep.subr.bf16.mxu0 0
    %5921 = vmatpush1.bf16.msra.mxu0 0
    %5922 = vmatprep.subr.bf16.mxu0 0
    %5923 = vmatpush1.bf16.msra.mxu0 %v5897
    %5924 = vmatprep.subr.bf16.mxu0 0
    %5925 = vmatpush1.bf16.msra.mxu0 %v5895
    %5926 = vmatprep.subr.bf16.mxu0 0
    %5927 = vmatpush1.bf16.msra.mxu0 %v5893
    %5928 = vmatprep.subr.bf16.mxu0 0
    %5929 = vmatpush1.bf16.msra.mxu0 %v5891
    %5930 = vmatprep.subr.bf16.mxu0 0
    %5931 = vmatpush2.bf16.msra.mxu0 0
    %5932 = vmatprep.subr.bf16.mxu0 0
    %5933 = vmatpush2.bf16.msra.mxu0 0
    %5934 = vmatprep.subr.bf16.mxu0 0
    %5935 = vmatpush2.bf16.msra.mxu0 0
    %5936 = vmatprep.subr.bf16.mxu0 0
    %5937 = vmatpush2.bf16.msra.mxu0 0
    %5938 = vmatprep.subr.bf16.mxu0 0
    %5939 = vmatpush2.bf16.msra.mxu0 0
    %5940 = vmatprep.subr.bf16.mxu0 0
    %5941 = vmatpush2.bf16.msra.mxu0 0
    %5942 = vmatprep.subr.bf16.mxu0 0
    %5943 = vmatpush2.bf16.msra.mxu0 0
    %5944 = vmatprep.subr.bf16.mxu0 0
    %5945 = vmatpush2.bf16.msra.mxu0 0
    %5946 = vmatprep.mubr.bf16.mxu0 0
    %5947 = vmatmul.mubr.bf16.gmra.mxu0 %v5903
    %v5948 = vpop.f32.mrf.mxu0
    %v5949 = vadd.f32 0.0, %v5948
    %v5950 = vpop.f32.mrf.mxu0
    %v5951 = vpop.f32.mrf.mxu0
    %v5952 = vadd.f32 0.0, %v5951
    %v5953 = vpop.f32.mrf.mxu0
    %5954 = vmatprep.mubr.bf16.mxu0 0
    %5955 = vmatmul.mubr.bf16.gmra.mxu0 %v5906
    %v5956 = vpop.f32.mrf.mxu0
    %v5957 = vadd.f32 0.0, %v5956
    %v5958 = vpop.f32.mrf.mxu0
    %v5959 = vpop.f32.mrf.mxu0
    %v5960 = vadd.f32 0.0, %v5959
    %v5961 = vpop.f32.mrf.mxu0
    %5962 = vmatprep.mubr.bf16.mxu0 0
    %5963 = vmatmul.mubr.bf16.gmra.mxu0 %v5909
    %v5964 = vpop.f32.mrf.mxu0
    %v5965 = vadd.f32 0.0, %v5964
    %v5966 = vpop.f32.mrf.mxu0
    %v5967 = vpop.f32.mrf.mxu0
    %v5968 = vadd.f32 0.0, %v5967
    %v5969 = vpop.f32.mrf.mxu0
    %5970 = vmatprep.mubr.bf16.mxu0 0
    %5971 = vmatmul.mubr.bf16.gmra.mxu0 %v5912
    %v5972 = vpop.f32.mrf.mxu0
    %v5973 = vadd.f32 0.0, %v5972
    %v5974 = vpop.f32.mrf.mxu0
    %v5975 = vpop.f32.mrf.mxu0
    %v5976 = vadd.f32 0.0, %v5975
    %v5977 = vpop.f32.mrf.mxu0
    %5978 = vdwg.mxu0
    %5987 = vrot.lane.b32.xlu0 %v5349, 64
    %v5988 = vpop.permute.xlu0 %5987
    %5989 = vrot.lane.b32.xlu0 %v5352, 64
    %v5990 = vpop.permute.xlu0 %5989
    %5991 = vrot.lane.b32.xlu0 %v5357, 64
    %v5992 = vpop.permute.xlu0 %5991
    %5993 = vrot.lane.b32.xlu0 %v5360, 64
    %v5994 = vpop.permute.xlu0 %5993
    %5995 = vrot.lane.b32.xlu0 %v5365, 64
    %v5996 = vpop.permute.xlu0 %5995
    %5997 = vrot.lane.b32.xlu0 %v5368, 64
    %v5998 = vpop.permute.xlu0 %5997
    %5999 = vrot.lane.b32.xlu0 %v5373, 64
    %v6000 = vpop.permute.xlu0 %5999
    %6001 = vrot.lane.b32.xlu0 %v5376, 64
    %v6002 = vpop.permute.xlu0 %6001
    %6019 = vrot.lane.b32.xlu0 %v5949, 64
    %v6020 = vpop.permute.xlu0 %6019
    %6021 = vrot.lane.b32.xlu0 %v5952, 64
    %v6022 = vpop.permute.xlu0 %6021
    %6023 = vrot.lane.b32.xlu0 %v5957, 64
    %v6024 = vpop.permute.xlu0 %6023
    %6025 = vrot.lane.b32.xlu0 %v5960, 64
    %v6026 = vpop.permute.xlu0 %6025
    %6027 = vrot.lane.b32.xlu0 %v5965, 64
    %v6028 = vpop.permute.xlu0 %6027
    %6029 = vrot.lane.b32.xlu0 %v5968, 64
    %v6030 = vpop.permute.xlu0 %6029
    %6031 = vrot.lane.b32.xlu0 %v5973, 64
    %v6032 = vpop.permute.xlu0 %6031
    %6033 = vrot.lane.b32.xlu0 %v5976, 64
    %v6034 = vpop.permute.xlu0 %6033
    %v6043 = vsel %vm605, %v5035, %v5988
    %v6044 = vsel %vm605, %v5038, %v5990
    %v6045 = vsel %vm605, %v5043, %v5992
    %v6046 = vsel %vm605, %v5046, %v5994
    %v6047 = vsel %vm605, %v5051, %v5996
    %v6048 = vsel %vm605, %v5054, %v5998
    %v6049 = vsel %vm605, %v5059, %v6000
    %v6050 = vsel %vm605, %v5062, %v6002
    %v6051 = vsel %vm605, %v5635, %v6020
    %v6052 = vsel %vm605, %v5638, %v6022
    %v6053 = vsel %vm605, %v5643, %v6024
    %v6054 = vsel %vm605, %v5646, %v6026
    %v6055 = vsel %vm605, %v5651, %v6028
    %v6056 = vsel %vm605, %v5654, %v6030
    %v6057 = vsel %vm605, %v5659, %v6032
    %v6058 = vsel %vm605, %v5662, %v6034
    %v6059 = vpack.c.bf16 %v6044, %v6043
    %v6060 = vpack.c.bf16 %v6052, %v6051
    %v6061 = vpack.c.bf16 %v6046, %v6045
    %v6062 = vpack.c.bf16 %v6054, %v6053
    %v6063 = vpack.c.bf16 %v6048, %v6047
    %v6064 = vpack.c.bf16 %v6056, %v6055
    %v6065 = vpack.c.bf16 %v6050, %v6049
    %v6066 = vpack.c.bf16 %v6058, %v6057
    %v6099 = vunpack.c.l.b16 %v4747
    %v6100 = vunpack.c.l.b16 %v4748
    %v6101 = vunpack.c.l.b16 %v4749
    %v6102 = vunpack.c.l.b16 %v4750
    %v6103 = vunpack.c.l.b16 %v4751
    %v6104 = vunpack.c.l.b16 %v4752
    %v6105 = vunpack.c.l.b16 %v4753
    %v6106 = vunpack.c.l.b16 %v4754
    %v6107 = vunpack.c.l.b16 %v4755
    %v6108 = vunpack.c.l.b16 %v4756
    %v6109 = vunpack.c.l.b16 %v4757
    %v6110 = vunpack.c.l.b16 %v4758
    %v6111 = vunpack.c.l.b16 %v4759
    %v6112 = vunpack.c.l.b16 %v4760
    %v6113 = vunpack.c.l.b16 %v4761
    %v6114 = vunpack.c.l.b16 %v4762
    %v6115 = vunpack.c.l.b16 %v4763
    %v6116 = vunpack.c.l.b16 %v4764
    %v6117 = vunpack.c.l.b16 %v4765
    %v6118 = vunpack.c.l.b16 %v4766
    %v6119 = vunpack.c.l.b16 %v4767
    %v6120 = vunpack.c.l.b16 %v4768
    %v6121 = vunpack.c.l.b16 %v4769
    %v6122 = vunpack.c.l.b16 %v4770
    %v6123 = vunpack.c.l.b16 %v4771
    %v6124 = vunpack.c.l.b16 %v4772
    %v6125 = vunpack.c.l.b16 %v4773
    %v6126 = vunpack.c.l.b16 %v4774
    %v6127 = vunpack.c.l.b16 %v4775
    %v6128 = vunpack.c.l.b16 %v4776
    %v6129 = vunpack.c.l.b16 %v4777
    %v6130 = vunpack.c.l.b16 %v4778
    %v6131 = vpack.c.b16 %v6100, %v6099
    %v6132 = vpack.c.b16 %v6102, %v6101
    %v6133 = vpack.c.b16 %v6104, %v6103
    %v6134 = vpack.c.b16 %v6106, %v6105
    %v6135 = vpack.c.b16 %v6108, %v6107
    %v6136 = vpack.c.b16 %v6110, %v6109
    %v6137 = vpack.c.b16 %v6112, %v6111
    %v6138 = vpack.c.b16 %v6114, %v6113
    %v6139 = vpack.c.b16 %v6116, %v6115
    %v6140 = vpack.c.b16 %v6118, %v6117
    %v6141 = vpack.c.b16 %v6120, %v6119
    %v6142 = vpack.c.b16 %v6122, %v6121
    %v6143 = vpack.c.b16 %v6124, %v6123
    %v6144 = vpack.c.b16 %v6126, %v6125
    %v6145 = vpack.c.b16 %v6128, %v6127
    %v6146 = vpack.c.b16 %v6130, %v6129
    %6163 = vmatprep.subr.bf16.mxu0 0
    %6164 = vmatpush1.bf16.msra.mxu0 %v6138
    %6165 = vmatprep.subr.bf16.mxu0 0
    %6166 = vmatpush1.bf16.msra.mxu0 %v6137
    %6167 = vmatprep.subr.bf16.mxu0 0
    %6168 = vmatpush1.bf16.msra.mxu0 %v6136
    %6169 = vmatprep.subr.bf16.mxu0 0
    %6170 = vmatpush1.bf16.msra.mxu0 %v6135
    %6171 = vmatprep.subr.bf16.mxu0 0
    %6172 = vmatpush1.bf16.msra.mxu0 %v6134
    %6173 = vmatprep.subr.bf16.mxu0 0
    %6174 = vmatpush1.bf16.msra.mxu0 %v6133
    %6175 = vmatprep.subr.bf16.mxu0 0
    %6176 = vmatpush1.bf16.msra.mxu0 %v6132
    %6177 = vmatprep.subr.bf16.mxu0 0
    %6178 = vmatpush1.bf16.msra.mxu0 %v6131
    %6179 = vmatprep.subr.bf16.mxu0 0
    %6180 = vmatpush2.bf16.msra.mxu0 %v6146
    %6181 = vmatprep.subr.bf16.mxu0 0
    %6182 = vmatpush2.bf16.msra.mxu0 %v6145
    %6183 = vmatprep.subr.bf16.mxu0 0
    %6184 = vmatpush2.bf16.msra.mxu0 %v6144
    %6185 = vmatprep.subr.bf16.mxu0 0
    %6186 = vmatpush2.bf16.msra.mxu0 %v6143
    %6187 = vmatprep.subr.bf16.mxu0 0
    %6188 = vmatpush2.bf16.msra.mxu0 %v6142
    %6189 = vmatprep.subr.bf16.mxu0 0
    %6190 = vmatpush2.bf16.msra.mxu0 %v6141
    %6191 = vmatprep.subr.bf16.mxu0 0
    %6192 = vmatpush2.bf16.msra.mxu0 %v6140
    %6193 = vmatprep.subr.bf16.mxu0 0
    %6194 = vmatpush2.bf16.msra.mxu0 %v6139
    %6195 = vmatprep.mubr.bf16.mxu0 %v6060
    %6196 = vmatmul.mubr.bf16.gmra.mxu0 %v6059
    %v6197 = vpop.f32.mrf.mxu0
    %v6198 = vadd.f32 0.0, %v6197
    %v6199 = vpop.f32.mrf.mxu0
    %v6200 = vpop.f32.mrf.mxu0
    %v6201 = vadd.f32 0.0, %v6200
    %v6202 = vpop.f32.mrf.mxu0
    %6203 = vmatprep.mubr.bf16.mxu0 %v6062
    %6204 = vmatmul.mubr.bf16.gmra.mxu0 %v6061
    %v6205 = vpop.f32.mrf.mxu0
    %v6206 = vadd.f32 0.0, %v6205
    %v6207 = vpop.f32.mrf.mxu0
    %v6208 = vpop.f32.mrf.mxu0
    %v6209 = vadd.f32 0.0, %v6208
    %v6210 = vpop.f32.mrf.mxu0
    %6211 = vmatprep.mubr.bf16.mxu0 %v6064
    %6212 = vmatmul.mubr.bf16.gmra.mxu0 %v6063
    %v6213 = vpop.f32.mrf.mxu0
    %v6214 = vadd.f32 0.0, %v6213
    %v6215 = vpop.f32.mrf.mxu0
    %v6216 = vpop.f32.mrf.mxu0
    %v6217 = vadd.f32 0.0, %v6216
    %v6218 = vpop.f32.mrf.mxu0
    %6219 = vmatprep.mubr.bf16.mxu0 %v6066
    %6220 = vmatmul.mubr.bf16.gmra.mxu0 %v6065
    %v6221 = vpop.f32.mrf.mxu0
    %v6222 = vadd.f32 0.0, %v6221
    %v6223 = vpop.f32.mrf.mxu0
    %v6224 = vpop.f32.mrf.mxu0
    %v6225 = vadd.f32 0.0, %v6224
    %v6226 = vpop.f32.mrf.mxu0
    %6227 = vdwg.mxu0
    %v6228 = vadd.f32 %v3880, %v6198
    %v6229 = vadd.f32 %v3883, %v6201
    %v6230 = vadd.f32 %v3888, %v6206
    %v6231 = vadd.f32 %v3891, %v6209
    %v6232 = vadd.f32 %v3896, %v6214
    %v6233 = vadd.f32 %v3899, %v6217
    %v6234 = vadd.f32 %v4088, %v6222
    %v6235 = vadd.f32 %v4091, %v6225
    %v6236 = vld [vmem:[#allocation32] sm:$0x1]
    %v6237 = vld [vmem:[#allocation34] sm:$0x1]
    %6238 = vadd.xlane.f32.xlu0 %v6228
    %v6239 = vpop.xlane.xlu0 %6238
    %6240 = vadd.xlane.f32.xlu0 %v6229
    %v6241 = vpop.xlane.xlu0 %6240
    %6242 = vadd.xlane.f32.xlu0 %v6230
    %v6243 = vpop.xlane.xlu0 %6242
    %6244 = vadd.xlane.f32.xlu0 %v6231
    %v6245 = vpop.xlane.xlu0 %6244
    %6246 = vadd.xlane.f32.xlu0 %v6232
    %v6247 = vpop.xlane.xlu0 %6246
    %6248 = vadd.xlane.f32.xlu0 %v6233
    %v6249 = vpop.xlane.xlu0 %6248
    %6250 = vadd.xlane.f32.xlu0 %v6234
    %v6251 = vpop.xlane.xlu0 %6250
    %6252 = vadd.xlane.f32.xlu0 %v6235
    %v6253 = vpop.xlane.xlu0 %6252
    %v6254 = vmul.f32 %v6239, %v4135
    %v6255 = vmul.f32 %v6241, %v4135
    %v6256 = vmul.f32 %v6243, %v4135
    %v6257 = vmul.f32 %v6245, %v4135
    %v6258 = vmul.f32 %v6247, %v4135
    %v6259 = vmul.f32 %v6249, %v4135
    %v6260 = vmul.f32 %v6251, %v4135
    %v6261 = vmul.f32 %v6253, %v4135
    %v6262 = vsub.f32 %v6228, %v6254
    %v6263 = vsub.f32 %v6229, %v6255
    %v6264 = vsub.f32 %v6230, %v6256
    %v6265 = vsub.f32 %v6231, %v6257
    %v6266 = vsub.f32 %v6232, %v6258
    %v6267 = vsub.f32 %v6233, %v6259
    %v6268 = vsub.f32 %v6234, %v6260
    %v6269 = vsub.f32 %v6235, %v6261
    %v6270 = vmul.f32 %v6262, %v6262
    %v6271 = vmul.f32 %v6263, %v6263
    %v6272 = vmul.f32 %v6264, %v6264
    %v6273 = vmul.f32 %v6265, %v6265
    %v6274 = vmul.f32 %v6266, %v6266
    %v6275 = vmul.f32 %v6267, %v6267
    %v6276 = vmul.f32 %v6268, %v6268
    %v6277 = vmul.f32 %v6269, %v6269
    %6278 = vadd.xlane.f32.xlu0 %v6270
    %v6279 = vpop.xlane.xlu0 %6278
    %6280 = vadd.xlane.f32.xlu0 %v6271
    %v6281 = vpop.xlane.xlu0 %6280
    %6282 = vadd.xlane.f32.xlu0 %v6272
    %v6283 = vpop.xlane.xlu0 %6282
    %6284 = vadd.xlane.f32.xlu0 %v6273
    %v6285 = vpop.xlane.xlu0 %6284
    %6286 = vadd.xlane.f32.xlu0 %v6274
    %v6287 = vpop.xlane.xlu0 %6286
    %6288 = vadd.xlane.f32.xlu0 %v6275
    %v6289 = vpop.xlane.xlu0 %6288
    %6290 = vadd.xlane.f32.xlu0 %v6276
    %v6291 = vpop.xlane.xlu0 %6290
    %6292 = vadd.xlane.f32.xlu0 %v6277
    %v6293 = vpop.xlane.xlu0 %6292
    %v6294 = vmul.f32 %v6279, %v4135
    %v6295 = vmul.f32 %v6281, %v4135
    %v6296 = vmul.f32 %v6283, %v4135
    %v6297 = vmul.f32 %v6285, %v4135
    %v6298 = vmul.f32 %v6287, %v4135
    %v6299 = vmul.f32 %v6289, %v4135
    %v6300 = vmul.f32 %v6291, %v4135
    %v6301 = vmul.f32 %v6293, %v4135
    %v6302 = vadd.f32 %v6294, 1e-05
    %v6303 = vadd.f32 %v6295, 1e-05
    %v6304 = vadd.f32 %v6296, 1e-05
    %v6305 = vadd.f32 %v6297, 1e-05
    %v6306 = vadd.f32 %v6298, 1e-05
    %v6307 = vadd.f32 %v6299, 1e-05
    %v6308 = vadd.f32 %v6300, 1e-05
    %v6309 = vadd.f32 %v6301, 1e-05
    %v6310 = vrsqrt.pop %v6302
    %v6311 = vrsqrt.pop %v6303
    %v6312 = vrsqrt.pop %v6304
    %v6313 = vrsqrt.pop %v6305
    %v6314 = vrsqrt.pop %v6306
    %v6315 = vrsqrt.pop %v6307
    %v6316 = vrsqrt.pop %v6308
    %v6317 = vrsqrt.pop %v6309
    %v6318 = vmul.f32 %v6262, %v6310
    %v6319 = vmul.f32 %v6263, %v6311
    %v6320 = vmul.f32 %v6264, %v6312
    %v6321 = vmul.f32 %v6265, %v6313
    %v6322 = vmul.f32 %v6266, %v6314
    %v6323 = vmul.f32 %v6267, %v6315
    %v6324 = vmul.f32 %v6268, %v6316
    %v6325 = vmul.f32 %v6269, %v6317
    %v6327 = vlaneseq
    %v6328 = vshrl.u32 %v6327, 7
    %v6329 = vsub.s32 0, %v6328
    %v6330 = vrot.slane %v6236, %v6329
    %v6332 = vmul.f32 %v6318, %v6330
    %v6333 = vmul.f32 %v6319, %v6330
    %v6334 = vmul.f32 %v6320, %v6330
    %v6335 = vmul.f32 %v6321, %v6330
    %v6336 = vmul.f32 %v6322, %v6330
    %v6337 = vmul.f32 %v6323, %v6330
    %v6338 = vmul.f32 %v6324, %v6330
    %v6339 = vmul.f32 %v6325, %v6330
    %v6341 = vlaneseq
    %v6342 = vshrl.u32 %v6341, 7
    %v6343 = vsub.s32 0, %v6342
    %v6344 = vrot.slane %v6237, %v6343
    %v6346 = vadd.f32 %v6332, %v6344
    %v6347 = vadd.f32 %v6333, %v6344
    %v6348 = vadd.f32 %v6334, %v6344
    %v6349 = vadd.f32 %v6335, %v6344
    %v6350 = vadd.f32 %v6336, %v6344
    %v6351 = vadd.f32 %v6337, %v6344
    %v6352 = vadd.f32 %v6338, %v6344
    %v6353 = vadd.f32 %v6339, %v6344
    %v6354 = vpack.c.bf16 %v6347, %v6346
    %v6355 = vpack.c.bf16 %v6349, %v6348
    %v6356 = vpack.c.bf16 %v6351, %v6350
    %v6357 = vpack.c.bf16 %v6353, %v6352
    %v6358 = vld [vmem:[%s63] sm:$0xff]
    %v6359 = vld [vmem:[%s63 + $0x8] sm:$0xff]
    %v6360 = vld [vmem:[%s63 + $0x10] sm:$0xff]
    %v6361 = vld [vmem:[%s63 + $0x18] sm:$0xff]
    %v6362 = vld [vmem:[%s63 + $0x20] sm:$0xff]
    %v6363 = vld [vmem:[%s63 + $0x28] sm:$0xff]
    %v6364 = vld [vmem:[%s63 + $0x30] sm:$0xff]
    %v6365 = vld [vmem:[%s63 + $0x38] sm:$0xff]
    %v6366 = vld [vmem:[%s63 + $0x40] sm:$0xff]
    %v6367 = vld [vmem:[%s63 + $0x48] sm:$0xff]
    %v6368 = vld [vmem:[%s63 + $0x50] sm:$0xff]
    %v6369 = vld [vmem:[%s63 + $0x58] sm:$0xff]
    %v6370 = vld [vmem:[%s63 + $0x60] sm:$0xff]
    %v6371 = vld [vmem:[%s63 + $0x68] sm:$0xff]
    %v6372 = vld [vmem:[%s63 + $0x70] sm:$0xff]
    %v6373 = vld [vmem:[%s63 + $0x78] sm:$0xff]
    %v6374 = vld [vmem:[%s63 + $0x80] sm:$0xff]
    %v6375 = vld [vmem:[%s63 + $0x88] sm:$0xff]
    %v6376 = vld [vmem:[%s63 + $0x90] sm:$0xff]
    %v6377 = vld [vmem:[%s63 + $0x98] sm:$0xff]
    %v6378 = vld [vmem:[%s63 + $0xa0] sm:$0xff]
    %v6379 = vld [vmem:[%s63 + $0xa8] sm:$0xff]
    %v6380 = vld [vmem:[%s63 + $0xb0] sm:$0xff]
    %v6381 = vld [vmem:[%s63 + $0xb8] sm:$0xff]
    %v6382 = vld [vmem:[%s63 + $0xc0] sm:$0xff]
    %v6383 = vld [vmem:[%s63 + $0xc8] sm:$0xff]
    %v6384 = vld [vmem:[%s63 + $0xd0] sm:$0xff]
    %v6385 = vld [vmem:[%s63 + $0xd8] sm:$0xff]
    %v6386 = vld [vmem:[%s63 + $0xe0] sm:$0xff]
    %v6387 = vld [vmem:[%s63 + $0xe8] sm:$0xff]
    %v6388 = vld [vmem:[%s63 + $0xf0] sm:$0xff]
    %v6389 = vld [vmem:[%s63 + $0xf8] sm:$0xff]
    %v6390 = vld [vmem:[%s65] sm:$0xf]
    %v6392 = vlaneseq
    %v6393 = vshrl.u32 %v6392, 7
    %v6394 = vsub.s32 0, %v6393
    %v6395 = vrot.slane %v6390, %v6394
    %v6396 = vlaneseq
    %v6397 = vshrl.u32 %v6396, 7
    %v6398 = vsub.s32 1, %v6397
    %v6399 = vrot.slane %v6390, %v6398
    %v6400 = vlaneseq
    %v6401 = vshrl.u32 %v6400, 7
    %v6402 = vsub.s32 2, %v6401
    %v6403 = vrot.slane %v6390, %v6402
    %v6404 = vlaneseq
    %v6405 = vshrl.u32 %v6404, 7
    %v6406 = vsub.s32 3, %v6405
    %v6407 = vrot.slane %v6390, %v6406
    %v6444 = vunpack.c.l.b16 %v6358
    %v6445 = vunpack.c.h.b16 %v6358
    %v6446 = vunpack.c.l.b16 %v6359
    %v6447 = vunpack.c.h.b16 %v6359
    %v6448 = vunpack.c.l.b16 %v6360
    %v6449 = vunpack.c.h.b16 %v6360
    %v6450 = vunpack.c.l.b16 %v6361
    %v6451 = vunpack.c.h.b16 %v6361
    %v6452 = vunpack.c.l.b16 %v6362
    %v6453 = vunpack.c.h.b16 %v6362
    %v6454 = vunpack.c.l.b16 %v6363
    %v6455 = vunpack.c.h.b16 %v6363
    %v6456 = vunpack.c.l.b16 %v6364
    %v6457 = vunpack.c.h.b16 %v6364
    %v6458 = vunpack.c.l.b16 %v6365
    %v6459 = vunpack.c.h.b16 %v6365
    %v6460 = vunpack.c.l.b16 %v6366
    %v6461 = vunpack.c.h.b16 %v6366
    %v6462 = vunpack.c.l.b16 %v6367
    %v6463 = vunpack.c.h.b16 %v6367
    %v6464 = vunpack.c.l.b16 %v6368
    %v6465 = vunpack.c.h.b16 %v6368
    %v6466 = vunpack.c.l.b16 %v6369
    %v6467 = vunpack.c.h.b16 %v6369
    %v6468 = vunpack.c.l.b16 %v6370
    %v6469 = vunpack.c.h.b16 %v6370
    %v6470 = vunpack.c.l.b16 %v6371
    %v6471 = vunpack.c.h.b16 %v6371
    %v6472 = vunpack.c.l.b16 %v6372
    %v6473 = vunpack.c.h.b16 %v6372
    %v6474 = vunpack.c.l.b16 %v6373
    %v6475 = vunpack.c.h.b16 %v6373
    %v6476 = vunpack.c.l.b16 %v6374
    %v6477 = vunpack.c.h.b16 %v6374
    %v6478 = vunpack.c.l.b16 %v6375
    %v6479 = vunpack.c.h.b16 %v6375
    %v6480 = vunpack.c.l.b16 %v6376
    %v6481 = vunpack.c.h.b16 %v6376
    %v6482 = vunpack.c.l.b16 %v6377
    %v6483 = vunpack.c.h.b16 %v6377
    %v6484 = vunpack.c.l.b16 %v6378
    %v6485 = vunpack.c.h.b16 %v6378
    %v6486 = vunpack.c.l.b16 %v6379
    %v6487 = vunpack.c.h.b16 %v6379
    %v6488 = vunpack.c.l.b16 %v6380
    %v6489 = vunpack.c.h.b16 %v6380
    %v6490 = vunpack.c.l.b16 %v6381
    %v6491 = vunpack.c.h.b16 %v6381
    %v6492 = vunpack.c.l.b16 %v6382
    %v6493 = vunpack.c.h.b16 %v6382
    %v6494 = vunpack.c.l.b16 %v6383
    %v6495 = vunpack.c.h.b16 %v6383
    %v6496 = vunpack.c.l.b16 %v6384
    %v6497 = vunpack.c.h.b16 %v6384
    %v6498 = vunpack.c.l.b16 %v6385
    %v6499 = vunpack.c.h.b16 %v6385
    %v6500 = vunpack.c.l.b16 %v6386
    %v6501 = vunpack.c.h.b16 %v6386
    %v6502 = vunpack.c.l.b16 %v6387
    %v6503 = vunpack.c.h.b16 %v6387
    %v6504 = vunpack.c.l.b16 %v6388
    %v6505 = vunpack.c.h.b16 %v6388
    %v6506 = vunpack.c.l.b16 %v6389
    %v6507 = vunpack.c.h.b16 %v6389
    %v6508 = vpack.c.b16 %v6448, %v6444
    %v6509 = vpack.c.b16 %v6449, %v6445
    %v6510 = vpack.c.b16 %v6450, %v6446
    %v6511 = vpack.c.b16 %v6451, %v6447
    %v6512 = vpack.c.b16 %v6456, %v6452
    %v6513 = vpack.c.b16 %v6457, %v6453
    %v6514 = vpack.c.b16 %v6458, %v6454
    %v6515 = vpack.c.b16 %v6459, %v6455
    %v6516 = vpack.c.b16 %v6464, %v6460
    %v6517 = vpack.c.b16 %v6465, %v6461
    %v6518 = vpack.c.b16 %v6466, %v6462
    %v6519 = vpack.c.b16 %v6467, %v6463
    %v6520 = vpack.c.b16 %v6472, %v6468
    %v6521 = vpack.c.b16 %v6473, %v6469
    %v6522 = vpack.c.b16 %v6474, %v6470
    %v6523 = vpack.c.b16 %v6475, %v6471
    %v6524 = vpack.c.b16 %v6480, %v6476
    %v6525 = vpack.c.b16 %v6481, %v6477
    %v6526 = vpack.c.b16 %v6482, %v6478
    %v6527 = vpack.c.b16 %v6483, %v6479
    %v6528 = vpack.c.b16 %v6488, %v6484
    %v6529 = vpack.c.b16 %v6489, %v6485
    %v6530 = vpack.c.b16 %v6490, %v6486
    %v6531 = vpack.c.b16 %v6491, %v6487
    %v6532 = vpack.c.b16 %v6496, %v6492
    %v6533 = vpack.c.b16 %v6497, %v6493
    %v6534 = vpack.c.b16 %v6498, %v6494
    %v6535 = vpack.c.b16 %v6499, %v6495
    %v6536 = vpack.c.b16 %v6504, %v6500
    %v6537 = vpack.c.b16 %v6505, %v6501
    %v6538 = vpack.c.b16 %v6506, %v6502
    %v6539 = vpack.c.b16 %v6507, %v6503
    %6572 = vmatprep.subr.bf16.mxu0 %v6537
    %6573 = vmatpush1.bf16.msra.mxu0 %v6536
    %6574 = vmatprep.subr.bf16.mxu0 %v6533
    %6575 = vmatpush1.bf16.msra.mxu0 %v6532
    %6576 = vmatprep.subr.bf16.mxu0 %v6529
    %6577 = vmatpush1.bf16.msra.mxu0 %v6528
    %6578 = vmatprep.subr.bf16.mxu0 %v6525
    %6579 = vmatpush1.bf16.msra.mxu0 %v6524
    %6580 = vmatprep.subr.bf16.mxu0 %v6521
    %6581 = vmatpush1.bf16.msra.mxu0 %v6520
    %6582 = vmatprep.subr.bf16.mxu0 %v6517
    %6583 = vmatpush1.bf16.msra.mxu0 %v6516
    %6584 = vmatprep.subr.bf16.mxu0 %v6513
    %6585 = vmatpush1.bf16.msra.mxu0 %v6512
    %6586 = vmatprep.subr.bf16.mxu0 %v6509
    %6587 = vmatpush1.bf16.msra.mxu0 %v6508
    %6588 = vmatprep.subr.bf16.mxu0 0
    %6589 = vmatpush2.bf16.msra.mxu0 0
    %6590 = vmatprep.subr.bf16.mxu0 0
    %6591 = vmatpush2.bf16.msra.mxu0 0
    %6592 = vmatprep.subr.bf16.mxu0 0
    %6593 = vmatpush2.bf16.msra.mxu0 0
    %6594 = vmatprep.subr.bf16.mxu0 0
    %6595 = vmatpush2.bf16.msra.mxu0 0
    %6596 = vmatprep.subr.bf16.mxu0 0
    %6597 = vmatpush2.bf16.msra.mxu0 0
    %6598 = vmatprep.subr.bf16.mxu0 0
    %6599 = vmatpush2.bf16.msra.mxu0 0
    %6600 = vmatprep.subr.bf16.mxu0 0
    %6601 = vmatpush2.bf16.msra.mxu0 0
    %6602 = vmatprep.subr.bf16.mxu0 0
    %6603 = vmatpush2.bf16.msra.mxu0 0
    %6604 = vmatprep.mubr.bf16.mxu0 0
    %6605 = vmatmul.mubr.bf16.gmra.mxu0 %v6354
    %v6606 = vpop.f32.mrf.mxu0
    %v6607 = vadd.f32 %v6395, %v6606
    %v6608 = vpop.f32.mrf.mxu0
    %v6609 = vadd.f32 %v6399, %v6608
    %v6610 = vpop.f32.mrf.mxu0
    %v6611 = vadd.f32 %v6395, %v6610
    %v6612 = vpop.f32.mrf.mxu0
    %v6613 = vadd.f32 %v6399, %v6612
    %6614 = vmatprep.mubr.bf16.mxu0 0
    %6615 = vmatmul.mubr.bf16.gmra.mxu0 %v6355
    %v6616 = vpop.f32.mrf.mxu0
    %v6617 = vadd.f32 %v6395, %v6616
    %v6618 = vpop.f32.mrf.mxu0
    %v6619 = vadd.f32 %v6399, %v6618
    %v6620 = vpop.f32.mrf.mxu0
    %v6621 = vadd.f32 %v6395, %v6620
    %v6622 = vpop.f32.mrf.mxu0
    %v6623 = vadd.f32 %v6399, %v6622
    %6624 = vmatprep.mubr.bf16.mxu0 0
    %6625 = vmatmul.mubr.bf16.gmra.mxu0 %v6356
    %v6626 = vpop.f32.mrf.mxu0
    %v6627 = vadd.f32 %v6395, %v6626
    %v6628 = vpop.f32.mrf.mxu0
    %v6629 = vadd.f32 %v6399, %v6628
    %v6630 = vpop.f32.mrf.mxu0
    %v6631 = vadd.f32 %v6395, %v6630
    %v6632 = vpop.f32.mrf.mxu0
    %v6633 = vadd.f32 %v6399, %v6632
    %6634 = vmatprep.mubr.bf16.mxu0 0
    %6635 = vmatmul.mubr.bf16.gmra.mxu0 %v6357
    %v6636 = vpop.f32.mrf.mxu0
    %v6637 = vadd.f32 %v6395, %v6636
    %v6638 = vpop.f32.mrf.mxu0
    %v6639 = vadd.f32 %v6399, %v6638
    %v6640 = vpop.f32.mrf.mxu0
    %v6641 = vadd.f32 %v6395, %v6640
    %v6642 = vpop.f32.mrf.mxu0
    %v6643 = vadd.f32 %v6399, %v6642
    %6644 = vdwg.mxu0
    %6645 = vmatprep.subr.bf16.mxu0 %v6539
    %6646 = vmatpush1.bf16.msra.mxu0 %v6538
    %6647 = vmatprep.subr.bf16.mxu0 %v6535
    %6648 = vmatpush1.bf16.msra.mxu0 %v6534
    %6649 = vmatprep.subr.bf16.mxu0 %v6531
    %6650 = vmatpush1.bf16.msra.mxu0 %v6530
    %6651 = vmatprep.subr.bf16.mxu0 %v6527
    %6652 = vmatpush1.bf16.msra.mxu0 %v6526
    %6653 = vmatprep.subr.bf16.mxu0 %v6523
    %6654 = vmatpush1.bf16.msra.mxu0 %v6522
    %6655 = vmatprep.subr.bf16.mxu0 %v6519
    %6656 = vmatpush1.bf16.msra.mxu0 %v6518
    %6657 = vmatprep.subr.bf16.mxu0 %v6515
    %6658 = vmatpush1.bf16.msra.mxu0 %v6514
    %6659 = vmatprep.subr.bf16.mxu0 %v6511
    %6660 = vmatpush1.bf16.msra.mxu0 %v6510
    %6661 = vmatprep.subr.bf16.mxu0 0
    %6662 = vmatpush2.bf16.msra.mxu0 0
    %6663 = vmatprep.subr.bf16.mxu0 0
    %6664 = vmatpush2.bf16.msra.mxu0 0
    %6665 = vmatprep.subr.bf16.mxu0 0
    %6666 = vmatpush2.bf16.msra.mxu0 0
    %6667 = vmatprep.subr.bf16.mxu0 0
    %6668 = vmatpush2.bf16.msra.mxu0 0
    %6669 = vmatprep.subr.bf16.mxu0 0
    %6670 = vmatpush2.bf16.msra.mxu0 0
    %6671 = vmatprep.subr.bf16.mxu0 0
    %6672 = vmatpush2.bf16.msra.mxu0 0
    %6673 = vmatprep.subr.bf16.mxu0 0
    %6674 = vmatpush2.bf16.msra.mxu0 0
    %6675 = vmatprep.subr.bf16.mxu0 0
    %6676 = vmatpush2.bf16.msra.mxu0 0
    %6677 = vmatprep.mubr.bf16.mxu0 0
    %6678 = vmatmul.mubr.bf16.gmra.mxu0 %v6354
    %v6679 = vpop.f32.mrf.mxu0
    %v6680 = vadd.f32 %v6403, %v6679
    %v6681 = vpop.f32.mrf.mxu0
    %v6682 = vadd.f32 %v6407, %v6681
    %v6683 = vpop.f32.mrf.mxu0
    %v6684 = vadd.f32 %v6403, %v6683
    %v6685 = vpop.f32.mrf.mxu0
    %v6686 = vadd.f32 %v6407, %v6685
    %6687 = vmatprep.mubr.bf16.mxu0 0
    %6688 = vmatmul.mubr.bf16.gmra.mxu0 %v6355
    %v6689 = vpop.f32.mrf.mxu0
    %v6690 = vadd.f32 %v6403, %v6689
    %v6691 = vpop.f32.mrf.mxu0
    %v6692 = vadd.f32 %v6407, %v6691
    %v6693 = vpop.f32.mrf.mxu0
    %v6694 = vadd.f32 %v6403, %v6693
    %v6695 = vpop.f32.mrf.mxu0
    %v6696 = vadd.f32 %v6407, %v6695
    %6697 = vmatprep.mubr.bf16.mxu0 0
    %6698 = vmatmul.mubr.bf16.gmra.mxu0 %v6356
    %v6699 = vpop.f32.mrf.mxu0
    %v6700 = vadd.f32 %v6403, %v6699
    %v6701 = vpop.f32.mrf.mxu0
    %v6702 = vadd.f32 %v6407, %v6701
    %v6703 = vpop.f32.mrf.mxu0
    %v6704 = vadd.f32 %v6403, %v6703
    %v6705 = vpop.f32.mrf.mxu0
    %v6706 = vadd.f32 %v6407, %v6705
    %6707 = vmatprep.mubr.bf16.mxu0 0
    %6708 = vmatmul.mubr.bf16.gmra.mxu0 %v6357
    %v6709 = vpop.f32.mrf.mxu0
    %v6710 = vadd.f32 %v6403, %v6709
    %v6711 = vpop.f32.mrf.mxu0
    %v6712 = vadd.f32 %v6407, %v6711
    %v6713 = vpop.f32.mrf.mxu0
    %v6714 = vadd.f32 %v6403, %v6713
    %v6715 = vpop.f32.mrf.mxu0
    %v6716 = vadd.f32 %v6407, %v6715
    %6717 = vdwg.mxu0
    %v6718 = vmul.f32 %v6607, 0.5
    %v6719 = vmul.f32 %v6609, 0.5
    %v6720 = vmul.f32 %v6680, 0.5
    %v6721 = vmul.f32 %v6682, 0.5
    %v6722 = vmul.f32 %v6611, 0.5
    %v6723 = vmul.f32 %v6613, 0.5
    %v6724 = vmul.f32 %v6684, 0.5
    %v6725 = vmul.f32 %v6686, 0.5
    %v6726 = vmul.f32 %v6617, 0.5
    %v6727 = vmul.f32 %v6619, 0.5
    %v6728 = vmul.f32 %v6690, 0.5
    %v6729 = vmul.f32 %v6692, 0.5
    %v6730 = vmul.f32 %v6621, 0.5
    %v6731 = vmul.f32 %v6623, 0.5
    %v6732 = vmul.f32 %v6694, 0.5
    %v6733 = vmul.f32 %v6696, 0.5
    %v6734 = vmul.f32 %v6627, 0.5
    %v6735 = vmul.f32 %v6629, 0.5
    %v6736 = vmul.f32 %v6700, 0.5
    %v6737 = vmul.f32 %v6702, 0.5
    %v6738 = vmul.f32 %v6631, 0.5
    %v6739 = vmul.f32 %v6633, 0.5
    %v6740 = vmul.f32 %v6704, 0.5
    %v6741 = vmul.f32 %v6706, 0.5
    %v6742 = vmul.f32 %v6637, 0.5
    %v6743 = vmul.f32 %v6639, 0.5
    %v6744 = vmul.f32 %v6710, 0.5
    %v6745 = vmul.f32 %v6712, 0.5
    %v6746 = vmul.f32 %v6641, 0.5
    %v6747 = vmul.f32 %v6643, 0.5
    %v6748 = vmul.f32 %v6714, 0.5
    %v6749 = vmul.f32 %v6716, 0.5
    %v6750 = vmul.f32 %v6607, 0.70710677
    %v6751 = vmul.f32 %v6609, 0.70710677
    %v6752 = vmul.f32 %v6680, 0.70710677
    %v6753 = vmul.f32 %v6682, 0.70710677
    %v6754 = vmul.f32 %v6611, 0.70710677
    %v6755 = vmul.f32 %v6613, 0.70710677
    %v6756 = vmul.f32 %v6684, 0.70710677
    %v6757 = vmul.f32 %v6686, 0.70710677
    %v6758 = vmul.f32 %v6617, 0.70710677
    %v6759 = vmul.f32 %v6619, 0.70710677
    %v6760 = vmul.f32 %v6690, 0.70710677
    %v6761 = vmul.f32 %v6692, 0.70710677
    %v6762 = vmul.f32 %v6621, 0.70710677
    %v6763 = vmul.f32 %v6623, 0.70710677
    %v6764 = vmul.f32 %v6694, 0.70710677
    %v6765 = vmul.f32 %v6696, 0.70710677
    %v6766 = vmul.f32 %v6627, 0.70710677
    %v6767 = vmul.f32 %v6629, 0.70710677
    %v6768 = vmul.f32 %v6700, 0.70710677
    %v6769 = vmul.f32 %v6702, 0.70710677
    %v6770 = vmul.f32 %v6631, 0.70710677
    %v6771 = vmul.f32 %v6633, 0.70710677
    %v6772 = vmul.f32 %v6704, 0.70710677
    %v6773 = vmul.f32 %v6706, 0.70710677
    %v6774 = vmul.f32 %v6637, 0.70710677
    %v6775 = vmul.f32 %v6639, 0.70710677
    %v6776 = vmul.f32 %v6710, 0.70710677
    %v6777 = vmul.f32 %v6712, 0.70710677
    %v6778 = vmul.f32 %v6641, 0.70710677
    %v6779 = vmul.f32 %v6643, 0.70710677
    %v6780 = vmul.f32 %v6714, 0.70710677
    %v6781 = vmul.f32 %v6716, 0.70710677
    %v6782 = verf.f32.pop %v6750
    %v6783 = verf.f32.pop %v6751
    %v6784 = verf.f32.pop %v6752
    %v6785 = verf.f32.pop %v6753
    %v6786 = verf.f32.pop %v6754
    %v6787 = verf.f32.pop %v6755
    %v6788 = verf.f32.pop %v6756
    %v6789 = verf.f32.pop %v6757
    %v6790 = verf.f32.pop %v6758
    %v6791 = verf.f32.pop %v6759
    %v6792 = verf.f32.pop %v6760
    %v6793 = verf.f32.pop %v6761
    %v6794 = verf.f32.pop %v6762
    %v6795 = verf.f32.pop %v6763
    %v6796 = verf.f32.pop %v6764
    %v6797 = verf.f32.pop %v6765
    %v6798 = verf.f32.pop %v6766
    %v6799 = verf.f32.pop %v6767
    %v6800 = verf.f32.pop %v6768
    %v6801 = verf.f32.pop %v6769
    %v6802 = verf.f32.pop %v6770
    %v6803 = verf.f32.pop %v6771
    %v6804 = verf.f32.pop %v6772
    %v6805 = verf.f32.pop %v6773
    %v6806 = verf.f32.pop %v6774
    %v6807 = verf.f32.pop %v6775
    %v6808 = verf.f32.pop %v6776
    %v6809 = verf.f32.pop %v6777
    %v6810 = verf.f32.pop %v6778
    %v6811 = verf.f32.pop %v6779
    %v6812 = verf.f32.pop %v6780
    %v6813 = verf.f32.pop %v6781
    %v6814 = vadd.f32 %v6782, 1.0
    %v6815 = vadd.f32 %v6783, 1.0
    %v6816 = vadd.f32 %v6784, 1.0
    %v6817 = vadd.f32 %v6785, 1.0
    %v6818 = vadd.f32 %v6786, 1.0
    %v6819 = vadd.f32 %v6787, 1.0
    %v6820 = vadd.f32 %v6788, 1.0
    %v6821 = vadd.f32 %v6789, 1.0
    %v6822 = vadd.f32 %v6790, 1.0
    %v6823 = vadd.f32 %v6791, 1.0
    %v6824 = vadd.f32 %v6792, 1.0
    %v6825 = vadd.f32 %v6793, 1.0
    %v6826 = vadd.f32 %v6794, 1.0
    %v6827 = vadd.f32 %v6795, 1.0
    %v6828 = vadd.f32 %v6796, 1.0
    %v6829 = vadd.f32 %v6797, 1.0
    %v6830 = vadd.f32 %v6798, 1.0
    %v6831 = vadd.f32 %v6799, 1.0
    %v6832 = vadd.f32 %v6800, 1.0
    %v6833 = vadd.f32 %v6801, 1.0
    %v6834 = vadd.f32 %v6802, 1.0
    %v6835 = vadd.f32 %v6803, 1.0
    %v6836 = vadd.f32 %v6804, 1.0
    %v6837 = vadd.f32 %v6805, 1.0
    %v6838 = vadd.f32 %v6806, 1.0
    %v6839 = vadd.f32 %v6807, 1.0
    %v6840 = vadd.f32 %v6808, 1.0
    %v6841 = vadd.f32 %v6809, 1.0
    %v6842 = vadd.f32 %v6810, 1.0
    %v6843 = vadd.f32 %v6811, 1.0
    %v6844 = vadd.f32 %v6812, 1.0
    %v6845 = vadd.f32 %v6813, 1.0
    %v6846 = vmul.f32 %v6718, %v6814
    %v6847 = vmul.f32 %v6719, %v6815
    %v6848 = vmul.f32 %v6720, %v6816
    %v6849 = vmul.f32 %v6721, %v6817
    %v6850 = vmul.f32 %v6722, %v6818
    %v6851 = vmul.f32 %v6723, %v6819
    %v6852 = vmul.f32 %v6724, %v6820
    %v6853 = vmul.f32 %v6725, %v6821
    %v6854 = vmul.f32 %v6726, %v6822
    %v6855 = vmul.f32 %v6727, %v6823
    %v6856 = vmul.f32 %v6728, %v6824
    %v6857 = vmul.f32 %v6729, %v6825
    %v6858 = vmul.f32 %v6730, %v6826
    %v6859 = vmul.f32 %v6731, %v6827
    %v6860 = vmul.f32 %v6732, %v6828
    %v6861 = vmul.f32 %v6733, %v6829
    %v6862 = vmul.f32 %v6734, %v6830
    %v6863 = vmul.f32 %v6735, %v6831
    %v6864 = vmul.f32 %v6736, %v6832
    %v6865 = vmul.f32 %v6737, %v6833
    %v6866 = vmul.f32 %v6738, %v6834
    %v6867 = vmul.f32 %v6739, %v6835
    %v6868 = vmul.f32 %v6740, %v6836
    %v6869 = vmul.f32 %v6741, %v6837
    %v6870 = vmul.f32 %v6742, %v6838
    %v6871 = vmul.f32 %v6743, %v6839
    %v6872 = vmul.f32 %v6744, %v6840
    %v6873 = vmul.f32 %v6745, %v6841
    %v6874 = vmul.f32 %v6746, %v6842
    %v6875 = vmul.f32 %v6747, %v6843
    %v6876 = vmul.f32 %v6748, %v6844
    %v6877 = vmul.f32 %v6749, %v6845
    %v6878 = vpack.c.bf16 %v6850, %v6846
    %v6879 = vpack.c.bf16 %v6851, %v6847
    %v6880 = vpack.c.bf16 %v6852, %v6848
    %v6881 = vpack.c.bf16 %v6853, %v6849
    %v6882 = vpack.c.bf16 %v6858, %v6854
    %v6883 = vpack.c.bf16 %v6859, %v6855
    %v6884 = vpack.c.bf16 %v6860, %v6856
    %v6885 = vpack.c.bf16 %v6861, %v6857
    %v6886 = vpack.c.bf16 %v6866, %v6862
    %v6887 = vpack.c.bf16 %v6867, %v6863
    %v6888 = vpack.c.bf16 %v6868, %v6864
    %v6889 = vpack.c.bf16 %v6869, %v6865
    %v6890 = vpack.c.bf16 %v6874, %v6870
    %v6891 = vpack.c.bf16 %v6875, %v6871
    %v6892 = vpack.c.bf16 %v6876, %v6872
    %v6893 = vpack.c.bf16 %v6877, %v6873
    %v6894 = vld [vmem:[%s67] sm:$0xf]
    %v6895 = vld [vmem:[%s67 + $0x4] sm:$0xf]
    %v6896 = vld [vmem:[%s67 + $0x8] sm:$0xf]
    %v6897 = vld [vmem:[%s67 + $0xc] sm:$0xf]
    %v6898 = vld [vmem:[%s67 + $0x10] sm:$0xf]
    %v6899 = vld [vmem:[%s67 + $0x14] sm:$0xf]
    %v6900 = vld [vmem:[%s67 + $0x18] sm:$0xf]
    %v6901 = vld [vmem:[%s67 + $0x1c] sm:$0xf]
    %v6902 = vld [vmem:[%s67 + $0x20] sm:$0xf]
    %v6903 = vld [vmem:[%s67 + $0x24] sm:$0xf]
    %v6904 = vld [vmem:[%s67 + $0x28] sm:$0xf]
    %v6905 = vld [vmem:[%s67 + $0x2c] sm:$0xf]
    %v6906 = vld [vmem:[%s67 + $0x30] sm:$0xf]
    %v6907 = vld [vmem:[%s67 + $0x34] sm:$0xf]
    %v6908 = vld [vmem:[%s67 + $0x38] sm:$0xf]
    %v6909 = vld [vmem:[%s67 + $0x3c] sm:$0xf]
    %v6910 = vld [vmem:[%s67 + $0x40] sm:$0xf]
    %v6911 = vld [vmem:[%s67 + $0x44] sm:$0xf]
    %v6912 = vld [vmem:[%s67 + $0x48] sm:$0xf]
    %v6913 = vld [vmem:[%s67 + $0x4c] sm:$0xf]
    %v6914 = vld [vmem:[%s67 + $0x50] sm:$0xf]
    %v6915 = vld [vmem:[%s67 + $0x54] sm:$0xf]
    %v6916 = vld [vmem:[%s67 + $0x58] sm:$0xf]
    %v6917 = vld [vmem:[%s67 + $0x5c] sm:$0xf]
    %v6918 = vld [vmem:[%s67 + $0x60] sm:$0xf]
    %v6919 = vld [vmem:[%s67 + $0x64] sm:$0xf]
    %v6920 = vld [vmem:[%s67 + $0x68] sm:$0xf]
    %v6921 = vld [vmem:[%s67 + $0x6c] sm:$0xf]
    %v6922 = vld [vmem:[%s67 + $0x70] sm:$0xf]
    %v6923 = vld [vmem:[%s67 + $0x74] sm:$0xf]
    %v6924 = vld [vmem:[%s67 + $0x78] sm:$0xf]
    %v6925 = vld [vmem:[%s67 + $0x7c] sm:$0xf]
    %v6926 = vld [vmem:[%s67 + $0x80] sm:$0xf]
    %v6927 = vld [vmem:[%s67 + $0x84] sm:$0xf]
    %v6928 = vld [vmem:[%s67 + $0x88] sm:$0xf]
    %v6929 = vld [vmem:[%s67 + $0x8c] sm:$0xf]
    %v6930 = vld [vmem:[%s67 + $0x90] sm:$0xf]
    %v6931 = vld [vmem:[%s67 + $0x94] sm:$0xf]
    %v6932 = vld [vmem:[%s67 + $0x98] sm:$0xf]
    %v6933 = vld [vmem:[%s67 + $0x9c] sm:$0xf]
    %v6934 = vld [vmem:[%s67 + $0xa0] sm:$0xf]
    %v6935 = vld [vmem:[%s67 + $0xa4] sm:$0xf]
    %v6936 = vld [vmem:[%s67 + $0xa8] sm:$0xf]
    %v6937 = vld [vmem:[%s67 + $0xac] sm:$0xf]
    %v6938 = vld [vmem:[%s67 + $0xb0] sm:$0xf]
    %v6939 = vld [vmem:[%s67 + $0xb4] sm:$0xf]
    %v6940 = vld [vmem:[%s67 + $0xb8] sm:$0xf]
    %v6941 = vld [vmem:[%s67 + $0xbc] sm:$0xf]
    %v6942 = vld [vmem:[%s67 + $0xc0] sm:$0xf]
    %v6943 = vld [vmem:[%s67 + $0xc4] sm:$0xf]
    %v6944 = vld [vmem:[%s67 + $0xc8] sm:$0xf]
    %v6945 = vld [vmem:[%s67 + $0xcc] sm:$0xf]
    %v6946 = vld [vmem:[%s67 + $0xd0] sm:$0xf]
    %v6947 = vld [vmem:[%s67 + $0xd4] sm:$0xf]
    %v6948 = vld [vmem:[%s67 + $0xd8] sm:$0xf]
    %v6949 = vld [vmem:[%s67 + $0xdc] sm:$0xf]
    %v6950 = vld [vmem:[%s67 + $0xe0] sm:$0xf]
    %v6951 = vld [vmem:[%s67 + $0xe4] sm:$0xf]
    %v6952 = vld [vmem:[%s67 + $0xe8] sm:$0xf]
    %v6953 = vld [vmem:[%s67 + $0xec] sm:$0xf]
    %v6954 = vld [vmem:[%s67 + $0xf0] sm:$0xf]
    %v6955 = vld [vmem:[%s67 + $0xf4] sm:$0xf]
    %v6956 = vld [vmem:[%s67 + $0xf8] sm:$0xf]
    %v6957 = vld [vmem:[%s67 + $0xfc] sm:$0xf]
    %v7022 = vunpack.c.l.b16 %v6894
    %v7023 = vunpack.c.l.b16 %v6895
    %v7024 = vunpack.c.l.b16 %v6896
    %v7025 = vunpack.c.l.b16 %v6897
    %v7026 = vunpack.c.l.b16 %v6898
    %v7027 = vunpack.c.l.b16 %v6899
    %v7028 = vunpack.c.l.b16 %v6900
    %v7029 = vunpack.c.l.b16 %v6901
    %v7030 = vunpack.c.l.b16 %v6902
    %v7031 = vunpack.c.l.b16 %v6903
    %v7032 = vunpack.c.l.b16 %v6904
    %v7033 = vunpack.c.l.b16 %v6905
    %v7034 = vunpack.c.l.b16 %v6906
    %v7035 = vunpack.c.l.b16 %v6907
    %v7036 = vunpack.c.l.b16 %v6908
    %v7037 = vunpack.c.l.b16 %v6909
    %v7038 = vunpack.c.l.b16 %v6910
    %v7039 = vunpack.c.l.b16 %v6911
    %v7040 = vunpack.c.l.b16 %v6912
    %v7041 = vunpack.c.l.b16 %v6913
    %v7042 = vunpack.c.l.b16 %v6914
    %v7043 = vunpack.c.l.b16 %v6915
    %v7044 = vunpack.c.l.b16 %v6916
    %v7045 = vunpack.c.l.b16 %v6917
    %v7046 = vunpack.c.l.b16 %v6918
    %v7047 = vunpack.c.l.b16 %v6919
    %v7048 = vunpack.c.l.b16 %v6920
    %v7049 = vunpack.c.l.b16 %v6921
    %v7050 = vunpack.c.l.b16 %v6922
    %v7051 = vunpack.c.l.b16 %v6923
    %v7052 = vunpack.c.l.b16 %v6924
    %v7053 = vunpack.c.l.b16 %v6925
    %v7054 = vunpack.c.l.b16 %v6926
    %v7055 = vunpack.c.l.b16 %v6927
    %v7056 = vunpack.c.l.b16 %v6928
    %v7057 = vunpack.c.l.b16 %v6929
    %v7058 = vunpack.c.l.b16 %v6930
    %v7059 = vunpack.c.l.b16 %v6931
    %v7060 = vunpack.c.l.b16 %v6932
    %v7061 = vunpack.c.l.b16 %v6933
    %v7062 = vunpack.c.l.b16 %v6934
    %v7063 = vunpack.c.l.b16 %v6935
    %v7064 = vunpack.c.l.b16 %v6936
    %v7065 = vunpack.c.l.b16 %v6937
    %v7066 = vunpack.c.l.b16 %v6938
    %v7067 = vunpack.c.l.b16 %v6939
    %v7068 = vunpack.c.l.b16 %v6940
    %v7069 = vunpack.c.l.b16 %v6941
    %v7070 = vunpack.c.l.b16 %v6942
    %v7071 = vunpack.c.l.b16 %v6943
    %v7072 = vunpack.c.l.b16 %v6944
    %v7073 = vunpack.c.l.b16 %v6945
    %v7074 = vunpack.c.l.b16 %v6946
    %v7075 = vunpack.c.l.b16 %v6947
    %v7076 = vunpack.c.l.b16 %v6948
    %v7077 = vunpack.c.l.b16 %v6949
    %v7078 = vunpack.c.l.b16 %v6950
    %v7079 = vunpack.c.l.b16 %v6951
    %v7080 = vunpack.c.l.b16 %v6952
    %v7081 = vunpack.c.l.b16 %v6953
    %v7082 = vunpack.c.l.b16 %v6954
    %v7083 = vunpack.c.l.b16 %v6955
    %v7084 = vunpack.c.l.b16 %v6956
    %v7085 = vunpack.c.l.b16 %v6957
    %v7086 = vpack.c.b16 %v7023, %v7022
    %v7087 = vpack.c.b16 %v7025, %v7024
    %v7088 = vpack.c.b16 %v7027, %v7026
    %v7089 = vpack.c.b16 %v7029, %v7028
    %v7090 = vpack.c.b16 %v7031, %v7030
    %v7091 = vpack.c.b16 %v7033, %v7032
    %v7092 = vpack.c.b16 %v7035, %v7034
    %v7093 = vpack.c.b16 %v7037, %v7036
    %v7094 = vpack.c.b16 %v7039, %v7038
    %v7095 = vpack.c.b16 %v7041, %v7040
    %v7096 = vpack.c.b16 %v7043, %v7042
    %v7097 = vpack.c.b16 %v7045, %v7044
    %v7098 = vpack.c.b16 %v7047, %v7046
    %v7099 = vpack.c.b16 %v7049, %v7048
    %v7100 = vpack.c.b16 %v7051, %v7050
    %v7101 = vpack.c.b16 %v7053, %v7052
    %v7102 = vpack.c.b16 %v7055, %v7054
    %v7103 = vpack.c.b16 %v7057, %v7056
    %v7104 = vpack.c.b16 %v7059, %v7058
    %v7105 = vpack.c.b16 %v7061, %v7060
    %v7106 = vpack.c.b16 %v7063, %v7062
    %v7107 = vpack.c.b16 %v7065, %v7064
    %v7108 = vpack.c.b16 %v7067, %v7066
    %v7109 = vpack.c.b16 %v7069, %v7068
    %v7110 = vpack.c.b16 %v7071, %v7070
    %v7111 = vpack.c.b16 %v7073, %v7072
    %v7112 = vpack.c.b16 %v7075, %v7074
    %v7113 = vpack.c.b16 %v7077, %v7076
    %v7114 = vpack.c.b16 %v7079, %v7078
    %v7115 = vpack.c.b16 %v7081, %v7080
    %v7116 = vpack.c.b16 %v7083, %v7082
    %v7117 = vpack.c.b16 %v7085, %v7084
    %7150 = vmatprep.subr.bf16.mxu0 0
    %7151 = vmatpush1.bf16.msra.mxu0 %v7093
    %7152 = vmatprep.subr.bf16.mxu0 0
    %7153 = vmatpush1.bf16.msra.mxu0 %v7092
    %7154 = vmatprep.subr.bf16.mxu0 0
    %7155 = vmatpush1.bf16.msra.mxu0 %v7091
    %7156 = vmatprep.subr.bf16.mxu0 0
    %7157 = vmatpush1.bf16.msra.mxu0 %v7090
    %7158 = vmatprep.subr.bf16.mxu0 0
    %7159 = vmatpush1.bf16.msra.mxu0 %v7089
    %7160 = vmatprep.subr.bf16.mxu0 0
    %7161 = vmatpush1.bf16.msra.mxu0 %v7088
    %7162 = vmatprep.subr.bf16.mxu0 0
    %7163 = vmatpush1.bf16.msra.mxu0 %v7087
    %7164 = vmatprep.subr.bf16.mxu0 0
    %7165 = vmatpush1.bf16.msra.mxu0 %v7086
    %7166 = vmatprep.subr.bf16.mxu0 0
    %7167 = vmatpush2.bf16.msra.mxu0 %v7101
    %7168 = vmatprep.subr.bf16.mxu0 0
    %7169 = vmatpush2.bf16.msra.mxu0 %v7100
    %7170 = vmatprep.subr.bf16.mxu0 0
    %7171 = vmatpush2.bf16.msra.mxu0 %v7099
    %7172 = vmatprep.subr.bf16.mxu0 0
    %7173 = vmatpush2.bf16.msra.mxu0 %v7098
    %7174 = vmatprep.subr.bf16.mxu0 0
    %7175 = vmatpush2.bf16.msra.mxu0 %v7097
    %7176 = vmatprep.subr.bf16.mxu0 0
    %7177 = vmatpush2.bf16.msra.mxu0 %v7096
    %7178 = vmatprep.subr.bf16.mxu0 0
    %7179 = vmatpush2.bf16.msra.mxu0 %v7095
    %7180 = vmatprep.subr.bf16.mxu0 0
    %7181 = vmatpush2.bf16.msra.mxu0 %v7094
    %7182 = vmatprep.mubr.bf16.mxu0 %v6879
    %7183 = vmatmul.mubr.bf16.gmra.mxu0 %v6878
    %v7184 = vpop.f32.mrf.mxu0
    %v7185 = vadd.f32 0.0, %v7184
    %v7186 = vpop.f32.mrf.mxu0
    %v7187 = vpop.f32.mrf.mxu0
    %v7188 = vadd.f32 0.0, %v7187
    %v7189 = vpop.f32.mrf.mxu0
    %7190 = vmatprep.mubr.bf16.mxu0 %v6883
    %7191 = vmatmul.mubr.bf16.gmra.mxu0 %v6882
    %v7192 = vpop.f32.mrf.mxu0
    %v7193 = vadd.f32 0.0, %v7192
    %v7194 = vpop.f32.mrf.mxu0
    %v7195 = vpop.f32.mrf.mxu0
    %v7196 = vadd.f32 0.0, %v7195
    %v7197 = vpop.f32.mrf.mxu0
    %7198 = vmatprep.mubr.bf16.mxu0 %v6887
    %7199 = vmatmul.mubr.bf16.gmra.mxu0 %v6886
    %v7200 = vpop.f32.mrf.mxu0
    %v7201 = vadd.f32 0.0, %v7200
    %v7202 = vpop.f32.mrf.mxu0
    %v7203 = vpop.f32.mrf.mxu0
    %v7204 = vadd.f32 0.0, %v7203
    %v7205 = vpop.f32.mrf.mxu0
    %7206 = vmatprep.mubr.bf16.mxu0 %v6891
    %7207 = vmatmul.mubr.bf16.gmra.mxu0 %v6890
    %v7208 = vpop.f32.mrf.mxu0
    %v7209 = vadd.f32 0.0, %v7208
    %v7210 = vpop.f32.mrf.mxu0
    %v7211 = vpop.f32.mrf.mxu0
    %v7212 = vadd.f32 0.0, %v7211
    %v7213 = vpop.f32.mrf.mxu0
    %7214 = vdwg.mxu0
    %7215 = vmatprep.subr.bf16.mxu0 0
    %7216 = vmatpush1.bf16.msra.mxu0 %v7109
    %7217 = vmatprep.subr.bf16.mxu0 0
    %7218 = vmatpush1.bf16.msra.mxu0 %v7108
    %7219 = vmatprep.subr.bf16.mxu0 0
    %7220 = vmatpush1.bf16.msra.mxu0 %v7107
    %7221 = vmatprep.subr.bf16.mxu0 0
    %7222 = vmatpush1.bf16.msra.mxu0 %v7106
    %7223 = vmatprep.subr.bf16.mxu0 0
    %7224 = vmatpush1.bf16.msra.mxu0 %v7105
    %7225 = vmatprep.subr.bf16.mxu0 0
    %7226 = vmatpush1.bf16.msra.mxu0 %v7104
    %7227 = vmatprep.subr.bf16.mxu0 0
    %7228 = vmatpush1.bf16.msra.mxu0 %v7103
    %7229 = vmatprep.subr.bf16.mxu0 0
    %7230 = vmatpush1.bf16.msra.mxu0 %v7102
    %7231 = vmatprep.subr.bf16.mxu0 0
    %7232 = vmatpush2.bf16.msra.mxu0 %v7117
    %7233 = vmatprep.subr.bf16.mxu0 0
    %7234 = vmatpush2.bf16.msra.mxu0 %v7116
    %7235 = vmatprep.subr.bf16.mxu0 0
    %7236 = vmatpush2.bf16.msra.mxu0 %v7115
    %7237 = vmatprep.subr.bf16.mxu0 0
    %7238 = vmatpush2.bf16.msra.mxu0 %v7114
    %7239 = vmatprep.subr.bf16.mxu0 0
    %7240 = vmatpush2.bf16.msra.mxu0 %v7113
    %7241 = vmatprep.subr.bf16.mxu0 0
    %7242 = vmatpush2.bf16.msra.mxu0 %v7112
    %7243 = vmatprep.subr.bf16.mxu0 0
    %7244 = vmatpush2.bf16.msra.mxu0 %v7111
    %7245 = vmatprep.subr.bf16.mxu0 0
    %7246 = vmatpush2.bf16.msra.mxu0 %v7110
    %7247 = vmatprep.mubr.bf16.mxu0 %v6881
    %7248 = vmatmul.mubr.bf16.gmra.mxu0 %v6880
    %v7249 = vpop.f32.mrf.mxu0
    %v7250 = vadd.f32 %v7185, %v7249
    %v7251 = vpop.f32.mrf.mxu0
    %v7252 = vpop.f32.mrf.mxu0
    %v7253 = vadd.f32 %v7188, %v7252
    %v7254 = vpop.f32.mrf.mxu0
    %7255 = vmatprep.mubr.bf16.mxu0 %v6885
    %7256 = vmatmul.mubr.bf16.gmra.mxu0 %v6884
    %v7257 = vpop.f32.mrf.mxu0
    %v7258 = vadd.f32 %v7193, %v7257
    %v7259 = vpop.f32.mrf.mxu0
    %v7260 = vpop.f32.mrf.mxu0
    %v7261 = vadd.f32 %v7196, %v7260
    %v7262 = vpop.f32.mrf.mxu0
    %7263 = vmatprep.mubr.bf16.mxu0 %v6889
    %7264 = vmatmul.mubr.bf16.gmra.mxu0 %v6888
    %v7265 = vpop.f32.mrf.mxu0
    %v7266 = vadd.f32 %v7201, %v7265
    %v7267 = vpop.f32.mrf.mxu0
    %v7268 = vpop.f32.mrf.mxu0
    %v7269 = vadd.f32 %v7204, %v7268
    %v7270 = vpop.f32.mrf.mxu0
    %7271 = vmatprep.mubr.bf16.mxu0 %v6893
    %7272 = vmatmul.mubr.bf16.gmra.mxu0 %v6892
    %v7273 = vpop.f32.mrf.mxu0
    %v7274 = vadd.f32 %v7209, %v7273
    %v7275 = vpop.f32.mrf.mxu0
    %v7276 = vpop.f32.mrf.mxu0
    %v7277 = vadd.f32 %v7212, %v7276
    %v7278 = vpop.f32.mrf.mxu0
    %7279 = vdwg.mxu0
    %v7280 = vadd.f32 %v6228, %v7250
    %v7281 = vadd.f32 %v6229, %v7253
    %v7282 = vadd.f32 %v6230, %v7258
    %v7283 = vadd.f32 %v6231, %v7261
    %v7284 = vadd.f32 %v6232, %v7266
    %v7285 = vadd.f32 %v6233, %v7269
    %v7286 = vadd.f32 %v6234, %v7274
    %v7287 = vadd.f32 %v6235, %v7277
    %v7288 = vld [vmem:[%s69] sm:$0x1]
    %v7290 = vlaneseq
    %v7291 = vshrl.u32 %v7290, 7
    %v7292 = vsub.s32 0, %v7291
    %v7293 = vrot.slane %v7288, %v7292
    %v7295 = vadd.f32 %v7280, %v7293
    %v7296 = vadd.f32 %v7281, %v7293
    %v7297 = vadd.f32 %v7282, %v7293
    %v7298 = vadd.f32 %v7283, %v7293
    %v7299 = vadd.f32 %v7284, %v7293
    %v7300 = vadd.f32 %v7285, %v7293
    %v7301 = vadd.f32 %v7286, %v7293
    %v7302 = vadd.f32 %v7287, %v7293
    %s7303 = scalar_lea.vmem [#allocation31], 1
    %v7304 = vld [vmem:[%s7303] sm:$0x1]
    %s7305 = scalar_lea.vmem %s53, 1
    %v7306 = vld [vmem:[%s7305] sm:$0x1]
    %7307 = vadd.xlane.f32.xlu0 %v7295
    %v7308 = vpop.xlane.xlu0 %7307
    %7309 = vadd.xlane.f32.xlu0 %v7296
    %v7310 = vpop.xlane.xlu0 %7309
    %7311 = vadd.xlane.f32.xlu0 %v7297
    %v7312 = vpop.xlane.xlu0 %7311
    %7313 = vadd.xlane.f32.xlu0 %v7298
    %v7314 = vpop.xlane.xlu0 %7313
    %7315 = vadd.xlane.f32.xlu0 %v7299
    %v7316 = vpop.xlane.xlu0 %7315
    %7317 = vadd.xlane.f32.xlu0 %v7300
    %v7318 = vpop.xlane.xlu0 %7317
    %7319 = vadd.xlane.f32.xlu0 %v7301
    %v7320 = vpop.xlane.xlu0 %7319
    %7321 = vadd.xlane.f32.xlu0 %v7302
    %v7322 = vpop.xlane.xlu0 %7321
    %v7323 = vmul.f32 %v7308, %v4135
    %v7324 = vmul.f32 %v7310, %v4135
    %v7325 = vmul.f32 %v7312, %v4135
    %v7326 = vmul.f32 %v7314, %v4135
    %v7327 = vmul.f32 %v7316, %v4135
    %v7328 = vmul.f32 %v7318, %v4135
    %v7329 = vmul.f32 %v7320, %v4135
    %v7330 = vmul.f32 %v7322, %v4135
    %v7331 = vsub.f32 %v7295, %v7323
    %v7332 = vsub.f32 %v7296, %v7324
    %v7333 = vsub.f32 %v7297, %v7325
    %v7334 = vsub.f32 %v7298, %v7326
    %v7335 = vsub.f32 %v7299, %v7327
    %v7336 = vsub.f32 %v7300, %v7328
    %v7337 = vsub.f32 %v7301, %v7329
    %v7338 = vsub.f32 %v7302, %v7330
    %v7339 = vmul.f32 %v7331, %v7331
    %v7340 = vmul.f32 %v7332, %v7332
    %v7341 = vmul.f32 %v7333, %v7333
    %v7342 = vmul.f32 %v7334, %v7334
    %v7343 = vmul.f32 %v7335, %v7335
    %v7344 = vmul.f32 %v7336, %v7336
    %v7345 = vmul.f32 %v7337, %v7337
    %v7346 = vmul.f32 %v7338, %v7338
    %7347 = vadd.xlane.f32.xlu0 %v7339
    %v7348 = vpop.xlane.xlu0 %7347
    %7349 = vadd.xlane.f32.xlu0 %v7340
    %v7350 = vpop.xlane.xlu0 %7349
    %7351 = vadd.xlane.f32.xlu0 %v7341
    %v7352 = vpop.xlane.xlu0 %7351
    %7353 = vadd.xlane.f32.xlu0 %v7342
    %v7354 = vpop.xlane.xlu0 %7353
    %7355 = vadd.xlane.f32.xlu0 %v7343
    %v7356 = vpop.xlane.xlu0 %7355
    %7357 = vadd.xlane.f32.xlu0 %v7344
    %v7358 = vpop.xlane.xlu0 %7357
    %7359 = vadd.xlane.f32.xlu0 %v7345
    %v7360 = vpop.xlane.xlu0 %7359
    %7361 = vadd.xlane.f32.xlu0 %v7346
    %v7362 = vpop.xlane.xlu0 %7361
    %v7363 = vmul.f32 %v7348, %v4135
    %v7364 = vmul.f32 %v7350, %v4135
    %v7365 = vmul.f32 %v7352, %v4135
    %v7366 = vmul.f32 %v7354, %v4135
    %v7367 = vmul.f32 %v7356, %v4135
    %v7368 = vmul.f32 %v7358, %v4135
    %v7369 = vmul.f32 %v7360, %v4135
    %v7370 = vmul.f32 %v7362, %v4135
    %v7371 = vadd.f32 %v7363, 1e-05
    %v7372 = vadd.f32 %v7364, 1e-05
    %v7373 = vadd.f32 %v7365, 1e-05
    %v7374 = vadd.f32 %v7366, 1e-05
    %v7375 = vadd.f32 %v7367, 1e-05
    %v7376 = vadd.f32 %v7368, 1e-05
    %v7377 = vadd.f32 %v7369, 1e-05
    %v7378 = vadd.f32 %v7370, 1e-05
    %v7379 = vrsqrt.pop %v7371
    %v7380 = vrsqrt.pop %v7372
    %v7381 = vrsqrt.pop %v7373
    %v7382 = vrsqrt.pop %v7374
    %v7383 = vrsqrt.pop %v7375
    %v7384 = vrsqrt.pop %v7376
    %v7385 = vrsqrt.pop %v7377
    %v7386 = vrsqrt.pop %v7378
    %v7387 = vmul.f32 %v7331, %v7379
    %v7388 = vmul.f32 %v7332, %v7380
    %v7389 = vmul.f32 %v7333, %v7381
    %v7390 = vmul.f32 %v7334, %v7382
    %v7391 = vmul.f32 %v7335, %v7383
    %v7392 = vmul.f32 %v7336, %v7384
    %v7393 = vmul.f32 %v7337, %v7385
    %v7394 = vmul.f32 %v7338, %v7386
    %v7396 = vlaneseq
    %v7397 = vshrl.u32 %v7396, 7
    %v7398 = vsub.s32 0, %v7397
    %v7399 = vrot.slane %v7304, %v7398
    %v7401 = vmul.f32 %v7387, %v7399
    %v7402 = vmul.f32 %v7388, %v7399
    %v7403 = vmul.f32 %v7389, %v7399
    %v7404 = vmul.f32 %v7390, %v7399
    %v7405 = vmul.f32 %v7391, %v7399
    %v7406 = vmul.f32 %v7392, %v7399
    %v7407 = vmul.f32 %v7393, %v7399
    %v7408 = vmul.f32 %v7394, %v7399
    %v7410 = vlaneseq
    %v7411 = vshrl.u32 %v7410, 7
    %v7412 = vsub.s32 0, %v7411
    %v7413 = vrot.slane %v7306, %v7412
    %v7415 = vadd.f32 %v7401, %v7413
    %v7416 = vadd.f32 %v7402, %v7413
    %v7417 = vadd.f32 %v7403, %v7413
    %v7418 = vadd.f32 %v7404, %v7413
    %v7419 = vadd.f32 %v7405, %v7413
    %v7420 = vadd.f32 %v7406, %v7413
    %v7421 = vadd.f32 %v7407, %v7413
    %v7422 = vadd.f32 %v7408, %v7413
    %v7423 = vpack.c.bf16 %v7416, %v7415
    %v7424 = vpack.c.bf16 %v7418, %v7417
    %v7425 = vpack.c.bf16 %v7420, %v7419
    %v7426 = vpack.c.bf16 %v7422, %v7421
    %s7427 = scalar_lea.vmem %s55, 384
    %v7428 = vld [vmem:[%s7427] sm:$0xff]
    %v7429 = vld [vmem:[%s7427 + $0x8] sm:$0xff]
    %v7430 = vld [vmem:[%s7427 + $0x10] sm:$0xff]
    %v7431 = vld [vmem:[%s7427 + $0x18] sm:$0xff]
    %v7432 = vld [vmem:[%s7427 + $0x20] sm:$0xff]
    %v7433 = vld [vmem:[%s7427 + $0x28] sm:$0xff]
    %v7434 = vld [vmem:[%s7427 + $0x30] sm:$0xff]
    %v7435 = vld [vmem:[%s7427 + $0x38] sm:$0xff]
    %v7436 = vld [vmem:[%s7427 + $0x40] sm:$0xff]
    %v7437 = vld [vmem:[%s7427 + $0x48] sm:$0xff]
    %v7438 = vld [vmem:[%s7427 + $0x50] sm:$0xff]
    %v7439 = vld [vmem:[%s7427 + $0x58] sm:$0xff]
    %v7440 = vld [vmem:[%s7427 + $0x60] sm:$0xff]
    %v7441 = vld [vmem:[%s7427 + $0x68] sm:$0xff]
    %v7442 = vld [vmem:[%s7427 + $0x70] sm:$0xff]
    %v7443 = vld [vmem:[%s7427 + $0x78] sm:$0xff]
    %v7444 = vld [vmem:[%s7427 + $0x80] sm:$0xff]
    %v7445 = vld [vmem:[%s7427 + $0x88] sm:$0xff]
    %v7446 = vld [vmem:[%s7427 + $0x90] sm:$0xff]
    %v7447 = vld [vmem:[%s7427 + $0x98] sm:$0xff]
    %v7448 = vld [vmem:[%s7427 + $0xa0] sm:$0xff]
    %v7449 = vld [vmem:[%s7427 + $0xa8] sm:$0xff]
    %v7450 = vld [vmem:[%s7427 + $0xb0] sm:$0xff]
    %v7451 = vld [vmem:[%s7427 + $0xb8] sm:$0xff]
    %v7452 = vld [vmem:[%s7427 + $0xc0] sm:$0xff]
    %v7453 = vld [vmem:[%s7427 + $0xc8] sm:$0xff]
    %v7454 = vld [vmem:[%s7427 + $0xd0] sm:$0xff]
    %v7455 = vld [vmem:[%s7427 + $0xd8] sm:$0xff]
    %v7456 = vld [vmem:[%s7427 + $0xe0] sm:$0xff]
    %v7457 = vld [vmem:[%s7427 + $0xe8] sm:$0xff]
    %v7458 = vld [vmem:[%s7427 + $0xf0] sm:$0xff]
    %v7459 = vld [vmem:[%s7427 + $0xf8] sm:$0xff]
    %v7460 = vld [vmem:[%s7427 + $0x100] sm:$0xff]
    %v7461 = vld [vmem:[%s7427 + $0x108] sm:$0xff]
    %v7462 = vld [vmem:[%s7427 + $0x110] sm:$0xff]
    %v7463 = vld [vmem:[%s7427 + $0x118] sm:$0xff]
    %v7464 = vld [vmem:[%s7427 + $0x120] sm:$0xff]
    %v7465 = vld [vmem:[%s7427 + $0x128] sm:$0xff]
    %v7466 = vld [vmem:[%s7427 + $0x130] sm:$0xff]
    %v7467 = vld [vmem:[%s7427 + $0x138] sm:$0xff]
    %v7468 = vld [vmem:[%s7427 + $0x140] sm:$0xff]
    %v7469 = vld [vmem:[%s7427 + $0x148] sm:$0xff]
    %v7470 = vld [vmem:[%s7427 + $0x150] sm:$0xff]
    %v7471 = vld [vmem:[%s7427 + $0x158] sm:$0xff]
    %v7472 = vld [vmem:[%s7427 + $0x160] sm:$0xff]
    %v7473 = vld [vmem:[%s7427 + $0x168] sm:$0xff]
    %v7474 = vld [vmem:[%s7427 + $0x170] sm:$0xff]
    %v7475 = vld [vmem:[%s7427 + $0x178] sm:$0xff]
    %v7524 = vunpack.c.l.b16 %v7428
    %v7525 = vunpack.c.h.b16 %v7428
    %v7526 = vunpack.c.l.b16 %v7429
    %v7527 = vunpack.c.h.b16 %v7429
    %v7528 = vunpack.c.l.b16 %v7430
    %v7529 = vunpack.c.h.b16 %v7430
    %v7530 = vunpack.c.l.b16 %v7431
    %v7531 = vunpack.c.h.b16 %v7431
    %v7532 = vunpack.c.l.b16 %v7432
    %v7533 = vunpack.c.h.b16 %v7432
    %v7534 = vunpack.c.l.b16 %v7433
    %v7535 = vunpack.c.h.b16 %v7433
    %v7536 = vunpack.c.l.b16 %v7434
    %v7537 = vunpack.c.h.b16 %v7434
    %v7538 = vunpack.c.l.b16 %v7435
    %v7539 = vunpack.c.h.b16 %v7435
    %v7540 = vunpack.c.l.b16 %v7436
    %v7541 = vunpack.c.h.b16 %v7436
    %v7542 = vunpack.c.l.b16 %v7437
    %v7543 = vunpack.c.h.b16 %v7437
    %v7544 = vunpack.c.l.b16 %v7438
    %v7545 = vunpack.c.h.b16 %v7438
    %v7546 = vunpack.c.l.b16 %v7439
    %v7547 = vunpack.c.h.b16 %v7439
    %v7548 = vunpack.c.l.b16 %v7440
    %v7549 = vunpack.c.h.b16 %v7440
    %v7550 = vunpack.c.l.b16 %v7441
    %v7551 = vunpack.c.h.b16 %v7441
    %v7552 = vunpack.c.l.b16 %v7442
    %v7553 = vunpack.c.h.b16 %v7442
    %v7554 = vunpack.c.l.b16 %v7443
    %v7555 = vunpack.c.h.b16 %v7443
    %v7556 = vunpack.c.l.b16 %v7444
    %v7557 = vunpack.c.h.b16 %v7444
    %v7558 = vunpack.c.l.b16 %v7445
    %v7559 = vunpack.c.h.b16 %v7445
    %v7560 = vunpack.c.l.b16 %v7446
    %v7561 = vunpack.c.h.b16 %v7446
    %v7562 = vunpack.c.l.b16 %v7447
    %v7563 = vunpack.c.h.b16 %v7447
    %v7564 = vunpack.c.l.b16 %v7448
    %v7565 = vunpack.c.h.b16 %v7448
    %v7566 = vunpack.c.l.b16 %v7449
    %v7567 = vunpack.c.h.b16 %v7449
    %v7568 = vunpack.c.l.b16 %v7450
    %v7569 = vunpack.c.h.b16 %v7450
    %v7570 = vunpack.c.l.b16 %v7451
    %v7571 = vunpack.c.h.b16 %v7451
    %v7572 = vunpack.c.l.b16 %v7452
    %v7573 = vunpack.c.h.b16 %v7452
    %v7574 = vunpack.c.l.b16 %v7453
    %v7575 = vunpack.c.h.b16 %v7453
    %v7576 = vunpack.c.l.b16 %v7454
    %v7577 = vunpack.c.h.b16 %v7454
    %v7578 = vunpack.c.l.b16 %v7455
    %v7579 = vunpack.c.h.b16 %v7455
    %v7580 = vunpack.c.l.b16 %v7456
    %v7581 = vunpack.c.h.b16 %v7456
    %v7582 = vunpack.c.l.b16 %v7457
    %v7583 = vunpack.c.h.b16 %v7457
    %v7584 = vunpack.c.l.b16 %v7458
    %v7585 = vunpack.c.h.b16 %v7458
    %v7586 = vunpack.c.l.b16 %v7459
    %v7587 = vunpack.c.h.b16 %v7459
    %v7588 = vunpack.c.l.b16 %v7460
    %v7589 = vunpack.c.h.b16 %v7460
    %v7590 = vunpack.c.l.b16 %v7461
    %v7591 = vunpack.c.h.b16 %v7461
    %v7592 = vunpack.c.l.b16 %v7462
    %v7593 = vunpack.c.h.b16 %v7462
    %v7594 = vunpack.c.l.b16 %v7463
    %v7595 = vunpack.c.h.b16 %v7463
    %v7596 = vunpack.c.l.b16 %v7464
    %v7597 = vunpack.c.h.b16 %v7464
    %v7598 = vunpack.c.l.b16 %v7465
    %v7599 = vunpack.c.h.b16 %v7465
    %v7600 = vunpack.c.l.b16 %v7466
    %v7601 = vunpack.c.h.b16 %v7466
    %v7602 = vunpack.c.l.b16 %v7467
    %v7603 = vunpack.c.h.b16 %v7467
    %v7604 = vunpack.c.l.b16 %v7468
    %v7605 = vunpack.c.h.b16 %v7468
    %v7606 = vunpack.c.l.b16 %v7469
    %v7607 = vunpack.c.h.b16 %v7469
    %v7608 = vunpack.c.l.b16 %v7470
    %v7609 = vunpack.c.h.b16 %v7470
    %v7610 = vunpack.c.l.b16 %v7471
    %v7611 = vunpack.c.h.b16 %v7471
    %v7612 = vunpack.c.l.b16 %v7472
    %v7613 = vunpack.c.h.b16 %v7472
    %v7614 = vunpack.c.l.b16 %v7473
    %v7615 = vunpack.c.h.b16 %v7473
    %v7616 = vunpack.c.l.b16 %v7474
    %v7617 = vunpack.c.h.b16 %v7474
    %v7618 = vunpack.c.l.b16 %v7475
    %v7619 = vunpack.c.h.b16 %v7475
    %v7620 = vpack.c.b16 %v7530, %v7524
    %v7621 = vpack.c.b16 %v7531, %v7525
    %v7622 = vpack.c.b16 %v7532, %v7526
    %v7623 = vpack.c.b16 %v7533, %v7527
    %v7624 = vpack.c.b16 %v7534, %v7528
    %v7625 = vpack.c.b16 %v7535, %v7529
    %v7626 = vpack.c.b16 %v7542, %v7536
    %v7627 = vpack.c.b16 %v7543, %v7537
    %v7628 = vpack.c.b16 %v7544, %v7538
    %v7629 = vpack.c.b16 %v7545, %v7539
    %v7630 = vpack.c.b16 %v7546, %v7540
    %v7631 = vpack.c.b16 %v7547, %v7541
    %v7632 = vpack.c.b16 %v7554, %v7548
    %v7633 = vpack.c.b16 %v7555, %v7549
    %v7634 = vpack.c.b16 %v7556, %v7550
    %v7635 = vpack.c.b16 %v7557, %v7551
    %v7636 = vpack.c.b16 %v7558, %v7552
    %v7637 = vpack.c.b16 %v7559, %v7553
    %v7638 = vpack.c.b16 %v7566, %v7560
    %v7639 = vpack.c.b16 %v7567, %v7561
    %v7640 = vpack.c.b16 %v7568, %v7562
    %v7641 = vpack.c.b16 %v7569, %v7563
    %v7642 = vpack.c.b16 %v7570, %v7564
    %v7643 = vpack.c.b16 %v7571, %v7565
    %v7644 = vpack.c.b16 %v7578, %v7572
    %v7645 = vpack.c.b16 %v7579, %v7573
    %v7646 = vpack.c.b16 %v7580, %v7574
    %v7647 = vpack.c.b16 %v7581, %v7575
    %v7648 = vpack.c.b16 %v7582, %v7576
    %v7649 = vpack.c.b16 %v7583, %v7577
    %v7650 = vpack.c.b16 %v7590, %v7584
    %v7651 = vpack.c.b16 %v7591, %v7585
    %v7652 = vpack.c.b16 %v7592, %v7586
    %v7653 = vpack.c.b16 %v7593, %v7587
    %v7654 = vpack.c.b16 %v7594, %v7588
    %v7655 = vpack.c.b16 %v7595, %v7589
    %v7656 = vpack.c.b16 %v7602, %v7596
    %v7657 = vpack.c.b16 %v7603, %v7597
    %v7658 = vpack.c.b16 %v7604, %v7598
    %v7659 = vpack.c.b16 %v7605, %v7599
    %v7660 = vpack.c.b16 %v7606, %v7600
    %v7661 = vpack.c.b16 %v7607, %v7601
    %v7662 = vpack.c.b16 %v7614, %v7608
    %v7663 = vpack.c.b16 %v7615, %v7609
    %v7664 = vpack.c.b16 %v7616, %v7610
    %v7665 = vpack.c.b16 %v7617, %v7611
    %v7666 = vpack.c.b16 %v7618, %v7612
    %v7667 = vpack.c.b16 %v7619, %v7613
    %7716 = vmatprep.subr.bf16.mxu0 %v7663
    %7717 = vmatpush1.bf16.msra.mxu0 %v7662
    %7718 = vmatprep.subr.bf16.mxu0 %v7657
    %7719 = vmatpush1.bf16.msra.mxu0 %v7656
    %7720 = vmatprep.subr.bf16.mxu0 %v7651
    %7721 = vmatpush1.bf16.msra.mxu0 %v7650
    %7722 = vmatprep.subr.bf16.mxu0 %v7645
    %7723 = vmatpush1.bf16.msra.mxu0 %v7644
    %7724 = vmatprep.subr.bf16.mxu0 %v7639
    %7725 = vmatpush1.bf16.msra.mxu0 %v7638
    %7726 = vmatprep.subr.bf16.mxu0 %v7633
    %7727 = vmatpush1.bf16.msra.mxu0 %v7632
    %7728 = vmatprep.subr.bf16.mxu0 %v7627
    %7729 = vmatpush1.bf16.msra.mxu0 %v7626
    %7730 = vmatprep.subr.bf16.mxu0 %v7621
    %7731 = vmatpush1.bf16.msra.mxu0 %v7620
    %7732 = vmatprep.subr.bf16.mxu0 0
    %7733 = vmatpush2.bf16.msra.mxu0 0
    %7734 = vmatprep.subr.bf16.mxu0 0
    %7735 = vmatpush2.bf16.msra.mxu0 0
    %7736 = vmatprep.subr.bf16.mxu0 0
    %7737 = vmatpush2.bf16.msra.mxu0 0
    %7738 = vmatprep.subr.bf16.mxu0 0
    %7739 = vmatpush2.bf16.msra.mxu0 0
    %7740 = vmatprep.subr.bf16.mxu0 0
    %7741 = vmatpush2.bf16.msra.mxu0 0
    %7742 = vmatprep.subr.bf16.mxu0 0
    %7743 = vmatpush2.bf16.msra.mxu0 0
    %7744 = vmatprep.subr.bf16.mxu0 0
    %7745 = vmatpush2.bf16.msra.mxu0 0
    %7746 = vmatprep.subr.bf16.mxu0 0
    %7747 = vmatpush2.bf16.msra.mxu0 0
    %7748 = vmatprep.mubr.bf16.mxu0 0
    %7749 = vmatmul.mubr.bf16.gmra.mxu0 %v7423
    %v7750 = vpop.f32.mrf.mxu0
    %v7751 = vadd.f32 0.0, %v7750
    %v7752 = vpop.f32.mrf.mxu0
    %v7753 = vadd.f32 0.0, %v7752
    %v7754 = vpop.f32.mrf.mxu0
    %v7755 = vadd.f32 0.0, %v7754
    %v7756 = vpop.f32.mrf.mxu0
    %v7757 = vadd.f32 0.0, %v7756
    %7758 = vmatprep.mubr.bf16.mxu0 0
    %7759 = vmatmul.mubr.bf16.gmra.mxu0 %v7424
    %v7760 = vpop.f32.mrf.mxu0
    %v7761 = vadd.f32 0.0, %v7760
    %v7762 = vpop.f32.mrf.mxu0
    %v7763 = vadd.f32 0.0, %v7762
    %v7764 = vpop.f32.mrf.mxu0
    %v7765 = vadd.f32 0.0, %v7764
    %v7766 = vpop.f32.mrf.mxu0
    %v7767 = vadd.f32 0.0, %v7766
    %7768 = vmatprep.mubr.bf16.mxu0 0
    %7769 = vmatmul.mubr.bf16.gmra.mxu0 %v7425
    %v7770 = vpop.f32.mrf.mxu0
    %v7771 = vadd.f32 0.0, %v7770
    %v7772 = vpop.f32.mrf.mxu0
    %v7773 = vadd.f32 0.0, %v7772
    %v7774 = vpop.f32.mrf.mxu0
    %v7775 = vadd.f32 0.0, %v7774
    %v7776 = vpop.f32.mrf.mxu0
    %v7777 = vadd.f32 0.0, %v7776
    %7778 = vmatprep.mubr.bf16.mxu0 0
    %7779 = vmatmul.mubr.bf16.gmra.mxu0 %v7426
    %v7780 = vpop.f32.mrf.mxu0
    %v7781 = vadd.f32 0.0, %v7780
    %v7782 = vpop.f32.mrf.mxu0
    %v7783 = vadd.f32 0.0, %v7782
    %v7784 = vpop.f32.mrf.mxu0
    %v7785 = vadd.f32 0.0, %v7784
    %v7786 = vpop.f32.mrf.mxu0
    %v7787 = vadd.f32 0.0, %v7786
    %7788 = vdwg.mxu0
    %7789 = vmatprep.subr.bf16.mxu0 %v7665
    %7790 = vmatpush1.bf16.msra.mxu0 %v7664
    %7791 = vmatprep.subr.bf16.mxu0 %v7659
    %7792 = vmatpush1.bf16.msra.mxu0 %v7658
    %7793 = vmatprep.subr.bf16.mxu0 %v7653
    %7794 = vmatpush1.bf16.msra.mxu0 %v7652
    %7795 = vmatprep.subr.bf16.mxu0 %v7647
    %7796 = vmatpush1.bf16.msra.mxu0 %v7646
    %7797 = vmatprep.subr.bf16.mxu0 %v7641
    %7798 = vmatpush1.bf16.msra.mxu0 %v7640
    %7799 = vmatprep.subr.bf16.mxu0 %v7635
    %7800 = vmatpush1.bf16.msra.mxu0 %v7634
    %7801 = vmatprep.subr.bf16.mxu0 %v7629
    %7802 = vmatpush1.bf16.msra.mxu0 %v7628
    %7803 = vmatprep.subr.bf16.mxu0 %v7623
    %7804 = vmatpush1.bf16.msra.mxu0 %v7622
    %7805 = vmatprep.subr.bf16.mxu0 0
    %7806 = vmatpush2.bf16.msra.mxu0 0
    %7807 = vmatprep.subr.bf16.mxu0 0
    %7808 = vmatpush2.bf16.msra.mxu0 0
    %7809 = vmatprep.subr.bf16.mxu0 0
    %7810 = vmatpush2.bf16.msra.mxu0 0
    %7811 = vmatprep.subr.bf16.mxu0 0
    %7812 = vmatpush2.bf16.msra.mxu0 0
    %7813 = vmatprep.subr.bf16.mxu0 0
    %7814 = vmatpush2.bf16.msra.mxu0 0
    %7815 = vmatprep.subr.bf16.mxu0 0
    %7816 = vmatpush2.bf16.msra.mxu0 0
    %7817 = vmatprep.subr.bf16.mxu0 0
    %7818 = vmatpush2.bf16.msra.mxu0 0
    %7819 = vmatprep.subr.bf16.mxu0 0
    %7820 = vmatpush2.bf16.msra.mxu0 0
    %7821 = vmatprep.mubr.bf16.mxu0 0
    %7822 = vmatmul.mubr.bf16.gmra.mxu0 %v7423
    %v7823 = vpop.f32.mrf.mxu0
    %v7824 = vadd.f32 0.0, %v7823
    %v7825 = vpop.f32.mrf.mxu0
    %v7826 = vadd.f32 0.0, %v7825
    %v7827 = vpop.f32.mrf.mxu0
    %v7828 = vadd.f32 0.0, %v7827
    %v7829 = vpop.f32.mrf.mxu0
    %v7830 = vadd.f32 0.0, %v7829
    %7831 = vmatprep.mubr.bf16.mxu0 0
    %7832 = vmatmul.mubr.bf16.gmra.mxu0 %v7424
    %v7833 = vpop.f32.mrf.mxu0
    %v7834 = vadd.f32 0.0, %v7833
    %v7835 = vpop.f32.mrf.mxu0
    %v7836 = vadd.f32 0.0, %v7835
    %v7837 = vpop.f32.mrf.mxu0
    %v7838 = vadd.f32 0.0, %v7837
    %v7839 = vpop.f32.mrf.mxu0
    %v7840 = vadd.f32 0.0, %v7839
    %7841 = vmatprep.mubr.bf16.mxu0 0
    %7842 = vmatmul.mubr.bf16.gmra.mxu0 %v7425
    %v7843 = vpop.f32.mrf.mxu0
    %v7844 = vadd.f32 0.0, %v7843
    %v7845 = vpop.f32.mrf.mxu0
    %v7846 = vadd.f32 0.0, %v7845
    %v7847 = vpop.f32.mrf.mxu0
    %v7848 = vadd.f32 0.0, %v7847
    %v7849 = vpop.f32.mrf.mxu0
    %v7850 = vadd.f32 0.0, %v7849
    %7851 = vmatprep.mubr.bf16.mxu0 0
    %7852 = vmatmul.mubr.bf16.gmra.mxu0 %v7426
    %v7853 = vpop.f32.mrf.mxu0
    %v7854 = vadd.f32 0.0, %v7853
    %v7855 = vpop.f32.mrf.mxu0
    %v7856 = vadd.f32 0.0, %v7855
    %v7857 = vpop.f32.mrf.mxu0
    %v7858 = vadd.f32 0.0, %v7857
    %v7859 = vpop.f32.mrf.mxu0
    %v7860 = vadd.f32 0.0, %v7859
    %7861 = vdwg.mxu0
    %7862 = vmatprep.subr.bf16.mxu0 %v7667
    %7863 = vmatpush1.bf16.msra.mxu0 %v7666
    %7864 = vmatprep.subr.bf16.mxu0 %v7661
    %7865 = vmatpush1.bf16.msra.mxu0 %v7660
    %7866 = vmatprep.subr.bf16.mxu0 %v7655
    %7867 = vmatpush1.bf16.msra.mxu0 %v7654
    %7868 = vmatprep.subr.bf16.mxu0 %v7649
    %7869 = vmatpush1.bf16.msra.mxu0 %v7648
    %7870 = vmatprep.subr.bf16.mxu0 %v7643
    %7871 = vmatpush1.bf16.msra.mxu0 %v7642
    %7872 = vmatprep.subr.bf16.mxu0 %v7637
    %7873 = vmatpush1.bf16.msra.mxu0 %v7636
    %7874 = vmatprep.subr.bf16.mxu0 %v7631
    %7875 = vmatpush1.bf16.msra.mxu0 %v7630
    %7876 = vmatprep.subr.bf16.mxu0 %v7625
    %7877 = vmatpush1.bf16.msra.mxu0 %v7624
    %7878 = vmatprep.subr.bf16.mxu0 0
    %7879 = vmatpush2.bf16.msra.mxu0 0
    %7880 = vmatprep.subr.bf16.mxu0 0
    %7881 = vmatpush2.bf16.msra.mxu0 0
    %7882 = vmatprep.subr.bf16.mxu0 0
    %7883 = vmatpush2.bf16.msra.mxu0 0
    %7884 = vmatprep.subr.bf16.mxu0 0
    %7885 = vmatpush2.bf16.msra.mxu0 0
    %7886 = vmatprep.subr.bf16.mxu0 0
    %7887 = vmatpush2.bf16.msra.mxu0 0
    %7888 = vmatprep.subr.bf16.mxu0 0
    %7889 = vmatpush2.bf16.msra.mxu0 0
    %7890 = vmatprep.subr.bf16.mxu0 0
    %7891 = vmatpush2.bf16.msra.mxu0 0
    %7892 = vmatprep.subr.bf16.mxu0 0
    %7893 = vmatpush2.bf16.msra.mxu0 0
    %7894 = vmatprep.mubr.bf16.mxu0 0
    %7895 = vmatmul.mubr.bf16.gmra.mxu0 %v7423
    %v7896 = vpop.f32.mrf.mxu0
    %v7897 = vadd.f32 0.0, %v7896
    %v7898 = vpop.f32.mrf.mxu0
    %v7899 = vadd.f32 0.0, %v7898
    %v7900 = vpop.f32.mrf.mxu0
    %v7901 = vadd.f32 0.0, %v7900
    %v7902 = vpop.f32.mrf.mxu0
    %v7903 = vadd.f32 0.0, %v7902
    %7904 = vmatprep.mubr.bf16.mxu0 0
    %7905 = vmatmul.mubr.bf16.gmra.mxu0 %v7424
    %v7906 = vpop.f32.mrf.mxu0
    %v7907 = vadd.f32 0.0, %v7906
    %v7908 = vpop.f32.mrf.mxu0
    %v7909 = vadd.f32 0.0, %v7908
    %v7910 = vpop.f32.mrf.mxu0
    %v7911 = vadd.f32 0.0, %v7910
    %v7912 = vpop.f32.mrf.mxu0
    %v7913 = vadd.f32 0.0, %v7912
    %7914 = vmatprep.mubr.bf16.mxu0 0
    %7915 = vmatmul.mubr.bf16.gmra.mxu0 %v7425
    %v7916 = vpop.f32.mrf.mxu0
    %v7917 = vadd.f32 0.0, %v7916
    %v7918 = vpop.f32.mrf.mxu0
    %v7919 = vadd.f32 0.0, %v7918
    %v7920 = vpop.f32.mrf.mxu0
    %v7921 = vadd.f32 0.0, %v7920
    %v7922 = vpop.f32.mrf.mxu0
    %v7923 = vadd.f32 0.0, %v7922
    %7924 = vmatprep.mubr.bf16.mxu0 0
    %7925 = vmatmul.mubr.bf16.gmra.mxu0 %v7426
    %v7926 = vpop.f32.mrf.mxu0
    %v7927 = vadd.f32 0.0, %v7926
    %v7928 = vpop.f32.mrf.mxu0
    %v7929 = vadd.f32 0.0, %v7928
    %v7930 = vpop.f32.mrf.mxu0
    %v7931 = vadd.f32 0.0, %v7930
    %v7932 = vpop.f32.mrf.mxu0
    %v7933 = vadd.f32 0.0, %v7932
    %7934 = vdwg.mxu0
    %s7935 = scalar_lea.vmem %s57, 128
    %v7936 = vld [vmem:[%s7935] sm:$0xf]
    %v7937 = vld [vmem:[%s7935 + $0x4] sm:$0xf]
    %v7938 = vld [vmem:[%s7935 + $0x8] sm:$0xf]
    %v7939 = vld [vmem:[%s7935 + $0xc] sm:$0xf]
    %v7940 = vld [vmem:[%s7935 + $0x10] sm:$0xf]
    %v7941 = vld [vmem:[%s7935 + $0x14] sm:$0xf]
    %v7942 = vld [vmem:[%s7935 + $0x18] sm:$0xf]
    %v7943 = vld [vmem:[%s7935 + $0x1c] sm:$0xf]
    %v7944 = vld [vmem:[%s7935 + $0x20] sm:$0xf]
    %v7945 = vld [vmem:[%s7935 + $0x24] sm:$0xf]
    %v7946 = vld [vmem:[%s7935 + $0x28] sm:$0xf]
    %v7947 = vld [vmem:[%s7935 + $0x2c] sm:$0xf]
    %v7948 = vld [vmem:[%s7935 + $0x30] sm:$0xf]
    %v7949 = vld [vmem:[%s7935 + $0x34] sm:$0xf]
    %v7950 = vld [vmem:[%s7935 + $0x38] sm:$0xf]
    %v7951 = vld [vmem:[%s7935 + $0x3c] sm:$0xf]
    %v7952 = vld [vmem:[%s7935 + $0x40] sm:$0xf]
    %v7953 = vld [vmem:[%s7935 + $0x44] sm:$0xf]
    %v7954 = vld [vmem:[%s7935 + $0x48] sm:$0xf]
    %v7955 = vld [vmem:[%s7935 + $0x4c] sm:$0xf]
    %v7956 = vld [vmem:[%s7935 + $0x50] sm:$0xf]
    %v7957 = vld [vmem:[%s7935 + $0x54] sm:$0xf]
    %v7958 = vld [vmem:[%s7935 + $0x58] sm:$0xf]
    %v7959 = vld [vmem:[%s7935 + $0x5c] sm:$0xf]
    %v7960 = vld [vmem:[%s7935 + $0x60] sm:$0xf]
    %v7961 = vld [vmem:[%s7935 + $0x64] sm:$0xf]
    %v7962 = vld [vmem:[%s7935 + $0x68] sm:$0xf]
    %v7963 = vld [vmem:[%s7935 + $0x6c] sm:$0xf]
    %v7964 = vld [vmem:[%s7935 + $0x70] sm:$0xf]
    %v7965 = vld [vmem:[%s7935 + $0x74] sm:$0xf]
    %v7966 = vld [vmem:[%s7935 + $0x78] sm:$0xf]
    %v7967 = vld [vmem:[%s7935 + $0x7c] sm:$0xf]
    %v7968 = vpack.c.bf16 %v7755, %v7751
    %v7969 = vpack.c.bf16 %v7765, %v7761
    %v7970 = vpack.c.bf16 %v7775, %v7771
    %v7971 = vpack.c.bf16 %v7785, %v7781
    %v7972 = vpack.c.bf16 %v7828, %v7824
    %v7973 = vpack.c.bf16 %v7838, %v7834
    %v7974 = vpack.c.bf16 %v7848, %v7844
    %v7975 = vpack.c.bf16 %v7858, %v7854
    %v7976 = vpack.c.bf16 %v7901, %v7897
    %v7977 = vpack.c.bf16 %v7911, %v7907
    %v7978 = vpack.c.bf16 %v7921, %v7917
    %v7979 = vpack.c.bf16 %v7931, %v7927
    %v7981 = vsel %vm605, %v7968, 0
    %v7984 = vsel %vm605, %v7969, 0
    %v7987 = vsel %vm605, %v7970, 0
    %v7990 = vsel %vm605, %v7971, 0
    %v7993 = vsel %vm605, %v7972, 0
    %v7996 = vsel %vm605, %v7973, 0
    %v7999 = vsel %vm605, %v7974, 0
    %v8002 = vsel %vm605, %v7975, 0
    %8004 = vmatprep.subr.bf16.mxu0 0
    %8005 = vmatpush1.bf16.xpose.msra.mxu0 0
    %8006 = vmatprep.subr.bf16.mxu0 0
    %8007 = vmatpush1.bf16.xpose.msra.mxu0 0
    %8008 = vmatprep.subr.bf16.mxu0 0
    %8009 = vmatpush1.bf16.xpose.msra.mxu0 0
    %8010 = vmatprep.subr.bf16.mxu0 0
    %8011 = vmatpush1.bf16.xpose.msra.mxu0 0
    %8012 = vmatprep.subr.bf16.mxu0 0
    %8013 = vmatpush1.bf16.xpose.msra.mxu0 %v8002
    %8014 = vmatprep.subr.bf16.mxu0 0
    %8015 = vmatpush1.bf16.xpose.msra.mxu0 %v7999
    %8016 = vmatprep.subr.bf16.mxu0 0
    %8017 = vmatpush1.bf16.xpose.msra.mxu0 %v7996
    %8018 = vmatprep.subr.bf16.mxu0 0
    %8019 = vmatpush1.bf16.xpose.msra.mxu0 %v7993
    %8020 = vmatprep.subr.bf16.mxu0 0
    %8021 = vmatpush2.bf16.xpose.msra.mxu0 0
    %8022 = vmatprep.subr.bf16.mxu0 0
    %8023 = vmatpush2.bf16.xpose.msra.mxu0 0
    %8024 = vmatprep.subr.bf16.mxu0 0
    %8025 = vmatpush2.bf16.xpose.msra.mxu0 0
    %8026 = vmatprep.subr.bf16.mxu0 0
    %8027 = vmatpush2.bf16.xpose.msra.mxu0 0
    %8028 = vmatprep.subr.bf16.mxu0 0
    %8029 = vmatpush2.bf16.xpose.msra.mxu0 0
    %8030 = vmatprep.subr.bf16.mxu0 0
    %8031 = vmatpush2.bf16.xpose.msra.mxu0 0
    %8032 = vmatprep.subr.bf16.mxu0 0
    %8033 = vmatpush2.bf16.xpose.msra.mxu0 0
    %8034 = vmatprep.subr.bf16.mxu0 0
    %8035 = vmatpush2.bf16.xpose.msra.mxu0 0
    %8036 = vmatprep.mubr.bf16.mxu0 0
    %8037 = vmatmul.mubr.bf16.gmra.mxu0 %v7981
    %v8038 = vpop.f32.mrf.mxu0
    %v8039 = vadd.f32 0.0, %v8038
    %v8040 = vpop.f32.mrf.mxu0
    %v8041 = vpop.f32.mrf.mxu0
    %v8042 = vadd.f32 0.0, %v8041
    %v8043 = vpop.f32.mrf.mxu0
    %8044 = vmatprep.mubr.bf16.mxu0 0
    %8045 = vmatmul.mubr.bf16.gmra.mxu0 %v7984
    %v8046 = vpop.f32.mrf.mxu0
    %v8047 = vadd.f32 0.0, %v8046
    %v8048 = vpop.f32.mrf.mxu0
    %v8049 = vpop.f32.mrf.mxu0
    %v8050 = vadd.f32 0.0, %v8049
    %v8051 = vpop.f32.mrf.mxu0
    %8052 = vmatprep.mubr.bf16.mxu0 0
    %8053 = vmatmul.mubr.bf16.gmra.mxu0 %v7987
    %v8054 = vpop.f32.mrf.mxu0
    %v8055 = vadd.f32 0.0, %v8054
    %v8056 = vpop.f32.mrf.mxu0
    %v8057 = vpop.f32.mrf.mxu0
    %v8058 = vadd.f32 0.0, %v8057
    %v8059 = vpop.f32.mrf.mxu0
    %8060 = vmatprep.mubr.bf16.mxu0 0
    %8061 = vmatmul.mubr.bf16.gmra.mxu0 %v7990
    %v8062 = vpop.f32.mrf.mxu0
    %v8063 = vadd.f32 0.0, %v8062
    %v8064 = vpop.f32.mrf.mxu0
    %v8065 = vpop.f32.mrf.mxu0
    %v8066 = vadd.f32 0.0, %v8065
    %v8067 = vpop.f32.mrf.mxu0
    %8068 = vdwg.mxu0
    %v8069 = vmul.f32 %v8039, 0.17677669
    %v8070 = vmul.f32 %v8042, 0.17677669
    %v8071 = vmul.f32 %v8047, 0.17677669
    %v8072 = vmul.f32 %v8050, 0.17677669
    %v8073 = vmul.f32 %v8055, 0.17677669
    %v8074 = vmul.f32 %v8058, 0.17677669
    %v8075 = vmul.f32 %v8063, 0.17677669
    %v8076 = vmul.f32 %v8066, 0.17677669
    %v8077 = vadd.f32 %v8069, %v4109
    %v8078 = vadd.f32 %v8070, %v4110
    %v8079 = vadd.f32 %v8071, %v4111
    %v8080 = vadd.f32 %v8072, %v4112
    %v8081 = vadd.f32 %v8073, %v4113
    %v8082 = vadd.f32 %v8074, %v4114
    %v8083 = vadd.f32 %v8075, %v4115
    %v8084 = vadd.f32 %v8076, %v4116
    %v8085 = vsel %vm605, %v8077, -inf
    %8086 = vmax.xlane.f32.xlu0 %v8085
    %v8087 = vpop.xlane.xlu0 %8086
    %v8088 = vsel %vm605, %v8078, -inf
    %8089 = vmax.xlane.f32.xlu0 %v8088
    %v8090 = vpop.xlane.xlu0 %8089
    %v8091 = vsel %vm605, %v8079, -inf
    %8092 = vmax.xlane.f32.xlu0 %v8091
    %v8093 = vpop.xlane.xlu0 %8092
    %v8094 = vsel %vm605, %v8080, -inf
    %8095 = vmax.xlane.f32.xlu0 %v8094
    %v8096 = vpop.xlane.xlu0 %8095
    %v8097 = vsel %vm605, %v8081, -inf
    %8098 = vmax.xlane.f32.xlu0 %v8097
    %v8099 = vpop.xlane.xlu0 %8098
    %v8100 = vsel %vm605, %v8082, -inf
    %8101 = vmax.xlane.f32.xlu0 %v8100
    %v8102 = vpop.xlane.xlu0 %8101
    %v8103 = vsel %vm605, %v8083, -inf
    %8104 = vmax.xlane.f32.xlu0 %v8103
    %v8105 = vpop.xlane.xlu0 %8104
    %v8106 = vsel %vm605, %v8084, -inf
    %8107 = vmax.xlane.f32.xlu0 %v8106
    %v8108 = vpop.xlane.xlu0 %8107
    %v8109 = vsub.f32 %v8077, %v8087
    %v8110 = vsub.f32 %v8078, %v8090
    %v8111 = vsub.f32 %v8079, %v8093
    %v8112 = vsub.f32 %v8080, %v8096
    %v8113 = vsub.f32 %v8081, %v8099
    %v8114 = vsub.f32 %v8082, %v8102
    %v8115 = vsub.f32 %v8083, %v8105
    %v8116 = vsub.f32 %v8084, %v8108
    %v8117 = vmul.f32 %v8109, 1.442695
    %v8118 = vpow.pop %v8117
    %v8119 = vmul.f32 %v8110, 1.442695
    %v8120 = vpow.pop %v8119
    %v8121 = vmul.f32 %v8111, 1.442695
    %v8122 = vpow.pop %v8121
    %v8123 = vmul.f32 %v8112, 1.442695
    %v8124 = vpow.pop %v8123
    %v8125 = vmul.f32 %v8113, 1.442695
    %v8126 = vpow.pop %v8125
    %v8127 = vmul.f32 %v8114, 1.442695
    %v8128 = vpow.pop %v8127
    %v8129 = vmul.f32 %v8115, 1.442695
    %v8130 = vpow.pop %v8129
    %v8131 = vmul.f32 %v8116, 1.442695
    %v8132 = vpow.pop %v8131
    %v8133 = vsel %vm605, %v8118, 0.0
    %8134 = vadd.xlane.f32.xlu0 %v8133
    %v8135 = vpop.xlane.xlu0 %8134
    %v8136 = vsel %vm605, %v8120, 0.0
    %8137 = vadd.xlane.f32.xlu0 %v8136
    %v8138 = vpop.xlane.xlu0 %8137
    %v8139 = vsel %vm605, %v8122, 0.0
    %8140 = vadd.xlane.f32.xlu0 %v8139
    %v8141 = vpop.xlane.xlu0 %8140
    %v8142 = vsel %vm605, %v8124, 0.0
    %8143 = vadd.xlane.f32.xlu0 %v8142
    %v8144 = vpop.xlane.xlu0 %8143
    %v8145 = vsel %vm605, %v8126, 0.0
    %8146 = vadd.xlane.f32.xlu0 %v8145
    %v8147 = vpop.xlane.xlu0 %8146
    %v8148 = vsel %vm605, %v8128, 0.0
    %8149 = vadd.xlane.f32.xlu0 %v8148
    %v8150 = vpop.xlane.xlu0 %8149
    %v8151 = vsel %vm605, %v8130, 0.0
    %8152 = vadd.xlane.f32.xlu0 %v8151
    %v8153 = vpop.xlane.xlu0 %8152
    %v8154 = vsel %vm605, %v8132, 0.0
    %8155 = vadd.xlane.f32.xlu0 %v8154
    %v8156 = vpop.xlane.xlu0 %8155
    %v8157 = vrcp.pop %v8135
    %v8158 = vrcp.pop %v8138
    %v8159 = vrcp.pop %v8141
    %v8160 = vrcp.pop %v8144
    %v8161 = vrcp.pop %v8147
    %v8162 = vrcp.pop %v8150
    %v8163 = vrcp.pop %v8153
    %v8164 = vrcp.pop %v8156
    %v8165 = vmul.f32 %v8118, %v8157
    %v8166 = vmul.f32 %v8120, %v8158
    %v8167 = vmul.f32 %v8122, %v8159
    %v8168 = vmul.f32 %v8124, %v8160
    %v8169 = vmul.f32 %v8126, %v8161
    %v8170 = vmul.f32 %v8128, %v8162
    %v8171 = vmul.f32 %v8130, %v8163
    %v8172 = vmul.f32 %v8132, %v8164
    %v8173 = vpack.c.bf16 %v8166, %v8165
    %v8174 = vpack.c.bf16 %v8168, %v8167
    %v8175 = vpack.c.bf16 %v8170, %v8169
    %v8176 = vpack.c.bf16 %v8172, %v8171
    %v8178 = vsel %vm605, %v8173, 0
    %v8181 = vsel %vm605, %v8174, 0
    %v8184 = vsel %vm605, %v8175, 0
    %v8187 = vsel %vm605, %v8176, 0
    %8189 = vmatprep.subr.bf16.mxu0 0
    %8190 = vmatpush1.bf16.msra.mxu0 0
    %8191 = vmatprep.subr.bf16.mxu0 0
    %8192 = vmatpush1.bf16.msra.mxu0 0
    %8193 = vmatprep.subr.bf16.mxu0 0
    %8194 = vmatpush1.bf16.msra.mxu0 0
    %8195 = vmatprep.subr.bf16.mxu0 0
    %8196 = vmatpush1.bf16.msra.mxu0 0
    %8197 = vmatprep.subr.bf16.mxu0 0
    %8198 = vmatpush1.bf16.msra.mxu0 %v7979
    %8199 = vmatprep.subr.bf16.mxu0 0
    %8200 = vmatpush1.bf16.msra.mxu0 %v7978
    %8201 = vmatprep.subr.bf16.mxu0 0
    %8202 = vmatpush1.bf16.msra.mxu0 %v7977
    %8203 = vmatprep.subr.bf16.mxu0 0
    %8204 = vmatpush1.bf16.msra.mxu0 %v7976
    %8205 = vmatprep.subr.bf16.mxu0 0
    %8206 = vmatpush2.bf16.msra.mxu0 0
    %8207 = vmatprep.subr.bf16.mxu0 0
    %8208 = vmatpush2.bf16.msra.mxu0 0
    %8209 = vmatprep.subr.bf16.mxu0 0
    %8210 = vmatpush2.bf16.msra.mxu0 0
    %8211 = vmatprep.subr.bf16.mxu0 0
    %8212 = vmatpush2.bf16.msra.mxu0 0
    %8213 = vmatprep.subr.bf16.mxu0 0
    %8214 = vmatpush2.bf16.msra.mxu0 0
    %8215 = vmatprep.subr.bf16.mxu0 0
    %8216 = vmatpush2.bf16.msra.mxu0 0
    %8217 = vmatprep.subr.bf16.mxu0 0
    %8218 = vmatpush2.bf16.msra.mxu0 0
    %8219 = vmatprep.subr.bf16.mxu0 0
    %8220 = vmatpush2.bf16.msra.mxu0 0
    %8221 = vmatprep.mubr.bf16.mxu0 0
    %8222 = vmatmul.mubr.bf16.gmra.mxu0 %v8178
    %v8223 = vpop.f32.mrf.mxu0
    %v8224 = vadd.f32 0.0, %v8223
    %v8225 = vpop.f32.mrf.mxu0
    %v8226 = vpop.f32.mrf.mxu0
    %v8227 = vadd.f32 0.0, %v8226
    %v8228 = vpop.f32.mrf.mxu0
    %8229 = vmatprep.mubr.bf16.mxu0 0
    %8230 = vmatmul.mubr.bf16.gmra.mxu0 %v8181
    %v8231 = vpop.f32.mrf.mxu0
    %v8232 = vadd.f32 0.0, %v8231
    %v8233 = vpop.f32.mrf.mxu0
    %v8234 = vpop.f32.mrf.mxu0
    %v8235 = vadd.f32 0.0, %v8234
    %v8236 = vpop.f32.mrf.mxu0
    %8237 = vmatprep.mubr.bf16.mxu0 0
    %8238 = vmatmul.mubr.bf16.gmra.mxu0 %v8184
    %v8239 = vpop.f32.mrf.mxu0
    %v8240 = vadd.f32 0.0, %v8239
    %v8241 = vpop.f32.mrf.mxu0
    %v8242 = vpop.f32.mrf.mxu0
    %v8243 = vadd.f32 0.0, %v8242
    %v8244 = vpop.f32.mrf.mxu0
    %8245 = vmatprep.mubr.bf16.mxu0 0
    %8246 = vmatmul.mubr.bf16.gmra.mxu0 %v8187
    %v8247 = vpop.f32.mrf.mxu0
    %v8248 = vadd.f32 0.0, %v8247
    %v8249 = vpop.f32.mrf.mxu0
    %v8250 = vpop.f32.mrf.mxu0
    %v8251 = vadd.f32 0.0, %v8250
    %v8252 = vpop.f32.mrf.mxu0
    %8253 = vdwg.mxu0
    %8258 = vrot.lane.b32.xlu0 %v7968, 64
    %v8259 = vpop.permute.xlu0 %8258
    %8260 = vrot.lane.b32.xlu0 %v7969, 64
    %v8261 = vpop.permute.xlu0 %8260
    %8262 = vrot.lane.b32.xlu0 %v7970, 64
    %v8263 = vpop.permute.xlu0 %8262
    %8264 = vrot.lane.b32.xlu0 %v7971, 64
    %v8265 = vpop.permute.xlu0 %8264
    %8270 = vrot.lane.b32.xlu0 %v7972, 64
    %v8271 = vpop.permute.xlu0 %8270
    %8272 = vrot.lane.b32.xlu0 %v7973, 64
    %v8273 = vpop.permute.xlu0 %8272
    %8274 = vrot.lane.b32.xlu0 %v7974, 64
    %v8275 = vpop.permute.xlu0 %8274
    %8276 = vrot.lane.b32.xlu0 %v7975, 64
    %v8277 = vpop.permute.xlu0 %8276
    %v8279 = vsel %vm605, %v8259, 0
    %v8282 = vsel %vm605, %v8261, 0
    %v8285 = vsel %vm605, %v8263, 0
    %v8288 = vsel %vm605, %v8265, 0
    %v8291 = vsel %vm605, %v8271, 0
    %v8294 = vsel %vm605, %v8273, 0
    %v8297 = vsel %vm605, %v8275, 0
    %v8300 = vsel %vm605, %v8277, 0
    %8302 = vmatprep.subr.bf16.mxu0 0
    %8303 = vmatpush1.bf16.xpose.msra.mxu0 0
    %8304 = vmatprep.subr.bf16.mxu0 0
    %8305 = vmatpush1.bf16.xpose.msra.mxu0 0
    %8306 = vmatprep.subr.bf16.mxu0 0
    %8307 = vmatpush1.bf16.xpose.msra.mxu0 0
    %8308 = vmatprep.subr.bf16.mxu0 0
    %8309 = vmatpush1.bf16.xpose.msra.mxu0 0
    %8310 = vmatprep.subr.bf16.mxu0 0
    %8311 = vmatpush1.bf16.xpose.msra.mxu0 %v8300
    %8312 = vmatprep.subr.bf16.mxu0 0
    %8313 = vmatpush1.bf16.xpose.msra.mxu0 %v8297
    %8314 = vmatprep.subr.bf16.mxu0 0
    %8315 = vmatpush1.bf16.xpose.msra.mxu0 %v8294
    %8316 = vmatprep.subr.bf16.mxu0 0
    %8317 = vmatpush1.bf16.xpose.msra.mxu0 %v8291
    %8318 = vmatprep.subr.bf16.mxu0 0
    %8319 = vmatpush2.bf16.xpose.msra.mxu0 0
    %8320 = vmatprep.subr.bf16.mxu0 0
    %8321 = vmatpush2.bf16.xpose.msra.mxu0 0
    %8322 = vmatprep.subr.bf16.mxu0 0
    %8323 = vmatpush2.bf16.xpose.msra.mxu0 0
    %8324 = vmatprep.subr.bf16.mxu0 0
    %8325 = vmatpush2.bf16.xpose.msra.mxu0 0
    %8326 = vmatprep.subr.bf16.mxu0 0
    %8327 = vmatpush2.bf16.xpose.msra.mxu0 0
    %8328 = vmatprep.subr.bf16.mxu0 0
    %8329 = vmatpush2.bf16.xpose.msra.mxu0 0
    %8330 = vmatprep.subr.bf16.mxu0 0
    %8331 = vmatpush2.bf16.xpose.msra.mxu0 0
    %8332 = vmatprep.subr.bf16.mxu0 0
    %8333 = vmatpush2.bf16.xpose.msra.mxu0 0
    %8334 = vmatprep.mubr.bf16.mxu0 0
    %8335 = vmatmul.mubr.bf16.gmra.mxu0 %v8279
    %v8336 = vpop.f32.mrf.mxu0
    %v8337 = vadd.f32 0.0, %v8336
    %v8338 = vpop.f32.mrf.mxu0
    %v8339 = vpop.f32.mrf.mxu0
    %v8340 = vadd.f32 0.0, %v8339
    %v8341 = vpop.f32.mrf.mxu0
    %8342 = vmatprep.mubr.bf16.mxu0 0
    %8343 = vmatmul.mubr.bf16.gmra.mxu0 %v8282
    %v8344 = vpop.f32.mrf.mxu0
    %v8345 = vadd.f32 0.0, %v8344
    %v8346 = vpop.f32.mrf.mxu0
    %v8347 = vpop.f32.mrf.mxu0
    %v8348 = vadd.f32 0.0, %v8347
    %v8349 = vpop.f32.mrf.mxu0
    %8350 = vmatprep.mubr.bf16.mxu0 0
    %8351 = vmatmul.mubr.bf16.gmra.mxu0 %v8285
    %v8352 = vpop.f32.mrf.mxu0
    %v8353 = vadd.f32 0.0, %v8352
    %v8354 = vpop.f32.mrf.mxu0
    %v8355 = vpop.f32.mrf.mxu0
    %v8356 = vadd.f32 0.0, %v8355
    %v8357 = vpop.f32.mrf.mxu0
    %8358 = vmatprep.mubr.bf16.mxu0 0
    %8359 = vmatmul.mubr.bf16.gmra.mxu0 %v8288
    %v8360 = vpop.f32.mrf.mxu0
    %v8361 = vadd.f32 0.0, %v8360
    %v8362 = vpop.f32.mrf.mxu0
    %v8363 = vpop.f32.mrf.mxu0
    %v8364 = vadd.f32 0.0, %v8363
    %v8365 = vpop.f32.mrf.mxu0
    %8366 = vdwg.mxu0
    %v8367 = vmul.f32 %v8337, 0.17677669
    %v8368 = vmul.f32 %v8340, 0.17677669
    %v8369 = vmul.f32 %v8345, 0.17677669
    %v8370 = vmul.f32 %v8348, 0.17677669
    %v8371 = vmul.f32 %v8353, 0.17677669
    %v8372 = vmul.f32 %v8356, 0.17677669
    %v8373 = vmul.f32 %v8361, 0.17677669
    %v8374 = vmul.f32 %v8364, 0.17677669
    %v8375 = vadd.f32 %v8367, %v4109
    %v8376 = vadd.f32 %v8368, %v4110
    %v8377 = vadd.f32 %v8369, %v4111
    %v8378 = vadd.f32 %v8370, %v4112
    %v8379 = vadd.f32 %v8371, %v4113
    %v8380 = vadd.f32 %v8372, %v4114
    %v8381 = vadd.f32 %v8373, %v4115
    %v8382 = vadd.f32 %v8374, %v4116
    %v8383 = vsel %vm605, %v8375, -inf
    %8384 = vmax.xlane.f32.xlu0 %v8383
    %v8385 = vpop.xlane.xlu0 %8384
    %v8386 = vsel %vm605, %v8376, -inf
    %8387 = vmax.xlane.f32.xlu0 %v8386
    %v8388 = vpop.xlane.xlu0 %8387
    %v8389 = vsel %vm605, %v8377, -inf
    %8390 = vmax.xlane.f32.xlu0 %v8389
    %v8391 = vpop.xlane.xlu0 %8390
    %v8392 = vsel %vm605, %v8378, -inf
    %8393 = vmax.xlane.f32.xlu0 %v8392
    %v8394 = vpop.xlane.xlu0 %8393
    %v8395 = vsel %vm605, %v8379, -inf
    %8396 = vmax.xlane.f32.xlu0 %v8395
    %v8397 = vpop.xlane.xlu0 %8396
    %v8398 = vsel %vm605, %v8380, -inf
    %8399 = vmax.xlane.f32.xlu0 %v8398
    %v8400 = vpop.xlane.xlu0 %8399
    %v8401 = vsel %vm605, %v8381, -inf
    %8402 = vmax.xlane.f32.xlu0 %v8401
    %v8403 = vpop.xlane.xlu0 %8402
    %v8404 = vsel %vm605, %v8382, -inf
    %8405 = vmax.xlane.f32.xlu0 %v8404
    %v8406 = vpop.xlane.xlu0 %8405
    %v8407 = vsub.f32 %v8375, %v8385
    %v8408 = vsub.f32 %v8376, %v8388
    %v8409 = vsub.f32 %v8377, %v8391
    %v8410 = vsub.f32 %v8378, %v8394
    %v8411 = vsub.f32 %v8379, %v8397
    %v8412 = vsub.f32 %v8380, %v8400
    %v8413 = vsub.f32 %v8381, %v8403
    %v8414 = vsub.f32 %v8382, %v8406
    %v8415 = vmul.f32 %v8407, 1.442695
    %v8416 = vpow.pop %v8415
    %v8417 = vmul.f32 %v8408, 1.442695
    %v8418 = vpow.pop %v8417
    %v8419 = vmul.f32 %v8409, 1.442695
    %v8420 = vpow.pop %v8419
    %v8421 = vmul.f32 %v8410, 1.442695
    %v8422 = vpow.pop %v8421
    %v8423 = vmul.f32 %v8411, 1.442695
    %v8424 = vpow.pop %v8423
    %v8425 = vmul.f32 %v8412, 1.442695
    %v8426 = vpow.pop %v8425
    %v8427 = vmul.f32 %v8413, 1.442695
    %v8428 = vpow.pop %v8427
    %v8429 = vmul.f32 %v8414, 1.442695
    %v8430 = vpow.pop %v8429
    %v8431 = vsel %vm605, %v8416, 0.0
    %8432 = vadd.xlane.f32.xlu0 %v8431
    %v8433 = vpop.xlane.xlu0 %8432
    %v8434 = vsel %vm605, %v8418, 0.0
    %8435 = vadd.xlane.f32.xlu0 %v8434
    %v8436 = vpop.xlane.xlu0 %8435
    %v8437 = vsel %vm605, %v8420, 0.0
    %8438 = vadd.xlane.f32.xlu0 %v8437
    %v8439 = vpop.xlane.xlu0 %8438
    %v8440 = vsel %vm605, %v8422, 0.0
    %8441 = vadd.xlane.f32.xlu0 %v8440
    %v8442 = vpop.xlane.xlu0 %8441
    %v8443 = vsel %vm605, %v8424, 0.0
    %8444 = vadd.xlane.f32.xlu0 %v8443
    %v8445 = vpop.xlane.xlu0 %8444
    %v8446 = vsel %vm605, %v8426, 0.0
    %8447 = vadd.xlane.f32.xlu0 %v8446
    %v8448 = vpop.xlane.xlu0 %8447
    %v8449 = vsel %vm605, %v8428, 0.0
    %8450 = vadd.xlane.f32.xlu0 %v8449
    %v8451 = vpop.xlane.xlu0 %8450
    %v8452 = vsel %vm605, %v8430, 0.0
    %8453 = vadd.xlane.f32.xlu0 %v8452
    %v8454 = vpop.xlane.xlu0 %8453
    %v8455 = vrcp.pop %v8433
    %v8456 = vrcp.pop %v8436
    %v8457 = vrcp.pop %v8439
    %v8458 = vrcp.pop %v8442
    %v8459 = vrcp.pop %v8445
    %v8460 = vrcp.pop %v8448
    %v8461 = vrcp.pop %v8451
    %v8462 = vrcp.pop %v8454
    %v8463 = vmul.f32 %v8416, %v8455
    %v8464 = vmul.f32 %v8418, %v8456
    %v8465 = vmul.f32 %v8420, %v8457
    %v8466 = vmul.f32 %v8422, %v8458
    %v8467 = vmul.f32 %v8424, %v8459
    %v8468 = vmul.f32 %v8426, %v8460
    %v8469 = vmul.f32 %v8428, %v8461
    %v8470 = vmul.f32 %v8430, %v8462
    %v8471 = vpack.c.bf16 %v8464, %v8463
    %v8472 = vpack.c.bf16 %v8466, %v8465
    %v8473 = vpack.c.bf16 %v8468, %v8467
    %v8474 = vpack.c.bf16 %v8470, %v8469
    %8479 = vrot.lane.b32.xlu0 %v7976, 64
    %v8480 = vpop.permute.xlu0 %8479
    %8481 = vrot.lane.b32.xlu0 %v7977, 64
    %v8482 = vpop.permute.xlu0 %8481
    %8483 = vrot.lane.b32.xlu0 %v7978, 64
    %v8484 = vpop.permute.xlu0 %8483
    %8485 = vrot.lane.b32.xlu0 %v7979, 64
    %v8486 = vpop.permute.xlu0 %8485
    %v8492 = vsel %vm605, %v8471, 0
    %v8495 = vsel %vm605, %v8472, 0
    %v8498 = vsel %vm605, %v8473, 0
    %v8501 = vsel %vm605, %v8474, 0
    %8503 = vmatprep.subr.bf16.mxu0 0
    %8504 = vmatpush1.bf16.msra.mxu0 0
    %8505 = vmatprep.subr.bf16.mxu0 0
    %8506 = vmatpush1.bf16.msra.mxu0 0
    %8507 = vmatprep.subr.bf16.mxu0 0
    %8508 = vmatpush1.bf16.msra.mxu0 0
    %8509 = vmatprep.subr.bf16.mxu0 0
    %8510 = vmatpush1.bf16.msra.mxu0 0
    %8511 = vmatprep.subr.bf16.mxu0 0
    %8512 = vmatpush1.bf16.msra.mxu0 %v8486
    %8513 = vmatprep.subr.bf16.mxu0 0
    %8514 = vmatpush1.bf16.msra.mxu0 %v8484
    %8515 = vmatprep.subr.bf16.mxu0 0
    %8516 = vmatpush1.bf16.msra.mxu0 %v8482
    %8517 = vmatprep.subr.bf16.mxu0 0
    %8518 = vmatpush1.bf16.msra.mxu0 %v8480
    %8519 = vmatprep.subr.bf16.mxu0 0
    %8520 = vmatpush2.bf16.msra.mxu0 0
    %8521 = vmatprep.subr.bf16.mxu0 0
    %8522 = vmatpush2.bf16.msra.mxu0 0
    %8523 = vmatprep.subr.bf16.mxu0 0
    %8524 = vmatpush2.bf16.msra.mxu0 0
    %8525 = vmatprep.subr.bf16.mxu0 0
    %8526 = vmatpush2.bf16.msra.mxu0 0
    %8527 = vmatprep.subr.bf16.mxu0 0
    %8528 = vmatpush2.bf16.msra.mxu0 0
    %8529 = vmatprep.subr.bf16.mxu0 0
    %8530 = vmatpush2.bf16.msra.mxu0 0
    %8531 = vmatprep.subr.bf16.mxu0 0
    %8532 = vmatpush2.bf16.msra.mxu0 0
    %8533 = vmatprep.subr.bf16.mxu0 0
    %8534 = vmatpush2.bf16.msra.mxu0 0
    %8535 = vmatprep.mubr.bf16.mxu0 0
    %8536 = vmatmul.mubr.bf16.gmra.mxu0 %v8492
    %v8537 = vpop.f32.mrf.mxu0
    %v8538 = vadd.f32 0.0, %v8537
    %v8539 = vpop.f32.mrf.mxu0
    %v8540 = vpop.f32.mrf.mxu0
    %v8541 = vadd.f32 0.0, %v8540
    %v8542 = vpop.f32.mrf.mxu0
    %8543 = vmatprep.mubr.bf16.mxu0 0
    %8544 = vmatmul.mubr.bf16.gmra.mxu0 %v8495
    %v8545 = vpop.f32.mrf.mxu0
    %v8546 = vadd.f32 0.0, %v8545
    %v8547 = vpop.f32.mrf.mxu0
    %v8548 = vpop.f32.mrf.mxu0
    %v8549 = vadd.f32 0.0, %v8548
    %v8550 = vpop.f32.mrf.mxu0
    %8551 = vmatprep.mubr.bf16.mxu0 0
    %8552 = vmatmul.mubr.bf16.gmra.mxu0 %v8498
    %v8553 = vpop.f32.mrf.mxu0
    %v8554 = vadd.f32 0.0, %v8553
    %v8555 = vpop.f32.mrf.mxu0
    %v8556 = vpop.f32.mrf.mxu0
    %v8557 = vadd.f32 0.0, %v8556
    %v8558 = vpop.f32.mrf.mxu0
    %8559 = vmatprep.mubr.bf16.mxu0 0
    %8560 = vmatmul.mubr.bf16.gmra.mxu0 %v8501
    %v8561 = vpop.f32.mrf.mxu0
    %v8562 = vadd.f32 0.0, %v8561
    %v8563 = vpop.f32.mrf.mxu0
    %v8564 = vpop.f32.mrf.mxu0
    %v8565 = vadd.f32 0.0, %v8564
    %v8566 = vpop.f32.mrf.mxu0
    %8567 = vdwg.mxu0
    %v8568 = vpack.c.bf16 %v7757, %v7753
    %v8569 = vpack.c.bf16 %v7767, %v7763
    %v8570 = vpack.c.bf16 %v7777, %v7773
    %v8571 = vpack.c.bf16 %v7787, %v7783
    %v8572 = vpack.c.bf16 %v7830, %v7826
    %v8573 = vpack.c.bf16 %v7840, %v7836
    %v8574 = vpack.c.bf16 %v7850, %v7846
    %v8575 = vpack.c.bf16 %v7860, %v7856
    %v8576 = vpack.c.bf16 %v7903, %v7899
    %v8577 = vpack.c.bf16 %v7913, %v7909
    %v8578 = vpack.c.bf16 %v7923, %v7919
    %v8579 = vpack.c.bf16 %v7933, %v7929
    %v8581 = vsel %vm605, %v8568, 0
    %v8584 = vsel %vm605, %v8569, 0
    %v8587 = vsel %vm605, %v8570, 0
    %v8590 = vsel %vm605, %v8571, 0
    %v8593 = vsel %vm605, %v8572, 0
    %v8596 = vsel %vm605, %v8573, 0
    %v8599 = vsel %vm605, %v8574, 0
    %v8602 = vsel %vm605, %v8575, 0
    %8604 = vmatprep.subr.bf16.mxu0 0
    %8605 = vmatpush1.bf16.xpose.msra.mxu0 0
    %8606 = vmatprep.subr.bf16.mxu0 0
    %8607 = vmatpush1.bf16.xpose.msra.mxu0 0
    %8608 = vmatprep.subr.bf16.mxu0 0
    %8609 = vmatpush1.bf16.xpose.msra.mxu0 0
    %8610 = vmatprep.subr.bf16.mxu0 0
    %8611 = vmatpush1.bf16.xpose.msra.mxu0 0
    %8612 = vmatprep.subr.bf16.mxu0 0
    %8613 = vmatpush1.bf16.xpose.msra.mxu0 %v8602
    %8614 = vmatprep.subr.bf16.mxu0 0
    %8615 = vmatpush1.bf16.xpose.msra.mxu0 %v8599
    %8616 = vmatprep.subr.bf16.mxu0 0
    %8617 = vmatpush1.bf16.xpose.msra.mxu0 %v8596
    %8618 = vmatprep.subr.bf16.mxu0 0
    %8619 = vmatpush1.bf16.xpose.msra.mxu0 %v8593
    %8620 = vmatprep.subr.bf16.mxu0 0
    %8621 = vmatpush2.bf16.xpose.msra.mxu0 0
    %8622 = vmatprep.subr.bf16.mxu0 0
    %8623 = vmatpush2.bf16.xpose.msra.mxu0 0
    %8624 = vmatprep.subr.bf16.mxu0 0
    %8625 = vmatpush2.bf16.xpose.msra.mxu0 0
    %8626 = vmatprep.subr.bf16.mxu0 0
    %8627 = vmatpush2.bf16.xpose.msra.mxu0 0
    %8628 = vmatprep.subr.bf16.mxu0 0
    %8629 = vmatpush2.bf16.xpose.msra.mxu0 0
    %8630 = vmatprep.subr.bf16.mxu0 0
    %8631 = vmatpush2.bf16.xpose.msra.mxu0 0
    %8632 = vmatprep.subr.bf16.mxu0 0
    %8633 = vmatpush2.bf16.xpose.msra.mxu0 0
    %8634 = vmatprep.subr.bf16.mxu0 0
    %8635 = vmatpush2.bf16.xpose.msra.mxu0 0
    %8636 = vmatprep.mubr.bf16.mxu0 0
    %8637 = vmatmul.mubr.bf16.gmra.mxu0 %v8581
    %v8638 = vpop.f32.mrf.mxu0
    %v8639 = vadd.f32 0.0, %v8638
    %v8640 = vpop.f32.mrf.mxu0
    %v8641 = vpop.f32.mrf.mxu0
    %v8642 = vadd.f32 0.0, %v8641
    %v8643 = vpop.f32.mrf.mxu0
    %8644 = vmatprep.mubr.bf16.mxu0 0
    %8645 = vmatmul.mubr.bf16.gmra.mxu0 %v8584
    %v8646 = vpop.f32.mrf.mxu0
    %v8647 = vadd.f32 0.0, %v8646
    %v8648 = vpop.f32.mrf.mxu0
    %v8649 = vpop.f32.mrf.mxu0
    %v8650 = vadd.f32 0.0, %v8649
    %v8651 = vpop.f32.mrf.mxu0
    %8652 = vmatprep.mubr.bf16.mxu0 0
    %8653 = vmatmul.mubr.bf16.gmra.mxu0 %v8587
    %v8654 = vpop.f32.mrf.mxu0
    %v8655 = vadd.f32 0.0, %v8654
    %v8656 = vpop.f32.mrf.mxu0
    %v8657 = vpop.f32.mrf.mxu0
    %v8658 = vadd.f32 0.0, %v8657
    %v8659 = vpop.f32.mrf.mxu0
    %8660 = vmatprep.mubr.bf16.mxu0 0
    %8661 = vmatmul.mubr.bf16.gmra.mxu0 %v8590
    %v8662 = vpop.f32.mrf.mxu0
    %v8663 = vadd.f32 0.0, %v8662
    %v8664 = vpop.f32.mrf.mxu0
    %v8665 = vpop.f32.mrf.mxu0
    %v8666 = vadd.f32 0.0, %v8665
    %v8667 = vpop.f32.mrf.mxu0
    %8668 = vdwg.mxu0
    %v8669 = vmul.f32 %v8639, 0.17677669
    %v8670 = vmul.f32 %v8642, 0.17677669
    %v8671 = vmul.f32 %v8647, 0.17677669
    %v8672 = vmul.f32 %v8650, 0.17677669
    %v8673 = vmul.f32 %v8655, 0.17677669
    %v8674 = vmul.f32 %v8658, 0.17677669
    %v8675 = vmul.f32 %v8663, 0.17677669
    %v8676 = vmul.f32 %v8666, 0.17677669
    %v8677 = vadd.f32 %v8669, %v4109
    %v8678 = vadd.f32 %v8670, %v4110
    %v8679 = vadd.f32 %v8671, %v4111
    %v8680 = vadd.f32 %v8672, %v4112
    %v8681 = vadd.f32 %v8673, %v4113
    %v8682 = vadd.f32 %v8674, %v4114
    %v8683 = vadd.f32 %v8675, %v4115
    %v8684 = vadd.f32 %v8676, %v4116
    %v8685 = vsel %vm605, %v8677, -inf
    %8686 = vmax.xlane.f32.xlu0 %v8685
    %v8687 = vpop.xlane.xlu0 %8686
    %v8688 = vsel %vm605, %v8678, -inf
    %8689 = vmax.xlane.f32.xlu0 %v8688
    %v8690 = vpop.xlane.xlu0 %8689
    %v8691 = vsel %vm605, %v8679, -inf
    %8692 = vmax.xlane.f32.xlu0 %v8691
    %v8693 = vpop.xlane.xlu0 %8692
    %v8694 = vsel %vm605, %v8680, -inf
    %8695 = vmax.xlane.f32.xlu0 %v8694
    %v8696 = vpop.xlane.xlu0 %8695
    %v8697 = vsel %vm605, %v8681, -inf
    %8698 = vmax.xlane.f32.xlu0 %v8697
    %v8699 = vpop.xlane.xlu0 %8698
    %v8700 = vsel %vm605, %v8682, -inf
    %8701 = vmax.xlane.f32.xlu0 %v8700
    %v8702 = vpop.xlane.xlu0 %8701
    %v8703 = vsel %vm605, %v8683, -inf
    %8704 = vmax.xlane.f32.xlu0 %v8703
    %v8705 = vpop.xlane.xlu0 %8704
    %v8706 = vsel %vm605, %v8684, -inf
    %8707 = vmax.xlane.f32.xlu0 %v8706
    %v8708 = vpop.xlane.xlu0 %8707
    %v8709 = vsub.f32 %v8677, %v8687
    %v8710 = vsub.f32 %v8678, %v8690
    %v8711 = vsub.f32 %v8679, %v8693
    %v8712 = vsub.f32 %v8680, %v8696
    %v8713 = vsub.f32 %v8681, %v8699
    %v8714 = vsub.f32 %v8682, %v8702
    %v8715 = vsub.f32 %v8683, %v8705
    %v8716 = vsub.f32 %v8684, %v8708
    %v8717 = vmul.f32 %v8709, 1.442695
    %v8718 = vpow.pop %v8717
    %v8719 = vmul.f32 %v8710, 1.442695
    %v8720 = vpow.pop %v8719
    %v8721 = vmul.f32 %v8711, 1.442695
    %v8722 = vpow.pop %v8721
    %v8723 = vmul.f32 %v8712, 1.442695
    %v8724 = vpow.pop %v8723
    %v8725 = vmul.f32 %v8713, 1.442695
    %v8726 = vpow.pop %v8725
    %v8727 = vmul.f32 %v8714, 1.442695
    %v8728 = vpow.pop %v8727
    %v8729 = vmul.f32 %v8715, 1.442695
    %v8730 = vpow.pop %v8729
    %v8731 = vmul.f32 %v8716, 1.442695
    %v8732 = vpow.pop %v8731
    %v8733 = vsel %vm605, %v8718, 0.0
    %8734 = vadd.xlane.f32.xlu0 %v8733
    %v8735 = vpop.xlane.xlu0 %8734
    %v8736 = vsel %vm605, %v8720, 0.0
    %8737 = vadd.xlane.f32.xlu0 %v8736
    %v8738 = vpop.xlane.xlu0 %8737
    %v8739 = vsel %vm605, %v8722, 0.0
    %8740 = vadd.xlane.f32.xlu0 %v8739
    %v8741 = vpop.xlane.xlu0 %8740
    %v8742 = vsel %vm605, %v8724, 0.0
    %8743 = vadd.xlane.f32.xlu0 %v8742
    %v8744 = vpop.xlane.xlu0 %8743
    %v8745 = vsel %vm605, %v8726, 0.0
    %8746 = vadd.xlane.f32.xlu0 %v8745
    %v8747 = vpop.xlane.xlu0 %8746
    %v8748 = vsel %vm605, %v8728, 0.0
    %8749 = vadd.xlane.f32.xlu0 %v8748
    %v8750 = vpop.xlane.xlu0 %8749
    %v8751 = vsel %vm605, %v8730, 0.0
    %8752 = vadd.xlane.f32.xlu0 %v8751
    %v8753 = vpop.xlane.xlu0 %8752
    %v8754 = vsel %vm605, %v8732, 0.0
    %8755 = vadd.xlane.f32.xlu0 %v8754
    %v8756 = vpop.xlane.xlu0 %8755
    %v8757 = vrcp.pop %v8735
    %v8758 = vrcp.pop %v8738
    %v8759 = vrcp.pop %v8741
    %v8760 = vrcp.pop %v8744
    %v8761 = vrcp.pop %v8747
    %v8762 = vrcp.pop %v8750
    %v8763 = vrcp.pop %v8753
    %v8764 = vrcp.pop %v8756
    %v8765 = vmul.f32 %v8718, %v8757
    %v8766 = vmul.f32 %v8720, %v8758
    %v8767 = vmul.f32 %v8722, %v8759
    %v8768 = vmul.f32 %v8724, %v8760
    %v8769 = vmul.f32 %v8726, %v8761
    %v8770 = vmul.f32 %v8728, %v8762
    %v8771 = vmul.f32 %v8730, %v8763
    %v8772 = vmul.f32 %v8732, %v8764
    %v8773 = vpack.c.bf16 %v8766, %v8765
    %v8774 = vpack.c.bf16 %v8768, %v8767
    %v8775 = vpack.c.bf16 %v8770, %v8769
    %v8776 = vpack.c.bf16 %v8772, %v8771
    %v8778 = vsel %vm605, %v8773, 0
    %v8781 = vsel %vm605, %v8774, 0
    %v8784 = vsel %vm605, %v8775, 0
    %v8787 = vsel %vm605, %v8776, 0
    %8789 = vmatprep.subr.bf16.mxu0 0
    %8790 = vmatpush1.bf16.msra.mxu0 0
    %8791 = vmatprep.subr.bf16.mxu0 0
    %8792 = vmatpush1.bf16.msra.mxu0 0
    %8793 = vmatprep.subr.bf16.mxu0 0
    %8794 = vmatpush1.bf16.msra.mxu0 0
    %8795 = vmatprep.subr.bf16.mxu0 0
    %8796 = vmatpush1.bf16.msra.mxu0 0
    %8797 = vmatprep.subr.bf16.mxu0 0
    %8798 = vmatpush1.bf16.msra.mxu0 %v8579
    %8799 = vmatprep.subr.bf16.mxu0 0
    %8800 = vmatpush1.bf16.msra.mxu0 %v8578
    %8801 = vmatprep.subr.bf16.mxu0 0
    %8802 = vmatpush1.bf16.msra.mxu0 %v8577
    %8803 = vmatprep.subr.bf16.mxu0 0
    %8804 = vmatpush1.bf16.msra.mxu0 %v8576
    %8805 = vmatprep.subr.bf16.mxu0 0
    %8806 = vmatpush2.bf16.msra.mxu0 0
    %8807 = vmatprep.subr.bf16.mxu0 0
    %8808 = vmatpush2.bf16.msra.mxu0 0
    %8809 = vmatprep.subr.bf16.mxu0 0
    %8810 = vmatpush2.bf16.msra.mxu0 0
    %8811 = vmatprep.subr.bf16.mxu0 0
    %8812 = vmatpush2.bf16.msra.mxu0 0
    %8813 = vmatprep.subr.bf16.mxu0 0
    %8814 = vmatpush2.bf16.msra.mxu0 0
    %8815 = vmatprep.subr.bf16.mxu0 0
    %8816 = vmatpush2.bf16.msra.mxu0 0
    %8817 = vmatprep.subr.bf16.mxu0 0
    %8818 = vmatpush2.bf16.msra.mxu0 0
    %8819 = vmatprep.subr.bf16.mxu0 0
    %8820 = vmatpush2.bf16.msra.mxu0 0
    %8821 = vmatprep.mubr.bf16.mxu0 0
    %8822 = vmatmul.mubr.bf16.gmra.mxu0 %v8778
    %v8823 = vpop.f32.mrf.mxu0
    %v8824 = vadd.f32 0.0, %v8823
    %v8825 = vpop.f32.mrf.mxu0
    %v8826 = vpop.f32.mrf.mxu0
    %v8827 = vadd.f32 0.0, %v8826
    %v8828 = vpop.f32.mrf.mxu0
    %8829 = vmatprep.mubr.bf16.mxu0 0
    %8830 = vmatmul.mubr.bf16.gmra.mxu0 %v8781
    %v8831 = vpop.f32.mrf.mxu0
    %v8832 = vadd.f32 0.0, %v8831
    %v8833 = vpop.f32.mrf.mxu0
    %v8834 = vpop.f32.mrf.mxu0
    %v8835 = vadd.f32 0.0, %v8834
    %v8836 = vpop.f32.mrf.mxu0
    %8837 = vmatprep.mubr.bf16.mxu0 0
    %8838 = vmatmul.mubr.bf16.gmra.mxu0 %v8784
    %v8839 = vpop.f32.mrf.mxu0
    %v8840 = vadd.f32 0.0, %v8839
    %v8841 = vpop.f32.mrf.mxu0
    %v8842 = vpop.f32.mrf.mxu0
    %v8843 = vadd.f32 0.0, %v8842
    %v8844 = vpop.f32.mrf.mxu0
    %8845 = vmatprep.mubr.bf16.mxu0 0
    %8846 = vmatmul.mubr.bf16.gmra.mxu0 %v8787
    %v8847 = vpop.f32.mrf.mxu0
    %v8848 = vadd.f32 0.0, %v8847
    %v8849 = vpop.f32.mrf.mxu0
    %v8850 = vpop.f32.mrf.mxu0
    %v8851 = vadd.f32 0.0, %v8850
    %v8852 = vpop.f32.mrf.mxu0
    %8853 = vdwg.mxu0
    %8858 = vrot.lane.b32.xlu0 %v8568, 64
    %v8859 = vpop.permute.xlu0 %8858
    %8860 = vrot.lane.b32.xlu0 %v8569, 64
    %v8861 = vpop.permute.xlu0 %8860
    %8862 = vrot.lane.b32.xlu0 %v8570, 64
    %v8863 = vpop.permute.xlu0 %8862
    %8864 = vrot.lane.b32.xlu0 %v8571, 64
    %v8865 = vpop.permute.xlu0 %8864
    %8870 = vrot.lane.b32.xlu0 %v8572, 64
    %v8871 = vpop.permute.xlu0 %8870
    %8872 = vrot.lane.b32.xlu0 %v8573, 64
    %v8873 = vpop.permute.xlu0 %8872
    %8874 = vrot.lane.b32.xlu0 %v8574, 64
    %v8875 = vpop.permute.xlu0 %8874
    %8876 = vrot.lane.b32.xlu0 %v8575, 64
    %v8877 = vpop.permute.xlu0 %8876
    %v8879 = vsel %vm605, %v8859, 0
    %v8882 = vsel %vm605, %v8861, 0
    %v8885 = vsel %vm605, %v8863, 0
    %v8888 = vsel %vm605, %v8865, 0
    %v8891 = vsel %vm605, %v8871, 0
    %v8894 = vsel %vm605, %v8873, 0
    %v8897 = vsel %vm605, %v8875, 0
    %v8900 = vsel %vm605, %v8877, 0
    %8902 = vmatprep.subr.bf16.mxu0 0
    %8903 = vmatpush1.bf16.xpose.msra.mxu0 0
    %8904 = vmatprep.subr.bf16.mxu0 0
    %8905 = vmatpush1.bf16.xpose.msra.mxu0 0
    %8906 = vmatprep.subr.bf16.mxu0 0
    %8907 = vmatpush1.bf16.xpose.msra.mxu0 0
    %8908 = vmatprep.subr.bf16.mxu0 0
    %8909 = vmatpush1.bf16.xpose.msra.mxu0 0
    %8910 = vmatprep.subr.bf16.mxu0 0
    %8911 = vmatpush1.bf16.xpose.msra.mxu0 %v8900
    %8912 = vmatprep.subr.bf16.mxu0 0
    %8913 = vmatpush1.bf16.xpose.msra.mxu0 %v8897
    %8914 = vmatprep.subr.bf16.mxu0 0
    %8915 = vmatpush1.bf16.xpose.msra.mxu0 %v8894
    %8916 = vmatprep.subr.bf16.mxu0 0
    %8917 = vmatpush1.bf16.xpose.msra.mxu0 %v8891
    %8918 = vmatprep.subr.bf16.mxu0 0
    %8919 = vmatpush2.bf16.xpose.msra.mxu0 0
    %8920 = vmatprep.subr.bf16.mxu0 0
    %8921 = vmatpush2.bf16.xpose.msra.mxu0 0
    %8922 = vmatprep.subr.bf16.mxu0 0
    %8923 = vmatpush2.bf16.xpose.msra.mxu0 0
    %8924 = vmatprep.subr.bf16.mxu0 0
    %8925 = vmatpush2.bf16.xpose.msra.mxu0 0
    %8926 = vmatprep.subr.bf16.mxu0 0
    %8927 = vmatpush2.bf16.xpose.msra.mxu0 0
    %8928 = vmatprep.subr.bf16.mxu0 0
    %8929 = vmatpush2.bf16.xpose.msra.mxu0 0
    %8930 = vmatprep.subr.bf16.mxu0 0
    %8931 = vmatpush2.bf16.xpose.msra.mxu0 0
    %8932 = vmatprep.subr.bf16.mxu0 0
    %8933 = vmatpush2.bf16.xpose.msra.mxu0 0
    %8934 = vmatprep.mubr.bf16.mxu0 0
    %8935 = vmatmul.mubr.bf16.gmra.mxu0 %v8879
    %v8936 = vpop.f32.mrf.mxu0
    %v8937 = vadd.f32 0.0, %v8936
    %v8938 = vpop.f32.mrf.mxu0
    %v8939 = vpop.f32.mrf.mxu0
    %v8940 = vadd.f32 0.0, %v8939
    %v8941 = vpop.f32.mrf.mxu0
    %8942 = vmatprep.mubr.bf16.mxu0 0
    %8943 = vmatmul.mubr.bf16.gmra.mxu0 %v8882
    %v8944 = vpop.f32.mrf.mxu0
    %v8945 = vadd.f32 0.0, %v8944
    %v8946 = vpop.f32.mrf.mxu0
    %v8947 = vpop.f32.mrf.mxu0
    %v8948 = vadd.f32 0.0, %v8947
    %v8949 = vpop.f32.mrf.mxu0
    %8950 = vmatprep.mubr.bf16.mxu0 0
    %8951 = vmatmul.mubr.bf16.gmra.mxu0 %v8885
    %v8952 = vpop.f32.mrf.mxu0
    %v8953 = vadd.f32 0.0, %v8952
    %v8954 = vpop.f32.mrf.mxu0
    %v8955 = vpop.f32.mrf.mxu0
    %v8956 = vadd.f32 0.0, %v8955
    %v8957 = vpop.f32.mrf.mxu0
    %8958 = vmatprep.mubr.bf16.mxu0 0
    %8959 = vmatmul.mubr.bf16.gmra.mxu0 %v8888
    %v8960 = vpop.f32.mrf.mxu0
    %v8961 = vadd.f32 0.0, %v8960
    %v8962 = vpop.f32.mrf.mxu0
    %v8963 = vpop.f32.mrf.mxu0
    %v8964 = vadd.f32 0.0, %v8963
    %v8965 = vpop.f32.mrf.mxu0
    %8966 = vdwg.mxu0
    %v8967 = vmul.f32 %v8937, 0.17677669
    %v8968 = vmul.f32 %v8940, 0.17677669
    %v8969 = vmul.f32 %v8945, 0.17677669
    %v8970 = vmul.f32 %v8948, 0.17677669
    %v8971 = vmul.f32 %v8953, 0.17677669
    %v8972 = vmul.f32 %v8956, 0.17677669
    %v8973 = vmul.f32 %v8961, 0.17677669
    %v8974 = vmul.f32 %v8964, 0.17677669
    %v8975 = vadd.f32 %v8967, %v4109
    %v8976 = vadd.f32 %v8968, %v4110
    %v8977 = vadd.f32 %v8969, %v4111
    %v8978 = vadd.f32 %v8970, %v4112
    %v8979 = vadd.f32 %v8971, %v4113
    %v8980 = vadd.f32 %v8972, %v4114
    %v8981 = vadd.f32 %v8973, %v4115
    %v8982 = vadd.f32 %v8974, %v4116
    %v8983 = vsel %vm605, %v8975, -inf
    %8984 = vmax.xlane.f32.xlu0 %v8983
    %v8985 = vpop.xlane.xlu0 %8984
    %v8986 = vsel %vm605, %v8976, -inf
    %8987 = vmax.xlane.f32.xlu0 %v8986
    %v8988 = vpop.xlane.xlu0 %8987
    %v8989 = vsel %vm605, %v8977, -inf
    %8990 = vmax.xlane.f32.xlu0 %v8989
    %v8991 = vpop.xlane.xlu0 %8990
    %v8992 = vsel %vm605, %v8978, -inf
    %8993 = vmax.xlane.f32.xlu0 %v8992
    %v8994 = vpop.xlane.xlu0 %8993
    %v8995 = vsel %vm605, %v8979, -inf
    %8996 = vmax.xlane.f32.xlu0 %v8995
    %v8997 = vpop.xlane.xlu0 %8996
    %v8998 = vsel %vm605, %v8980, -inf
    %8999 = vmax.xlane.f32.xlu0 %v8998
    %v9000 = vpop.xlane.xlu0 %8999
    %v9001 = vsel %vm605, %v8981, -inf
    %9002 = vmax.xlane.f32.xlu0 %v9001
    %v9003 = vpop.xlane.xlu0 %9002
    %v9004 = vsel %vm605, %v8982, -inf
    %9005 = vmax.xlane.f32.xlu0 %v9004
    %v9006 = vpop.xlane.xlu0 %9005
    %v9007 = vsub.f32 %v8975, %v8985
    %v9008 = vsub.f32 %v8976, %v8988
    %v9009 = vsub.f32 %v8977, %v8991
    %v9010 = vsub.f32 %v8978, %v8994
    %v9011 = vsub.f32 %v8979, %v8997
    %v9012 = vsub.f32 %v8980, %v9000
    %v9013 = vsub.f32 %v8981, %v9003
    %v9014 = vsub.f32 %v8982, %v9006
    %v9015 = vmul.f32 %v9007, 1.442695
    %v9016 = vpow.pop %v9015
    %v9017 = vmul.f32 %v9008, 1.442695
    %v9018 = vpow.pop %v9017
    %v9019 = vmul.f32 %v9009, 1.442695
    %v9020 = vpow.pop %v9019
    %v9021 = vmul.f32 %v9010, 1.442695
    %v9022 = vpow.pop %v9021
    %v9023 = vmul.f32 %v9011, 1.442695
    %v9024 = vpow.pop %v9023
    %v9025 = vmul.f32 %v9012, 1.442695
    %v9026 = vpow.pop %v9025
    %v9027 = vmul.f32 %v9013, 1.442695
    %v9028 = vpow.pop %v9027
    %v9029 = vmul.f32 %v9014, 1.442695
    %v9030 = vpow.pop %v9029
    %v9031 = vsel %vm605, %v9016, 0.0
    %9032 = vadd.xlane.f32.xlu0 %v9031
    %v9033 = vpop.xlane.xlu0 %9032
    %v9034 = vsel %vm605, %v9018, 0.0
    %9035 = vadd.xlane.f32.xlu0 %v9034
    %v9036 = vpop.xlane.xlu0 %9035
    %v9037 = vsel %vm605, %v9020, 0.0
    %9038 = vadd.xlane.f32.xlu0 %v9037
    %v9039 = vpop.xlane.xlu0 %9038
    %v9040 = vsel %vm605, %v9022, 0.0
    %9041 = vadd.xlane.f32.xlu0 %v9040
    %v9042 = vpop.xlane.xlu0 %9041
    %v9043 = vsel %vm605, %v9024, 0.0
    %9044 = vadd.xlane.f32.xlu0 %v9043
    %v9045 = vpop.xlane.xlu0 %9044
    %v9046 = vsel %vm605, %v9026, 0.0
    %9047 = vadd.xlane.f32.xlu0 %v9046
    %v9048 = vpop.xlane.xlu0 %9047
    %v9049 = vsel %vm605, %v9028, 0.0
    %9050 = vadd.xlane.f32.xlu0 %v9049
    %v9051 = vpop.xlane.xlu0 %9050
    %v9052 = vsel %vm605, %v9030, 0.0
    %9053 = vadd.xlane.f32.xlu0 %v9052
    %v9054 = vpop.xlane.xlu0 %9053
    %v9055 = vrcp.pop %v9033
    %v9056 = vrcp.pop %v9036
    %v9057 = vrcp.pop %v9039
    %v9058 = vrcp.pop %v9042
    %v9059 = vrcp.pop %v9045
    %v9060 = vrcp.pop %v9048
    %v9061 = vrcp.pop %v9051
    %v9062 = vrcp.pop %v9054
    %v9063 = vmul.f32 %v9016, %v9055
    %v9064 = vmul.f32 %v9018, %v9056
    %v9065 = vmul.f32 %v9020, %v9057
    %v9066 = vmul.f32 %v9022, %v9058
    %v9067 = vmul.f32 %v9024, %v9059
    %v9068 = vmul.f32 %v9026, %v9060
    %v9069 = vmul.f32 %v9028, %v9061
    %v9070 = vmul.f32 %v9030, %v9062
    %v9071 = vpack.c.bf16 %v9064, %v9063
    %v9072 = vpack.c.bf16 %v9066, %v9065
    %v9073 = vpack.c.bf16 %v9068, %v9067
    %v9074 = vpack.c.bf16 %v9070, %v9069
    %9079 = vrot.lane.b32.xlu0 %v8576, 64
    %v9080 = vpop.permute.xlu0 %9079
    %9081 = vrot.lane.b32.xlu0 %v8577, 64
    %v9082 = vpop.permute.xlu0 %9081
    %9083 = vrot.lane.b32.xlu0 %v8578, 64
    %v9084 = vpop.permute.xlu0 %9083
    %9085 = vrot.lane.b32.xlu0 %v8579, 64
    %v9086 = vpop.permute.xlu0 %9085
    %v9092 = vsel %vm605, %v9071, 0
    %v9095 = vsel %vm605, %v9072, 0
    %v9098 = vsel %vm605, %v9073, 0
    %v9101 = vsel %vm605, %v9074, 0
    %9103 = vmatprep.subr.bf16.mxu0 0
    %9104 = vmatpush1.bf16.msra.mxu0 0
    %9105 = vmatprep.subr.bf16.mxu0 0
    %9106 = vmatpush1.bf16.msra.mxu0 0
    %9107 = vmatprep.subr.bf16.mxu0 0
    %9108 = vmatpush1.bf16.msra.mxu0 0
    %9109 = vmatprep.subr.bf16.mxu0 0
    %9110 = vmatpush1.bf16.msra.mxu0 0
    %9111 = vmatprep.subr.bf16.mxu0 0
    %9112 = vmatpush1.bf16.msra.mxu0 %v9086
    %9113 = vmatprep.subr.bf16.mxu0 0
    %9114 = vmatpush1.bf16.msra.mxu0 %v9084
    %9115 = vmatprep.subr.bf16.mxu0 0
    %9116 = vmatpush1.bf16.msra.mxu0 %v9082
    %9117 = vmatprep.subr.bf16.mxu0 0
    %9118 = vmatpush1.bf16.msra.mxu0 %v9080
    %9119 = vmatprep.subr.bf16.mxu0 0
    %9120 = vmatpush2.bf16.msra.mxu0 0
    %9121 = vmatprep.subr.bf16.mxu0 0
    %9122 = vmatpush2.bf16.msra.mxu0 0
    %9123 = vmatprep.subr.bf16.mxu0 0
    %9124 = vmatpush2.bf16.msra.mxu0 0
    %9125 = vmatprep.subr.bf16.mxu0 0
    %9126 = vmatpush2.bf16.msra.mxu0 0
    %9127 = vmatprep.subr.bf16.mxu0 0
    %9128 = vmatpush2.bf16.msra.mxu0 0
    %9129 = vmatprep.subr.bf16.mxu0 0
    %9130 = vmatpush2.bf16.msra.mxu0 0
    %9131 = vmatprep.subr.bf16.mxu0 0
    %9132 = vmatpush2.bf16.msra.mxu0 0
    %9133 = vmatprep.subr.bf16.mxu0 0
    %9134 = vmatpush2.bf16.msra.mxu0 0
    %9135 = vmatprep.mubr.bf16.mxu0 0
    %9136 = vmatmul.mubr.bf16.gmra.mxu0 %v9092
    %v9137 = vpop.f32.mrf.mxu0
    %v9138 = vadd.f32 0.0, %v9137
    %v9139 = vpop.f32.mrf.mxu0
    %v9140 = vpop.f32.mrf.mxu0
    %v9141 = vadd.f32 0.0, %v9140
    %v9142 = vpop.f32.mrf.mxu0
    %9143 = vmatprep.mubr.bf16.mxu0 0
    %9144 = vmatmul.mubr.bf16.gmra.mxu0 %v9095
    %v9145 = vpop.f32.mrf.mxu0
    %v9146 = vadd.f32 0.0, %v9145
    %v9147 = vpop.f32.mrf.mxu0
    %v9148 = vpop.f32.mrf.mxu0
    %v9149 = vadd.f32 0.0, %v9148
    %v9150 = vpop.f32.mrf.mxu0
    %9151 = vmatprep.mubr.bf16.mxu0 0
    %9152 = vmatmul.mubr.bf16.gmra.mxu0 %v9098
    %v9153 = vpop.f32.mrf.mxu0
    %v9154 = vadd.f32 0.0, %v9153
    %v9155 = vpop.f32.mrf.mxu0
    %v9156 = vpop.f32.mrf.mxu0
    %v9157 = vadd.f32 0.0, %v9156
    %v9158 = vpop.f32.mrf.mxu0
    %9159 = vmatprep.mubr.bf16.mxu0 0
    %9160 = vmatmul.mubr.bf16.gmra.mxu0 %v9101
    %v9161 = vpop.f32.mrf.mxu0
    %v9162 = vadd.f32 0.0, %v9161
    %v9163 = vpop.f32.mrf.mxu0
    %v9164 = vpop.f32.mrf.mxu0
    %v9165 = vadd.f32 0.0, %v9164
    %v9166 = vpop.f32.mrf.mxu0
    %9167 = vdwg.mxu0
    %9176 = vrot.lane.b32.xlu0 %v8538, 64
    %v9177 = vpop.permute.xlu0 %9176
    %9178 = vrot.lane.b32.xlu0 %v8541, 64
    %v9179 = vpop.permute.xlu0 %9178
    %9180 = vrot.lane.b32.xlu0 %v8546, 64
    %v9181 = vpop.permute.xlu0 %9180
    %9182 = vrot.lane.b32.xlu0 %v8549, 64
    %v9183 = vpop.permute.xlu0 %9182
    %9184 = vrot.lane.b32.xlu0 %v8554, 64
    %v9185 = vpop.permute.xlu0 %9184
    %9186 = vrot.lane.b32.xlu0 %v8557, 64
    %v9187 = vpop.permute.xlu0 %9186
    %9188 = vrot.lane.b32.xlu0 %v8562, 64
    %v9189 = vpop.permute.xlu0 %9188
    %9190 = vrot.lane.b32.xlu0 %v8565, 64
    %v9191 = vpop.permute.xlu0 %9190
    %9208 = vrot.lane.b32.xlu0 %v9138, 64
    %v9209 = vpop.permute.xlu0 %9208
    %9210 = vrot.lane.b32.xlu0 %v9141, 64
    %v9211 = vpop.permute.xlu0 %9210
    %9212 = vrot.lane.b32.xlu0 %v9146, 64
    %v9213 = vpop.permute.xlu0 %9212
    %9214 = vrot.lane.b32.xlu0 %v9149, 64
    %v9215 = vpop.permute.xlu0 %9214
    %9216 = vrot.lane.b32.xlu0 %v9154, 64
    %v9217 = vpop.permute.xlu0 %9216
    %9218 = vrot.lane.b32.xlu0 %v9157, 64
    %v9219 = vpop.permute.xlu0 %9218
    %9220 = vrot.lane.b32.xlu0 %v9162, 64
    %v9221 = vpop.permute.xlu0 %9220
    %9222 = vrot.lane.b32.xlu0 %v9165, 64
    %v9223 = vpop.permute.xlu0 %9222
    %v9232 = vsel %vm605, %v8224, %v9177
    %v9233 = vsel %vm605, %v8227, %v9179
    %v9234 = vsel %vm605, %v8232, %v9181
    %v9235 = vsel %vm605, %v8235, %v9183
    %v9236 = vsel %vm605, %v8240, %v9185
    %v9237 = vsel %vm605, %v8243, %v9187
    %v9238 = vsel %vm605, %v8248, %v9189
    %v9239 = vsel %vm605, %v8251, %v9191
    %v9240 = vsel %vm605, %v8824, %v9209
    %v9241 = vsel %vm605, %v8827, %v9211
    %v9242 = vsel %vm605, %v8832, %v9213
    %v9243 = vsel %vm605, %v8835, %v9215
    %v9244 = vsel %vm605, %v8840, %v9217
    %v9245 = vsel %vm605, %v8843, %v9219
    %v9246 = vsel %vm605, %v8848, %v9221
    %v9247 = vsel %vm605, %v8851, %v9223
    %v9248 = vpack.c.bf16 %v9233, %v9232
    %v9249 = vpack.c.bf16 %v9241, %v9240
    %v9250 = vpack.c.bf16 %v9235, %v9234
    %v9251 = vpack.c.bf16 %v9243, %v9242
    %v9252 = vpack.c.bf16 %v9237, %v9236
    %v9253 = vpack.c.bf16 %v9245, %v9244
    %v9254 = vpack.c.bf16 %v9239, %v9238
    %v9255 = vpack.c.bf16 %v9247, %v9246
    %v9288 = vunpack.c.l.b16 %v7936
    %v9289 = vunpack.c.l.b16 %v7937
    %v9290 = vunpack.c.l.b16 %v7938
    %v9291 = vunpack.c.l.b16 %v7939
    %v9292 = vunpack.c.l.b16 %v7940
    %v9293 = vunpack.c.l.b16 %v7941
    %v9294 = vunpack.c.l.b16 %v7942
    %v9295 = vunpack.c.l.b16 %v7943
    %v9296 = vunpack.c.l.b16 %v7944
    %v9297 = vunpack.c.l.b16 %v7945
    %v9298 = vunpack.c.l.b16 %v7946
    %v9299 = vunpack.c.l.b16 %v7947
    %v9300 = vunpack.c.l.b16 %v7948
    %v9301 = vunpack.c.l.b16 %v7949
    %v9302 = vunpack.c.l.b16 %v7950
    %v9303 = vunpack.c.l.b16 %v7951
    %v9304 = vunpack.c.l.b16 %v7952
    %v9305 = vunpack.c.l.b16 %v7953
    %v9306 = vunpack.c.l.b16 %v7954
    %v9307 = vunpack.c.l.b16 %v7955
    %v9308 = vunpack.c.l.b16 %v7956
    %v9309 = vunpack.c.l.b16 %v7957
    %v9310 = vunpack.c.l.b16 %v7958
    %v9311 = vunpack.c.l.b16 %v7959
    %v9312 = vunpack.c.l.b16 %v7960
    %v9313 = vunpack.c.l.b16 %v7961
    %v9314 = vunpack.c.l.b16 %v7962
    %v9315 = vunpack.c.l.b16 %v7963
    %v9316 = vunpack.c.l.b16 %v7964
    %v9317 = vunpack.c.l.b16 %v7965
    %v9318 = vunpack.c.l.b16 %v7966
    %v9319 = vunpack.c.l.b16 %v7967
    %v9320 = vpack.c.b16 %v9289, %v9288
    %v9321 = vpack.c.b16 %v9291, %v9290
    %v9322 = vpack.c.b16 %v9293, %v9292
    %v9323 = vpack.c.b16 %v9295, %v9294
    %v9324 = vpack.c.b16 %v9297, %v9296
    %v9325 = vpack.c.b16 %v9299, %v9298
    %v9326 = vpack.c.b16 %v9301, %v9300
    %v9327 = vpack.c.b16 %v9303, %v9302
    %v9328 = vpack.c.b16 %v9305, %v9304
    %v9329 = vpack.c.b16 %v9307, %v9306
    %v9330 = vpack.c.b16 %v9309, %v9308
    %v9331 = vpack.c.b16 %v9311, %v9310
    %v9332 = vpack.c.b16 %v9313, %v9312
    %v9333 = vpack.c.b16 %v9315, %v9314
    %v9334 = vpack.c.b16 %v9317, %v9316
    %v9335 = vpack.c.b16 %v9319, %v9318
    %9352 = vmatprep.subr.bf16.mxu0 0
    %9353 = vmatpush1.bf16.msra.mxu0 %v9327
    %9354 = vmatprep.subr.bf16.mxu0 0
    %9355 = vmatpush1.bf16.msra.mxu0 %v9326
    %9356 = vmatprep.subr.bf16.mxu0 0
    %9357 = vmatpush1.bf16.msra.mxu0 %v9325
    %9358 = vmatprep.subr.bf16.mxu0 0
    %9359 = vmatpush1.bf16.msra.mxu0 %v9324
    %9360 = vmatprep.subr.bf16.mxu0 0
    %9361 = vmatpush1.bf16.msra.mxu0 %v9323
    %9362 = vmatprep.subr.bf16.mxu0 0
    %9363 = vmatpush1.bf16.msra.mxu0 %v9322
    %9364 = vmatprep.subr.bf16.mxu0 0
    %9365 = vmatpush1.bf16.msra.mxu0 %v9321
    %9366 = vmatprep.subr.bf16.mxu0 0
    %9367 = vmatpush1.bf16.msra.mxu0 %v9320
    %9368 = vmatprep.subr.bf16.mxu0 0
    %9369 = vmatpush2.bf16.msra.mxu0 %v9335
    %9370 = vmatprep.subr.bf16.mxu0 0
    %9371 = vmatpush2.bf16.msra.mxu0 %v9334
    %9372 = vmatprep.subr.bf16.mxu0 0
    %9373 = vmatpush2.bf16.msra.mxu0 %v9333
    %9374 = vmatprep.subr.bf16.mxu0 0
    %9375 = vmatpush2.bf16.msra.mxu0 %v9332
    %9376 = vmatprep.subr.bf16.mxu0 0
    %9377 = vmatpush2.bf16.msra.mxu0 %v9331
    %9378 = vmatprep.subr.bf16.mxu0 0
    %9379 = vmatpush2.bf16.msra.mxu0 %v9330
    %9380 = vmatprep.subr.bf16.mxu0 0
    %9381 = vmatpush2.bf16.msra.mxu0 %v9329
    %9382 = vmatprep.subr.bf16.mxu0 0
    %9383 = vmatpush2.bf16.msra.mxu0 %v9328
    %9384 = vmatprep.mubr.bf16.mxu0 %v9249
    %9385 = vmatmul.mubr.bf16.gmra.mxu0 %v9248
    %v9386 = vpop.f32.mrf.mxu0
    %v9387 = vadd.f32 0.0, %v9386
    %v9388 = vpop.f32.mrf.mxu0
    %v9389 = vpop.f32.mrf.mxu0
    %v9390 = vadd.f32 0.0, %v9389
    %v9391 = vpop.f32.mrf.mxu0
    %9392 = vmatprep.mubr.bf16.mxu0 %v9251
    %9393 = vmatmul.mubr.bf16.gmra.mxu0 %v9250
    %v9394 = vpop.f32.mrf.mxu0
    %v9395 = vadd.f32 0.0, %v9394
    %v9396 = vpop.f32.mrf.mxu0
    %v9397 = vpop.f32.mrf.mxu0
    %v9398 = vadd.f32 0.0, %v9397
    %v9399 = vpop.f32.mrf.mxu0
    %9400 = vmatprep.mubr.bf16.mxu0 %v9253
    %9401 = vmatmul.mubr.bf16.gmra.mxu0 %v9252
    %v9402 = vpop.f32.mrf.mxu0
    %v9403 = vadd.f32 0.0, %v9402
    %v9404 = vpop.f32.mrf.mxu0
    %v9405 = vpop.f32.mrf.mxu0
    %v9406 = vadd.f32 0.0, %v9405
    %v9407 = vpop.f32.mrf.mxu0
    %9408 = vmatprep.mubr.bf16.mxu0 %v9255
    %9409 = vmatmul.mubr.bf16.gmra.mxu0 %v9254
    %v9410 = vpop.f32.mrf.mxu0
    %v9411 = vadd.f32 0.0, %v9410
    %v9412 = vpop.f32.mrf.mxu0
    %v9413 = vpop.f32.mrf.mxu0
    %v9414 = vadd.f32 0.0, %v9413
    %v9415 = vpop.f32.mrf.mxu0
    %9416 = vdwg.mxu0
    %v9417 = vadd.f32 %v7295, %v9387
    %v9418 = vadd.f32 %v7296, %v9390
    %v9419 = vadd.f32 %v7297, %v9395
    %v9420 = vadd.f32 %v7298, %v9398
    %v9421 = vadd.f32 %v7299, %v9403
    %v9422 = vadd.f32 %v7300, %v9406
    %v9423 = vadd.f32 %v7301, %v9411
    %v9424 = vadd.f32 %v7302, %v9414
    %s9425 = scalar_lea.vmem [#allocation32], 1
    %v9426 = vld [vmem:[%s9425] sm:$0x1]
    %s9427 = scalar_lea.vmem [#allocation34], 1
    %v9428 = vld [vmem:[%s9427] sm:$0x1]
    %9429 = vadd.xlane.f32.xlu0 %v9417
    %v9430 = vpop.xlane.xlu0 %9429
    %9431 = vadd.xlane.f32.xlu0 %v9418
    %v9432 = vpop.xlane.xlu0 %9431
    %9433 = vadd.xlane.f32.xlu0 %v9419
    %v9434 = vpop.xlane.xlu0 %9433
    %9435 = vadd.xlane.f32.xlu0 %v9420
    %v9436 = vpop.xlane.xlu0 %9435
    %9437 = vadd.xlane.f32.xlu0 %v9421
    %v9438 = vpop.xlane.xlu0 %9437
    %9439 = vadd.xlane.f32.xlu0 %v9422
    %v9440 = vpop.xlane.xlu0 %9439
    %9441 = vadd.xlane.f32.xlu0 %v9423
    %v9442 = vpop.xlane.xlu0 %9441
    %9443 = vadd.xlane.f32.xlu0 %v9424
    %v9444 = vpop.xlane.xlu0 %9443
    %v9445 = vmul.f32 %v9430, %v4135
    %v9446 = vmul.f32 %v9432, %v4135
    %v9447 = vmul.f32 %v9434, %v4135
    %v9448 = vmul.f32 %v9436, %v4135
    %v9449 = vmul.f32 %v9438, %v4135
    %v9450 = vmul.f32 %v9440, %v4135
    %v9451 = vmul.f32 %v9442, %v4135
    %v9452 = vmul.f32 %v9444, %v4135
    %v9453 = vsub.f32 %v9417, %v9445
    %v9454 = vsub.f32 %v9418, %v9446
    %v9455 = vsub.f32 %v9419, %v9447
    %v9456 = vsub.f32 %v9420, %v9448
    %v9457 = vsub.f32 %v9421, %v9449
    %v9458 = vsub.f32 %v9422, %v9450
    %v9459 = vsub.f32 %v9423, %v9451
    %v9460 = vsub.f32 %v9424, %v9452
    %v9461 = vmul.f32 %v9453, %v9453
    %v9462 = vmul.f32 %v9454, %v9454
    %v9463 = vmul.f32 %v9455, %v9455
    %v9464 = vmul.f32 %v9456, %v9456
    %v9465 = vmul.f32 %v9457, %v9457
    %v9466 = vmul.f32 %v9458, %v9458
    %v9467 = vmul.f32 %v9459, %v9459
    %v9468 = vmul.f32 %v9460, %v9460
    %9469 = vadd.xlane.f32.xlu0 %v9461
    %v9470 = vpop.xlane.xlu0 %9469
    %9471 = vadd.xlane.f32.xlu0 %v9462
    %v9472 = vpop.xlane.xlu0 %9471
    %9473 = vadd.xlane.f32.xlu0 %v9463
    %v9474 = vpop.xlane.xlu0 %9473
    %9475 = vadd.xlane.f32.xlu0 %v9464
    %v9476 = vpop.xlane.xlu0 %9475
    %9477 = vadd.xlane.f32.xlu0 %v9465
    %v9478 = vpop.xlane.xlu0 %9477
    %9479 = vadd.xlane.f32.xlu0 %v9466
    %v9480 = vpop.xlane.xlu0 %9479
    %9481 = vadd.xlane.f32.xlu0 %v9467
    %v9482 = vpop.xlane.xlu0 %9481
    %9483 = vadd.xlane.f32.xlu0 %v9468
    %v9484 = vpop.xlane.xlu0 %9483
    %v9485 = vmul.f32 %v9470, %v4135
    %v9486 = vmul.f32 %v9472, %v4135
    %v9487 = vmul.f32 %v9474, %v4135
    %v9488 = vmul.f32 %v9476, %v4135
    %v9489 = vmul.f32 %v9478, %v4135
    %v9490 = vmul.f32 %v9480, %v4135
    %v9491 = vmul.f32 %v9482, %v4135
    %v9492 = vmul.f32 %v9484, %v4135
    %v9493 = vadd.f32 %v9485, 1e-05
    %v9494 = vadd.f32 %v9486, 1e-05
    %v9495 = vadd.f32 %v9487, 1e-05
    %v9496 = vadd.f32 %v9488, 1e-05
    %v9497 = vadd.f32 %v9489, 1e-05
    %v9498 = vadd.f32 %v9490, 1e-05
    %v9499 = vadd.f32 %v9491, 1e-05
    %v9500 = vadd.f32 %v9492, 1e-05
    %v9501 = vrsqrt.pop %v9493
    %v9502 = vrsqrt.pop %v9494
    %v9503 = vrsqrt.pop %v9495
    %v9504 = vrsqrt.pop %v9496
    %v9505 = vrsqrt.pop %v9497
    %v9506 = vrsqrt.pop %v9498
    %v9507 = vrsqrt.pop %v9499
    %v9508 = vrsqrt.pop %v9500
    %v9509 = vmul.f32 %v9453, %v9501
    %v9510 = vmul.f32 %v9454, %v9502
    %v9511 = vmul.f32 %v9455, %v9503
    %v9512 = vmul.f32 %v9456, %v9504
    %v9513 = vmul.f32 %v9457, %v9505
    %v9514 = vmul.f32 %v9458, %v9506
    %v9515 = vmul.f32 %v9459, %v9507
    %v9516 = vmul.f32 %v9460, %v9508
    %v9518 = vlaneseq
    %v9519 = vshrl.u32 %v9518, 7
    %v9520 = vsub.s32 0, %v9519
    %v9521 = vrot.slane %v9426, %v9520
    %v9523 = vmul.f32 %v9509, %v9521
    %v9524 = vmul.f32 %v9510, %v9521
    %v9525 = vmul.f32 %v9511, %v9521
    %v9526 = vmul.f32 %v9512, %v9521
    %v9527 = vmul.f32 %v9513, %v9521
    %v9528 = vmul.f32 %v9514, %v9521
    %v9529 = vmul.f32 %v9515, %v9521
    %v9530 = vmul.f32 %v9516, %v9521
    %v9532 = vlaneseq
    %v9533 = vshrl.u32 %v9532, 7
    %v9534 = vsub.s32 0, %v9533
    %v9535 = vrot.slane %v9428, %v9534
    %v9537 = vadd.f32 %v9523, %v9535
    %v9538 = vadd.f32 %v9524, %v9535
    %v9539 = vadd.f32 %v9525, %v9535
    %v9540 = vadd.f32 %v9526, %v9535
    %v9541 = vadd.f32 %v9527, %v9535
    %v9542 = vadd.f32 %v9528, %v9535
    %v9543 = vadd.f32 %v9529, %v9535
    %v9544 = vadd.f32 %v9530, %v9535
    %v9545 = vpack.c.bf16 %v9538, %v9537
    %v9546 = vpack.c.bf16 %v9540, %v9539
    %v9547 = vpack.c.bf16 %v9542, %v9541
    %v9548 = vpack.c.bf16 %v9544, %v9543
    %s9549 = scalar_lea.vmem %s63, 256
    %v9550 = vld [vmem:[%s9549] sm:$0xff]
    %v9551 = vld [vmem:[%s9549 + $0x8] sm:$0xff]
    %v9552 = vld [vmem:[%s9549 + $0x10] sm:$0xff]
    %v9553 = vld [vmem:[%s9549 + $0x18] sm:$0xff]
    %v9554 = vld [vmem:[%s9549 + $0x20] sm:$0xff]
    %v9555 = vld [vmem:[%s9549 + $0x28] sm:$0xff]
    %v9556 = vld [vmem:[%s9549 + $0x30] sm:$0xff]
    %v9557 = vld [vmem:[%s9549 + $0x38] sm:$0xff]
    %v9558 = vld [vmem:[%s9549 + $0x40] sm:$0xff]
    %v9559 = vld [vmem:[%s9549 + $0x48] sm:$0xff]
    %v9560 = vld [vmem:[%s9549 + $0x50] sm:$0xff]
    %v9561 = vld [vmem:[%s9549 + $0x58] sm:$0xff]
    %v9562 = vld [vmem:[%s9549 + $0x60] sm:$0xff]
    %v9563 = vld [vmem:[%s9549 + $0x68] sm:$0xff]
    %v9564 = vld [vmem:[%s9549 + $0x70] sm:$0xff]
    %v9565 = vld [vmem:[%s9549 + $0x78] sm:$0xff]
    %v9566 = vld [vmem:[%s9549 + $0x80] sm:$0xff]
    %v9567 = vld [vmem:[%s9549 + $0x88] sm:$0xff]
    %v9568 = vld [vmem:[%s9549 + $0x90] sm:$0xff]
    %v9569 = vld [vmem:[%s9549 + $0x98] sm:$0xff]
    %v9570 = vld [vmem:[%s9549 + $0xa0] sm:$0xff]
    %v9571 = vld [vmem:[%s9549 + $0xa8] sm:$0xff]
    %v9572 = vld [vmem:[%s9549 + $0xb0] sm:$0xff]
    %v9573 = vld [vmem:[%s9549 + $0xb8] sm:$0xff]
    %v9574 = vld [vmem:[%s9549 + $0xc0] sm:$0xff]
    %v9575 = vld [vmem:[%s9549 + $0xc8] sm:$0xff]
    %v9576 = vld [vmem:[%s9549 + $0xd0] sm:$0xff]
    %v9577 = vld [vmem:[%s9549 + $0xd8] sm:$0xff]
    %v9578 = vld [vmem:[%s9549 + $0xe0] sm:$0xff]
    %v9579 = vld [vmem:[%s9549 + $0xe8] sm:$0xff]
    %v9580 = vld [vmem:[%s9549 + $0xf0] sm:$0xff]
    %v9581 = vld [vmem:[%s9549 + $0xf8] sm:$0xff]
    %s9582 = scalar_lea.vmem %s65, 4
    %v9583 = vld [vmem:[%s9582] sm:$0xf]
    %v9585 = vlaneseq
    %v9586 = vshrl.u32 %v9585, 7
    %v9587 = vsub.s32 0, %v9586
    %v9588 = vrot.slane %v9583, %v9587
    %v9589 = vlaneseq
    %v9590 = vshrl.u32 %v9589, 7
    %v9591 = vsub.s32 1, %v9590
    %v9592 = vrot.slane %v9583, %v9591
    %v9593 = vlaneseq
    %v9594 = vshrl.u32 %v9593, 7
    %v9595 = vsub.s32 2, %v9594
    %v9596 = vrot.slane %v9583, %v9595
    %v9597 = vlaneseq
    %v9598 = vshrl.u32 %v9597, 7
    %v9599 = vsub.s32 3, %v9598
    %v9600 = vrot.slane %v9583, %v9599
    %v9637 = vunpack.c.l.b16 %v9550
    %v9638 = vunpack.c.h.b16 %v9550
    %v9639 = vunpack.c.l.b16 %v9551
    %v9640 = vunpack.c.h.b16 %v9551
    %v9641 = vunpack.c.l.b16 %v9552
    %v9642 = vunpack.c.h.b16 %v9552
    %v9643 = vunpack.c.l.b16 %v9553
    %v9644 = vunpack.c.h.b16 %v9553
    %v9645 = vunpack.c.l.b16 %v9554
    %v9646 = vunpack.c.h.b16 %v9554
    %v9647 = vunpack.c.l.b16 %v9555
    %v9648 = vunpack.c.h.b16 %v9555
    %v9649 = vunpack.c.l.b16 %v9556
    %v9650 = vunpack.c.h.b16 %v9556
    %v9651 = vunpack.c.l.b16 %v9557
    %v9652 = vunpack.c.h.b16 %v9557
    %v9653 = vunpack.c.l.b16 %v9558
    %v9654 = vunpack.c.h.b16 %v9558
    %v9655 = vunpack.c.l.b16 %v9559
    %v9656 = vunpack.c.h.b16 %v9559
    %v9657 = vunpack.c.l.b16 %v9560
    %v9658 = vunpack.c.h.b16 %v9560
    %v9659 = vunpack.c.l.b16 %v9561
    %v9660 = vunpack.c.h.b16 %v9561
    %v9661 = vunpack.c.l.b16 %v9562
    %v9662 = vunpack.c.h.b16 %v9562
    %v9663 = vunpack.c.l.b16 %v9563
    %v9664 = vunpack.c.h.b16 %v9563
    %v9665 = vunpack.c.l.b16 %v9564
    %v9666 = vunpack.c.h.b16 %v9564
    %v9667 = vunpack.c.l.b16 %v9565
    %v9668 = vunpack.c.h.b16 %v9565
    %v9669 = vunpack.c.l.b16 %v9566
    %v9670 = vunpack.c.h.b16 %v9566
    %v9671 = vunpack.c.l.b16 %v9567
    %v9672 = vunpack.c.h.b16 %v9567
    %v9673 = vunpack.c.l.b16 %v9568
    %v9674 = vunpack.c.h.b16 %v9568
    %v9675 = vunpack.c.l.b16 %v9569
    %v9676 = vunpack.c.h.b16 %v9569
    %v9677 = vunpack.c.l.b16 %v9570
    %v9678 = vunpack.c.h.b16 %v9570
    %v9679 = vunpack.c.l.b16 %v9571
    %v9680 = vunpack.c.h.b16 %v9571
    %v9681 = vunpack.c.l.b16 %v9572
    %v9682 = vunpack.c.h.b16 %v9572
    %v9683 = vunpack.c.l.b16 %v9573
    %v9684 = vunpack.c.h.b16 %v9573
    %v9685 = vunpack.c.l.b16 %v9574
    %v9686 = vunpack.c.h.b16 %v9574
    %v9687 = vunpack.c.l.b16 %v9575
    %v9688 = vunpack.c.h.b16 %v9575
    %v9689 = vunpack.c.l.b16 %v9576
    %v9690 = vunpack.c.h.b16 %v9576
    %v9691 = vunpack.c.l.b16 %v9577
    %v9692 = vunpack.c.h.b16 %v9577
    %v9693 = vunpack.c.l.b16 %v9578
    %v9694 = vunpack.c.h.b16 %v9578
    %v9695 = vunpack.c.l.b16 %v9579
    %v9696 = vunpack.c.h.b16 %v9579
    %v9697 = vunpack.c.l.b16 %v9580
    %v9698 = vunpack.c.h.b16 %v9580
    %v9699 = vunpack.c.l.b16 %v9581
    %v9700 = vunpack.c.h.b16 %v9581
    %v9701 = vpack.c.b16 %v9641, %v9637
    %v9702 = vpack.c.b16 %v9642, %v9638
    %v9703 = vpack.c.b16 %v9643, %v9639
    %v9704 = vpack.c.b16 %v9644, %v9640
    %v9705 = vpack.c.b16 %v9649, %v9645
    %v9706 = vpack.c.b16 %v9650, %v9646
    %v9707 = vpack.c.b16 %v9651, %v9647
    %v9708 = vpack.c.b16 %v9652, %v9648
    %v9709 = vpack.c.b16 %v9657, %v9653
    %v9710 = vpack.c.b16 %v9658, %v9654
    %v9711 = vpack.c.b16 %v9659, %v9655
    %v9712 = vpack.c.b16 %v9660, %v9656
    %v9713 = vpack.c.b16 %v9665, %v9661
    %v9714 = vpack.c.b16 %v9666, %v9662
    %v9715 = vpack.c.b16 %v9667, %v9663
    %v9716 = vpack.c.b16 %v9668, %v9664
    %v9717 = vpack.c.b16 %v9673, %v9669
    %v9718 = vpack.c.b16 %v9674, %v9670
    %v9719 = vpack.c.b16 %v9675, %v9671
    %v9720 = vpack.c.b16 %v9676, %v9672
    %v9721 = vpack.c.b16 %v9681, %v9677
    %v9722 = vpack.c.b16 %v9682, %v9678
    %v9723 = vpack.c.b16 %v9683, %v9679
    %v9724 = vpack.c.b16 %v9684, %v9680
    %v9725 = vpack.c.b16 %v9689, %v9685
    %v9726 = vpack.c.b16 %v9690, %v9686
    %v9727 = vpack.c.b16 %v9691, %v9687
    %v9728 = vpack.c.b16 %v9692, %v9688
    %v9729 = vpack.c.b16 %v9697, %v9693
    %v9730 = vpack.c.b16 %v9698, %v9694
    %v9731 = vpack.c.b16 %v9699, %v9695
    %v9732 = vpack.c.b16 %v9700, %v9696
    %9765 = vmatprep.subr.bf16.mxu0 %v9730
    %9766 = vmatpush1.bf16.msra.mxu0 %v9729
    %9767 = vmatprep.subr.bf16.mxu0 %v9726
    %9768 = vmatpush1.bf16.msra.mxu0 %v9725
    %9769 = vmatprep.subr.bf16.mxu0 %v9722
    %9770 = vmatpush1.bf16.msra.mxu0 %v9721
    %9771 = vmatprep.subr.bf16.mxu0 %v9718
    %9772 = vmatpush1.bf16.msra.mxu0 %v9717
    %9773 = vmatprep.subr.bf16.mxu0 %v9714
    %9774 = vmatpush1.bf16.msra.mxu0 %v9713
    %9775 = vmatprep.subr.bf16.mxu0 %v9710
    %9776 = vmatpush1.bf16.msra.mxu0 %v9709
    %9777 = vmatprep.subr.bf16.mxu0 %v9706
    %9778 = vmatpush1.bf16.msra.mxu0 %v9705
    %9779 = vmatprep.subr.bf16.mxu0 %v9702
    %9780 = vmatpush1.bf16.msra.mxu0 %v9701
    %9781 = vmatprep.subr.bf16.mxu0 0
    %9782 = vmatpush2.bf16.msra.mxu0 0
    %9783 = vmatprep.subr.bf16.mxu0 0
    %9784 = vmatpush2.bf16.msra.mxu0 0
    %9785 = vmatprep.subr.bf16.mxu0 0
    %9786 = vmatpush2.bf16.msra.mxu0 0
    %9787 = vmatprep.subr.bf16.mxu0 0
    %9788 = vmatpush2.bf16.msra.mxu0 0
    %9789 = vmatprep.subr.bf16.mxu0 0
    %9790 = vmatpush2.bf16.msra.mxu0 0
    %9791 = vmatprep.subr.bf16.mxu0 0
    %9792 = vmatpush2.bf16.msra.mxu0 0
    %9793 = vmatprep.subr.bf16.mxu0 0
    %9794 = vmatpush2.bf16.msra.mxu0 0
    %9795 = vmatprep.subr.bf16.mxu0 0
    %9796 = vmatpush2.bf16.msra.mxu0 0
    %9797 = vmatprep.mubr.bf16.mxu0 0
    %9798 = vmatmul.mubr.bf16.gmra.mxu0 %v9545
    %v9799 = vpop.f32.mrf.mxu0
    %v9800 = vadd.f32 %v9588, %v9799
    %v9801 = vpop.f32.mrf.mxu0
    %v9802 = vadd.f32 %v9592, %v9801
    %v9803 = vpop.f32.mrf.mxu0
    %v9804 = vadd.f32 %v9588, %v9803
    %v9805 = vpop.f32.mrf.mxu0
    %v9806 = vadd.f32 %v9592, %v9805
    %9807 = vmatprep.mubr.bf16.mxu0 0
    %9808 = vmatmul.mubr.bf16.gmra.mxu0 %v9546
    %v9809 = vpop.f32.mrf.mxu0
    %v9810 = vadd.f32 %v9588, %v9809
    %v9811 = vpop.f32.mrf.mxu0
    %v9812 = vadd.f32 %v9592, %v9811
    %v9813 = vpop.f32.mrf.mxu0
    %v9814 = vadd.f32 %v9588, %v9813
    %v9815 = vpop.f32.mrf.mxu0
    %v9816 = vadd.f32 %v9592, %v9815
    %9817 = vmatprep.mubr.bf16.mxu0 0
    %9818 = vmatmul.mubr.bf16.gmra.mxu0 %v9547
    %v9819 = vpop.f32.mrf.mxu0
    %v9820 = vadd.f32 %v9588, %v9819
    %v9821 = vpop.f32.mrf.mxu0
    %v9822 = vadd.f32 %v9592, %v9821
    %v9823 = vpop.f32.mrf.mxu0
    %v9824 = vadd.f32 %v9588, %v9823
    %v9825 = vpop.f32.mrf.mxu0
    %v9826 = vadd.f32 %v9592, %v9825
    %9827 = vmatprep.mubr.bf16.mxu0 0
    %9828 = vmatmul.mubr.bf16.gmra.mxu0 %v9548
    %v9829 = vpop.f32.mrf.mxu0
    %v9830 = vadd.f32 %v9588, %v9829
    %v9831 = vpop.f32.mrf.mxu0
    %v9832 = vadd.f32 %v9592, %v9831
    %v9833 = vpop.f32.mrf.mxu0
    %v9834 = vadd.f32 %v9588, %v9833
    %v9835 = vpop.f32.mrf.mxu0
    %v9836 = vadd.f32 %v9592, %v9835
    %9837 = vdwg.mxu0
    %9838 = vmatprep.subr.bf16.mxu0 %v9732
    %9839 = vmatpush1.bf16.msra.mxu0 %v9731
    %9840 = vmatprep.subr.bf16.mxu0 %v9728
    %9841 = vmatpush1.bf16.msra.mxu0 %v9727
    %9842 = vmatprep.subr.bf16.mxu0 %v9724
    %9843 = vmatpush1.bf16.msra.mxu0 %v9723
    %9844 = vmatprep.subr.bf16.mxu0 %v9720
    %9845 = vmatpush1.bf16.msra.mxu0 %v9719
    %9846 = vmatprep.subr.bf16.mxu0 %v9716
    %9847 = vmatpush1.bf16.msra.mxu0 %v9715
    %9848 = vmatprep.subr.bf16.mxu0 %v9712
    %9849 = vmatpush1.bf16.msra.mxu0 %v9711
    %9850 = vmatprep.subr.bf16.mxu0 %v9708
    %9851 = vmatpush1.bf16.msra.mxu0 %v9707
    %9852 = vmatprep.subr.bf16.mxu0 %v9704
    %9853 = vmatpush1.bf16.msra.mxu0 %v9703
    %9854 = vmatprep.subr.bf16.mxu0 0
    %9855 = vmatpush2.bf16.msra.mxu0 0
    %9856 = vmatprep.subr.bf16.mxu0 0
    %9857 = vmatpush2.bf16.msra.mxu0 0
    %9858 = vmatprep.subr.bf16.mxu0 0
    %9859 = vmatpush2.bf16.msra.mxu0 0
    %9860 = vmatprep.subr.bf16.mxu0 0
    %9861 = vmatpush2.bf16.msra.mxu0 0
    %9862 = vmatprep.subr.bf16.mxu0 0
    %9863 = vmatpush2.bf16.msra.mxu0 0
    %9864 = vmatprep.subr.bf16.mxu0 0
    %9865 = vmatpush2.bf16.msra.mxu0 0
    %9866 = vmatprep.subr.bf16.mxu0 0
    %9867 = vmatpush2.bf16.msra.mxu0 0
    %9868 = vmatprep.subr.bf16.mxu0 0
    %9869 = vmatpush2.bf16.msra.mxu0 0
    %9870 = vmatprep.mubr.bf16.mxu0 0
    %9871 = vmatmul.mubr.bf16.gmra.mxu0 %v9545
    %v9872 = vpop.f32.mrf.mxu0
    %v9873 = vadd.f32 %v9596, %v9872
    %v9874 = vpop.f32.mrf.mxu0
    %v9875 = vadd.f32 %v9600, %v9874
    %v9876 = vpop.f32.mrf.mxu0
    %v9877 = vadd.f32 %v9596, %v9876
    %v9878 = vpop.f32.mrf.mxu0
    %v9879 = vadd.f32 %v9600, %v9878
    %9880 = vmatprep.mubr.bf16.mxu0 0
    %9881 = vmatmul.mubr.bf16.gmra.mxu0 %v9546
    %v9882 = vpop.f32.mrf.mxu0
    %v9883 = vadd.f32 %v9596, %v9882
    %v9884 = vpop.f32.mrf.mxu0
    %v9885 = vadd.f32 %v9600, %v9884
    %v9886 = vpop.f32.mrf.mxu0
    %v9887 = vadd.f32 %v9596, %v9886
    %v9888 = vpop.f32.mrf.mxu0
    %v9889 = vadd.f32 %v9600, %v9888
    %9890 = vmatprep.mubr.bf16.mxu0 0
    %9891 = vmatmul.mubr.bf16.gmra.mxu0 %v9547
    %v9892 = vpop.f32.mrf.mxu0
    %v9893 = vadd.f32 %v9596, %v9892
    %v9894 = vpop.f32.mrf.mxu0
    %v9895 = vadd.f32 %v9600, %v9894
    %v9896 = vpop.f32.mrf.mxu0
    %v9897 = vadd.f32 %v9596, %v9896
    %v9898 = vpop.f32.mrf.mxu0
    %v9899 = vadd.f32 %v9600, %v9898
    %9900 = vmatprep.mubr.bf16.mxu0 0
    %9901 = vmatmul.mubr.bf16.gmra.mxu0 %v9548
    %v9902 = vpop.f32.mrf.mxu0
    %v9903 = vadd.f32 %v9596, %v9902
    %v9904 = vpop.f32.mrf.mxu0
    %v9905 = vadd.f32 %v9600, %v9904
    %v9906 = vpop.f32.mrf.mxu0
    %v9907 = vadd.f32 %v9596, %v9906
    %v9908 = vpop.f32.mrf.mxu0
    %v9909 = vadd.f32 %v9600, %v9908
    %9910 = vdwg.mxu0
    %v9911 = vmul.f32 %v9800, 0.5
    %v9912 = vmul.f32 %v9802, 0.5
    %v9913 = vmul.f32 %v9873, 0.5
    %v9914 = vmul.f32 %v9875, 0.5
    %v9915 = vmul.f32 %v9804, 0.5
    %v9916 = vmul.f32 %v9806, 0.5
    %v9917 = vmul.f32 %v9877, 0.5
    %v9918 = vmul.f32 %v9879, 0.5
    %v9919 = vmul.f32 %v9810, 0.5
    %v9920 = vmul.f32 %v9812, 0.5
    %v9921 = vmul.f32 %v9883, 0.5
    %v9922 = vmul.f32 %v9885, 0.5
    %v9923 = vmul.f32 %v9814, 0.5
    %v9924 = vmul.f32 %v9816, 0.5
    %v9925 = vmul.f32 %v9887, 0.5
    %v9926 = vmul.f32 %v9889, 0.5
    %v9927 = vmul.f32 %v9820, 0.5
    %v9928 = vmul.f32 %v9822, 0.5
    %v9929 = vmul.f32 %v9893, 0.5
    %v9930 = vmul.f32 %v9895, 0.5
    %v9931 = vmul.f32 %v9824, 0.5
    %v9932 = vmul.f32 %v9826, 0.5
    %v9933 = vmul.f32 %v9897, 0.5
    %v9934 = vmul.f32 %v9899, 0.5
    %v9935 = vmul.f32 %v9830, 0.5
    %v9936 = vmul.f32 %v9832, 0.5
    %v9937 = vmul.f32 %v9903, 0.5
    %v9938 = vmul.f32 %v9905, 0.5
    %v9939 = vmul.f32 %v9834, 0.5
    %v9940 = vmul.f32 %v9836, 0.5
    %v9941 = vmul.f32 %v9907, 0.5
    %v9942 = vmul.f32 %v9909, 0.5
    %v9943 = vmul.f32 %v9800, 0.70710677
    %v9944 = vmul.f32 %v9802, 0.70710677
    %v9945 = vmul.f32 %v9873, 0.70710677
    %v9946 = vmul.f32 %v9875, 0.70710677
    %v9947 = vmul.f32 %v9804, 0.70710677
    %v9948 = vmul.f32 %v9806, 0.70710677
    %v9949 = vmul.f32 %v9877, 0.70710677
    %v9950 = vmul.f32 %v9879, 0.70710677
    %v9951 = vmul.f32 %v9810, 0.70710677
    %v9952 = vmul.f32 %v9812, 0.70710677
    %v9953 = vmul.f32 %v9883, 0.70710677
    %v9954 = vmul.f32 %v9885, 0.70710677
    %v9955 = vmul.f32 %v9814, 0.70710677
    %v9956 = vmul.f32 %v9816, 0.70710677
    %v9957 = vmul.f32 %v9887, 0.70710677
    %v9958 = vmul.f32 %v9889, 0.70710677
    %v9959 = vmul.f32 %v9820, 0.70710677
    %v9960 = vmul.f32 %v9822, 0.70710677
    %v9961 = vmul.f32 %v9893, 0.70710677
    %v9962 = vmul.f32 %v9895, 0.70710677
    %v9963 = vmul.f32 %v9824, 0.70710677
    %v9964 = vmul.f32 %v9826, 0.70710677
    %v9965 = vmul.f32 %v9897, 0.70710677
    %v9966 = vmul.f32 %v9899, 0.70710677
    %v9967 = vmul.f32 %v9830, 0.70710677
    %v9968 = vmul.f32 %v9832, 0.70710677
    %v9969 = vmul.f32 %v9903, 0.70710677
    %v9970 = vmul.f32 %v9905, 0.70710677
    %v9971 = vmul.f32 %v9834, 0.70710677
    %v9972 = vmul.f32 %v9836, 0.70710677
    %v9973 = vmul.f32 %v9907, 0.70710677
    %v9974 = vmul.f32 %v9909, 0.70710677
    %v9975 = verf.f32.pop %v9943
    %v9976 = verf.f32.pop %v9944
    %v9977 = verf.f32.pop %v9945
    %v9978 = verf.f32.pop %v9946
    %v9979 = verf.f32.pop %v9947
    %v9980 = verf.f32.pop %v9948
    %v9981 = verf.f32.pop %v9949
    %v9982 = verf.f32.pop %v9950
    %v9983 = verf.f32.pop %v9951
    %v9984 = verf.f32.pop %v9952
    %v9985 = verf.f32.pop %v9953
    %v9986 = verf.f32.pop %v9954
    %v9987 = verf.f32.pop %v9955
    %v9988 = verf.f32.pop %v9956
    %v9989 = verf.f32.pop %v9957
    %v9990 = verf.f32.pop %v9958
    %v9991 = verf.f32.pop %v9959
    %v9992 = verf.f32.pop %v9960
    %v9993 = verf.f32.pop %v9961
    %v9994 = verf.f32.pop %v9962
    %v9995 = verf.f32.pop %v9963
    %v9996 = verf.f32.pop %v9964
    %v9997 = verf.f32.pop %v9965
    %v9998 = verf.f32.pop %v9966
    %v9999 = verf.f32.pop %v9967
    %v10000 = verf.f32.pop %v9968
    %v10001 = verf.f32.pop %v9969
    %v10002 = verf.f32.pop %v9970
    %v10003 = verf.f32.pop %v9971
    %v10004 = verf.f32.pop %v9972
    %v10005 = verf.f32.pop %v9973
    %v10006 = verf.f32.pop %v9974
    %v10007 = vadd.f32 %v9975, 1.0
    %v10008 = vadd.f32 %v9976, 1.0
    %v10009 = vadd.f32 %v9977, 1.0
    %v10010 = vadd.f32 %v9978, 1.0
    %v10011 = vadd.f32 %v9979, 1.0
    %v10012 = vadd.f32 %v9980, 1.0
    %v10013 = vadd.f32 %v9981, 1.0
    %v10014 = vadd.f32 %v9982, 1.0
    %v10015 = vadd.f32 %v9983, 1.0
    %v10016 = vadd.f32 %v9984, 1.0
    %v10017 = vadd.f32 %v9985, 1.0
    %v10018 = vadd.f32 %v9986, 1.0
    %v10019 = vadd.f32 %v9987, 1.0
    %v10020 = vadd.f32 %v9988, 1.0
    %v10021 = vadd.f32 %v9989, 1.0
    %v10022 = vadd.f32 %v9990, 1.0
    %v10023 = vadd.f32 %v9991, 1.0
    %v10024 = vadd.f32 %v9992, 1.0
    %v10025 = vadd.f32 %v9993, 1.0
    %v10026 = vadd.f32 %v9994, 1.0
    %v10027 = vadd.f32 %v9995, 1.0
    %v10028 = vadd.f32 %v9996, 1.0
    %v10029 = vadd.f32 %v9997, 1.0
    %v10030 = vadd.f32 %v9998, 1.0
    %v10031 = vadd.f32 %v9999, 1.0
    %v10032 = vadd.f32 %v10000, 1.0
    %v10033 = vadd.f32 %v10001, 1.0
    %v10034 = vadd.f32 %v10002, 1.0
    %v10035 = vadd.f32 %v10003, 1.0
    %v10036 = vadd.f32 %v10004, 1.0
    %v10037 = vadd.f32 %v10005, 1.0
    %v10038 = vadd.f32 %v10006, 1.0
    %v10039 = vmul.f32 %v9911, %v10007
    %v10040 = vmul.f32 %v9912, %v10008
    %v10041 = vmul.f32 %v9913, %v10009
    %v10042 = vmul.f32 %v9914, %v10010
    %v10043 = vmul.f32 %v9915, %v10011
    %v10044 = vmul.f32 %v9916, %v10012
    %v10045 = vmul.f32 %v9917, %v10013
    %v10046 = vmul.f32 %v9918, %v10014
    %v10047 = vmul.f32 %v9919, %v10015
    %v10048 = vmul.f32 %v9920, %v10016
    %v10049 = vmul.f32 %v9921, %v10017
    %v10050 = vmul.f32 %v9922, %v10018
    %v10051 = vmul.f32 %v9923, %v10019
    %v10052 = vmul.f32 %v9924, %v10020
    %v10053 = vmul.f32 %v9925, %v10021
    %v10054 = vmul.f32 %v9926, %v10022
    %v10055 = vmul.f32 %v9927, %v10023
    %v10056 = vmul.f32 %v9928, %v10024
    %v10057 = vmul.f32 %v9929, %v10025
    %v10058 = vmul.f32 %v9930, %v10026
    %v10059 = vmul.f32 %v9931, %v10027
    %v10060 = vmul.f32 %v9932, %v10028
    %v10061 = vmul.f32 %v9933, %v10029
    %v10062 = vmul.f32 %v9934, %v10030
    %v10063 = vmul.f32 %v9935, %v10031
    %v10064 = vmul.f32 %v9936, %v10032
    %v10065 = vmul.f32 %v9937, %v10033
    %v10066 = vmul.f32 %v9938, %v10034
    %v10067 = vmul.f32 %v9939, %v10035
    %v10068 = vmul.f32 %v9940, %v10036
    %v10069 = vmul.f32 %v9941, %v10037
    %v10070 = vmul.f32 %v9942, %v10038
    %v10071 = vpack.c.bf16 %v10043, %v10039
    %v10072 = vpack.c.bf16 %v10044, %v10040
    %v10073 = vpack.c.bf16 %v10045, %v10041
    %v10074 = vpack.c.bf16 %v10046, %v10042
    %v10075 = vpack.c.bf16 %v10051, %v10047
    %v10076 = vpack.c.bf16 %v10052, %v10048
    %v10077 = vpack.c.bf16 %v10053, %v10049
    %v10078 = vpack.c.bf16 %v10054, %v10050
    %v10079 = vpack.c.bf16 %v10059, %v10055
    %v10080 = vpack.c.bf16 %v10060, %v10056
    %v10081 = vpack.c.bf16 %v10061, %v10057
    %v10082 = vpack.c.bf16 %v10062, %v10058
    %v10083 = vpack.c.bf16 %v10067, %v10063
    %v10084 = vpack.c.bf16 %v10068, %v10064
    %v10085 = vpack.c.bf16 %v10069, %v10065
    %v10086 = vpack.c.bf16 %v10070, %v10066
    %s10087 = scalar_lea.vmem %s67, 256
    %v10088 = vld [vmem:[%s10087] sm:$0xf]
    %v10089 = vld [vmem:[%s10087 + $0x4] sm:$0xf]
    %v10090 = vld [vmem:[%s10087 + $0x8] sm:$0xf]
    %v10091 = vld [vmem:[%s10087 + $0xc] sm:$0xf]
    %v10092 = vld [vmem:[%s10087 + $0x10] sm:$0xf]
    %v10093 = vld [vmem:[%s10087 + $0x14] sm:$0xf]
    %v10094 = vld [vmem:[%s10087 + $0x18] sm:$0xf]
    %v10095 = vld [vmem:[%s10087 + $0x1c] sm:$0xf]
    %v10096 = vld [vmem:[%s10087 + $0x20] sm:$0xf]
    %v10097 = vld [vmem:[%s10087 + $0x24] sm:$0xf]
    %v10098 = vld [vmem:[%s10087 + $0x28] sm:$0xf]
    %v10099 = vld [vmem:[%s10087 + $0x2c] sm:$0xf]
    %v10100 = vld [vmem:[%s10087 + $0x30] sm:$0xf]
    %v10101 = vld [vmem:[%s10087 + $0x34] sm:$0xf]
    %v10102 = vld [vmem:[%s10087 + $0x38] sm:$0xf]
    %v10103 = vld [vmem:[%s10087 + $0x3c] sm:$0xf]
    %v10104 = vld [vmem:[%s10087 + $0x40] sm:$0xf]
    %v10105 = vld [vmem:[%s10087 + $0x44] sm:$0xf]
    %v10106 = vld [vmem:[%s10087 + $0x48] sm:$0xf]
    %v10107 = vld [vmem:[%s10087 + $0x4c] sm:$0xf]
    %v10108 = vld [vmem:[%s10087 + $0x50] sm:$0xf]
    %v10109 = vld [vmem:[%s10087 + $0x54] sm:$0xf]
    %v10110 = vld [vmem:[%s10087 + $0x58] sm:$0xf]
    %v10111 = vld [vmem:[%s10087 + $0x5c] sm:$0xf]
    %v10112 = vld [vmem:[%s10087 + $0x60] sm:$0xf]
    %v10113 = vld [vmem:[%s10087 + $0x64] sm:$0xf]
    %v10114 = vld [vmem:[%s10087 + $0x68] sm:$0xf]
    %v10115 = vld [vmem:[%s10087 + $0x6c] sm:$0xf]
    %v10116 = vld [vmem:[%s10087 + $0x70] sm:$0xf]
    %v10117 = vld [vmem:[%s10087 + $0x74] sm:$0xf]
    %v10118 = vld [vmem:[%s10087 + $0x78] sm:$0xf]
    %v10119 = vld [vmem:[%s10087 + $0x7c] sm:$0xf]
    %v10120 = vld [vmem:[%s10087 + $0x80] sm:$0xf]
    %v10121 = vld [vmem:[%s10087 + $0x84] sm:$0xf]
    %v10122 = vld [vmem:[%s10087 + $0x88] sm:$0xf]
    %v10123 = vld [vmem:[%s10087 + $0x8c] sm:$0xf]
    %v10124 = vld [vmem:[%s10087 + $0x90] sm:$0xf]
    %v10125 = vld [vmem:[%s10087 + $0x94] sm:$0xf]
    %v10126 = vld [vmem:[%s10087 + $0x98] sm:$0xf]
    %v10127 = vld [vmem:[%s10087 + $0x9c] sm:$0xf]
    %v10128 = vld [vmem:[%s10087 + $0xa0] sm:$0xf]
    %v10129 = vld [vmem:[%s10087 + $0xa4] sm:$0xf]
    %v10130 = vld [vmem:[%s10087 + $0xa8] sm:$0xf]
    %v10131 = vld [vmem:[%s10087 + $0xac] sm:$0xf]
    %v10132 = vld [vmem:[%s10087 + $0xb0] sm:$0xf]
    %v10133 = vld [vmem:[%s10087 + $0xb4] sm:$0xf]
    %v10134 = vld [vmem:[%s10087 + $0xb8] sm:$0xf]
    %v10135 = vld [vmem:[%s10087 + $0xbc] sm:$0xf]
    %v10136 = vld [vmem:[%s10087 + $0xc0] sm:$0xf]
    %v10137 = vld [vmem:[%s10087 + $0xc4] sm:$0xf]
    %v10138 = vld [vmem:[%s10087 + $0xc8] sm:$0xf]
    %v10139 = vld [vmem:[%s10087 + $0xcc] sm:$0xf]
    %v10140 = vld [vmem:[%s10087 + $0xd0] sm:$0xf]
    %v10141 = vld [vmem:[%s10087 + $0xd4] sm:$0xf]
    %v10142 = vld [vmem:[%s10087 + $0xd8] sm:$0xf]
    %v10143 = vld [vmem:[%s10087 + $0xdc] sm:$0xf]
    %v10144 = vld [vmem:[%s10087 + $0xe0] sm:$0xf]
    %v10145 = vld [vmem:[%s10087 + $0xe4] sm:$0xf]
    %v10146 = vld [vmem:[%s10087 + $0xe8] sm:$0xf]
    %v10147 = vld [vmem:[%s10087 + $0xec] sm:$0xf]
    %v10148 = vld [vmem:[%s10087 + $0xf0] sm:$0xf]
    %v10149 = vld [vmem:[%s10087 + $0xf4] sm:$0xf]
    %v10150 = vld [vmem:[%s10087 + $0xf8] sm:$0xf]
    %v10151 = vld [vmem:[%s10087 + $0xfc] sm:$0xf]
    %v10216 = vunpack.c.l.b16 %v10088
    %v10217 = vunpack.c.l.b16 %v10089
    %v10218 = vunpack.c.l.b16 %v10090
    %v10219 = vunpack.c.l.b16 %v10091
    %v10220 = vunpack.c.l.b16 %v10092
    %v10221 = vunpack.c.l.b16 %v10093
    %v10222 = vunpack.c.l.b16 %v10094
    %v10223 = vunpack.c.l.b16 %v10095
    %v10224 = vunpack.c.l.b16 %v10096
    %v10225 = vunpack.c.l.b16 %v10097
    %v10226 = vunpack.c.l.b16 %v10098
    %v10227 = vunpack.c.l.b16 %v10099
    %v10228 = vunpack.c.l.b16 %v10100
    %v10229 = vunpack.c.l.b16 %v10101
    %v10230 = vunpack.c.l.b16 %v10102
    %v10231 = vunpack.c.l.b16 %v10103
    %v10232 = vunpack.c.l.b16 %v10104
    %v10233 = vunpack.c.l.b16 %v10105
    %v10234 = vunpack.c.l.b16 %v10106
    %v10235 = vunpack.c.l.b16 %v10107
    %v10236 = vunpack.c.l.b16 %v10108
    %v10237 = vunpack.c.l.b16 %v10109
    %v10238 = vunpack.c.l.b16 %v10110
    %v10239 = vunpack.c.l.b16 %v10111
    %v10240 = vunpack.c.l.b16 %v10112
    %v10241 = vunpack.c.l.b16 %v10113
    %v10242 = vunpack.c.l.b16 %v10114
    %v10243 = vunpack.c.l.b16 %v10115
    %v10244 = vunpack.c.l.b16 %v10116
    %v10245 = vunpack.c.l.b16 %v10117
    %v10246 = vunpack.c.l.b16 %v10118
    %v10247 = vunpack.c.l.b16 %v10119
    %v10248 = vunpack.c.l.b16 %v10120
    %v10249 = vunpack.c.l.b16 %v10121
    %v10250 = vunpack.c.l.b16 %v10122
    %v10251 = vunpack.c.l.b16 %v10123
    %v10252 = vunpack.c.l.b16 %v10124
    %v10253 = vunpack.c.l.b16 %v10125
    %v10254 = vunpack.c.l.b16 %v10126
    %v10255 = vunpack.c.l.b16 %v10127
    %v10256 = vunpack.c.l.b16 %v10128
    %v10257 = vunpack.c.l.b16 %v10129
    %v10258 = vunpack.c.l.b16 %v10130
    %v10259 = vunpack.c.l.b16 %v10131
    %v10260 = vunpack.c.l.b16 %v10132
    %v10261 = vunpack.c.l.b16 %v10133
    %v10262 = vunpack.c.l.b16 %v10134
    %v10263 = vunpack.c.l.b16 %v10135
    %v10264 = vunpack.c.l.b16 %v10136
    %v10265 = vunpack.c.l.b16 %v10137
    %v10266 = vunpack.c.l.b16 %v10138
    %v10267 = vunpack.c.l.b16 %v10139
    %v10268 = vunpack.c.l.b16 %v10140
    %v10269 = vunpack.c.l.b16 %v10141
    %v10270 = vunpack.c.l.b16 %v10142
    %v10271 = vunpack.c.l.b16 %v10143
    %v10272 = vunpack.c.l.b16 %v10144
    %v10273 = vunpack.c.l.b16 %v10145
    %v10274 = vunpack.c.l.b16 %v10146
    %v10275 = vunpack.c.l.b16 %v10147
    %v10276 = vunpack.c.l.b16 %v10148
    %v10277 = vunpack.c.l.b16 %v10149
    %v10278 = vunpack.c.l.b16 %v10150
    %v10279 = vunpack.c.l.b16 %v10151
    %v10280 = vpack.c.b16 %v10217, %v10216
    %v10281 = vpack.c.b16 %v10219, %v10218
    %v10282 = vpack.c.b16 %v10221, %v10220
    %v10283 = vpack.c.b16 %v10223, %v10222
    %v10284 = vpack.c.b16 %v10225, %v10224
    %v10285 = vpack.c.b16 %v10227, %v10226
    %v10286 = vpack.c.b16 %v10229, %v10228
    %v10287 = vpack.c.b16 %v10231, %v10230
    %v10288 = vpack.c.b16 %v10233, %v10232
    %v10289 = vpack.c.b16 %v10235, %v10234
    %v10290 = vpack.c.b16 %v10237, %v10236
    %v10291 = vpack.c.b16 %v10239, %v10238
    %v10292 = vpack.c.b16 %v10241, %v10240
    %v10293 = vpack.c.b16 %v10243, %v10242
    %v10294 = vpack.c.b16 %v10245, %v10244
    %v10295 = vpack.c.b16 %v10247, %v10246
    %v10296 = vpack.c.b16 %v10249, %v10248
    %v10297 = vpack.c.b16 %v10251, %v10250
    %v10298 = vpack.c.b16 %v10253, %v10252
    %v10299 = vpack.c.b16 %v10255, %v10254
    %v10300 = vpack.c.b16 %v10257, %v10256
    %v10301 = vpack.c.b16 %v10259, %v10258
    %v10302 = vpack.c.b16 %v10261, %v10260
    %v10303 = vpack.c.b16 %v10263, %v10262
    %v10304 = vpack.c.b16 %v10265, %v10264
    %v10305 = vpack.c.b16 %v10267, %v10266
    %v10306 = vpack.c.b16 %v10269, %v10268
    %v10307 = vpack.c.b16 %v10271, %v10270
    %v10308 = vpack.c.b16 %v10273, %v10272
    %v10309 = vpack.c.b16 %v10275, %v10274
    %v10310 = vpack.c.b16 %v10277, %v10276
    %v10311 = vpack.c.b16 %v10279, %v10278
    %10344 = vmatprep.subr.bf16.mxu0 0
    %10345 = vmatpush1.bf16.msra.mxu0 %v10287
    %10346 = vmatprep.subr.bf16.mxu0 0
    %10347 = vmatpush1.bf16.msra.mxu0 %v10286
    %10348 = vmatprep.subr.bf16.mxu0 0
    %10349 = vmatpush1.bf16.msra.mxu0 %v10285
    %10350 = vmatprep.subr.bf16.mxu0 0
    %10351 = vmatpush1.bf16.msra.mxu0 %v10284
    %10352 = vmatprep.subr.bf16.mxu0 0
    %10353 = vmatpush1.bf16.msra.mxu0 %v10283
    %10354 = vmatprep.subr.bf16.mxu0 0
    %10355 = vmatpush1.bf16.msra.mxu0 %v10282
    %10356 = vmatprep.subr.bf16.mxu0 0
    %10357 = vmatpush1.bf16.msra.mxu0 %v10281
    %10358 = vmatprep.subr.bf16.mxu0 0
    %10359 = vmatpush1.bf16.msra.mxu0 %v10280
    %10360 = vmatprep.subr.bf16.mxu0 0
    %10361 = vmatpush2.bf16.msra.mxu0 %v10295
    %10362 = vmatprep.subr.bf16.mxu0 0
    %10363 = vmatpush2.bf16.msra.mxu0 %v10294
    %10364 = vmatprep.subr.bf16.mxu0 0
    %10365 = vmatpush2.bf16.msra.mxu0 %v10293
    %10366 = vmatprep.subr.bf16.mxu0 0
    %10367 = vmatpush2.bf16.msra.mxu0 %v10292
    %10368 = vmatprep.subr.bf16.mxu0 0
    %10369 = vmatpush2.bf16.msra.mxu0 %v10291
    %10370 = vmatprep.subr.bf16.mxu0 0
    %10371 = vmatpush2.bf16.msra.mxu0 %v10290
    %10372 = vmatprep.subr.bf16.mxu0 0
    %10373 = vmatpush2.bf16.msra.mxu0 %v10289
    %10374 = vmatprep.subr.bf16.mxu0 0
    %10375 = vmatpush2.bf16.msra.mxu0 %v10288
    %10376 = vmatprep.mubr.bf16.mxu0 %v10072
    %10377 = vmatmul.mubr.bf16.gmra.mxu0 %v10071
    %v10378 = vpop.f32.mrf.mxu0
    %v10379 = vadd.f32 0.0, %v10378
    %v10380 = vpop.f32.mrf.mxu0
    %v10381 = vpop.f32.mrf.mxu0
    %v10382 = vadd.f32 0.0, %v10381
    %v10383 = vpop.f32.mrf.mxu0
    %10384 = vmatprep.mubr.bf16.mxu0 %v10076
    %10385 = vmatmul.mubr.bf16.gmra.mxu0 %v10075
    %v10386 = vpop.f32.mrf.mxu0
    %v10387 = vadd.f32 0.0, %v10386
    %v10388 = vpop.f32.mrf.mxu0
    %v10389 = vpop.f32.mrf.mxu0
    %v10390 = vadd.f32 0.0, %v10389
    %v10391 = vpop.f32.mrf.mxu0
    %10392 = vmatprep.mubr.bf16.mxu0 %v10080
    %10393 = vmatmul.mubr.bf16.gmra.mxu0 %v10079
    %v10394 = vpop.f32.mrf.mxu0
    %v10395 = vadd.f32 0.0, %v10394
    %v10396 = vpop.f32.mrf.mxu0
    %v10397 = vpop.f32.mrf.mxu0
    %v10398 = vadd.f32 0.0, %v10397
    %v10399 = vpop.f32.mrf.mxu0
    %10400 = vmatprep.mubr.bf16.mxu0 %v10084
    %10401 = vmatmul.mubr.bf16.gmra.mxu0 %v10083
    %v10402 = vpop.f32.mrf.mxu0
    %v10403 = vadd.f32 0.0, %v10402
    %v10404 = vpop.f32.mrf.mxu0
    %v10405 = vpop.f32.mrf.mxu0
    %v10406 = vadd.f32 0.0, %v10405
    %v10407 = vpop.f32.mrf.mxu0
    %10408 = vdwg.mxu0
    %10409 = vmatprep.subr.bf16.mxu0 0
    %10410 = vmatpush1.bf16.msra.mxu0 %v10303
    %10411 = vmatprep.subr.bf16.mxu0 0
    %10412 = vmatpush1.bf16.msra.mxu0 %v10302
    %10413 = vmatprep.subr.bf16.mxu0 0
    %10414 = vmatpush1.bf16.msra.mxu0 %v10301
    %10415 = vmatprep.subr.bf16.mxu0 0
    %10416 = vmatpush1.bf16.msra.mxu0 %v10300
    %10417 = vmatprep.subr.bf16.mxu0 0
    %10418 = vmatpush1.bf16.msra.mxu0 %v10299
    %10419 = vmatprep.subr.bf16.mxu0 0
    %10420 = vmatpush1.bf16.msra.mxu0 %v10298
    %10421 = vmatprep.subr.bf16.mxu0 0
    %10422 = vmatpush1.bf16.msra.mxu0 %v10297
    %10423 = vmatprep.subr.bf16.mxu0 0
    %10424 = vmatpush1.bf16.msra.mxu0 %v10296
    %10425 = vmatprep.subr.bf16.mxu0 0
    %10426 = vmatpush2.bf16.msra.mxu0 %v10311
    %10427 = vmatprep.subr.bf16.mxu0 0
    %10428 = vmatpush2.bf16.msra.mxu0 %v10310
    %10429 = vmatprep.subr.bf16.mxu0 0
    %10430 = vmatpush2.bf16.msra.mxu0 %v10309
    %10431 = vmatprep.subr.bf16.mxu0 0
    %10432 = vmatpush2.bf16.msra.mxu0 %v10308
    %10433 = vmatprep.subr.bf16.mxu0 0
    %10434 = vmatpush2.bf16.msra.mxu0 %v10307
    %10435 = vmatprep.subr.bf16.mxu0 0
    %10436 = vmatpush2.bf16.msra.mxu0 %v10306
    %10437 = vmatprep.subr.bf16.mxu0 0
    %10438 = vmatpush2.bf16.msra.mxu0 %v10305
    %10439 = vmatprep.subr.bf16.mxu0 0
    %10440 = vmatpush2.bf16.msra.mxu0 %v10304
    %10441 = vmatprep.mubr.bf16.mxu0 %v10074
    %10442 = vmatmul.mubr.bf16.gmra.mxu0 %v10073
    %v10443 = vpop.f32.mrf.mxu0
    %v10444 = vadd.f32 %v10379, %v10443
    %v10445 = vpop.f32.mrf.mxu0
    %v10446 = vpop.f32.mrf.mxu0
    %v10447 = vadd.f32 %v10382, %v10446
    %v10448 = vpop.f32.mrf.mxu0
    %10449 = vmatprep.mubr.bf16.mxu0 %v10078
    %10450 = vmatmul.mubr.bf16.gmra.mxu0 %v10077
    %v10451 = vpop.f32.mrf.mxu0
    %v10452 = vadd.f32 %v10387, %v10451
    %v10453 = vpop.f32.mrf.mxu0
    %v10454 = vpop.f32.mrf.mxu0
    %v10455 = vadd.f32 %v10390, %v10454
    %v10456 = vpop.f32.mrf.mxu0
    %10457 = vmatprep.mubr.bf16.mxu0 %v10082
    %10458 = vmatmul.mubr.bf16.gmra.mxu0 %v10081
    %v10459 = vpop.f32.mrf.mxu0
    %v10460 = vadd.f32 %v10395, %v10459
    %v10461 = vpop.f32.mrf.mxu0
    %v10462 = vpop.f32.mrf.mxu0
    %v10463 = vadd.f32 %v10398, %v10462
    %v10464 = vpop.f32.mrf.mxu0
    %10465 = vmatprep.mubr.bf16.mxu0 %v10086
    %10466 = vmatmul.mubr.bf16.gmra.mxu0 %v10085
    %v10467 = vpop.f32.mrf.mxu0
    %v10468 = vadd.f32 %v10403, %v10467
    %v10469 = vpop.f32.mrf.mxu0
    %v10470 = vpop.f32.mrf.mxu0
    %v10471 = vadd.f32 %v10406, %v10470
    %v10472 = vpop.f32.mrf.mxu0
    %10473 = vdwg.mxu0
    %v10474 = vadd.f32 %v9417, %v10444
    %v10475 = vadd.f32 %v9418, %v10447
    %v10476 = vadd.f32 %v9419, %v10452
    %v10477 = vadd.f32 %v9420, %v10455
    %v10478 = vadd.f32 %v9421, %v10460
    %v10479 = vadd.f32 %v9422, %v10463
    %v10480 = vadd.f32 %v9423, %v10468
    %v10481 = vadd.f32 %v9424, %v10471
    %s10482 = scalar_lea.vmem %s69, 1
    %v10483 = vld [vmem:[%s10482] sm:$0x1]
    %v10485 = vlaneseq
    %v10486 = vshrl.u32 %v10485, 7
    %v10487 = vsub.s32 0, %v10486
    %v10488 = vrot.slane %v10483, %v10487
    %v10490 = vadd.f32 %v10474, %v10488
    %v10491 = vadd.f32 %v10475, %v10488
    %v10492 = vadd.f32 %v10476, %v10488
    %v10493 = vadd.f32 %v10477, %v10488
    %v10494 = vadd.f32 %v10478, %v10488
    %v10495 = vadd.f32 %v10479, %v10488
    %v10496 = vadd.f32 %v10480, %v10488
    %v10497 = vadd.f32 %v10481, %v10488
    %v10498 = vld [vmem:[#allocation35] sm:$0x1]
    %v10499 = vld [vmem:[#allocation37] sm:$0x1]
    %10500 = vadd.xlane.f32.xlu0 %v10490
    %v10501 = vpop.xlane.xlu0 %10500
    %10502 = vadd.xlane.f32.xlu0 %v10491
    %v10503 = vpop.xlane.xlu0 %10502
    %10504 = vadd.xlane.f32.xlu0 %v10492
    %v10505 = vpop.xlane.xlu0 %10504
    %10506 = vadd.xlane.f32.xlu0 %v10493
    %v10507 = vpop.xlane.xlu0 %10506
    %10508 = vadd.xlane.f32.xlu0 %v10494
    %v10509 = vpop.xlane.xlu0 %10508
    %10510 = vadd.xlane.f32.xlu0 %v10495
    %v10511 = vpop.xlane.xlu0 %10510
    %10512 = vadd.xlane.f32.xlu0 %v10496
    %v10513 = vpop.xlane.xlu0 %10512
    %10514 = vadd.xlane.f32.xlu0 %v10497
    %v10515 = vpop.xlane.xlu0 %10514
    %v10516 = vmul.f32 %v10501, %v4135
    %v10517 = vmul.f32 %v10503, %v4135
    %v10518 = vmul.f32 %v10505, %v4135
    %v10519 = vmul.f32 %v10507, %v4135
    %v10520 = vmul.f32 %v10509, %v4135
    %v10521 = vmul.f32 %v10511, %v4135
    %v10522 = vmul.f32 %v10513, %v4135
    %v10523 = vmul.f32 %v10515, %v4135
    %v10524 = vsub.f32 %v10490, %v10516
    %v10525 = vsub.f32 %v10491, %v10517
    %v10526 = vsub.f32 %v10492, %v10518
    %v10527 = vsub.f32 %v10493, %v10519
    %v10528 = vsub.f32 %v10494, %v10520
    %v10529 = vsub.f32 %v10495, %v10521
    %v10530 = vsub.f32 %v10496, %v10522
    %v10531 = vsub.f32 %v10497, %v10523
    %v10532 = vmul.f32 %v10524, %v10524
    %v10533 = vmul.f32 %v10525, %v10525
    %v10534 = vmul.f32 %v10526, %v10526
    %v10535 = vmul.f32 %v10527, %v10527
    %v10536 = vmul.f32 %v10528, %v10528
    %v10537 = vmul.f32 %v10529, %v10529
    %v10538 = vmul.f32 %v10530, %v10530
    %v10539 = vmul.f32 %v10531, %v10531
    %10540 = vadd.xlane.f32.xlu0 %v10532
    %v10541 = vpop.xlane.xlu0 %10540
    %10542 = vadd.xlane.f32.xlu0 %v10533
    %v10543 = vpop.xlane.xlu0 %10542
    %10544 = vadd.xlane.f32.xlu0 %v10534
    %v10545 = vpop.xlane.xlu0 %10544
    %10546 = vadd.xlane.f32.xlu0 %v10535
    %v10547 = vpop.xlane.xlu0 %10546
    %10548 = vadd.xlane.f32.xlu0 %v10536
    %v10549 = vpop.xlane.xlu0 %10548
    %10550 = vadd.xlane.f32.xlu0 %v10537
    %v10551 = vpop.xlane.xlu0 %10550
    %10552 = vadd.xlane.f32.xlu0 %v10538
    %v10553 = vpop.xlane.xlu0 %10552
    %10554 = vadd.xlane.f32.xlu0 %v10539
    %v10555 = vpop.xlane.xlu0 %10554
    %v10556 = vmul.f32 %v10541, %v4135
    %v10557 = vmul.f32 %v10543, %v4135
    %v10558 = vmul.f32 %v10545, %v4135
    %v10559 = vmul.f32 %v10547, %v4135
    %v10560 = vmul.f32 %v10549, %v4135
    %v10561 = vmul.f32 %v10551, %v4135
    %v10562 = vmul.f32 %v10553, %v4135
    %v10563 = vmul.f32 %v10555, %v4135
    %v10564 = vadd.f32 %v10556, 1e-05
    %v10565 = vadd.f32 %v10557, 1e-05
    %v10566 = vadd.f32 %v10558, 1e-05
    %v10567 = vadd.f32 %v10559, 1e-05
    %v10568 = vadd.f32 %v10560, 1e-05
    %v10569 = vadd.f32 %v10561, 1e-05
    %v10570 = vadd.f32 %v10562, 1e-05
    %v10571 = vadd.f32 %v10563, 1e-05
    %v10572 = vrsqrt.pop %v10564
    %v10573 = vrsqrt.pop %v10565
    %v10574 = vrsqrt.pop %v10566
    %v10575 = vrsqrt.pop %v10567
    %v10576 = vrsqrt.pop %v10568
    %v10577 = vrsqrt.pop %v10569
    %v10578 = vrsqrt.pop %v10570
    %v10579 = vrsqrt.pop %v10571
    %v10580 = vmul.f32 %v10524, %v10572
    %v10581 = vmul.f32 %v10525, %v10573
    %v10582 = vmul.f32 %v10526, %v10574
    %v10583 = vmul.f32 %v10527, %v10575
    %v10584 = vmul.f32 %v10528, %v10576
    %v10585 = vmul.f32 %v10529, %v10577
    %v10586 = vmul.f32 %v10530, %v10578
    %v10587 = vmul.f32 %v10531, %v10579
    %v10589 = vlaneseq
    %v10590 = vshrl.u32 %v10589, 7
    %v10591 = vsub.s32 0, %v10590
    %v10592 = vrot.slane %v10498, %v10591
    %v10594 = vmul.f32 %v10580, %v10592
    %v10595 = vmul.f32 %v10581, %v10592
    %v10596 = vmul.f32 %v10582, %v10592
    %v10597 = vmul.f32 %v10583, %v10592
    %v10598 = vmul.f32 %v10584, %v10592
    %v10599 = vmul.f32 %v10585, %v10592
    %v10600 = vmul.f32 %v10586, %v10592
    %v10601 = vmul.f32 %v10587, %v10592
    %v10603 = vlaneseq
    %v10604 = vshrl.u32 %v10603, 7
    %v10605 = vsub.s32 0, %v10604
    %v10606 = vrot.slane %v10499, %v10605
    %v10608 = vadd.f32 %v10594, %v10606
    %v10609 = vadd.f32 %v10595, %v10606
    %v10610 = vadd.f32 %v10596, %v10606
    %v10611 = vadd.f32 %v10597, %v10606
    %v10612 = vadd.f32 %v10598, %v10606
    %v10613 = vadd.f32 %v10599, %v10606
    %v10614 = vadd.f32 %v10600, %v10606
    %v10615 = vadd.f32 %v10601, %v10606
    %10616 = vst [vmem:[%s79] sm:$0xff] %v10608
    %10617 = vst [vmem:[%s79 + $0x8] sm:$0xff] %v10609
    %10618 = vst [vmem:[%s79 + $0x10] sm:$0xff] %v10610
    %10619 = vst [vmem:[%s79 + $0x18] sm:$0xff] %v10611
    %10620 = vst [vmem:[%s79 + $0x20] sm:$0xff] %v10612
    %10621 = vst [vmem:[%s79 + $0x28] sm:$0xff] %v10613
    %10622 = vst [vmem:[%s79 + $0x30] sm:$0xff] %v10614
    %10623 = vst [vmem:[%s79 + $0x38] sm:$0xff] %v10615
    %v10624 = vpack.c.bf16 %v10615, %v10614
    %v10625 = vld [vmem:[#allocation38] sm:$0xff]
    %v10626 = vld [vmem:[#allocation38 + $0x8] sm:$0xff]
    %v10627 = vld [vmem:[#allocation38 + $0x10] sm:$0xff]
    %v10628 = vld [vmem:[#allocation38 + $0x18] sm:$0xff]
    %v10629 = vld [vmem:[#allocation38 + $0x20] sm:$0xff]
    %v10630 = vld [vmem:[#allocation38 + $0x28] sm:$0xff]
    %v10631 = vld [vmem:[#allocation38 + $0x30] sm:$0xff]
    %v10632 = vld [vmem:[#allocation38 + $0x38] sm:$0xff]
    %v10633 = vld [vmem:[#allocation38 + $0x40] sm:$0xff]
    %v10634 = vld [vmem:[#allocation38 + $0x48] sm:$0xff]
    %v10635 = vld [vmem:[#allocation38 + $0x50] sm:$0xff]
    %v10636 = vld [vmem:[#allocation38 + $0x58] sm:$0xff]
    %v10637 = vld [vmem:[#allocation38 + $0x60] sm:$0xff]
    %v10638 = vld [vmem:[#allocation38 + $0x68] sm:$0xff]
    %v10639 = vld [vmem:[#allocation38 + $0x70] sm:$0xff]
    %v10640 = vld [vmem:[#allocation38 + $0x78] sm:$0xff]
    %v10641 = vld [vmem:[#allocation40] sm:$0x3]
    %v10643 = vlaneseq
    %v10644 = vshrl.u32 %v10643, 7
    %v10645 = vsub.s32 0, %v10644
    %v10646 = vrot.slane %v10641, %v10645
    %v10647 = vlaneseq
    %v10648 = vshrl.u32 %v10647, 7
    %v10649 = vsub.s32 1, %v10648
    %v10650 = vrot.slane %v10641, %v10649
    %v10669 = vunpack.c.l.b16 %v10625
    %v10670 = vunpack.c.h.b16 %v10625
    %v10671 = vunpack.c.l.b16 %v10626
    %v10672 = vunpack.c.h.b16 %v10626
    %v10673 = vunpack.c.l.b16 %v10627
    %v10674 = vunpack.c.h.b16 %v10627
    %v10675 = vunpack.c.l.b16 %v10628
    %v10676 = vunpack.c.h.b16 %v10628
    %v10677 = vunpack.c.l.b16 %v10629
    %v10678 = vunpack.c.h.b16 %v10629
    %v10679 = vunpack.c.l.b16 %v10630
    %v10680 = vunpack.c.h.b16 %v10630
    %v10681 = vunpack.c.l.b16 %v10631
    %v10682 = vunpack.c.h.b16 %v10631
    %v10683 = vunpack.c.l.b16 %v10632
    %v10684 = vunpack.c.h.b16 %v10632
    %v10685 = vunpack.c.l.b16 %v10633
    %v10686 = vunpack.c.h.b16 %v10633
    %v10687 = vunpack.c.l.b16 %v10634
    %v10688 = vunpack.c.h.b16 %v10634
    %v10689 = vunpack.c.l.b16 %v10635
    %v10690 = vunpack.c.h.b16 %v10635
    %v10691 = vunpack.c.l.b16 %v10636
    %v10692 = vunpack.c.h.b16 %v10636
    %v10693 = vunpack.c.l.b16 %v10637
    %v10694 = vunpack.c.h.b16 %v10637
    %v10695 = vunpack.c.l.b16 %v10638
    %v10696 = vunpack.c.h.b16 %v10638
    %v10697 = vunpack.c.l.b16 %v10639
    %v10698 = vunpack.c.h.b16 %v10639
    %v10699 = vunpack.c.l.b16 %v10640
    %v10700 = vunpack.c.h.b16 %v10640
    %v10701 = vpack.c.b16 %v10671, %v10669
    %v10702 = vpack.c.b16 %v10672, %v10670
    %v10703 = vpack.c.b16 %v10675, %v10673
    %v10704 = vpack.c.b16 %v10676, %v10674
    %v10705 = vpack.c.b16 %v10679, %v10677
    %v10706 = vpack.c.b16 %v10680, %v10678
    %v10707 = vpack.c.b16 %v10683, %v10681
    %v10708 = vpack.c.b16 %v10684, %v10682
    %v10709 = vpack.c.b16 %v10687, %v10685
    %v10710 = vpack.c.b16 %v10688, %v10686
    %v10711 = vpack.c.b16 %v10691, %v10689
    %v10712 = vpack.c.b16 %v10692, %v10690
    %v10713 = vpack.c.b16 %v10695, %v10693
    %v10714 = vpack.c.b16 %v10696, %v10694
    %v10715 = vpack.c.b16 %v10699, %v10697
    %v10716 = vpack.c.b16 %v10700, %v10698
    %10733 = vmatprep.subr.bf16.mxu0 %v10716
    %10734 = vmatpush1.bf16.msra.mxu0 %v10715
    %10735 = vmatprep.subr.bf16.mxu0 %v10714
    %10736 = vmatpush1.bf16.msra.mxu0 %v10713
    %10737 = vmatprep.subr.bf16.mxu0 %v10712
    %10738 = vmatpush1.bf16.msra.mxu0 %v10711
    %10739 = vmatprep.subr.bf16.mxu0 %v10710
    %10740 = vmatpush1.bf16.msra.mxu0 %v10709
    %10741 = vmatprep.subr.bf16.mxu0 %v10708
    %10742 = vmatpush1.bf16.msra.mxu0 %v10707
    %10743 = vmatprep.subr.bf16.mxu0 %v10706
    %10744 = vmatpush1.bf16.msra.mxu0 %v10705
    %10745 = vmatprep.subr.bf16.mxu0 %v10704
    %10746 = vmatpush1.bf16.msra.mxu0 %v10703
    %10747 = vmatprep.subr.bf16.mxu0 %v10702
    %10748 = vmatpush1.bf16.msra.mxu0 %v10701
    %10749 = vmatprep.subr.bf16.mxu0 0
    %10750 = vmatpush2.bf16.msra.mxu0 0
    %10751 = vmatprep.subr.bf16.mxu0 0
    %10752 = vmatpush2.bf16.msra.mxu0 0
    %10753 = vmatprep.subr.bf16.mxu0 0
    %10754 = vmatpush2.bf16.msra.mxu0 0
    %10755 = vmatprep.subr.bf16.mxu0 0
    %10756 = vmatpush2.bf16.msra.mxu0 0
    %10757 = vmatprep.subr.bf16.mxu0 0
    %10758 = vmatpush2.bf16.msra.mxu0 0
    %10759 = vmatprep.subr.bf16.mxu0 0
    %10760 = vmatpush2.bf16.msra.mxu0 0
    %10761 = vmatprep.subr.bf16.mxu0 0
    %10762 = vmatpush2.bf16.msra.mxu0 0
    %10763 = vmatprep.subr.bf16.mxu0 0
    %10764 = vmatpush2.bf16.msra.mxu0 0
    %10765 = vmatprep.mubr.bf16.mxu0 0
    %10766 = vmatmul.mubr.bf16.gmra.mxu0 %v10624
    %v10767 = vpop.f32.mrf.mxu0
    %v10768 = vadd.f32 %v10646, %v10767
    %v10769 = vpop.f32.mrf.mxu0
    %v10770 = vadd.f32 %v10650, %v10769
    %v10771 = vpop.f32.mrf.mxu0
    %v10772 = vadd.f32 %v10646, %v10771
    %v10773 = vpop.f32.mrf.mxu0
    %v10774 = vadd.f32 %v10650, %v10773
    %10775 = vdwg.mxu0
    %10776 = vst [vmem:[#allocation41] sm:$0xff] %v10768
    %10777 = vst [vmem:[#allocation41 + $0x8] sm:$0xff] %v10770
    %10778 = vst [vmem:[#allocation41 + $0x10] sm:$0xff] %v10772
    %10779 = vst [vmem:[#allocation41 + $0x18] sm:$0xff] %v10774
    // Predicated region
    $region258: #{multimodal_captioner.1} parent=1 // pred_check
      _
    $region259: #{multimodal_captioner.1} parent=1 // pred_check_branch
      %10781 = sbr.rel (0) target = $region261
    $region260: #{multimodal_captioner.1} parent=1 // pred_region
      _
    $region261: #{multimodal_captioner.1} parent=1 // pred_fallthru
      _
    // Predicated region
    $region262: #{multimodal_captioner.1} parent=1 // pred_check
      _
    $region263: #{multimodal_captioner.1} parent=1 // pred_check_branch
      %10783 = sbr.rel (0) target = $region265
    $region264: #{multimodal_captioner.1} parent=1 // pred_region
      %s10785 = ssub.s32 512, 512
      %10786 = vsyncadd [#allocation4], %s10785
      %s10787 = sshll.u32 [#allocation41], 4
      %s10788 = int_to_ptr.vmem [resolvable:$true] %s10787
      %10793 = dma.vmem_to_hbm [thread:$0]  %s10788, 512, %s81, [#allocation4], 256, 256, 16
    $region265: #{multimodal_captioner.1} parent=1 // pred_fallthru
      _
    // Predicated region
    $region266: #{multimodal_captioner.1} parent=1 // pred_check
      _
    $region267: #{multimodal_captioner.1} parent=1 // pred_check_branch
      %10795 = sbr.rel (0) target = $region269
    $region268: #{multimodal_captioner.1} parent=1 // pred_region
      _
    $region269: #{multimodal_captioner.1} parent=1 // pred_fallthru
      _
    // Predicated region
    $region270: #{multimodal_captioner.1} parent=1 // pred_check
      _
    $region271: #{multimodal_captioner.1} parent=1 // pred_check_branch
      %10797 = sbr.rel (0) target = $region273
    $region272: #{multimodal_captioner.1} parent=1 // pred_region
      %10798 = dma.done [#allocation4], 512
    $region273: #{multimodal_captioner.1} parent=1 // pred_fallthru
      _
    %10799 = vsyncpa [#allocation3], 1
    %10800 = vsyncpa [#allocation6], 1
    %10801 = vsyncpa [#allocation9], 1
    %10802 = vsyncpa [#allocation12], 1
    %10803 = vsyncpa [#allocation15], 1
    %10804 = vsyncpa [#allocation18], 1
    %10805 = vsyncpa [#allocation21], 1
    %10806 = vsyncpa [#allocation24], 1
    %10807 = vsyncpa [#allocation27], 1
    %10808 = vsyncpa [#allocation30], 1
    %10809 = vsyncpa [#allocation33], 1
    %10810 = vsyncpa [#allocation36], 1
    %10811 = vsyncpa [#allocation39], 1
    %10812 = vsyncpa [#allocation4], 1

</llo_original>
